<compile_context>
chip_gen: v5e
topology: v5e:2x2
jax: 0.10.0
libtpu: 0.0.40
codegen_flags: <defaults>
</compile_context>

<pallas_src>
import functools

import numpy as np
import jax
import jax.numpy as jnp
from jax.experimental import pallas as pl
from jax.experimental.pallas import tpu as pltpu


# ----------------------------------------------------------------------------- #
# Fused Global_block Pallas kernel
# ----------------------------------------------------------------------------- #
def _make_block_kernel(num_heads, head_dim, Wg, N, scale, *,
                       with_mask, fuse_ln, compute_dtype):
    C = num_heads * head_dim
    R = Wg * N
    inv_sqrt2 = np.float32(1.0 / np.sqrt(2.0))

    def kernel(*refs):
        it = iter(refs)
        x_ref = next(it)                              # (Wg, N, C) raw tokens
        sc_ref = None if fuse_ln else next(it)        # (Wg, N, C) shortcut (padded path)
        mask_ref = next(it) if with_mask else None    # (Wg, N, N) shift mask
        if fuse_ln:
            gamma_ref = next(it)                      # (1, C)
            beta_ref = next(it)                       # (1, C)
        qkv_w_ref = next(it)                          # (3, C, C)  (bf16)
        qkv_b_ref = next(it)                          # (3, 1, C)
        pf_w_ref = next(it)                           # (C, C)  folded proj@fc1 (bf16)
        pf_b_ref = next(it)                           # (1, C)  folded bias
        bias_ref = next(it)                           # (H, N, N) rel-pos bias
        o_ref = next(it)                              # (Wg, N, C)

        x2 = x_ref[...].astype(jnp.float32).reshape(R, C)
        if fuse_ln:
            # LayerNorm fused in-kernel (per-token, commutes with windowing).
            sc = x2
            mu = jnp.mean(x2, axis=-1, keepdims=True)
            var = jnp.mean((x2 - mu) ** 2, axis=-1, keepdims=True)
            xn = (x2 - mu) * jax.lax.rsqrt(var + 1e-5)
            xn = xn * gamma_ref[...] + beta_ref[...]
        else:
            xn = x2
            sc = sc_ref[...].astype(jnp.float32).reshape(R, C)

        xn_c = xn.astype(compute_dtype)
        # Big token-batched matmuls (R x C x C) feed the MXU large tiles.
        q = (jnp.dot(xn_c, qkv_w_ref[0], preferred_element_type=jnp.float32)
             + qkv_b_ref[0]) * scale
        k = jnp.dot(xn_c, qkv_w_ref[1],
                    preferred_element_type=jnp.float32) + qkv_b_ref[1]
        v = jnp.dot(xn_c, qkv_w_ref[2],
                    preferred_element_type=jnp.float32) + qkv_b_ref[2]
        q = q.reshape(Wg, N, C).astype(compute_dtype)
        k = k.reshape(Wg, N, C).astype(compute_dtype)
        v = v.reshape(Wg, N, C).astype(compute_dtype)

        rel_bias = bias_ref[...]                      # (H, N, N) f32
        if with_mask:
            mask = mask_ref[...]                      # (Wg, N, N) f32

        outs = []
        for h in range(num_heads):                    # static loop over heads
            sl = slice(h * head_dim, (h + 1) * head_dim)
            qh, kh, vh = q[:, :, sl], k[:, :, sl], v[:, :, sl]
            # scores, batched over the Wg windows: (Wg, N, N)
            s = jax.lax.dot_general(
                qh, kh, (((2,), (2,)), ((0,), (0,))),
                preferred_element_type=jnp.float32)
            s = s + rel_bias[h][None]
            if with_mask:
                s = s + mask
            # softmax in f32; divide moved to the EUP via approx reciprocal.
            s = s - jnp.max(s, axis=-1, keepdims=True)
            p = jnp.exp(s)
            p = p * pl.reciprocal(jnp.sum(p, axis=-1, keepdims=True), approx=True)
            outs.append(jax.lax.dot_general(
                p.astype(compute_dtype), vh, (((2,), (1,)), ((0,), (0,))),
                preferred_element_type=jnp.float32))  # (Wg, N, hd)

        attn = jnp.concatenate(outs, axis=-1).reshape(R, C)
        # Single folded (proj ∘ fc1) matmul, then exact GELU and residual add.
        hpre = jnp.dot(attn.astype(compute_dtype), pf_w_ref[...],
                       preferred_element_type=jnp.float32) + pf_b_ref[...]
        gelu = 0.5 * hpre * (1.0 + jax.lax.erf(hpre * inv_sqrt2))   # exact GELU
        out = sc + gelu
        o_ref[...] = out.reshape(Wg, N, C).astype(o_ref.dtype)

    return kernel


def _choose_window_batch(nWB, nW, N, target_rows=1024):
    """Largest Wg dividing nWB with Wg|nW or nW|Wg and Wg*N <= target_rows."""
    best = 1
    for wg in range(1, nWB + 1):
        if nWB % wg:
            continue
        if wg % nW != 0 and nW % wg != 0:
            continue
        if wg * N <= target_rows:
            best = wg
    return best


def fused_global_block(x_windows, mask, p, num_heads, *, shortcut_windows=None,
                       compute_dtype=jnp.bfloat16, target_rows=1024):
    """One fused Global_block over windowed tokens.

    x_windows: (nWB, N, C) raw (pre-LN) windowed tokens (also the shortcut when
               shortcut_windows is None).
    mask:      (nW, N, N) shift mask, or None for un-shifted blocks.
    """
    nWB, N, C = x_windows.shape
    head_dim = C // num_heads
    scale = head_dim ** (-0.5)
    fuse_ln = shortcut_windows is None
    with_mask = mask is not None
    nW = mask.shape[0] if with_mask else 1
    Wg = _choose_window_batch(nWB, nW, N, target_rows)
    grid = (nWB // Wg,)
    cd = compute_dtype

    # Fold proj (C->C) and fc1 (C->C): in the reference they are separated only
    # by per-token layout ops and zero-rate dropouts, so
    #   fc1(proj(z)) = z @ (Wp @ Wf) + (bp @ Wf + bf).
    # Folded in f32; saves one (R,C)x(C,C) matmul per block.
    pf_w = jnp.dot(p["proj_w"], p["fc1_w"], preferred_element_type=jnp.float32)
    pf_b = (jnp.dot(p["proj_b"].reshape(1, C), p["fc1_w"],
                    preferred_element_type=jnp.float32)
            + p["fc1_b"].reshape(1, C))

    in_specs = [pl.BlockSpec((Wg, N, C), lambda g: (g, 0, 0))]
    args = [x_windows]
    if not fuse_ln:
        in_specs.append(pl.BlockSpec((Wg, N, C), lambda g: (g, 0, 0)))
        args.append(shortcut_windows)
    if with_mask:
        if Wg % nW == 0:
            # one (tiny, Wg-sized) mask block shared by every grid step
            m_in = mask if Wg == nW else jnp.tile(mask, (Wg // nW, 1, 1))
            in_specs.append(pl.BlockSpec((Wg, N, N), lambda g: (0, 0, 0)))
        else:  # nW % Wg == 0: pick the matching mask slice via index_map
            m_in = mask
            nblk = nW // Wg
            in_specs.append(
                pl.BlockSpec((Wg, N, N), lambda g: (g % nblk, 0, 0)))
        args.append(m_in)
    if fuse_ln:
        in_specs += [pl.BlockSpec((1, C), lambda g: (0, 0)),
                     pl.BlockSpec((1, C), lambda g: (0, 0))]
        args += [p["norm1_g"].reshape(1, C), p["norm1_b"].reshape(1, C)]
    in_specs += [
        pl.BlockSpec((3, C, C), lambda g: (0, 0, 0)),
        pl.BlockSpec((3, 1, C), lambda g: (0, 0, 0)),
        pl.BlockSpec((C, C), lambda g: (0, 0)),
        pl.BlockSpec((1, C), lambda g: (0, 0)),
        pl.BlockSpec((num_heads, N, N), lambda g: (0, 0, 0)),
    ]
    args += [p["qkv_w"].astype(cd), p["qkv_b"].reshape(3, 1, C),
             pf_w.astype(cd), pf_b, p["rel_bias"]]

    kernel = _make_block_kernel(num_heads, head_dim, Wg, N, scale,
                                with_mask=with_mask, fuse_ln=fuse_ln,
                                compute_dtype=cd)
    return pl.pallas_call(
        kernel,
        out_shape=jax.ShapeDtypeStruct((nWB, N, C), x_windows.dtype),
        grid=grid,
        in_specs=in_specs,
        out_specs=pl.BlockSpec((Wg, N, C), lambda g: (g, 0, 0)),
        compiler_params=pltpu.CompilerParams(
            dimension_semantics=("parallel",)),   # window batches independent
    )(*args)


# ----------------------------------------------------------------------------- #
# JAX glue: window partition / reverse, masks, params
# ----------------------------------------------------------------------------- #
def _layernorm_jnp(x, gamma, beta, eps=1e-5):
    mu = jnp.mean(x, axis=-1, keepdims=True)
    var = jnp.mean((x - mu) ** 2, axis=-1, keepdims=True)
    return (x - mu) * jax.lax.rsqrt(var + eps) * gamma + beta


def window_partition(x, M):
    B, H, W, C = x.shape
    x = x.reshape(B, H // M, M, W // M, M, C)
    return jnp.transpose(x, (0, 1, 3, 2, 4, 5)).reshape(-1, M, M, C)


def window_reverse(windows, M, H, W):
    B = windows.shape[0] // ((H // M) * (W // M))
    x = windows.reshape(B, H // M, W // M, M, M, -1)
    return jnp.transpose(x, (0, 1, 3, 2, 4, 5)).reshape(B, H, W, -1)


def window_partition_np(x, M):
    B, H, W, C = x.shape
    x = x.reshape(B, H // M, M, W // M, M, C)
    return x.transpose(0, 1, 3, 2, 4, 5).reshape(-1, M, M, C)


def create_mask(H, W, window_size, shift_size):
    Hp = int(np.ceil(H / window_size)) * window_size
    Wp = int(np.ceil(W / window_size)) * window_size
    img_mask = np.zeros((1, Hp, Wp, 1), dtype=np.float32)
    h_slices = (slice(0, -window_size), slice(-window_size, -shift_size),
                slice(-shift_size, None))
    w_slices = (slice(0, -window_size), slice(-window_size, -shift_size),
                slice(-shift_size, None))
    cnt = 0
    for h in h_slices:
        for w in w_slices:
            img_mask[:, h, w, :] = cnt
            cnt += 1
    mask_windows = window_partition_np(img_mask, window_size)
    mask_windows = mask_windows.reshape(-1, window_size * window_size)
    attn_mask = mask_windows[:, None, :] - mask_windows[:, :, None]
    attn_mask = np.where(attn_mask != 0, -100.0, 0.0).astype(np.float32)
    return jnp.asarray(attn_mask)            # (nW, N, N)


def compute_rel_index(M):
    coords = np.stack(np.meshgrid(np.arange(M), np.arange(M), indexing="ij"))
    coords_flatten = coords.reshape(2, -1)
    rel = coords_flatten[:, :, None] - coords_flatten[:, None, :]
    rel = rel.transpose(1, 2, 0).copy()
    rel[..., 0] += M - 1
    rel[..., 1] += M - 1
    rel[..., 0] *= 2 * M - 1
    return rel.sum(-1)                        # (N, N)


def init_params(key, dim, depth, num_heads, window_size):
    M = window_size
    N = M * M
    rel_index = compute_rel_index(M)
    blocks = []
    for _ in range(depth):
        key, k0, k1, k2, k3 = jax.random.split(key, 5)
        table = jax.random.normal(
            k0, ((2 * M - 1) * (2 * M - 1), num_heads), jnp.float32) * 0.02
        rel_bias = jnp.transpose(
            table[rel_index.reshape(-1)].reshape(N, N, num_heads), (2, 0, 1))
        blocks.append(dict(
            norm1_g=jnp.ones((dim,), jnp.float32),
            norm1_b=jnp.zeros((dim,), jnp.float32),
            qkv_w=jax.random.normal(k1, (3, dim, dim), jnp.float32) * 0.02,
            qkv_b=jnp.zeros((3, dim), jnp.float32),
            proj_w=jax.random.normal(k2, (dim, dim), jnp.float32) * 0.02,
            proj_b=jnp.zeros((dim,), jnp.float32),
            fc1_w=jax.random.normal(k3, (dim, dim), jnp.float32) * 0.02,
            fc1_b=jnp.zeros((dim,), jnp.float32),
            rel_bias=rel_bias,
        ))
    return {"blocks": blocks}


def global_block_forward(x, H, W, p, shift_size, window_size, num_heads,
                         attn_mask, compute_dtype=jnp.bfloat16):
    B, L, C = x.shape
    M = window_size
    x_sp = x.reshape(B, H, W, C)

    pad_r = (M - W % M) % M
    pad_b = (M - H % M) % M
    if pad_r or pad_b:
        # TODO(synk): padded path keeps LayerNorm outside the fused kernel (it
        # must run before zero padding to match the reference exactly).
        xn = _layernorm_jnp(x_sp, p["norm1_g"], p["norm1_b"])
        xn = jnp.pad(xn, ((0, 0), (0, pad_b), (0, pad_r), (0, 0)))
        sc = jnp.pad(x_sp, ((0, 0), (0, pad_b), (0, pad_r), (0, 0)))
    else:
        xn = x_sp
        sc = None
    Hp, Wp = H + pad_b, W + pad_r

    if shift_size > 0:
        xn = jnp.roll(xn, (-shift_size, -shift_size), (1, 2))
        if sc is not None:
            sc = jnp.roll(sc, (-shift_size, -shift_size), (1, 2))
        mask = attn_mask
    else:
        mask = None                      # un-shifted block: no mask input at all

    xw = window_partition(xn, M).reshape(-1, M * M, C)
    scw = (window_partition(sc, M).reshape(-1, M * M, C)
           if sc is not None else None)

    ow = fused_global_block(xw, mask, p, num_heads,
                            shortcut_windows=scw, compute_dtype=compute_dtype)

    ow = ow.reshape(-1, M, M, C)
    out = window_reverse(ow, M, Hp, Wp)
    if shift_size > 0:
        out = jnp.roll(out, (shift_size, shift_size), (1, 2))
    if pad_r or pad_b:
        out = out[:, :H, :W, :]
    return out.reshape(B, L, C)


@functools.partial(jax.jit, static_argnames=("H", "W", "window_size", "num_heads"))
def _basic_layer_impl(x, params, *, H, W, window_size, num_heads):
    shift_size = window_size // 2
    attn_mask = create_mask(H, W, window_size, shift_size)
    for i, blk in enumerate(params["blocks"]):
        s = 0 if i % 2 == 0 else shift_size
        x = global_block_forward(x, H, W, blk, s, window_size, num_heads, attn_mask)
    return x


def basic_layer_forward(x, H, W, params, window_size, num_heads):
    # downsample=None configuration
    # TODO(synk): PatchMerging downsample variant not implemented (downsample=None path only).
    x = _basic_layer_impl(x, params, H=H, W=W,
                          window_size=window_size, num_heads=num_heads)
    return x, H, W


# ----------------------------------------------------------------------------- #
# Pure-JAX reference (mirrors the PyTorch forward op-for-op, all f32)
# ----------------------------------------------------------------------------- #
def _global_block_ref(x, H, W, p, shift_size, window_size, num_heads, attn_mask):
    B, L, C = x.shape
    M = window_size
    hd = C // num_heads
    scale = hd ** (-0.5)
    shortcut = x
    xn = _layernorm_jnp(x, p["norm1_g"], p["norm1_b"]).reshape(B, H, W, C)
    pad_r = (M - W % M) % M
    pad_b = (M - H % M) % M
    xn = jnp.pad(xn, ((0, 0), (0, pad_b), (0, pad_r), (0, 0)))
    Hp, Wp = H + pad_b, W + pad_r
    if shift_size > 0:
        xn = jnp.roll(xn, (-shift_size, -shift_size), (1, 2))
        mask = attn_mask
    else:
        mask = None
    xw = window_partition(xn, M).reshape(-1, M * M, C)
    B_, N, _ = xw.shape
    q = xw @ p["qkv_w"][0] + p["qkv_b"][0]
    k = xw @ p["qkv_w"][1] + p["qkv_b"][1]
    v = xw @ p["qkv_w"][2] + p["qkv_b"][2]
    q = (q * scale).reshape(B_, N, num_heads, hd).transpose(0, 2, 1, 3)
    k = k.reshape(B_, N, num_heads, hd).transpose(0, 2, 1, 3)
    v = v.reshape(B_, N, num_heads, hd).transpose(0, 2, 1, 3)
    attn = q @ jnp.swapaxes(k, -2, -1) + p["rel_bias"][None]
    if mask is not None:
        nW = mask.shape[0]
        attn = attn.reshape(B_ // nW, nW, num_heads, N, N) + mask[None, :, None]
        attn = attn.reshape(B_, num_heads, N, N)
    attn = jax.nn.softmax(attn, axis=-1)
    out = (attn @ v).transpose(0, 2, 1, 3).reshape(B_, N, C)
    out = out @ p["proj_w"] + p["proj_b"]
    out = out.reshape(-1, M, M, C)
    xr = window_reverse(out, M, Hp, Wp)
    if shift_size > 0:
        xr = jnp.roll(xr, (shift_size, shift_size), (1, 2))
    xr = xr[:, :H, :W, :].reshape(B, H * W, C)
    xr = xr @ p["fc1_w"] + p["fc1_b"]
    xr = 0.5 * xr * (1.0 + jax.lax.erf(xr / np.sqrt(2.0)))
    return shortcut + xr


def basic_layer_ref(x, H, W, params, window_size, num_heads):
    shift_size = window_size // 2
    attn_mask = create_mask(H, W, window_size, shift_size)
    for i, blk in enumerate(params["blocks"]):
        s = 0 if i % 2 == 0 else shift_size
        x = _global_block_ref(x, H, W, blk, s, window_size, num_heads, attn_mask)
    return x


# ----------------------------------------------------------------------------- #
if __name__ == "__main__":
    B, H, W, C = 2, 8, 8, 32
    depth, num_heads, window_size = 2, 4, 4

    key = jax.random.PRNGKey(0)
    kx, kp = jax.random.split(key)
    x = jax.random.normal(kx, (B, H * W, C), jnp.float32)
    params = init_params(kp, C, depth, num_heads, window_size)

    out, Ho, Wo = basic_layer_forward(x, H, W, params, window_size, num_heads)
    out = jax.block_until_ready(out)
    assert out.shape == (B, H * W, C) and (Ho, Wo) == (H, W)
    assert bool(jnp.all(jnp.isfinite(out)))

    # Correctness sanity-check against the pure-JAX (f32) reference.
    ref = basic_layer_ref(x, H, W, params, window_size, num_heads)
    err = float(jnp.max(jnp.abs(out - ref)))
    assert err < 1e-1, f"max abs error vs reference: {err}"
    print("KERNEL_OK")
</pallas_src>

<mosaic_0001>
module attributes {stable_mosaic.version = 11 : i64} {
  func.func @kernel(%arg0: i32, %arg1: memref<8x16x32xf32, #tpu.memory_space<vmem>>, %arg2: memref<1x32xf32, #tpu.memory_space<vmem>>, %arg3: memref<1x32xf32, #tpu.memory_space<vmem>>, %arg4: memref<3x32x32xbf16, #tpu.memory_space<vmem>>, %arg5: memref<3x1x32xf32, #tpu.memory_space<vmem>>, %arg6: memref<32x32xbf16, #tpu.memory_space<vmem>>, %arg7: memref<1x32xf32, #tpu.memory_space<vmem>>, %arg8: memref<4x16x16xf32, #tpu.memory_space<vmem>>, %arg9: memref<8x16x32xf32, #tpu.memory_space<vmem>>) attributes {dimension_semantics = [#tpu.dimension_semantics<parallel>], iteration_bounds = array<i64: 1>, scalar_prefetch = 0 : i64, scratch_operands = 0 : i64, tpu.core_type = #tpu.core_type<tc>, window_params = [{transform_indices = @transform_0, window_bounds = array<i64: 8, 16, 32>}, {pipeline_mode = #tpu.pipeline_mode<synchronous>, transform_indices = @transform_1, window_bounds = array<i64: 1, 32>}, {pipeline_mode = #tpu.pipeline_mode<synchronous>, transform_indices = @transform_2, window_bounds = array<i64: 1, 32>}, {pipeline_mode = #tpu.pipeline_mode<synchronous>, transform_indices = @transform_3, window_bounds = array<i64: 3, 32, 32>}, {pipeline_mode = #tpu.pipeline_mode<synchronous>, transform_indices = @transform_4, window_bounds = array<i64: 3, 1, 32>}, {pipeline_mode = #tpu.pipeline_mode<synchronous>, transform_indices = @transform_5, window_bounds = array<i64: 32, 32>}, {pipeline_mode = #tpu.pipeline_mode<synchronous>, transform_indices = @transform_6, window_bounds = array<i64: 1, 32>}, {pipeline_mode = #tpu.pipeline_mode<synchronous>, transform_indices = @transform_7, window_bounds = array<i64: 4, 16, 16>}, {transform_indices = @transform_8, window_bounds = array<i64: 8, 16, 32>}]} {
    %c0 = arith.constant 0 : index
    %c0_0 = arith.constant 0 : index
    %c0_1 = arith.constant 0 : index
    %0 = vector.load %arg1[%c0, %c0_0, %c0_1] : memref<8x16x32xf32, #tpu.memory_space<vmem>>, vector<8x16x32xf32>
    %1 = vector.shape_cast %0 : vector<8x16x32xf32> to vector<128x32xf32>
    %cst = arith.constant dense<0.000000e+00> : vector<128xf32>
    %2 = vector.multi_reduction <add>, %1, %cst [1] : vector<128x32xf32> to vector<128xf32>
    %3 = vector.shape_cast %2 : vector<128xf32> to vector<128x1xf32>
    %cst_2 = arith.constant 3.200000e+01 : f32
    %4 = vector.broadcast %cst_2 : f32 to vector<128x1xf32>
    %5 = arith.divf %3, %4 : vector<128x1xf32>
    %6 = vector.broadcast %5 : vector<128x1xf32> to vector<128x32xf32>
    %7 = arith.subf %1, %6 : vector<128x32xf32>
    %8 = arith.mulf %7, %7 : vector<128x32xf32>
    %cst_3 = arith.constant dense<0.000000e+00> : vector<128xf32>
    %9 = vector.multi_reduction <add>, %8, %cst_3 [1] : vector<128x32xf32> to vector<128xf32>
    %10 = vector.shape_cast %9 : vector<128xf32> to vector<128x1xf32>
    %cst_4 = arith.constant 3.200000e+01 : f32
    %11 = vector.broadcast %cst_4 : f32 to vector<128x1xf32>
    %12 = arith.divf %10, %11 : vector<128x1xf32>
    %13 = vector.broadcast %5 : vector<128x1xf32> to vector<128x32xf32>
    %14 = arith.subf %1, %13 : vector<128x32xf32>
    %cst_5 = arith.constant 9.99999974E-6 : f32
    %15 = vector.broadcast %cst_5 : f32 to vector<128x1xf32>
    %16 = arith.addf %12, %15 : vector<128x1xf32>
    %17 = math.rsqrt %16 : vector<128x1xf32>
    %18 = vector.broadcast %17 : vector<128x1xf32> to vector<128x32xf32>
    %19 = arith.mulf %14, %18 : vector<128x32xf32>
    %c0_6 = arith.constant 0 : index
    %c0_7 = arith.constant 0 : index
    %20 = vector.load %arg2[%c0_6, %c0_7] : memref<1x32xf32, #tpu.memory_space<vmem>>, vector<1x32xf32>
    %21 = vector.broadcast %20 : vector<1x32xf32> to vector<128x32xf32>
    %22 = arith.mulf %19, %21 : vector<128x32xf32>
    %c0_8 = arith.constant 0 : index
    %c0_9 = arith.constant 0 : index
    %23 = vector.load %arg3[%c0_8, %c0_9] : memref<1x32xf32, #tpu.memory_space<vmem>>, vector<1x32xf32>
    %24 = vector.broadcast %23 : vector<1x32xf32> to vector<128x32xf32>
    %25 = arith.addf %22, %24 : vector<128x32xf32>
    %26 = arith.truncf %25 : vector<128x32xf32> to vector<128x32xbf16>
    %c0_10 = arith.constant 0 : index
    %c0_11 = arith.constant 0 : index
    %c0_12 = arith.constant 0 : index
    %27 = vector.load %arg4[%c0_10, %c0_11, %c0_12] : memref<3x32x32xbf16, #tpu.memory_space<vmem>>, vector<1x32x32xbf16>
    %28 = vector.shape_cast %27 : vector<1x32x32xbf16> to vector<32x32xbf16>
    %cst_13 = arith.constant dense<0.000000e+00> : vector<128x32xf32>
    %29 = tpu.matmul %26, %28, %cst_13 {dimension_numbers = #tpu.dot_dimension_numbers<[1], [0], [0], [1], [0, 0, 1, 1], [], []>} : vector<128x32xbf16>, vector<32x32xbf16>, vector<128x32xf32> -> vector<128x32xf32>
    %c0_14 = arith.constant 0 : index
    %c0_15 = arith.constant 0 : index
    %c0_16 = arith.constant 0 : index
    %30 = vector.load %arg5[%c0_14, %c0_15, %c0_16] : memref<3x1x32xf32, #tpu.memory_space<vmem>>, vector<1x1x32xf32>
    %31 = vector.shape_cast %30 : vector<1x1x32xf32> to vector<1x32xf32>
    %32 = vector.broadcast %31 : vector<1x32xf32> to vector<128x32xf32>
    %33 = arith.addf %29, %32 : vector<128x32xf32>
    %cst_17 = arith.constant 0.353553385 : f32
    %34 = vector.broadcast %cst_17 : f32 to vector<128x32xf32>
    %35 = arith.mulf %33, %34 : vector<128x32xf32>
    %c1 = arith.constant 1 : index
    %c0_18 = arith.constant 0 : index
    %c0_19 = arith.constant 0 : index
    %36 = vector.load %arg4[%c1, %c0_18, %c0_19] : memref<3x32x32xbf16, #tpu.memory_space<vmem>>, vector<1x32x32xbf16>
    %37 = vector.shape_cast %36 : vector<1x32x32xbf16> to vector<32x32xbf16>
    %cst_20 = arith.constant dense<0.000000e+00> : vector<128x32xf32>
    %38 = tpu.matmul %26, %37, %cst_20 {dimension_numbers = #tpu.dot_dimension_numbers<[1], [0], [0], [1], [0, 0, 1, 1], [], []>} : vector<128x32xbf16>, vector<32x32xbf16>, vector<128x32xf32> -> vector<128x32xf32>
    %c1_21 = arith.constant 1 : index
    %c0_22 = arith.constant 0 : index
    %c0_23 = arith.constant 0 : index
    %39 = vector.load %arg5[%c1_21, %c0_22, %c0_23] : memref<3x1x32xf32, #tpu.memory_space<vmem>>, vector<1x1x32xf32>
    %40 = vector.shape_cast %39 : vector<1x1x32xf32> to vector<1x32xf32>
    %41 = vector.broadcast %40 : vector<1x32xf32> to vector<128x32xf32>
    %42 = arith.addf %38, %41 : vector<128x32xf32>
    %c2 = arith.constant 2 : index
    %c0_24 = arith.constant 0 : index
    %c0_25 = arith.constant 0 : index
    %43 = vector.load %arg4[%c2, %c0_24, %c0_25] : memref<3x32x32xbf16, #tpu.memory_space<vmem>>, vector<1x32x32xbf16>
    %44 = vector.shape_cast %43 : vector<1x32x32xbf16> to vector<32x32xbf16>
    %cst_26 = arith.constant dense<0.000000e+00> : vector<128x32xf32>
    %45 = tpu.matmul %26, %44, %cst_26 {dimension_numbers = #tpu.dot_dimension_numbers<[1], [0], [0], [1], [0, 0, 1, 1], [], []>} : vector<128x32xbf16>, vector<32x32xbf16>, vector<128x32xf32> -> vector<128x32xf32>
    %c2_27 = arith.constant 2 : index
    %c0_28 = arith.constant 0 : index
    %c0_29 = arith.constant 0 : index
    %46 = vector.load %arg5[%c2_27, %c0_28, %c0_29] : memref<3x1x32xf32, #tpu.memory_space<vmem>>, vector<1x1x32xf32>
    %47 = vector.shape_cast %46 : vector<1x1x32xf32> to vector<1x32xf32>
    %48 = vector.broadcast %47 : vector<1x32xf32> to vector<128x32xf32>
    %49 = arith.addf %45, %48 : vector<128x32xf32>
    %50 = vector.shape_cast %35 : vector<128x32xf32> to vector<8x16x32xf32>
    %51 = arith.truncf %50 : vector<8x16x32xf32> to vector<8x16x32xbf16>
    %52 = vector.shape_cast %42 : vector<128x32xf32> to vector<8x16x32xf32>
    %53 = arith.truncf %52 : vector<8x16x32xf32> to vector<8x16x32xbf16>
    %54 = vector.shape_cast %49 : vector<128x32xf32> to vector<8x16x32xf32>
    %55 = arith.truncf %54 : vector<8x16x32xf32> to vector<8x16x32xbf16>
    %c0_30 = arith.constant 0 : index
    %c0_31 = arith.constant 0 : index
    %c0_32 = arith.constant 0 : index
    %56 = vector.load %arg8[%c0_30, %c0_31, %c0_32] : memref<4x16x16xf32, #tpu.memory_space<vmem>>, vector<4x16x16xf32>
    %57 = vector.extract_strided_slice %51 {offsets = [0, 0, 0], sizes = [8, 16, 8], strides = [1, 1, 1]} : vector<8x16x32xbf16> to vector<8x16x8xbf16>
    %58 = vector.extract_strided_slice %53 {offsets = [0, 0, 0], sizes = [8, 16, 8], strides = [1, 1, 1]} : vector<8x16x32xbf16> to vector<8x16x8xbf16>
    %59 = vector.extract_strided_slice %55 {offsets = [0, 0, 0], sizes = [8, 16, 8], strides = [1, 1, 1]} : vector<8x16x32xbf16> to vector<8x16x8xbf16>
    %cst_33 = arith.constant dense<0.000000e+00> : vector<8x16x16xf32>
    %60 = tpu.matmul %57, %58, %cst_33 {dimension_numbers = #tpu.dot_dimension_numbers<[2], [2], [1], [1], [0, 0, 0, 1, 1, 1], [0], [0]>} : vector<8x16x8xbf16>, vector<8x16x8xbf16>, vector<8x16x16xf32> -> vector<8x16x16xf32>
    %61 = vector.extract_strided_slice %56 {offsets = [0, 0, 0], sizes = [1, 16, 16], strides = [1, 1, 1]} : vector<4x16x16xf32> to vector<1x16x16xf32>
    %62 = vector.shape_cast %61 : vector<1x16x16xf32> to vector<16x16xf32>
    %63 = vector.shape_cast %62 : vector<16x16xf32> to vector<1x16x16xf32>
    %64 = vector.broadcast %63 : vector<1x16x16xf32> to vector<8x16x16xf32>
    %65 = arith.addf %60, %64 : vector<8x16x16xf32>
    %cst_34 = arith.constant dense<0xFF800000> : vector<8x16xf32>
    %66 = vector.multi_reduction <maximumf>, %65, %cst_34 [2] : vector<8x16x16xf32> to vector<8x16xf32>
    %67 = vector.shape_cast %66 : vector<8x16xf32> to vector<8x16x1xf32>
    %68 = vector.broadcast %67 : vector<8x16x1xf32> to vector<8x16x16xf32>
    %69 = arith.subf %65, %68 : vector<8x16x16xf32>
    %70 = math.exp %69 : vector<8x16x16xf32>
    %cst_35 = arith.constant dense<0.000000e+00> : vector<8x16xf32>
    %71 = vector.multi_reduction <add>, %70, %cst_35 [2] : vector<8x16x16xf32> to vector<8x16xf32>
    %72 = vector.shape_cast %71 : vector<8x16xf32> to vector<8x16x1xf32>
    %73 = tpu.reciprocal %72 {approx = true} : vector<8x16x1xf32> -> vector<8x16x1xf32>
    %74 = vector.broadcast %73 : vector<8x16x1xf32> to vector<8x16x16xf32>
    %75 = arith.mulf %70, %74 : vector<8x16x16xf32>
    %76 = arith.truncf %75 : vector<8x16x16xf32> to vector<8x16x16xbf16>
    %cst_36 = arith.constant dense<0.000000e+00> : vector<8x16x8xf32>
    %77 = tpu.matmul %76, %59, %cst_36 {dimension_numbers = #tpu.dot_dimension_numbers<[2], [1], [1], [2], [0, 0, 0, 1, 1, 2], [0], [0]>} : vector<8x16x16xbf16>, vector<8x16x8xbf16>, vector<8x16x8xf32> -> vector<8x16x8xf32>
    %78 = vector.extract_strided_slice %51 {offsets = [0, 0, 8], sizes = [8, 16, 8], strides = [1, 1, 1]} : vector<8x16x32xbf16> to vector<8x16x8xbf16>
    %79 = vector.extract_strided_slice %53 {offsets = [0, 0, 8], sizes = [8, 16, 8], strides = [1, 1, 1]} : vector<8x16x32xbf16> to vector<8x16x8xbf16>
    %80 = vector.extract_strided_slice %55 {offsets = [0, 0, 8], sizes = [8, 16, 8], strides = [1, 1, 1]} : vector<8x16x32xbf16> to vector<8x16x8xbf16>
    %cst_37 = arith.constant dense<0.000000e+00> : vector<8x16x16xf32>
    %81 = tpu.matmul %78, %79, %cst_37 {dimension_numbers = #tpu.dot_dimension_numbers<[2], [2], [1], [1], [0, 0, 0, 1, 1, 1], [0], [0]>} : vector<8x16x8xbf16>, vector<8x16x8xbf16>, vector<8x16x16xf32> -> vector<8x16x16xf32>
    %82 = vector.extract_strided_slice %56 {offsets = [1, 0, 0], sizes = [1, 16, 16], strides = [1, 1, 1]} : vector<4x16x16xf32> to vector<1x16x16xf32>
    %83 = vector.shape_cast %82 : vector<1x16x16xf32> to vector<16x16xf32>
    %84 = vector.shape_cast %83 : vector<16x16xf32> to vector<1x16x16xf32>
    %85 = vector.broadcast %84 : vector<1x16x16xf32> to vector<8x16x16xf32>
    %86 = arith.addf %81, %85 : vector<8x16x16xf32>
    %cst_38 = arith.constant dense<0xFF800000> : vector<8x16xf32>
    %87 = vector.multi_reduction <maximumf>, %86, %cst_38 [2] : vector<8x16x16xf32> to vector<8x16xf32>
    %88 = vector.shape_cast %87 : vector<8x16xf32> to vector<8x16x1xf32>
    %89 = vector.broadcast %88 : vector<8x16x1xf32> to vector<8x16x16xf32>
    %90 = arith.subf %86, %89 : vector<8x16x16xf32>
    %91 = math.exp %90 : vector<8x16x16xf32>
    %cst_39 = arith.constant dense<0.000000e+00> : vector<8x16xf32>
    %92 = vector.multi_reduction <add>, %91, %cst_39 [2] : vector<8x16x16xf32> to vector<8x16xf32>
    %93 = vector.shape_cast %92 : vector<8x16xf32> to vector<8x16x1xf32>
    %94 = tpu.reciprocal %93 {approx = true} : vector<8x16x1xf32> -> vector<8x16x1xf32>
    %95 = vector.broadcast %94 : vector<8x16x1xf32> to vector<8x16x16xf32>
    %96 = arith.mulf %91, %95 : vector<8x16x16xf32>
    %97 = arith.truncf %96 : vector<8x16x16xf32> to vector<8x16x16xbf16>
    %cst_40 = arith.constant dense<0.000000e+00> : vector<8x16x8xf32>
    %98 = tpu.matmul %97, %80, %cst_40 {dimension_numbers = #tpu.dot_dimension_numbers<[2], [1], [1], [2], [0, 0, 0, 1, 1, 2], [0], [0]>} : vector<8x16x16xbf16>, vector<8x16x8xbf16>, vector<8x16x8xf32> -> vector<8x16x8xf32>
    %99 = vector.extract_strided_slice %51 {offsets = [0, 0, 16], sizes = [8, 16, 8], strides = [1, 1, 1]} : vector<8x16x32xbf16> to vector<8x16x8xbf16>
    %100 = vector.extract_strided_slice %53 {offsets = [0, 0, 16], sizes = [8, 16, 8], strides = [1, 1, 1]} : vector<8x16x32xbf16> to vector<8x16x8xbf16>
    %101 = vector.extract_strided_slice %55 {offsets = [0, 0, 16], sizes = [8, 16, 8], strides = [1, 1, 1]} : vector<8x16x32xbf16> to vector<8x16x8xbf16>
    %cst_41 = arith.constant dense<0.000000e+00> : vector<8x16x16xf32>
    %102 = tpu.matmul %99, %100, %cst_41 {dimension_numbers = #tpu.dot_dimension_numbers<[2], [2], [1], [1], [0, 0, 0, 1, 1, 1], [0], [0]>} : vector<8x16x8xbf16>, vector<8x16x8xbf16>, vector<8x16x16xf32> -> vector<8x16x16xf32>
    %103 = vector.extract_strided_slice %56 {offsets = [2, 0, 0], sizes = [1, 16, 16], strides = [1, 1, 1]} : vector<4x16x16xf32> to vector<1x16x16xf32>
    %104 = vector.shape_cast %103 : vector<1x16x16xf32> to vector<16x16xf32>
    %105 = vector.shape_cast %104 : vector<16x16xf32> to vector<1x16x16xf32>
    %106 = vector.broadcast %105 : vector<1x16x16xf32> to vector<8x16x16xf32>
    %107 = arith.addf %102, %106 : vector<8x16x16xf32>
    %cst_42 = arith.constant dense<0xFF800000> : vector<8x16xf32>
    %108 = vector.multi_reduction <maximumf>, %107, %cst_42 [2] : vector<8x16x16xf32> to vector<8x16xf32>
    %109 = vector.shape_cast %108 : vector<8x16xf32> to vector<8x16x1xf32>
    %110 = vector.broadcast %109 : vector<8x16x1xf32> to vector<8x16x16xf32>
    %111 = arith.subf %107, %110 : vector<8x16x16xf32>
    %112 = math.exp %111 : vector<8x16x16xf32>
    %cst_43 = arith.constant dense<0.000000e+00> : vector<8x16xf32>
    %113 = vector.multi_reduction <add>, %112, %cst_43 [2] : vector<8x16x16xf32> to vector<8x16xf32>
    %114 = vector.shape_cast %113 : vector<8x16xf32> to vector<8x16x1xf32>
    %115 = tpu.reciprocal %114 {approx = true} : vector<8x16x1xf32> -> vector<8x16x1xf32>
    %116 = vector.broadcast %115 : vector<8x16x1xf32> to vector<8x16x16xf32>
    %117 = arith.mulf %112, %116 : vector<8x16x16xf32>
    %118 = arith.truncf %117 : vector<8x16x16xf32> to vector<8x16x16xbf16>
    %cst_44 = arith.constant dense<0.000000e+00> : vector<8x16x8xf32>
    %119 = tpu.matmul %118, %101, %cst_44 {dimension_numbers = #tpu.dot_dimension_numbers<[2], [1], [1], [2], [0, 0, 0, 1, 1, 2], [0], [0]>} : vector<8x16x16xbf16>, vector<8x16x8xbf16>, vector<8x16x8xf32> -> vector<8x16x8xf32>
    %120 = vector.extract_strided_slice %51 {offsets = [0, 0, 24], sizes = [8, 16, 8], strides = [1, 1, 1]} : vector<8x16x32xbf16> to vector<8x16x8xbf16>
    %121 = vector.extract_strided_slice %53 {offsets = [0, 0, 24], sizes = [8, 16, 8], strides = [1, 1, 1]} : vector<8x16x32xbf16> to vector<8x16x8xbf16>
    %122 = vector.extract_strided_slice %55 {offsets = [0, 0, 24], sizes = [8, 16, 8], strides = [1, 1, 1]} : vector<8x16x32xbf16> to vector<8x16x8xbf16>
    %cst_45 = arith.constant dense<0.000000e+00> : vector<8x16x16xf32>
    %123 = tpu.matmul %120, %121, %cst_45 {dimension_numbers = #tpu.dot_dimension_numbers<[2], [2], [1], [1], [0, 0, 0, 1, 1, 1], [0], [0]>} : vector<8x16x8xbf16>, vector<8x16x8xbf16>, vector<8x16x16xf32> -> vector<8x16x16xf32>
    %124 = vector.extract_strided_slice %56 {offsets = [3, 0, 0], sizes = [1, 16, 16], strides = [1, 1, 1]} : vector<4x16x16xf32> to vector<1x16x16xf32>
    %125 = vector.shape_cast %124 : vector<1x16x16xf32> to vector<16x16xf32>
    %126 = vector.shape_cast %125 : vector<16x16xf32> to vector<1x16x16xf32>
    %127 = vector.broadcast %126 : vector<1x16x16xf32> to vector<8x16x16xf32>
    %128 = arith.addf %123, %127 : vector<8x16x16xf32>
    %cst_46 = arith.constant dense<0xFF800000> : vector<8x16xf32>
    %129 = vector.multi_reduction <maximumf>, %128, %cst_46 [2] : vector<8x16x16xf32> to vector<8x16xf32>
    %130 = vector.shape_cast %129 : vector<8x16xf32> to vector<8x16x1xf32>
    %131 = vector.broadcast %130 : vector<8x16x1xf32> to vector<8x16x16xf32>
    %132 = arith.subf %128, %131 : vector<8x16x16xf32>
    %133 = math.exp %132 : vector<8x16x16xf32>
    %cst_47 = arith.constant dense<0.000000e+00> : vector<8x16xf32>
    %134 = vector.multi_reduction <add>, %133, %cst_47 [2] : vector<8x16x16xf32> to vector<8x16xf32>
    %135 = vector.shape_cast %134 : vector<8x16xf32> to vector<8x16x1xf32>
    %136 = tpu.reciprocal %135 {approx = true} : vector<8x16x1xf32> -> vector<8x16x1xf32>
    %137 = vector.broadcast %136 : vector<8x16x1xf32> to vector<8x16x16xf32>
    %138 = arith.mulf %133, %137 : vector<8x16x16xf32>
    %139 = arith.truncf %138 : vector<8x16x16xf32> to vector<8x16x16xbf16>
    %cst_48 = arith.constant dense<0.000000e+00> : vector<8x16x8xf32>
    %140 = tpu.matmul %139, %122, %cst_48 {dimension_numbers = #tpu.dot_dimension_numbers<[2], [1], [1], [2], [0, 0, 0, 1, 1, 2], [0], [0]>} : vector<8x16x16xbf16>, vector<8x16x8xbf16>, vector<8x16x8xf32> -> vector<8x16x8xf32>
    %141 = tpu.concatenate %77, %98, %119, %140 in 2 : vector<8x16x8xf32>, vector<8x16x8xf32>, vector<8x16x8xf32>, vector<8x16x8xf32> -> vector<8x16x32xf32>
    %142 = vector.shape_cast %141 : vector<8x16x32xf32> to vector<128x32xf32>
    %143 = arith.truncf %142 : vector<128x32xf32> to vector<128x32xbf16>
    %c0_49 = arith.constant 0 : index
    %c0_50 = arith.constant 0 : index
    %144 = vector.load %arg6[%c0_49, %c0_50] : memref<32x32xbf16, #tpu.memory_space<vmem>>, vector<32x32xbf16>
    %cst_51 = arith.constant dense<0.000000e+00> : vector<128x32xf32>
    %145 = tpu.matmul %143, %144, %cst_51 {dimension_numbers = #tpu.dot_dimension_numbers<[1], [0], [0], [1], [0, 0, 1, 1], [], []>} : vector<128x32xbf16>, vector<32x32xbf16>, vector<128x32xf32> -> vector<128x32xf32>
    %c0_52 = arith.constant 0 : index
    %c0_53 = arith.constant 0 : index
    %146 = vector.load %arg7[%c0_52, %c0_53] : memref<1x32xf32, #tpu.memory_space<vmem>>, vector<1x32xf32>
    %147 = vector.broadcast %146 : vector<1x32xf32> to vector<128x32xf32>
    %148 = arith.addf %145, %147 : vector<128x32xf32>
    %cst_54 = arith.constant 5.000000e-01 : f32
    %149 = vector.broadcast %cst_54 : f32 to vector<128x32xf32>
    %150 = arith.mulf %149, %148 : vector<128x32xf32>
    %cst_55 = arith.constant 0.707106769 : f32
    %151 = vector.broadcast %cst_55 : f32 to vector<128x32xf32>
    %152 = arith.mulf %148, %151 : vector<128x32xf32>
    %153 = math.erf %152 : vector<128x32xf32>
    %cst_56 = arith.constant 1.000000e+00 : f32
    %154 = vector.broadcast %cst_56 : f32 to vector<128x32xf32>
    %155 = arith.addf %154, %153 : vector<128x32xf32>
    %156 = arith.mulf %150, %155 : vector<128x32xf32>
    %157 = arith.addf %1, %156 : vector<128x32xf32>
    %158 = vector.shape_cast %157 : vector<128x32xf32> to vector<8x16x32xf32>
    %c0_57 = arith.constant 0 : index
    %c0_58 = arith.constant 0 : index
    %c0_59 = arith.constant 0 : index
    %159 = vector.load %arg9[%c0_57, %c0_58, %c0_59] : memref<8x16x32xf32, #tpu.memory_space<vmem>>, vector<8x16x32xf32>
    tpu.vector_store %arg9[%c0_57, %c0_58, %c0_59], %158 {strides = array<i32>} : memref<8x16x32xf32, #tpu.memory_space<vmem>>, vector<8x16x32xf32>,
    return
  }
  func.func @transform_0(%arg0: i32) -> (i32, i32, i32) {
    %c0_i32 = arith.constant 0 : i32
    %c0_i32_0 = arith.constant 0 : i32
    %c0_i32_1 = arith.constant 0 : i32
    return %arg0, %c0_i32, %c0_i32_0 : i32, i32, i32
  }
  func.func @transform_1(%arg0: i32) -> (i32, i32) {
    %c0_i32 = arith.constant 0 : i32
    %c0_i32_0 = arith.constant 0 : i32
    %c0_i32_1 = arith.constant 0 : i32
    return %c0_i32, %c0_i32_0 : i32, i32
  }
  func.func @transform_2(%arg0: i32) -> (i32, i32) {
    %c0_i32 = arith.constant 0 : i32
    %c0_i32_0 = arith.constant 0 : i32
    %c0_i32_1 = arith.constant 0 : i32
    return %c0_i32, %c0_i32_0 : i32, i32
  }
  func.func @transform_3(%arg0: i32) -> (i32, i32, i32) {
    %c0_i32 = arith.constant 0 : i32
    %c0_i32_0 = arith.constant 0 : i32
    %c0_i32_1 = arith.constant 0 : i32
    %c0_i32_2 = arith.constant 0 : i32
    return %c0_i32, %c0_i32_0, %c0_i32_1 : i32, i32, i32
  }
  func.func @transform_4(%arg0: i32) -> (i32, i32, i32) {
    %c0_i32 = arith.constant 0 : i32
    %c0_i32_0 = arith.constant 0 : i32
    %c0_i32_1 = arith.constant 0 : i32
    %c0_i32_2 = arith.constant 0 : i32
    return %c0_i32, %c0_i32_0, %c0_i32_1 : i32, i32, i32
  }
  func.func @transform_5(%arg0: i32) -> (i32, i32) {
    %c0_i32 = arith.constant 0 : i32
    %c0_i32_0 = arith.constant 0 : i32
    %c0_i32_1 = arith.constant 0 : i32
    return %c0_i32, %c0_i32_0 : i32, i32
  }
  func.func @transform_6(%arg0: i32) -> (i32, i32) {
    %c0_i32 = arith.constant 0 : i32
    %c0_i32_0 = arith.constant 0 : i32
    %c0_i32_1 = arith.constant 0 : i32
    return %c0_i32, %c0_i32_0 : i32, i32
  }
  func.func @transform_7(%arg0: i32) -> (i32, i32, i32) {
    %c0_i32 = arith.constant 0 : i32
    %c0_i32_0 = arith.constant 0 : i32
    %c0_i32_1 = arith.constant 0 : i32
    %c0_i32_2 = arith.constant 0 : i32
    return %c0_i32, %c0_i32_0, %c0_i32_1 : i32, i32, i32
  }
  func.func @transform_8(%arg0: i32) -> (i32, i32, i32) {
    %c0_i32 = arith.constant 0 : i32
    %c0_i32_0 = arith.constant 0 : i32
    %c0_i32_1 = arith.constant 0 : i32
    return %arg0, %c0_i32, %c0_i32_0 : i32, i32, i32
  }
}

module attributes {stable_mosaic.version = 11 : i64} {
  func.func @kernel(%arg0: i32, %arg1: memref<8x16x32xf32, #tpu.memory_space<vmem>>, %arg2: memref<8x16x16xf32, #tpu.memory_space<vmem>>, %arg3: memref<1x32xf32, #tpu.memory_space<vmem>>, %arg4: memref<1x32xf32, #tpu.memory_space<vmem>>, %arg5: memref<3x32x32xbf16, #tpu.memory_space<vmem>>, %arg6: memref<3x1x32xf32, #tpu.memory_space<vmem>>, %arg7: memref<32x32xbf16, #tpu.memory_space<vmem>>, %arg8: memref<1x32xf32, #tpu.memory_space<vmem>>, %arg9: memref<4x16x16xf32, #tpu.memory_space<vmem>>, %arg10: memref<8x16x32xf32, #tpu.memory_space<vmem>>) attributes {dimension_semantics = [#tpu.dimension_semantics<parallel>], iteration_bounds = array<i64: 1>, scalar_prefetch = 0 : i64, scratch_operands = 0 : i64, tpu.core_type = #tpu.core_type<tc>, window_params = [{transform_indices = @transform_0, window_bounds = array<i64: 8, 16, 32>}, {pipeline_mode = #tpu.pipeline_mode<synchronous>, transform_indices = @transform_1, window_bounds = array<i64: 8, 16, 16>}, {pipeline_mode = #tpu.pipeline_mode<synchronous>, transform_indices = @transform_2, window_bounds = array<i64: 1, 32>}, {pipeline_mode = #tpu.pipeline_mode<synchronous>, transform_indices = @transform_3, window_bounds = array<i64: 1, 32>}, {pipeline_mode = #tpu.pipeline_mode<synchronous>, transform_indices = @transform_4, window_bounds = array<i64: 3, 32, 32>}, {pipeline_mode = #tpu.pipeline_mode<synchronous>, transform_indices = @transform_5, window_bounds = array<i64: 3, 1, 32>}, {pipeline_mode = #tpu.pipeline_mode<synchronous>, transform_indices = @transform_6, window_bounds = array<i64: 32, 32>}, {pipeline_mode = #tpu.pipeline_mode<synchronous>, transform_indices = @transform_7, window_bounds = array<i64: 1, 32>}, {pipeline_mode = #tpu.pipeline_mode<synchronous>, transform_indices = @transform_8, window_bounds = array<i64: 4, 16, 16>}, {transform_indices = @transform_9, window_bounds = array<i64: 8, 16, 32>}]} {
    %c0 = arith.constant 0 : index
    %c0_0 = arith.constant 0 : index
    %c0_1 = arith.constant 0 : index
    %0 = vector.load %arg1[%c0, %c0_0, %c0_1] : memref<8x16x32xf32, #tpu.memory_space<vmem>>, vector<8x16x32xf32>
    %1 = vector.shape_cast %0 : vector<8x16x32xf32> to vector<128x32xf32>
    %cst = arith.constant dense<0.000000e+00> : vector<128xf32>
    %2 = vector.multi_reduction <add>, %1, %cst [1] : vector<128x32xf32> to vector<128xf32>
    %3 = vector.shape_cast %2 : vector<128xf32> to vector<128x1xf32>
    %cst_2 = arith.constant 3.200000e+01 : f32
    %4 = vector.broadcast %cst_2 : f32 to vector<128x1xf32>
    %5 = arith.divf %3, %4 : vector<128x1xf32>
    %6 = vector.broadcast %5 : vector<128x1xf32> to vector<128x32xf32>
    %7 = arith.subf %1, %6 : vector<128x32xf32>
    %8 = arith.mulf %7, %7 : vector<128x32xf32>
    %cst_3 = arith.constant dense<0.000000e+00> : vector<128xf32>
    %9 = vector.multi_reduction <add>, %8, %cst_3 [1] : vector<128x32xf32> to vector<128xf32>
    %10 = vector.shape_cast %9 : vector<128xf32> to vector<128x1xf32>
    %cst_4 = arith.constant 3.200000e+01 : f32
    %11 = vector.broadcast %cst_4 : f32 to vector<128x1xf32>
    %12 = arith.divf %10, %11 : vector<128x1xf32>
    %13 = vector.broadcast %5 : vector<128x1xf32> to vector<128x32xf32>
    %14 = arith.subf %1, %13 : vector<128x32xf32>
    %cst_5 = arith.constant 9.99999974E-6 : f32
    %15 = vector.broadcast %cst_5 : f32 to vector<128x1xf32>
    %16 = arith.addf %12, %15 : vector<128x1xf32>
    %17 = math.rsqrt %16 : vector<128x1xf32>
    %18 = vector.broadcast %17 : vector<128x1xf32> to vector<128x32xf32>
    %19 = arith.mulf %14, %18 : vector<128x32xf32>
    %c0_6 = arith.constant 0 : index
    %c0_7 = arith.constant 0 : index
    %20 = vector.load %arg3[%c0_6, %c0_7] : memref<1x32xf32, #tpu.memory_space<vmem>>, vector<1x32xf32>
    %21 = vector.broadcast %20 : vector<1x32xf32> to vector<128x32xf32>
    %22 = arith.mulf %19, %21 : vector<128x32xf32>
    %c0_8 = arith.constant 0 : index
    %c0_9 = arith.constant 0 : index
    %23 = vector.load %arg4[%c0_8, %c0_9] : memref<1x32xf32, #tpu.memory_space<vmem>>, vector<1x32xf32>
    %24 = vector.broadcast %23 : vector<1x32xf32> to vector<128x32xf32>
    %25 = arith.addf %22, %24 : vector<128x32xf32>
    %26 = arith.truncf %25 : vector<128x32xf32> to vector<128x32xbf16>
    %c0_10 = arith.constant 0 : index
    %c0_11 = arith.constant 0 : index
    %c0_12 = arith.constant 0 : index
    %27 = vector.load %arg5[%c0_10, %c0_11, %c0_12] : memref<3x32x32xbf16, #tpu.memory_space<vmem>>, vector<1x32x32xbf16>
    %28 = vector.shape_cast %27 : vector<1x32x32xbf16> to vector<32x32xbf16>
    %cst_13 = arith.constant dense<0.000000e+00> : vector<128x32xf32>
    %29 = tpu.matmul %26, %28, %cst_13 {dimension_numbers = #tpu.dot_dimension_numbers<[1], [0], [0], [1], [0, 0, 1, 1], [], []>} : vector<128x32xbf16>, vector<32x32xbf16>, vector<128x32xf32> -> vector<128x32xf32>
    %c0_14 = arith.constant 0 : index
    %c0_15 = arith.constant 0 : index
    %c0_16 = arith.constant 0 : index
    %30 = vector.load %arg6[%c0_14, %c0_15, %c0_16] : memref<3x1x32xf32, #tpu.memory_space<vmem>>, vector<1x1x32xf32>
    %31 = vector.shape_cast %30 : vector<1x1x32xf32> to vector<1x32xf32>
    %32 = vector.broadcast %31 : vector<1x32xf32> to vector<128x32xf32>
    %33 = arith.addf %29, %32 : vector<128x32xf32>
    %cst_17 = arith.constant 0.353553385 : f32
    %34 = vector.broadcast %cst_17 : f32 to vector<128x32xf32>
    %35 = arith.mulf %33, %34 : vector<128x32xf32>
    %c1 = arith.constant 1 : index
    %c0_18 = arith.constant 0 : index
    %c0_19 = arith.constant 0 : index
    %36 = vector.load %arg5[%c1, %c0_18, %c0_19] : memref<3x32x32xbf16, #tpu.memory_space<vmem>>, vector<1x32x32xbf16>
    %37 = vector.shape_cast %36 : vector<1x32x32xbf16> to vector<32x32xbf16>
    %cst_20 = arith.constant dense<0.000000e+00> : vector<128x32xf32>
    %38 = tpu.matmul %26, %37, %cst_20 {dimension_numbers = #tpu.dot_dimension_numbers<[1], [0], [0], [1], [0, 0, 1, 1], [], []>} : vector<128x32xbf16>, vector<32x32xbf16>, vector<128x32xf32> -> vector<128x32xf32>
    %c1_21 = arith.constant 1 : index
    %c0_22 = arith.constant 0 : index
    %c0_23 = arith.constant 0 : index
    %39 = vector.load %arg6[%c1_21, %c0_22, %c0_23] : memref<3x1x32xf32, #tpu.memory_space<vmem>>, vector<1x1x32xf32>
    %40 = vector.shape_cast %39 : vector<1x1x32xf32> to vector<1x32xf32>
    %41 = vector.broadcast %40 : vector<1x32xf32> to vector<128x32xf32>
    %42 = arith.addf %38, %41 : vector<128x32xf32>
    %c2 = arith.constant 2 : index
    %c0_24 = arith.constant 0 : index
    %c0_25 = arith.constant 0 : index
    %43 = vector.load %arg5[%c2, %c0_24, %c0_25] : memref<3x32x32xbf16, #tpu.memory_space<vmem>>, vector<1x32x32xbf16>
    %44 = vector.shape_cast %43 : vector<1x32x32xbf16> to vector<32x32xbf16>
    %cst_26 = arith.constant dense<0.000000e+00> : vector<128x32xf32>
    %45 = tpu.matmul %26, %44, %cst_26 {dimension_numbers = #tpu.dot_dimension_numbers<[1], [0], [0], [1], [0, 0, 1, 1], [], []>} : vector<128x32xbf16>, vector<32x32xbf16>, vector<128x32xf32> -> vector<128x32xf32>
    %c2_27 = arith.constant 2 : index
    %c0_28 = arith.constant 0 : index
    %c0_29 = arith.constant 0 : index
    %46 = vector.load %arg6[%c2_27, %c0_28, %c0_29] : memref<3x1x32xf32, #tpu.memory_space<vmem>>, vector<1x1x32xf32>
    %47 = vector.shape_cast %46 : vector<1x1x32xf32> to vector<1x32xf32>
    %48 = vector.broadcast %47 : vector<1x32xf32> to vector<128x32xf32>
    %49 = arith.addf %45, %48 : vector<128x32xf32>
    %50 = vector.shape_cast %35 : vector<128x32xf32> to vector<8x16x32xf32>
    %51 = arith.truncf %50 : vector<8x16x32xf32> to vector<8x16x32xbf16>
    %52 = vector.shape_cast %42 : vector<128x32xf32> to vector<8x16x32xf32>
    %53 = arith.truncf %52 : vector<8x16x32xf32> to vector<8x16x32xbf16>
    %54 = vector.shape_cast %49 : vector<128x32xf32> to vector<8x16x32xf32>
    %55 = arith.truncf %54 : vector<8x16x32xf32> to vector<8x16x32xbf16>
    %c0_30 = arith.constant 0 : index
    %c0_31 = arith.constant 0 : index
    %c0_32 = arith.constant 0 : index
    %56 = vector.load %arg9[%c0_30, %c0_31, %c0_32] : memref<4x16x16xf32, #tpu.memory_space<vmem>>, vector<4x16x16xf32>
    %c0_33 = arith.constant 0 : index
    %c0_34 = arith.constant 0 : index
    %c0_35 = arith.constant 0 : index
    %57 = vector.load %arg2[%c0_33, %c0_34, %c0_35] : memref<8x16x16xf32, #tpu.memory_space<vmem>>, vector<8x16x16xf32>
    %58 = vector.extract_strided_slice %51 {offsets = [0, 0, 0], sizes = [8, 16, 8], strides = [1, 1, 1]} : vector<8x16x32xbf16> to vector<8x16x8xbf16>
    %59 = vector.extract_strided_slice %53 {offsets = [0, 0, 0], sizes = [8, 16, 8], strides = [1, 1, 1]} : vector<8x16x32xbf16> to vector<8x16x8xbf16>
    %60 = vector.extract_strided_slice %55 {offsets = [0, 0, 0], sizes = [8, 16, 8], strides = [1, 1, 1]} : vector<8x16x32xbf16> to vector<8x16x8xbf16>
    %cst_36 = arith.constant dense<0.000000e+00> : vector<8x16x16xf32>
    %61 = tpu.matmul %58, %59, %cst_36 {dimension_numbers = #tpu.dot_dimension_numbers<[2], [2], [1], [1], [0, 0, 0, 1, 1, 1], [0], [0]>} : vector<8x16x8xbf16>, vector<8x16x8xbf16>, vector<8x16x16xf32> -> vector<8x16x16xf32>
    %62 = vector.extract_strided_slice %56 {offsets = [0, 0, 0], sizes = [1, 16, 16], strides = [1, 1, 1]} : vector<4x16x16xf32> to vector<1x16x16xf32>
    %63 = vector.shape_cast %62 : vector<1x16x16xf32> to vector<16x16xf32>
    %64 = vector.shape_cast %63 : vector<16x16xf32> to vector<1x16x16xf32>
    %65 = vector.broadcast %64 : vector<1x16x16xf32> to vector<8x16x16xf32>
    %66 = arith.addf %61, %65 : vector<8x16x16xf32>
    %67 = arith.addf %66, %57 : vector<8x16x16xf32>
    %cst_37 = arith.constant dense<0xFF800000> : vector<8x16xf32>
    %68 = vector.multi_reduction <maximumf>, %67, %cst_37 [2] : vector<8x16x16xf32> to vector<8x16xf32>
    %69 = vector.shape_cast %68 : vector<8x16xf32> to vector<8x16x1xf32>
    %70 = vector.broadcast %69 : vector<8x16x1xf32> to vector<8x16x16xf32>
    %71 = arith.subf %67, %70 : vector<8x16x16xf32>
    %72 = math.exp %71 : vector<8x16x16xf32>
    %cst_38 = arith.constant dense<0.000000e+00> : vector<8x16xf32>
    %73 = vector.multi_reduction <add>, %72, %cst_38 [2] : vector<8x16x16xf32> to vector<8x16xf32>
    %74 = vector.shape_cast %73 : vector<8x16xf32> to vector<8x16x1xf32>
    %75 = tpu.reciprocal %74 {approx = true} : vector<8x16x1xf32> -> vector<8x16x1xf32>
    %76 = vector.broadcast %75 : vector<8x16x1xf32> to vector<8x16x16xf32>
    %77 = arith.mulf %72, %76 : vector<8x16x16xf32>
    %78 = arith.truncf %77 : vector<8x16x16xf32> to vector<8x16x16xbf16>
    %cst_39 = arith.constant dense<0.000000e+00> : vector<8x16x8xf32>
    %79 = tpu.matmul %78, %60, %cst_39 {dimension_numbers = #tpu.dot_dimension_numbers<[2], [1], [1], [2], [0, 0, 0, 1, 1, 2], [0], [0]>} : vector<8x16x16xbf16>, vector<8x16x8xbf16>, vector<8x16x8xf32> -> vector<8x16x8xf32>
    %80 = vector.extract_strided_slice %51 {offsets = [0, 0, 8], sizes = [8, 16, 8], strides = [1, 1, 1]} : vector<8x16x32xbf16> to vector<8x16x8xbf16>
    %81 = vector.extract_strided_slice %53 {offsets = [0, 0, 8], sizes = [8, 16, 8], strides = [1, 1, 1]} : vector<8x16x32xbf16> to vector<8x16x8xbf16>
    %82 = vector.extract_strided_slice %55 {offsets = [0, 0, 8], sizes = [8, 16, 8], strides = [1, 1, 1]} : vector<8x16x32xbf16> to vector<8x16x8xbf16>
    %cst_40 = arith.constant dense<0.000000e+00> : vector<8x16x16xf32>
    %83 = tpu.matmul %80, %81, %cst_40 {dimension_numbers = #tpu.dot_dimension_numbers<[2], [2], [1], [1], [0, 0, 0, 1, 1, 1], [0], [0]>} : vector<8x16x8xbf16>, vector<8x16x8xbf16>, vector<8x16x16xf32> -> vector<8x16x16xf32>
    %84 = vector.extract_strided_slice %56 {offsets = [1, 0, 0], sizes = [1, 16, 16], strides = [1, 1, 1]} : vector<4x16x16xf32> to vector<1x16x16xf32>
    %85 = vector.shape_cast %84 : vector<1x16x16xf32> to vector<16x16xf32>
    %86 = vector.shape_cast %85 : vector<16x16xf32> to vector<1x16x16xf32>
    %87 = vector.broadcast %86 : vector<1x16x16xf32> to vector<8x16x16xf32>
    %88 = arith.addf %83, %87 : vector<8x16x16xf32>
    %89 = arith.addf %88, %57 : vector<8x16x16xf32>
    %cst_41 = arith.constant dense<0xFF800000> : vector<8x16xf32>
    %90 = vector.multi_reduction <maximumf>, %89, %cst_41 [2] : vector<8x16x16xf32> to vector<8x16xf32>
    %91 = vector.shape_cast %90 : vector<8x16xf32> to vector<8x16x1xf32>
    %92 = vector.broadcast %91 : vector<8x16x1xf32> to vector<8x16x16xf32>
    %93 = arith.subf %89, %92 : vector<8x16x16xf32>
    %94 = math.exp %93 : vector<8x16x16xf32>
    %cst_42 = arith.constant dense<0.000000e+00> : vector<8x16xf32>
    %95 = vector.multi_reduction <add>, %94, %cst_42 [2] : vector<8x16x16xf32> to vector<8x16xf32>
    %96 = vector.shape_cast %95 : vector<8x16xf32> to vector<8x16x1xf32>
    %97 = tpu.reciprocal %96 {approx = true} : vector<8x16x1xf32> -> vector<8x16x1xf32>
    %98 = vector.broadcast %97 : vector<8x16x1xf32> to vector<8x16x16xf32>
    %99 = arith.mulf %94, %98 : vector<8x16x16xf32>
    %100 = arith.truncf %99 : vector<8x16x16xf32> to vector<8x16x16xbf16>
    %cst_43 = arith.constant dense<0.000000e+00> : vector<8x16x8xf32>
    %101 = tpu.matmul %100, %82, %cst_43 {dimension_numbers = #tpu.dot_dimension_numbers<[2], [1], [1], [2], [0, 0, 0, 1, 1, 2], [0], [0]>} : vector<8x16x16xbf16>, vector<8x16x8xbf16>, vector<8x16x8xf32> -> vector<8x16x8xf32>
    %102 = vector.extract_strided_slice %51 {offsets = [0, 0, 16], sizes = [8, 16, 8], strides = [1, 1, 1]} : vector<8x16x32xbf16> to vector<8x16x8xbf16>
    %103 = vector.extract_strided_slice %53 {offsets = [0, 0, 16], sizes = [8, 16, 8], strides = [1, 1, 1]} : vector<8x16x32xbf16> to vector<8x16x8xbf16>
    %104 = vector.extract_strided_slice %55 {offsets = [0, 0, 16], sizes = [8, 16, 8], strides = [1, 1, 1]} : vector<8x16x32xbf16> to vector<8x16x8xbf16>
    %cst_44 = arith.constant dense<0.000000e+00> : vector<8x16x16xf32>
    %105 = tpu.matmul %102, %103, %cst_44 {dimension_numbers = #tpu.dot_dimension_numbers<[2], [2], [1], [1], [0, 0, 0, 1, 1, 1], [0], [0]>} : vector<8x16x8xbf16>, vector<8x16x8xbf16>, vector<8x16x16xf32> -> vector<8x16x16xf32>
    %106 = vector.extract_strided_slice %56 {offsets = [2, 0, 0], sizes = [1, 16, 16], strides = [1, 1, 1]} : vector<4x16x16xf32> to vector<1x16x16xf32>
    %107 = vector.shape_cast %106 : vector<1x16x16xf32> to vector<16x16xf32>
    %108 = vector.shape_cast %107 : vector<16x16xf32> to vector<1x16x16xf32>
    %109 = vector.broadcast %108 : vector<1x16x16xf32> to vector<8x16x16xf32>
    %110 = arith.addf %105, %109 : vector<8x16x16xf32>
    %111 = arith.addf %110, %57 : vector<8x16x16xf32>
    %cst_45 = arith.constant dense<0xFF800000> : vector<8x16xf32>
    %112 = vector.multi_reduction <maximumf>, %111, %cst_45 [2] : vector<8x16x16xf32> to vector<8x16xf32>
    %113 = vector.shape_cast %112 : vector<8x16xf32> to vector<8x16x1xf32>
    %114 = vector.broadcast %113 : vector<8x16x1xf32> to vector<8x16x16xf32>
    %115 = arith.subf %111, %114 : vector<8x16x16xf32>
    %116 = math.exp %115 : vector<8x16x16xf32>
    %cst_46 = arith.constant dense<0.000000e+00> : vector<8x16xf32>
    %117 = vector.multi_reduction <add>, %116, %cst_46 [2] : vector<8x16x16xf32> to vector<8x16xf32>
    %118 = vector.shape_cast %117 : vector<8x16xf32> to vector<8x16x1xf32>
    %119 = tpu.reciprocal %118 {approx = true} : vector<8x16x1xf32> -> vector<8x16x1xf32>
    %120 = vector.broadcast %119 : vector<8x16x1xf32> to vector<8x16x16xf32>
    %121 = arith.mulf %116, %120 : vector<8x16x16xf32>
    %122 = arith.truncf %121 : vector<8x16x16xf32> to vector<8x16x16xbf16>
    %cst_47 = arith.constant dense<0.000000e+00> : vector<8x16x8xf32>
    %123 = tpu.matmul %122, %104, %cst_47 {dimension_numbers = #tpu.dot_dimension_numbers<[2], [1], [1], [2], [0, 0, 0, 1, 1, 2], [0], [0]>} : vector<8x16x16xbf16>, vector<8x16x8xbf16>, vector<8x16x8xf32> -> vector<8x16x8xf32>
    %124 = vector.extract_strided_slice %51 {offsets = [0, 0, 24], sizes = [8, 16, 8], strides = [1, 1, 1]} : vector<8x16x32xbf16> to vector<8x16x8xbf16>
    %125 = vector.extract_strided_slice %53 {offsets = [0, 0, 24], sizes = [8, 16, 8], strides = [1, 1, 1]} : vector<8x16x32xbf16> to vector<8x16x8xbf16>
    %126 = vector.extract_strided_slice %55 {offsets = [0, 0, 24], sizes = [8, 16, 8], strides = [1, 1, 1]} : vector<8x16x32xbf16> to vector<8x16x8xbf16>
    %cst_48 = arith.constant dense<0.000000e+00> : vector<8x16x16xf32>
    %127 = tpu.matmul %124, %125, %cst_48 {dimension_numbers = #tpu.dot_dimension_numbers<[2], [2], [1], [1], [0, 0, 0, 1, 1, 1], [0], [0]>} : vector<8x16x8xbf16>, vector<8x16x8xbf16>, vector<8x16x16xf32> -> vector<8x16x16xf32>
    %128 = vector.extract_strided_slice %56 {offsets = [3, 0, 0], sizes = [1, 16, 16], strides = [1, 1, 1]} : vector<4x16x16xf32> to vector<1x16x16xf32>
    %129 = vector.shape_cast %128 : vector<1x16x16xf32> to vector<16x16xf32>
    %130 = vector.shape_cast %129 : vector<16x16xf32> to vector<1x16x16xf32>
    %131 = vector.broadcast %130 : vector<1x16x16xf32> to vector<8x16x16xf32>
    %132 = arith.addf %127, %131 : vector<8x16x16xf32>
    %133 = arith.addf %132, %57 : vector<8x16x16xf32>
    %cst_49 = arith.constant dense<0xFF800000> : vector<8x16xf32>
    %134 = vector.multi_reduction <maximumf>, %133, %cst_49 [2] : vector<8x16x16xf32> to vector<8x16xf32>
    %135 = vector.shape_cast %134 : vector<8x16xf32> to vector<8x16x1xf32>
    %136 = vector.broadcast %135 : vector<8x16x1xf32> to vector<8x16x16xf32>
    %137 = arith.subf %133, %136 : vector<8x16x16xf32>
    %138 = math.exp %137 : vector<8x16x16xf32>
    %cst_50 = arith.constant dense<0.000000e+00> : vector<8x16xf32>
    %139 = vector.multi_reduction <add>, %138, %cst_50 [2] : vector<8x16x16xf32> to vector<8x16xf32>
    %140 = vector.shape_cast %139 : vector<8x16xf32> to vector<8x16x1xf32>
    %141 = tpu.reciprocal %140 {approx = true} : vector<8x16x1xf32> -> vector<8x16x1xf32>
    %142 = vector.broadcast %141 : vector<8x16x1xf32> to vector<8x16x16xf32>
    %143 = arith.mulf %138, %142 : vector<8x16x16xf32>
    %144 = arith.truncf %143 : vector<8x16x16xf32> to vector<8x16x16xbf16>
    %cst_51 = arith.constant dense<0.000000e+00> : vector<8x16x8xf32>
    %145 = tpu.matmul %144, %126, %cst_51 {dimension_numbers = #tpu.dot_dimension_numbers<[2], [1], [1], [2], [0, 0, 0, 1, 1, 2], [0], [0]>} : vector<8x16x16xbf16>, vector<8x16x8xbf16>, vector<8x16x8xf32> -> vector<8x16x8xf32>
    %146 = tpu.concatenate %79, %101, %123, %145 in 2 : vector<8x16x8xf32>, vector<8x16x8xf32>, vector<8x16x8xf32>, vector<8x16x8xf32> -> vector<8x16x32xf32>
    %147 = vector.shape_cast %146 : vector<8x16x32xf32> to vector<128x32xf32>
    %148 = arith.truncf %147 : vector<128x32xf32> to vector<128x32xbf16>
    %c0_52 = arith.constant 0 : index
    %c0_53 = arith.constant 0 : index
    %149 = vector.load %arg7[%c0_52, %c0_53] : memref<32x32xbf16, #tpu.memory_space<vmem>>, vector<32x32xbf16>
    %cst_54 = arith.constant dense<0.000000e+00> : vector<128x32xf32>
    %150 = tpu.matmul %148, %149, %cst_54 {dimension_numbers = #tpu.dot_dimension_numbers<[1], [0], [0], [1], [0, 0, 1, 1], [], []>} : vector<128x32xbf16>, vector<32x32xbf16>, vector<128x32xf32> -> vector<128x32xf32>
    %c0_55 = arith.constant 0 : index
    %c0_56 = arith.constant 0 : index
    %151 = vector.load %arg8[%c0_55, %c0_56] : memref<1x32xf32, #tpu.memory_space<vmem>>, vector<1x32xf32>
    %152 = vector.broadcast %151 : vector<1x32xf32> to vector<128x32xf32>
    %153 = arith.addf %150, %152 : vector<128x32xf32>
    %cst_57 = arith.constant 5.000000e-01 : f32
    %154 = vector.broadcast %cst_57 : f32 to vector<128x32xf32>
    %155 = arith.mulf %154, %153 : vector<128x32xf32>
    %cst_58 = arith.constant 0.707106769 : f32
    %156 = vector.broadcast %cst_58 : f32 to vector<128x32xf32>
    %157 = arith.mulf %153, %156 : vector<128x32xf32>
    %158 = math.erf %157 : vector<128x32xf32>
    %cst_59 = arith.constant 1.000000e+00 : f32
    %159 = vector.broadcast %cst_59 : f32 to vector<128x32xf32>
    %160 = arith.addf %159, %158 : vector<128x32xf32>
    %161 = arith.mulf %155, %160 : vector<128x32xf32>
    %162 = arith.addf %1, %161 : vector<128x32xf32>
    %163 = vector.shape_cast %162 : vector<128x32xf32> to vector<8x16x32xf32>
    %c0_60 = arith.constant 0 : index
    %c0_61 = arith.constant 0 : index
    %c0_62 = arith.constant 0 : index
    %164 = vector.load %arg10[%c0_60, %c0_61, %c0_62] : memref<8x16x32xf32, #tpu.memory_space<vmem>>, vector<8x16x32xf32>
    tpu.vector_store %arg10[%c0_60, %c0_61, %c0_62], %163 {strides = array<i32>} : memref<8x16x32xf32, #tpu.memory_space<vmem>>, vector<8x16x32xf32>,
    return
  }
  func.func @transform_0(%arg0: i32) -> (i32, i32, i32) {
    %c0_i32 = arith.constant 0 : i32
    %c0_i32_0 = arith.constant 0 : i32
    %c0_i32_1 = arith.constant 0 : i32
    return %arg0, %c0_i32, %c0_i32_0 : i32, i32, i32
  }
  func.func @transform_1(%arg0: i32) -> (i32, i32, i32) {
    %c0_i32 = arith.constant 0 : i32
    %c0_i32_0 = arith.constant 0 : i32
    %c0_i32_1 = arith.constant 0 : i32
    %c0_i32_2 = arith.constant 0 : i32
    return %c0_i32, %c0_i32_0, %c0_i32_1 : i32, i32, i32
  }
  func.func @transform_2(%arg0: i32) -> (i32, i32) {
    %c0_i32 = arith.constant 0 : i32
    %c0_i32_0 = arith.constant 0 : i32
    %c0_i32_1 = arith.constant 0 : i32
    return %c0_i32, %c0_i32_0 : i32, i32
  }
  func.func @transform_3(%arg0: i32) -> (i32, i32) {
    %c0_i32 = arith.constant 0 : i32
    %c0_i32_0 = arith.constant 0 : i32
    %c0_i32_1 = arith.constant 0 : i32
    return %c0_i32, %c0_i32_0 : i32, i32
  }
  func.func @transform_4(%arg0: i32) -> (i32, i32, i32) {
    %c0_i32 = arith.constant 0 : i32
    %c0_i32_0 = arith.constant 0 : i32
    %c0_i32_1 = arith.constant 0 : i32
    %c0_i32_2 = arith.constant 0 : i32
    return %c0_i32, %c0_i32_0, %c0_i32_1 : i32, i32, i32
  }
  func.func @transform_5(%arg0: i32) -> (i32, i32, i32) {
    %c0_i32 = arith.constant 0 : i32
    %c0_i32_0 = arith.constant 0 : i32
    %c0_i32_1 = arith.constant 0 : i32
    %c0_i32_2 = arith.constant 0 : i32
    return %c0_i32, %c0_i32_0, %c0_i32_1 : i32, i32, i32
  }
  func.func @transform_6(%arg0: i32) -> (i32, i32) {
    %c0_i32 = arith.constant 0 : i32
    %c0_i32_0 = arith.constant 0 : i32
    %c0_i32_1 = arith.constant 0 : i32
    return %c0_i32, %c0_i32_0 : i32, i32
  }
  func.func @transform_7(%arg0: i32) -> (i32, i32) {
    %c0_i32 = arith.constant 0 : i32
    %c0_i32_0 = arith.constant 0 : i32
    %c0_i32_1 = arith.constant 0 : i32
    return %c0_i32, %c0_i32_0 : i32, i32
  }
  func.func @transform_8(%arg0: i32) -> (i32, i32, i32) {
    %c0_i32 = arith.constant 0 : i32
    %c0_i32_0 = arith.constant 0 : i32
    %c0_i32_1 = arith.constant 0 : i32
    %c0_i32_2 = arith.constant 0 : i32
    return %c0_i32, %c0_i32_0, %c0_i32_1 : i32, i32, i32
  }
  func.func @transform_9(%arg0: i32) -> (i32, i32, i32) {
    %c0_i32 = arith.constant 0 : i32
    %c0_i32_0 = arith.constant 0 : i32
    %c0_i32_1 = arith.constant 0 : i32
    return %arg0, %c0_i32, %c0_i32_0 : i32, i32, i32
  }
}

</mosaic_0001>

<llo_original>
// kernel: _basic_layer_impl.3
$region0: #{_basic_layer_impl.3}
  #allocation0 [shape = 'u32[]', space=smem, size = 0x4, offset = 0x4, fixed_abs, tag = 'smem constant byte address 0x4 - core index']
  #allocation1 [shape = 'u32[72,128]{1,0:T(1,128)}', space=vmem, size = 0x9000, scoped, tag = 'internal scratch']
  %s0 = inlined_call_operand.vmem [shape: f32[8,16,32], index: 0, kind: input, shape index: {}]
  %s1 = inlined_call_operand.vmem [shape: f32[8,16,16], index: 1, kind: input, shape index: {}]
  %s2 = inlined_call_operand.vmem [shape: f32[1,32], index: 2, kind: input, shape index: {}]
  %s3 = inlined_call_operand.vmem [shape: f32[1,32], index: 3, kind: input, shape index: {}]
  %s4 = inlined_call_operand.vmem [shape: bf16[3,32,32], index: 4, kind: input, shape index: {}]
  %s5 = inlined_call_operand.vmem [shape: f32[3,1,32], index: 5, kind: input, shape index: {}]
  %s6 = inlined_call_operand.vmem [shape: bf16[32,32], index: 6, kind: input, shape index: {}]
  %s7 = inlined_call_operand.vmem [shape: f32[1,32], index: 7, kind: input, shape index: {}]
  %s8 = inlined_call_operand.vmem [shape: f32[4,16,16], index: 8, kind: input, shape index: {}]
  %s9 = inlined_call_operand.vmem [shape: f32[8,16,32], index: 9, kind: output, shape index: {}]
  %s10 = sld [smem:[#allocation0]]
  $region46: #{_basic_layer_impl.3} parent=0
    _
  %s12 = ssub.s32 1, %s10
  %s13 = scalar_select 0, %s12, %s10
  // Predicated region
  $region2: #{_basic_layer_impl.3} parent=0 // pred_check
    _
  $region3: #{_basic_layer_impl.3} parent=0 // pred_check_branch
    %15 = sbr.rel (0) target = $region5
  $region4: #{_basic_layer_impl.3} parent=0 // pred_region
    _
  $region5: #{_basic_layer_impl.3} parent=0 // pred_fallthru
    _
  // Predicated region
  $region6: #{_basic_layer_impl.3} parent=0 // pred_check
    _
  $region7: #{_basic_layer_impl.3} parent=0 // pred_check_branch
    %17 = sbr.rel (0) target = $region9
  $region8: #{_basic_layer_impl.3} parent=0 // pred_region
    _
  $region9: #{_basic_layer_impl.3} parent=0 // pred_fallthru
    _
  // Predicated region
  $region10: #{_basic_layer_impl.3} parent=0 // pred_check
    _
  $region11: #{_basic_layer_impl.3} parent=0 // pred_check_branch
    %19 = sbr.rel (0) target = $region13
  $region12: #{_basic_layer_impl.3} parent=0 // pred_region
    _
  $region13: #{_basic_layer_impl.3} parent=0 // pred_fallthru
    _
  // Predicated region
  $region14: #{_basic_layer_impl.3} parent=0 // pred_check
    _
  $region15: #{_basic_layer_impl.3} parent=0 // pred_check_branch
    %21 = sbr.rel (0) target = $region17
  $region16: #{_basic_layer_impl.3} parent=0 // pred_region
    _
  $region17: #{_basic_layer_impl.3} parent=0 // pred_fallthru
    _
  // Predicated region
  $region18: #{_basic_layer_impl.3} parent=0 // pred_check
    _
  $region19: #{_basic_layer_impl.3} parent=0 // pred_check_branch
    %23 = sbr.rel (0) target = $region21
  $region20: #{_basic_layer_impl.3} parent=0 // pred_region
    _
  $region21: #{_basic_layer_impl.3} parent=0 // pred_fallthru
    _
  // Predicated region
  $region22: #{_basic_layer_impl.3} parent=0 // pred_check
    _
  $region23: #{_basic_layer_impl.3} parent=0 // pred_check_branch
    %25 = sbr.rel (0) target = $region25
  $region24: #{_basic_layer_impl.3} parent=0 // pred_region
    _
  $region25: #{_basic_layer_impl.3} parent=0 // pred_fallthru
    _
  // Predicated region
  $region26: #{_basic_layer_impl.3} parent=0 // pred_check
    _
  $region27: #{_basic_layer_impl.3} parent=0 // pred_check_branch
    %27 = sbr.rel (0) target = $region29
  $region28: #{_basic_layer_impl.3} parent=0 // pred_region
    _
  $region29: #{_basic_layer_impl.3} parent=0 // pred_fallthru
    _
  // Predicated region
  $region30: #{_basic_layer_impl.3} parent=0 // pred_check
    _
  $region31: #{_basic_layer_impl.3} parent=0 // pred_check_branch
    %29 = sbr.rel (0) target = $region33
  $region32: #{_basic_layer_impl.3} parent=0 // pred_region
    _
  $region33: #{_basic_layer_impl.3} parent=0 // pred_fallthru
    _
  // Predicated region
  $region34: #{_basic_layer_impl.3} parent=0 // pred_check
    _
  $region35: #{_basic_layer_impl.3} parent=0 // pred_check_branch
    %31 = sbr.rel (0) target = $region37
  $region36: #{_basic_layer_impl.3} parent=0 // pred_region
    _
  $region37: #{_basic_layer_impl.3} parent=0 // pred_fallthru
    _
  %v33 = vld [vmem:[%s0] sm:$0xff]
  %v34 = vld [vmem:[%s0 + $0x8] sm:$0xff]
  %v35 = vld [vmem:[%s0 + $0x10] sm:$0xff]
  %v36 = vld [vmem:[%s0 + $0x18] sm:$0xff]
  %v37 = vld [vmem:[%s0 + $0x20] sm:$0xff]
  %v38 = vld [vmem:[%s0 + $0x28] sm:$0xff]
  %v39 = vld [vmem:[%s0 + $0x30] sm:$0xff]
  %v40 = vld [vmem:[%s0 + $0x38] sm:$0xff]
  %v41 = vld [vmem:[%s0 + $0x40] sm:$0xff]
  %v42 = vld [vmem:[%s0 + $0x48] sm:$0xff]
  %v43 = vld [vmem:[%s0 + $0x50] sm:$0xff]
  %v44 = vld [vmem:[%s0 + $0x58] sm:$0xff]
  %v45 = vld [vmem:[%s0 + $0x60] sm:$0xff]
  %v46 = vld [vmem:[%s0 + $0x68] sm:$0xff]
  %v47 = vld [vmem:[%s0 + $0x70] sm:$0xff]
  %v48 = vld [vmem:[%s0 + $0x78] sm:$0xff]
  %vm49 = vcmask 261120
  %v50 = vsel %vm49, %v33, 0.0
  %51 = vadd.xlane.f32.xlu0 %v50
  %v52 = vpop.xlane.xlu0 %51
  %v53 = vsel %vm49, %v34, 0.0
  %54 = vadd.xlane.f32.xlu0 %v53
  %v55 = vpop.xlane.xlu0 %54
  %v56 = vsel %vm49, %v35, 0.0
  %57 = vadd.xlane.f32.xlu0 %v56
  %v58 = vpop.xlane.xlu0 %57
  %v59 = vsel %vm49, %v36, 0.0
  %60 = vadd.xlane.f32.xlu0 %v59
  %v61 = vpop.xlane.xlu0 %60
  %v62 = vsel %vm49, %v37, 0.0
  %63 = vadd.xlane.f32.xlu0 %v62
  %v64 = vpop.xlane.xlu0 %63
  %v65 = vsel %vm49, %v38, 0.0
  %66 = vadd.xlane.f32.xlu0 %v65
  %v67 = vpop.xlane.xlu0 %66
  %v68 = vsel %vm49, %v39, 0.0
  %69 = vadd.xlane.f32.xlu0 %v68
  %v70 = vpop.xlane.xlu0 %69
  %v71 = vsel %vm49, %v40, 0.0
  %72 = vadd.xlane.f32.xlu0 %v71
  %v73 = vpop.xlane.xlu0 %72
  %v74 = vsel %vm49, %v41, 0.0
  %75 = vadd.xlane.f32.xlu0 %v74
  %v76 = vpop.xlane.xlu0 %75
  %v77 = vsel %vm49, %v42, 0.0
  %78 = vadd.xlane.f32.xlu0 %v77
  %v79 = vpop.xlane.xlu0 %78
  %v80 = vsel %vm49, %v43, 0.0
  %81 = vadd.xlane.f32.xlu0 %v80
  %v82 = vpop.xlane.xlu0 %81
  %v83 = vsel %vm49, %v44, 0.0
  %84 = vadd.xlane.f32.xlu0 %v83
  %v85 = vpop.xlane.xlu0 %84
  %v86 = vsel %vm49, %v45, 0.0
  %87 = vadd.xlane.f32.xlu0 %v86
  %v88 = vpop.xlane.xlu0 %87
  %v89 = vsel %vm49, %v46, 0.0
  %90 = vadd.xlane.f32.xlu0 %v89
  %v91 = vpop.xlane.xlu0 %90
  %v92 = vsel %vm49, %v47, 0.0
  %93 = vadd.xlane.f32.xlu0 %v92
  %v94 = vpop.xlane.xlu0 %93
  %v95 = vsel %vm49, %v48, 0.0
  %96 = vadd.xlane.f32.xlu0 %v95
  %v97 = vpop.xlane.xlu0 %96
  %v98 = vrcp.pop 32.0
  %v99 = vmul.f32 32.0, %v98
  %v100 = vsub.f32 1.0, %v99
  %v101 = vmul.f32 %v98, %v100
  %v102 = vadd.f32 %v98, %v101
  %vm103 = vweird.f32 %v98
  %v104 = vsel %vm103, %v98, %v102
  %v105 = vmul.f32 %v52, %v104
  %v106 = vmul.f32 %v55, %v104
  %v107 = vmul.f32 %v58, %v104
  %v108 = vmul.f32 %v61, %v104
  %v109 = vmul.f32 %v64, %v104
  %v110 = vmul.f32 %v67, %v104
  %v111 = vmul.f32 %v70, %v104
  %v112 = vmul.f32 %v73, %v104
  %v113 = vmul.f32 %v76, %v104
  %v114 = vmul.f32 %v79, %v104
  %v115 = vmul.f32 %v82, %v104
  %v116 = vmul.f32 %v85, %v104
  %v117 = vmul.f32 %v88, %v104
  %v118 = vmul.f32 %v91, %v104
  %v119 = vmul.f32 %v94, %v104
  %v120 = vmul.f32 %v97, %v104
  %v121 = vsub.f32 %v33, %v105
  %v122 = vsub.f32 %v34, %v106
  %v123 = vsub.f32 %v35, %v107
  %v124 = vsub.f32 %v36, %v108
  %v125 = vsub.f32 %v37, %v109
  %v126 = vsub.f32 %v38, %v110
  %v127 = vsub.f32 %v39, %v111
  %v128 = vsub.f32 %v40, %v112
  %v129 = vsub.f32 %v41, %v113
  %v130 = vsub.f32 %v42, %v114
  %v131 = vsub.f32 %v43, %v115
  %v132 = vsub.f32 %v44, %v116
  %v133 = vsub.f32 %v45, %v117
  %v134 = vsub.f32 %v46, %v118
  %v135 = vsub.f32 %v47, %v119
  %v136 = vsub.f32 %v48, %v120
  %v137 = vmul.f32 %v121, %v121
  %v138 = vmul.f32 %v122, %v122
  %v139 = vmul.f32 %v123, %v123
  %v140 = vmul.f32 %v124, %v124
  %v141 = vmul.f32 %v125, %v125
  %v142 = vmul.f32 %v126, %v126
  %v143 = vmul.f32 %v127, %v127
  %v144 = vmul.f32 %v128, %v128
  %v145 = vmul.f32 %v129, %v129
  %v146 = vmul.f32 %v130, %v130
  %v147 = vmul.f32 %v131, %v131
  %v148 = vmul.f32 %v132, %v132
  %v149 = vmul.f32 %v133, %v133
  %v150 = vmul.f32 %v134, %v134
  %v151 = vmul.f32 %v135, %v135
  %v152 = vmul.f32 %v136, %v136
  %v153 = vsel %vm49, %v137, 0.0
  %154 = vadd.xlane.f32.xlu0 %v153
  %v155 = vpop.xlane.xlu0 %154
  %v156 = vsel %vm49, %v138, 0.0
  %157 = vadd.xlane.f32.xlu0 %v156
  %v158 = vpop.xlane.xlu0 %157
  %v159 = vsel %vm49, %v139, 0.0
  %160 = vadd.xlane.f32.xlu0 %v159
  %v161 = vpop.xlane.xlu0 %160
  %v162 = vsel %vm49, %v140, 0.0
  %163 = vadd.xlane.f32.xlu0 %v162
  %v164 = vpop.xlane.xlu0 %163
  %v165 = vsel %vm49, %v141, 0.0
  %166 = vadd.xlane.f32.xlu0 %v165
  %v167 = vpop.xlane.xlu0 %166
  %v168 = vsel %vm49, %v142, 0.0
  %169 = vadd.xlane.f32.xlu0 %v168
  %v170 = vpop.xlane.xlu0 %169
  %v171 = vsel %vm49, %v143, 0.0
  %172 = vadd.xlane.f32.xlu0 %v171
  %v173 = vpop.xlane.xlu0 %172
  %v174 = vsel %vm49, %v144, 0.0
  %175 = vadd.xlane.f32.xlu0 %v174
  %v176 = vpop.xlane.xlu0 %175
  %v177 = vsel %vm49, %v145, 0.0
  %178 = vadd.xlane.f32.xlu0 %v177
  %v179 = vpop.xlane.xlu0 %178
  %v180 = vsel %vm49, %v146, 0.0
  %181 = vadd.xlane.f32.xlu0 %v180
  %v182 = vpop.xlane.xlu0 %181
  %v183 = vsel %vm49, %v147, 0.0
  %184 = vadd.xlane.f32.xlu0 %v183
  %v185 = vpop.xlane.xlu0 %184
  %v186 = vsel %vm49, %v148, 0.0
  %187 = vadd.xlane.f32.xlu0 %v186
  %v188 = vpop.xlane.xlu0 %187
  %v189 = vsel %vm49, %v149, 0.0
  %190 = vadd.xlane.f32.xlu0 %v189
  %v191 = vpop.xlane.xlu0 %190
  %v192 = vsel %vm49, %v150, 0.0
  %193 = vadd.xlane.f32.xlu0 %v192
  %v194 = vpop.xlane.xlu0 %193
  %v195 = vsel %vm49, %v151, 0.0
  %196 = vadd.xlane.f32.xlu0 %v195
  %v197 = vpop.xlane.xlu0 %196
  %v198 = vsel %vm49, %v152, 0.0
  %199 = vadd.xlane.f32.xlu0 %v198
  %v200 = vpop.xlane.xlu0 %199
  %v201 = vmul.f32 %v155, %v104
  %v202 = vmul.f32 %v158, %v104
  %v203 = vmul.f32 %v161, %v104
  %v204 = vmul.f32 %v164, %v104
  %v205 = vmul.f32 %v167, %v104
  %v206 = vmul.f32 %v170, %v104
  %v207 = vmul.f32 %v173, %v104
  %v208 = vmul.f32 %v176, %v104
  %v209 = vmul.f32 %v179, %v104
  %v210 = vmul.f32 %v182, %v104
  %v211 = vmul.f32 %v185, %v104
  %v212 = vmul.f32 %v188, %v104
  %v213 = vmul.f32 %v191, %v104
  %v214 = vmul.f32 %v194, %v104
  %v215 = vmul.f32 %v197, %v104
  %v216 = vmul.f32 %v200, %v104
  %v217 = vadd.f32 %v201, 1e-05
  %v218 = vadd.f32 %v202, 1e-05
  %v219 = vadd.f32 %v203, 1e-05
  %v220 = vadd.f32 %v204, 1e-05
  %v221 = vadd.f32 %v205, 1e-05
  %v222 = vadd.f32 %v206, 1e-05
  %v223 = vadd.f32 %v207, 1e-05
  %v224 = vadd.f32 %v208, 1e-05
  %v225 = vadd.f32 %v209, 1e-05
  %v226 = vadd.f32 %v210, 1e-05
  %v227 = vadd.f32 %v211, 1e-05
  %v228 = vadd.f32 %v212, 1e-05
  %v229 = vadd.f32 %v213, 1e-05
  %v230 = vadd.f32 %v214, 1e-05
  %v231 = vadd.f32 %v215, 1e-05
  %v232 = vadd.f32 %v216, 1e-05
  %v233 = vrsqrt.pop %v217
  %v234 = vmul.f32 %v233, %v217
  %v235 = vmul.f32 %v234, %v233
  %v236 = vmul.f32 0.5, %v235
  %v237 = vsub.f32 1.5, %v236
  %v238 = vmul.f32 %v233, %v237
  %vm239 = vweird.f32 %v217
  %vm240 = vweird.f32 %v233
  %vm241 = vmor %vm239, %vm240
  %v242 = vsel %vm241, %v233, %v238
  %v243 = vrsqrt.pop %v218
  %v244 = vmul.f32 %v243, %v218
  %v245 = vmul.f32 %v244, %v243
  %v246 = vmul.f32 0.5, %v245
  %v247 = vsub.f32 1.5, %v246
  %v248 = vmul.f32 %v243, %v247
  %vm249 = vweird.f32 %v218
  %vm250 = vweird.f32 %v243
  %vm251 = vmor %vm249, %vm250
  %v252 = vsel %vm251, %v243, %v248
  %v253 = vrsqrt.pop %v219
  %v254 = vmul.f32 %v253, %v219
  %v255 = vmul.f32 %v254, %v253
  %v256 = vmul.f32 0.5, %v255
  %v257 = vsub.f32 1.5, %v256
  %v258 = vmul.f32 %v253, %v257
  %vm259 = vweird.f32 %v219
  %vm260 = vweird.f32 %v253
  %vm261 = vmor %vm259, %vm260
  %v262 = vsel %vm261, %v253, %v258
  %v263 = vrsqrt.pop %v220
  %v264 = vmul.f32 %v263, %v220
  %v265 = vmul.f32 %v264, %v263
  %v266 = vmul.f32 0.5, %v265
  %v267 = vsub.f32 1.5, %v266
  %v268 = vmul.f32 %v263, %v267
  %vm269 = vweird.f32 %v220
  %vm270 = vweird.f32 %v263
  %vm271 = vmor %vm269, %vm270
  %v272 = vsel %vm271, %v263, %v268
  %v273 = vrsqrt.pop %v221
  %v274 = vmul.f32 %v273, %v221
  %v275 = vmul.f32 %v274, %v273
  %v276 = vmul.f32 0.5, %v275
  %v277 = vsub.f32 1.5, %v276
  %v278 = vmul.f32 %v273, %v277
  %vm279 = vweird.f32 %v221
  %vm280 = vweird.f32 %v273
  %vm281 = vmor %vm279, %vm280
  %v282 = vsel %vm281, %v273, %v278
  %v283 = vrsqrt.pop %v222
  %v284 = vmul.f32 %v283, %v222
  %v285 = vmul.f32 %v284, %v283
  %v286 = vmul.f32 0.5, %v285
  %v287 = vsub.f32 1.5, %v286
  %v288 = vmul.f32 %v283, %v287
  %vm289 = vweird.f32 %v222
  %vm290 = vweird.f32 %v283
  %vm291 = vmor %vm289, %vm290
  %v292 = vsel %vm291, %v283, %v288
  %v293 = vrsqrt.pop %v223
  %v294 = vmul.f32 %v293, %v223
  %v295 = vmul.f32 %v294, %v293
  %v296 = vmul.f32 0.5, %v295
  %v297 = vsub.f32 1.5, %v296
  %v298 = vmul.f32 %v293, %v297
  %vm299 = vweird.f32 %v223
  %vm300 = vweird.f32 %v293
  %vm301 = vmor %vm299, %vm300
  %v302 = vsel %vm301, %v293, %v298
  %v303 = vrsqrt.pop %v224
  %v304 = vmul.f32 %v303, %v224
  %v305 = vmul.f32 %v304, %v303
  %v306 = vmul.f32 0.5, %v305
  %v307 = vsub.f32 1.5, %v306
  %v308 = vmul.f32 %v303, %v307
  %vm309 = vweird.f32 %v224
  %vm310 = vweird.f32 %v303
  %vm311 = vmor %vm309, %vm310
  %v312 = vsel %vm311, %v303, %v308
  %v313 = vrsqrt.pop %v225
  %v314 = vmul.f32 %v313, %v225
  %v315 = vmul.f32 %v314, %v313
  %v316 = vmul.f32 0.5, %v315
  %v317 = vsub.f32 1.5, %v316
  %v318 = vmul.f32 %v313, %v317
  %vm319 = vweird.f32 %v225
  %vm320 = vweird.f32 %v313
  %vm321 = vmor %vm319, %vm320
  %v322 = vsel %vm321, %v313, %v318
  %v323 = vrsqrt.pop %v226
  %v324 = vmul.f32 %v323, %v226
  %v325 = vmul.f32 %v324, %v323
  %v326 = vmul.f32 0.5, %v325
  %v327 = vsub.f32 1.5, %v326
  %v328 = vmul.f32 %v323, %v327
  %vm329 = vweird.f32 %v226
  %vm330 = vweird.f32 %v323
  %vm331 = vmor %vm329, %vm330
  %v332 = vsel %vm331, %v323, %v328
  %v333 = vrsqrt.pop %v227
  %v334 = vmul.f32 %v333, %v227
  %v335 = vmul.f32 %v334, %v333
  %v336 = vmul.f32 0.5, %v335
  %v337 = vsub.f32 1.5, %v336
  %v338 = vmul.f32 %v333, %v337
  %vm339 = vweird.f32 %v227
  %vm340 = vweird.f32 %v333
  %vm341 = vmor %vm339, %vm340
  %v342 = vsel %vm341, %v333, %v338
  %v343 = vrsqrt.pop %v228
  %v344 = vmul.f32 %v343, %v228
  %v345 = vmul.f32 %v344, %v343
  %v346 = vmul.f32 0.5, %v345
  %v347 = vsub.f32 1.5, %v346
  %v348 = vmul.f32 %v343, %v347
  %vm349 = vweird.f32 %v228
  %vm350 = vweird.f32 %v343
  %vm351 = vmor %vm349, %vm350
  %v352 = vsel %vm351, %v343, %v348
  %v353 = vrsqrt.pop %v229
  %v354 = vmul.f32 %v353, %v229
  %v355 = vmul.f32 %v354, %v353
  %v356 = vmul.f32 0.5, %v355
  %v357 = vsub.f32 1.5, %v356
  %v358 = vmul.f32 %v353, %v357
  %vm359 = vweird.f32 %v229
  %vm360 = vweird.f32 %v353
  %vm361 = vmor %vm359, %vm360
  %v362 = vsel %vm361, %v353, %v358
  %v363 = vrsqrt.pop %v230
  %v364 = vmul.f32 %v363, %v230
  %v365 = vmul.f32 %v364, %v363
  %v366 = vmul.f32 0.5, %v365
  %v367 = vsub.f32 1.5, %v366
  %v368 = vmul.f32 %v363, %v367
  %vm369 = vweird.f32 %v230
  %vm370 = vweird.f32 %v363
  %vm371 = vmor %vm369, %vm370
  %v372 = vsel %vm371, %v363, %v368
  %v373 = vrsqrt.pop %v231
  %v374 = vmul.f32 %v373, %v231
  %v375 = vmul.f32 %v374, %v373
  %v376 = vmul.f32 0.5, %v375
  %v377 = vsub.f32 1.5, %v376
  %v378 = vmul.f32 %v373, %v377
  %vm379 = vweird.f32 %v231
  %vm380 = vweird.f32 %v373
  %vm381 = vmor %vm379, %vm380
  %v382 = vsel %vm381, %v373, %v378
  %v383 = vrsqrt.pop %v232
  %v384 = vmul.f32 %v383, %v232
  %v385 = vmul.f32 %v384, %v383
  %v386 = vmul.f32 0.5, %v385
  %v387 = vsub.f32 1.5, %v386
  %v388 = vmul.f32 %v383, %v387
  %vm389 = vweird.f32 %v232
  %vm390 = vweird.f32 %v383
  %vm391 = vmor %vm389, %vm390
  %v392 = vsel %vm391, %v383, %v388
  %v393 = vmul.f32 %v121, %v242
  %v394 = vmul.f32 %v122, %v252
  %v395 = vmul.f32 %v123, %v262
  %v396 = vmul.f32 %v124, %v272
  %v397 = vmul.f32 %v125, %v282
  %v398 = vmul.f32 %v126, %v292
  %v399 = vmul.f32 %v127, %v302
  %v400 = vmul.f32 %v128, %v312
  %v401 = vmul.f32 %v129, %v322
  %v402 = vmul.f32 %v130, %v332
  %v403 = vmul.f32 %v131, %v342
  %v404 = vmul.f32 %v132, %v352
  %v405 = vmul.f32 %v133, %v362
  %v406 = vmul.f32 %v134, %v372
  %v407 = vmul.f32 %v135, %v382
  %v408 = vmul.f32 %v136, %v392
  %v409 = vld [vmem:[%s2] sm:$0x1]
  %v411 = vperm.slane %v409, 0
  %v413 = vmul.f32 %v393, %v411
  %v414 = vmul.f32 %v394, %v411
  %v415 = vmul.f32 %v395, %v411
  %v416 = vmul.f32 %v396, %v411
  %v417 = vmul.f32 %v397, %v411
  %v418 = vmul.f32 %v398, %v411
  %v419 = vmul.f32 %v399, %v411
  %v420 = vmul.f32 %v400, %v411
  %v421 = vmul.f32 %v401, %v411
  %v422 = vmul.f32 %v402, %v411
  %v423 = vmul.f32 %v403, %v411
  %v424 = vmul.f32 %v404, %v411
  %v425 = vmul.f32 %v405, %v411
  %v426 = vmul.f32 %v406, %v411
  %v427 = vmul.f32 %v407, %v411
  %v428 = vmul.f32 %v408, %v411
  %v429 = vld [vmem:[%s3] sm:$0x1]
  %v431 = vperm.slane %v429, 0
  %v433 = vadd.f32 %v413, %v431
  %v434 = vadd.f32 %v414, %v431
  %v435 = vadd.f32 %v415, %v431
  %v436 = vadd.f32 %v416, %v431
  %v437 = vadd.f32 %v417, %v431
  %v438 = vadd.f32 %v418, %v431
  %v439 = vadd.f32 %v419, %v431
  %v440 = vadd.f32 %v420, %v431
  %v441 = vadd.f32 %v421, %v431
  %v442 = vadd.f32 %v422, %v431
  %v443 = vadd.f32 %v423, %v431
  %v444 = vadd.f32 %v424, %v431
  %v445 = vadd.f32 %v425, %v431
  %v446 = vadd.f32 %v426, %v431
  %v447 = vadd.f32 %v427, %v431
  %v448 = vadd.f32 %v428, %v431
  %v449 = vpack.c.bf16 %v434, %v433
  %v450 = vpack.c.bf16 %v436, %v435
  %v451 = vpack.c.bf16 %v438, %v437
  %v452 = vpack.c.bf16 %v440, %v439
  %v453 = vpack.c.bf16 %v442, %v441
  %v454 = vpack.c.bf16 %v444, %v443
  %v455 = vpack.c.bf16 %v446, %v445
  %v456 = vpack.c.bf16 %v448, %v447
  %v457 = vld [vmem:[%s4] sm:$0xf]
  %v458 = vld [vmem:[%s4 + $0x4] sm:$0xf]
  %v459 = vld [vmem:[%s4 + $0x8] sm:$0xf]
  %v460 = vld [vmem:[%s4 + $0xc] sm:$0xf]
  %v461 = vld [vmem:[%s5] sm:$0x1]
  %v463 = vperm.slane %v461, 0
  %v469 = vunpack.c.l.b16 %v457
  %v470 = vunpack.c.l.b16 %v458
  %v471 = vunpack.c.l.b16 %v459
  %v472 = vunpack.c.l.b16 %v460
  %v473 = vpack.c.b16 %v470, %v469
  %v474 = vpack.c.b16 %v472, %v471
  %v478 = vsel %vm49, %v449, 0
  %v481 = vsel %vm49, %v450, 0
  %v484 = vsel %vm49, %v451, 0
  %v487 = vsel %vm49, %v452, 0
  %v490 = vsel %vm49, %v453, 0
  %v493 = vsel %vm49, %v454, 0
  %v496 = vsel %vm49, %v455, 0
  %v499 = vsel %vm49, %v456, 0
  %501 = vmatpush.bf16.msra.mxu0 0
  %502 = vmatpush.bf16.msra.mxu0 0
  %503 = vmatpush.bf16.msra.mxu0 0
  %504 = vmatpush.bf16.msra.mxu0 0
  %505 = vmatpush.bf16.msra.mxu0 0
  %506 = vmatpush.bf16.msra.mxu0 0
  %507 = vmatpush.bf16.msra.mxu0 %v474
  %508 = vmatpush.bf16.msra.mxu0 %v473
  %509 = vmatmul.bf16.gmra.mxu0 %v478
  %v510 = vpop.f32.mrf.mxu0
  %v511 = vadd.f32 %v463, %v510
  %v512 = vpop.f32.mrf.mxu0
  %v513 = vadd.f32 %v463, %v512
  %514 = vmatmul.bf16.gmra.mxu0 %v481
  %v515 = vpop.f32.mrf.mxu0
  %v516 = vadd.f32 %v463, %v515
  %v517 = vpop.f32.mrf.mxu0
  %v518 = vadd.f32 %v463, %v517
  %519 = vmatmul.bf16.gmra.mxu0 %v484
  %v520 = vpop.f32.mrf.mxu0
  %v521 = vadd.f32 %v463, %v520
  %v522 = vpop.f32.mrf.mxu0
  %v523 = vadd.f32 %v463, %v522
  %524 = vmatmul.bf16.gmra.mxu0 %v487
  %v525 = vpop.f32.mrf.mxu0
  %v526 = vadd.f32 %v463, %v525
  %v527 = vpop.f32.mrf.mxu0
  %v528 = vadd.f32 %v463, %v527
  %529 = vmatmul.bf16.gmra.mxu0 %v490
  %v530 = vpop.f32.mrf.mxu0
  %v531 = vadd.f32 %v463, %v530
  %v532 = vpop.f32.mrf.mxu0
  %v533 = vadd.f32 %v463, %v532
  %534 = vmatmul.bf16.gmra.mxu0 %v493
  %v535 = vpop.f32.mrf.mxu0
  %v536 = vadd.f32 %v463, %v535
  %v537 = vpop.f32.mrf.mxu0
  %v538 = vadd.f32 %v463, %v537
  %539 = vmatmul.bf16.gmra.mxu0 %v496
  %v540 = vpop.f32.mrf.mxu0
  %v541 = vadd.f32 %v463, %v540
  %v542 = vpop.f32.mrf.mxu0
  %v543 = vadd.f32 %v463, %v542
  %544 = vmatmul.bf16.gmra.mxu0 %v499
  %v545 = vpop.f32.mrf.mxu0
  %v546 = vadd.f32 %v463, %v545
  %v547 = vpop.f32.mrf.mxu0
  %v548 = vadd.f32 %v463, %v547
  %549 = vdwg.mxu0
  %v550 = vmul.f32 %v511, 0.35355338
  %v551 = vmul.f32 %v513, 0.35355338
  %v552 = vmul.f32 %v516, 0.35355338
  %v553 = vmul.f32 %v518, 0.35355338
  %v554 = vmul.f32 %v521, 0.35355338
  %v555 = vmul.f32 %v523, 0.35355338
  %v556 = vmul.f32 %v526, 0.35355338
  %v557 = vmul.f32 %v528, 0.35355338
  %v558 = vmul.f32 %v531, 0.35355338
  %v559 = vmul.f32 %v533, 0.35355338
  %v560 = vmul.f32 %v536, 0.35355338
  %v561 = vmul.f32 %v538, 0.35355338
  %v562 = vmul.f32 %v541, 0.35355338
  %v563 = vmul.f32 %v543, 0.35355338
  %v564 = vmul.f32 %v546, 0.35355338
  %v565 = vmul.f32 %v548, 0.35355338
  %s566 = scalar_lea.vmem %s4, 16
  %v567 = vld [vmem:[%s566] sm:$0xf]
  %v568 = vld [vmem:[%s566 + $0x4] sm:$0xf]
  %v569 = vld [vmem:[%s566 + $0x8] sm:$0xf]
  %v570 = vld [vmem:[%s566 + $0xc] sm:$0xf]
  %s571 = scalar_lea.vmem %s5, 1
  %v572 = vld [vmem:[%s571] sm:$0x1]
  %v574 = vperm.slane %v572, 0
  %v580 = vunpack.c.l.b16 %v567
  %v581 = vunpack.c.l.b16 %v568
  %v582 = vunpack.c.l.b16 %v569
  %v583 = vunpack.c.l.b16 %v570
  %v584 = vpack.c.b16 %v581, %v580
  %v585 = vpack.c.b16 %v583, %v582
  %588 = vmatpush.bf16.msra.mxu0 0
  %589 = vmatpush.bf16.msra.mxu0 0
  %590 = vmatpush.bf16.msra.mxu0 0
  %591 = vmatpush.bf16.msra.mxu0 0
  %592 = vmatpush.bf16.msra.mxu0 0
  %593 = vmatpush.bf16.msra.mxu0 0
  %594 = vmatpush.bf16.msra.mxu0 %v585
  %595 = vmatpush.bf16.msra.mxu0 %v584
  %596 = vmatmul.bf16.gmra.mxu0 %v478
  %v597 = vpop.f32.mrf.mxu0
  %v598 = vadd.f32 %v574, %v597
  %v599 = vpop.f32.mrf.mxu0
  %v600 = vadd.f32 %v574, %v599
  %601 = vmatmul.bf16.gmra.mxu0 %v481
  %v602 = vpop.f32.mrf.mxu0
  %v603 = vadd.f32 %v574, %v602
  %v604 = vpop.f32.mrf.mxu0
  %v605 = vadd.f32 %v574, %v604
  %606 = vmatmul.bf16.gmra.mxu0 %v484
  %v607 = vpop.f32.mrf.mxu0
  %v608 = vadd.f32 %v574, %v607
  %v609 = vpop.f32.mrf.mxu0
  %v610 = vadd.f32 %v574, %v609
  %611 = vmatmul.bf16.gmra.mxu0 %v487
  %v612 = vpop.f32.mrf.mxu0
  %v613 = vadd.f32 %v574, %v612
  %v614 = vpop.f32.mrf.mxu0
  %v615 = vadd.f32 %v574, %v614
  %616 = vmatmul.bf16.gmra.mxu0 %v490
  %v617 = vpop.f32.mrf.mxu0
  %v618 = vadd.f32 %v574, %v617
  %v619 = vpop.f32.mrf.mxu0
  %v620 = vadd.f32 %v574, %v619
  %621 = vmatmul.bf16.gmra.mxu0 %v493
  %v622 = vpop.f32.mrf.mxu0
  %v623 = vadd.f32 %v574, %v622
  %v624 = vpop.f32.mrf.mxu0
  %v625 = vadd.f32 %v574, %v624
  %626 = vmatmul.bf16.gmra.mxu0 %v496
  %v627 = vpop.f32.mrf.mxu0
  %v628 = vadd.f32 %v574, %v627
  %v629 = vpop.f32.mrf.mxu0
  %v630 = vadd.f32 %v574, %v629
  %631 = vmatmul.bf16.gmra.mxu0 %v499
  %v632 = vpop.f32.mrf.mxu0
  %v633 = vadd.f32 %v574, %v632
  %v634 = vpop.f32.mrf.mxu0
  %v635 = vadd.f32 %v574, %v634
  %636 = vdwg.mxu0
  %s637 = scalar_lea.vmem %s4, 32
  %v638 = vld [vmem:[%s637] sm:$0xf]
  %v639 = vld [vmem:[%s637 + $0x4] sm:$0xf]
  %v640 = vld [vmem:[%s637 + $0x8] sm:$0xf]
  %v641 = vld [vmem:[%s637 + $0xc] sm:$0xf]
  %s642 = scalar_lea.vmem %s5, 2
  %v643 = vld [vmem:[%s642] sm:$0x1]
  %v645 = vperm.slane %v643, 0
  %v651 = vunpack.c.l.b16 %v638
  %v652 = vunpack.c.l.b16 %v639
  %v653 = vunpack.c.l.b16 %v640
  %v654 = vunpack.c.l.b16 %v641
  %v655 = vpack.c.b16 %v652, %v651
  %v656 = vpack.c.b16 %v654, %v653
  %659 = vmatpush.bf16.msra.mxu0 0
  %660 = vmatpush.bf16.msra.mxu0 0
  %661 = vmatpush.bf16.msra.mxu0 0
  %662 = vmatpush.bf16.msra.mxu0 0
  %663 = vmatpush.bf16.msra.mxu0 0
  %664 = vmatpush.bf16.msra.mxu0 0
  %665 = vmatpush.bf16.msra.mxu0 %v656
  %666 = vmatpush.bf16.msra.mxu0 %v655
  %667 = vmatmul.bf16.gmra.mxu0 %v478
  %v668 = vpop.f32.mrf.mxu0
  %v669 = vadd.f32 %v645, %v668
  %v670 = vpop.f32.mrf.mxu0
  %v671 = vadd.f32 %v645, %v670
  %672 = vmatmul.bf16.gmra.mxu0 %v481
  %v673 = vpop.f32.mrf.mxu0
  %v674 = vadd.f32 %v645, %v673
  %v675 = vpop.f32.mrf.mxu0
  %v676 = vadd.f32 %v645, %v675
  %677 = vmatmul.bf16.gmra.mxu0 %v484
  %v678 = vpop.f32.mrf.mxu0
  %v679 = vadd.f32 %v645, %v678
  %v680 = vpop.f32.mrf.mxu0
  %v681 = vadd.f32 %v645, %v680
  %682 = vmatmul.bf16.gmra.mxu0 %v487
  %v683 = vpop.f32.mrf.mxu0
  %v684 = vadd.f32 %v645, %v683
  %v685 = vpop.f32.mrf.mxu0
  %v686 = vadd.f32 %v645, %v685
  %687 = vmatmul.bf16.gmra.mxu0 %v490
  %v688 = vpop.f32.mrf.mxu0
  %v689 = vadd.f32 %v645, %v688
  %v690 = vpop.f32.mrf.mxu0
  %v691 = vadd.f32 %v645, %v690
  %692 = vmatmul.bf16.gmra.mxu0 %v493
  %v693 = vpop.f32.mrf.mxu0
  %v694 = vadd.f32 %v645, %v693
  %v695 = vpop.f32.mrf.mxu0
  %v696 = vadd.f32 %v645, %v695
  %697 = vmatmul.bf16.gmra.mxu0 %v496
  %v698 = vpop.f32.mrf.mxu0
  %v699 = vadd.f32 %v645, %v698
  %v700 = vpop.f32.mrf.mxu0
  %v701 = vadd.f32 %v645, %v700
  %702 = vmatmul.bf16.gmra.mxu0 %v499
  %v703 = vpop.f32.mrf.mxu0
  %v704 = vadd.f32 %v645, %v703
  %v705 = vpop.f32.mrf.mxu0
  %v706 = vadd.f32 %v645, %v705
  %707 = vdwg.mxu0
  %v708 = vpack.c.bf16 %v550, %v550
  %v709 = vpack.c.bf16 %v551, %v551
  %v710 = vpack.c.bf16 %v552, %v552
  %v711 = vpack.c.bf16 %v553, %v553
  %v712 = vpack.c.bf16 %v554, %v554
  %v713 = vpack.c.bf16 %v555, %v555
  %v714 = vpack.c.bf16 %v556, %v556
  %v715 = vpack.c.bf16 %v557, %v557
  %v716 = vpack.c.bf16 %v558, %v558
  %v717 = vpack.c.bf16 %v559, %v559
  %v718 = vpack.c.bf16 %v560, %v560
  %v719 = vpack.c.bf16 %v561, %v561
  %v720 = vpack.c.bf16 %v562, %v562
  %v721 = vpack.c.bf16 %v563, %v563
  %v722 = vpack.c.bf16 %v564, %v564
  %v723 = vpack.c.bf16 %v565, %v565
  %v724 = vpack.c.bf16 %v598, %v598
  %v725 = vpack.c.bf16 %v600, %v600
  %v726 = vpack.c.bf16 %v603, %v603
  %v727 = vpack.c.bf16 %v605, %v605
  %v728 = vpack.c.bf16 %v608, %v608
  %v729 = vpack.c.bf16 %v610, %v610
  %v730 = vpack.c.bf16 %v613, %v613
  %v731 = vpack.c.bf16 %v615, %v615
  %v732 = vpack.c.bf16 %v618, %v618
  %v733 = vpack.c.bf16 %v620, %v620
  %v734 = vpack.c.bf16 %v623, %v623
  %v735 = vpack.c.bf16 %v625, %v625
  %v736 = vpack.c.bf16 %v628, %v628
  %v737 = vpack.c.bf16 %v630, %v630
  %v738 = vpack.c.bf16 %v633, %v633
  %v739 = vpack.c.bf16 %v635, %v635
  %v740 = vpack.c.bf16 %v669, %v669
  %v741 = vpack.c.bf16 %v671, %v671
  %v742 = vpack.c.bf16 %v674, %v674
  %v743 = vpack.c.bf16 %v676, %v676
  %v744 = vpack.c.bf16 %v679, %v679
  %v745 = vpack.c.bf16 %v681, %v681
  %v746 = vpack.c.bf16 %v684, %v684
  %v747 = vpack.c.bf16 %v686, %v686
  %v748 = vpack.c.bf16 %v689, %v689
  %v749 = vpack.c.bf16 %v691, %v691
  %v750 = vpack.c.bf16 %v694, %v694
  %v751 = vpack.c.bf16 %v696, %v696
  %v752 = vpack.c.bf16 %v699, %v699
  %v753 = vpack.c.bf16 %v701, %v701
  %v754 = vpack.c.bf16 %v704, %v704
  %v755 = vpack.c.bf16 %v706, %v706
  %v756 = vld [vmem:[%s8] sm:$0xff]
  %v757 = vld [vmem:[%s8 + $0x8] sm:$0xff]
  %v758 = vld [vmem:[%s8 + $0x10] sm:$0xff]
  %v759 = vld [vmem:[%s8 + $0x18] sm:$0xff]
  %v760 = vld [vmem:[%s8 + $0x20] sm:$0xff]
  %v761 = vld [vmem:[%s8 + $0x28] sm:$0xff]
  %v762 = vld [vmem:[%s8 + $0x30] sm:$0xff]
  %v763 = vld [vmem:[%s8 + $0x38] sm:$0xff]
  %v764 = vld [vmem:[%s1] sm:$0xff]
  %v765 = vld [vmem:[%s1 + $0x8] sm:$0xff]
  %v766 = vld [vmem:[%s1 + $0x10] sm:$0xff]
  %v767 = vld [vmem:[%s1 + $0x18] sm:$0xff]
  %v768 = vld [vmem:[%s1 + $0x20] sm:$0xff]
  %v769 = vld [vmem:[%s1 + $0x28] sm:$0xff]
  %v770 = vld [vmem:[%s1 + $0x30] sm:$0xff]
  %v771 = vld [vmem:[%s1 + $0x38] sm:$0xff]
  %v772 = vld [vmem:[%s1 + $0x40] sm:$0xff]
  %v773 = vld [vmem:[%s1 + $0x48] sm:$0xff]
  %v774 = vld [vmem:[%s1 + $0x50] sm:$0xff]
  %v775 = vld [vmem:[%s1 + $0x58] sm:$0xff]
  %v776 = vld [vmem:[%s1 + $0x60] sm:$0xff]
  %v777 = vld [vmem:[%s1 + $0x68] sm:$0xff]
  %v778 = vld [vmem:[%s1 + $0x70] sm:$0xff]
  %v779 = vld [vmem:[%s1 + $0x78] sm:$0xff]
  %v782 = vunpack.c.l.b16 %v708
  %v783 = vunpack.c.l.b16 %v709
  %v784 = vpack.c.b16 %v783, %v782
  %v787 = vunpack.c.l.b16 %v724
  %v788 = vunpack.c.l.b16 %v725
  %v789 = vpack.c.b16 %v788, %v787
  %vm790 = vcmask 64512
  %v792 = vsel %vm790, %v784, 0
  %v795 = vsel %vm790, %v789, 0
  %797 = vmatpush.bf16.xpose.msra.mxu0 0
  %798 = vmatpush.bf16.xpose.msra.mxu0 0
  %799 = vmatpush.bf16.xpose.msra.mxu0 0
  %800 = vmatpush.bf16.xpose.msra.mxu0 0
  %801 = vmatpush.bf16.xpose.msra.mxu0 0
  %802 = vmatpush.bf16.xpose.msra.mxu0 0
  %803 = vmatpush.bf16.xpose.msra.mxu0 0
  %804 = vmatpush.bf16.xpose.msra.mxu0 %v795
  %805 = vmatmul.bf16.gmra.mxu0 %v792
  %v806 = vpop.f32.mrf.mxu0
  %v807 = vadd.f32 %v756, %v806
  %v808 = vpop.f32.mrf.mxu0
  %v809 = vadd.f32 %v757, %v808
  %810 = vdwg.mxu0
  %v813 = vunpack.c.l.b16 %v710
  %v814 = vunpack.c.l.b16 %v711
  %v815 = vpack.c.b16 %v814, %v813
  %v818 = vunpack.c.l.b16 %v726
  %v819 = vunpack.c.l.b16 %v727
  %v820 = vpack.c.b16 %v819, %v818
  %v822 = vsel %vm790, %v815, 0
  %v825 = vsel %vm790, %v820, 0
  %827 = vmatpush.bf16.xpose.msra.mxu0 0
  %828 = vmatpush.bf16.xpose.msra.mxu0 0
  %829 = vmatpush.bf16.xpose.msra.mxu0 0
  %830 = vmatpush.bf16.xpose.msra.mxu0 0
  %831 = vmatpush.bf16.xpose.msra.mxu0 0
  %832 = vmatpush.bf16.xpose.msra.mxu0 0
  %833 = vmatpush.bf16.xpose.msra.mxu0 0
  %834 = vmatpush.bf16.xpose.msra.mxu0 %v825
  %835 = vmatmul.bf16.gmra.mxu0 %v822
  %v836 = vpop.f32.mrf.mxu0
  %v837 = vadd.f32 %v756, %v836
  %v838 = vpop.f32.mrf.mxu0
  %v839 = vadd.f32 %v757, %v838
  %840 = vdwg.mxu0
  %v843 = vunpack.c.l.b16 %v712
  %v844 = vunpack.c.l.b16 %v713
  %v845 = vpack.c.b16 %v844, %v843
  %v848 = vunpack.c.l.b16 %v728
  %v849 = vunpack.c.l.b16 %v729
  %v850 = vpack.c.b16 %v849, %v848
  %v852 = vsel %vm790, %v845, 0
  %v855 = vsel %vm790, %v850, 0
  %857 = vmatpush.bf16.xpose.msra.mxu0 0
  %858 = vmatpush.bf16.xpose.msra.mxu0 0
  %859 = vmatpush.bf16.xpose.msra.mxu0 0
  %860 = vmatpush.bf16.xpose.msra.mxu0 0
  %861 = vmatpush.bf16.xpose.msra.mxu0 0
  %862 = vmatpush.bf16.xpose.msra.mxu0 0
  %863 = vmatpush.bf16.xpose.msra.mxu0 0
  %864 = vmatpush.bf16.xpose.msra.mxu0 %v855
  %865 = vmatmul.bf16.gmra.mxu0 %v852
  %v866 = vpop.f32.mrf.mxu0
  %v867 = vadd.f32 %v756, %v866
  %v868 = vpop.f32.mrf.mxu0
  %v869 = vadd.f32 %v757, %v868
  %870 = vdwg.mxu0
  %v873 = vunpack.c.l.b16 %v714
  %v874 = vunpack.c.l.b16 %v715
  %v875 = vpack.c.b16 %v874, %v873
  %v878 = vunpack.c.l.b16 %v730
  %v879 = vunpack.c.l.b16 %v731
  %v880 = vpack.c.b16 %v879, %v878
  %v882 = vsel %vm790, %v875, 0
  %v885 = vsel %vm790, %v880, 0
  %887 = vmatpush.bf16.xpose.msra.mxu0 0
  %888 = vmatpush.bf16.xpose.msra.mxu0 0
  %889 = vmatpush.bf16.xpose.msra.mxu0 0
  %890 = vmatpush.bf16.xpose.msra.mxu0 0
  %891 = vmatpush.bf16.xpose.msra.mxu0 0
  %892 = vmatpush.bf16.xpose.msra.mxu0 0
  %893 = vmatpush.bf16.xpose.msra.mxu0 0
  %894 = vmatpush.bf16.xpose.msra.mxu0 %v885
  %895 = vmatmul.bf16.gmra.mxu0 %v882
  %v896 = vpop.f32.mrf.mxu0
  %v897 = vadd.f32 %v756, %v896
  %v898 = vpop.f32.mrf.mxu0
  %v899 = vadd.f32 %v757, %v898
  %900 = vdwg.mxu0
  %v903 = vunpack.c.l.b16 %v716
  %v904 = vunpack.c.l.b16 %v717
  %v905 = vpack.c.b16 %v904, %v903
  %v908 = vunpack.c.l.b16 %v732
  %v909 = vunpack.c.l.b16 %v733
  %v910 = vpack.c.b16 %v909, %v908
  %v912 = vsel %vm790, %v905, 0
  %v915 = vsel %vm790, %v910, 0
  %917 = vmatpush.bf16.xpose.msra.mxu0 0
  %918 = vmatpush.bf16.xpose.msra.mxu0 0
  %919 = vmatpush.bf16.xpose.msra.mxu0 0
  %920 = vmatpush.bf16.xpose.msra.mxu0 0
  %921 = vmatpush.bf16.xpose.msra.mxu0 0
  %922 = vmatpush.bf16.xpose.msra.mxu0 0
  %923 = vmatpush.bf16.xpose.msra.mxu0 0
  %924 = vmatpush.bf16.xpose.msra.mxu0 %v915
  %925 = vmatmul.bf16.gmra.mxu0 %v912
  %v926 = vpop.f32.mrf.mxu0
  %v927 = vadd.f32 %v756, %v926
  %v928 = vpop.f32.mrf.mxu0
  %v929 = vadd.f32 %v757, %v928
  %930 = vdwg.mxu0
  %v933 = vunpack.c.l.b16 %v718
  %v934 = vunpack.c.l.b16 %v719
  %v935 = vpack.c.b16 %v934, %v933
  %v938 = vunpack.c.l.b16 %v734
  %v939 = vunpack.c.l.b16 %v735
  %v940 = vpack.c.b16 %v939, %v938
  %v942 = vsel %vm790, %v935, 0
  %v945 = vsel %vm790, %v940, 0
  %947 = vmatpush.bf16.xpose.msra.mxu0 0
  %948 = vmatpush.bf16.xpose.msra.mxu0 0
  %949 = vmatpush.bf16.xpose.msra.mxu0 0
  %950 = vmatpush.bf16.xpose.msra.mxu0 0
  %951 = vmatpush.bf16.xpose.msra.mxu0 0
  %952 = vmatpush.bf16.xpose.msra.mxu0 0
  %953 = vmatpush.bf16.xpose.msra.mxu0 0
  %954 = vmatpush.bf16.xpose.msra.mxu0 %v945
  %955 = vmatmul.bf16.gmra.mxu0 %v942
  %v956 = vpop.f32.mrf.mxu0
  %v957 = vadd.f32 %v756, %v956
  %v958 = vpop.f32.mrf.mxu0
  %v959 = vadd.f32 %v757, %v958
  %960 = vdwg.mxu0
  %v963 = vunpack.c.l.b16 %v720
  %v964 = vunpack.c.l.b16 %v721
  %v965 = vpack.c.b16 %v964, %v963
  %v968 = vunpack.c.l.b16 %v736
  %v969 = vunpack.c.l.b16 %v737
  %v970 = vpack.c.b16 %v969, %v968
  %v972 = vsel %vm790, %v965, 0
  %v975 = vsel %vm790, %v970, 0
  %977 = vmatpush.bf16.xpose.msra.mxu0 0
  %978 = vmatpush.bf16.xpose.msra.mxu0 0
  %979 = vmatpush.bf16.xpose.msra.mxu0 0
  %980 = vmatpush.bf16.xpose.msra.mxu0 0
  %981 = vmatpush.bf16.xpose.msra.mxu0 0
  %982 = vmatpush.bf16.xpose.msra.mxu0 0
  %983 = vmatpush.bf16.xpose.msra.mxu0 0
  %984 = vmatpush.bf16.xpose.msra.mxu0 %v975
  %985 = vmatmul.bf16.gmra.mxu0 %v972
  %v986 = vpop.f32.mrf.mxu0
  %v987 = vadd.f32 %v756, %v986
  %v988 = vpop.f32.mrf.mxu0
  %v989 = vadd.f32 %v757, %v988
  %990 = vdwg.mxu0
  %v993 = vunpack.c.l.b16 %v722
  %v994 = vunpack.c.l.b16 %v723
  %v995 = vpack.c.b16 %v994, %v993
  %v998 = vunpack.c.l.b16 %v738
  %v999 = vunpack.c.l.b16 %v739
  %v1000 = vpack.c.b16 %v999, %v998
  %v1002 = vsel %vm790, %v995, 0
  %v1005 = vsel %vm790, %v1000, 0
  %1007 = vmatpush.bf16.xpose.msra.mxu0 0
  %1008 = vmatpush.bf16.xpose.msra.mxu0 0
  %1009 = vmatpush.bf16.xpose.msra.mxu0 0
  %1010 = vmatpush.bf16.xpose.msra.mxu0 0
  %1011 = vmatpush.bf16.xpose.msra.mxu0 0
  %1012 = vmatpush.bf16.xpose.msra.mxu0 0
  %1013 = vmatpush.bf16.xpose.msra.mxu0 0
  %1014 = vmatpush.bf16.xpose.msra.mxu0 %v1005
  %1015 = vmatmul.bf16.gmra.mxu0 %v1002
  %v1016 = vpop.f32.mrf.mxu0
  %v1017 = vadd.f32 %v756, %v1016
  %v1018 = vpop.f32.mrf.mxu0
  %v1019 = vadd.f32 %v757, %v1018
  %1020 = vdwg.mxu0
  %v1021 = vadd.f32 %v807, %v764
  %v1022 = vadd.f32 %v809, %v765
  %v1023 = vadd.f32 %v837, %v766
  %v1024 = vadd.f32 %v839, %v767
  %v1025 = vadd.f32 %v867, %v768
  %v1026 = vadd.f32 %v869, %v769
  %v1027 = vadd.f32 %v897, %v770
  %v1028 = vadd.f32 %v899, %v771
  %v1029 = vadd.f32 %v927, %v772
  %v1030 = vadd.f32 %v929, %v773
  %v1031 = vadd.f32 %v957, %v774
  %v1032 = vadd.f32 %v959, %v775
  %v1033 = vadd.f32 %v987, %v776
  %v1034 = vadd.f32 %v989, %v777
  %v1035 = vadd.f32 %v1017, %v778
  %v1036 = vadd.f32 %v1019, %v779
  %vm1037 = vcmask 130048
  %v1038 = vsel %vm1037, %v1021, -inf
  %1039 = vmax.xlane.f32.xlu0 %v1038
  %v1040 = vpop.xlane.xlu0 %1039
  %v1041 = vsel %vm1037, %v1022, -inf
  %1042 = vmax.xlane.f32.xlu0 %v1041
  %v1043 = vpop.xlane.xlu0 %1042
  %v1044 = vsel %vm1037, %v1023, -inf
  %1045 = vmax.xlane.f32.xlu0 %v1044
  %v1046 = vpop.xlane.xlu0 %1045
  %v1047 = vsel %vm1037, %v1024, -inf
  %1048 = vmax.xlane.f32.xlu0 %v1047
  %v1049 = vpop.xlane.xlu0 %1048
  %v1050 = vsel %vm1037, %v1025, -inf
  %1051 = vmax.xlane.f32.xlu0 %v1050
  %v1052 = vpop.xlane.xlu0 %1051
  %v1053 = vsel %vm1037, %v1026, -inf
  %1054 = vmax.xlane.f32.xlu0 %v1053
  %v1055 = vpop.xlane.xlu0 %1054
  %v1056 = vsel %vm1037, %v1027, -inf
  %1057 = vmax.xlane.f32.xlu0 %v1056
  %v1058 = vpop.xlane.xlu0 %1057
  %v1059 = vsel %vm1037, %v1028, -inf
  %1060 = vmax.xlane.f32.xlu0 %v1059
  %v1061 = vpop.xlane.xlu0 %1060
  %v1062 = vsel %vm1037, %v1029, -inf
  %1063 = vmax.xlane.f32.xlu0 %v1062
  %v1064 = vpop.xlane.xlu0 %1063
  %v1065 = vsel %vm1037, %v1030, -inf
  %1066 = vmax.xlane.f32.xlu0 %v1065
  %v1067 = vpop.xlane.xlu0 %1066
  %v1068 = vsel %vm1037, %v1031, -inf
  %1069 = vmax.xlane.f32.xlu0 %v1068
  %v1070 = vpop.xlane.xlu0 %1069
  %v1071 = vsel %vm1037, %v1032, -inf
  %1072 = vmax.xlane.f32.xlu0 %v1071
  %v1073 = vpop.xlane.xlu0 %1072
  %v1074 = vsel %vm1037, %v1033, -inf
  %1075 = vmax.xlane.f32.xlu0 %v1074
  %v1076 = vpop.xlane.xlu0 %1075
  %v1077 = vsel %vm1037, %v1034, -inf
  %1078 = vmax.xlane.f32.xlu0 %v1077
  %v1079 = vpop.xlane.xlu0 %1078
  %v1080 = vsel %vm1037, %v1035, -inf
  %1081 = vmax.xlane.f32.xlu0 %v1080
  %v1082 = vpop.xlane.xlu0 %1081
  %v1083 = vsel %vm1037, %v1036, -inf
  %1084 = vmax.xlane.f32.xlu0 %v1083
  %v1085 = vpop.xlane.xlu0 %1084
  %v1086 = vsub.f32 %v1021, %v1040
  %v1087 = vsub.f32 %v1022, %v1043
  %v1088 = vsub.f32 %v1023, %v1046
  %v1089 = vsub.f32 %v1024, %v1049
  %v1090 = vsub.f32 %v1025, %v1052
  %v1091 = vsub.f32 %v1026, %v1055
  %v1092 = vsub.f32 %v1027, %v1058
  %v1093 = vsub.f32 %v1028, %v1061
  %v1094 = vsub.f32 %v1029, %v1064
  %v1095 = vsub.f32 %v1030, %v1067
  %v1096 = vsub.f32 %v1031, %v1070
  %v1097 = vsub.f32 %v1032, %v1073
  %v1098 = vsub.f32 %v1033, %v1076
  %v1099 = vsub.f32 %v1034, %v1079
  %v1100 = vsub.f32 %v1035, %v1082
  %v1101 = vsub.f32 %v1036, %v1085
  %v1102 = vmul.f32 %v1086, 1.442695
  %v1103 = vpow.pop %v1102
  %v1104 = vmul.f32 %v1087, 1.442695
  %v1105 = vpow.pop %v1104
  %v1106 = vmul.f32 %v1088, 1.442695
  %v1107 = vpow.pop %v1106
  %v1108 = vmul.f32 %v1089, 1.442695
  %v1109 = vpow.pop %v1108
  %v1110 = vmul.f32 %v1090, 1.442695
  %v1111 = vpow.pop %v1110
  %v1112 = vmul.f32 %v1091, 1.442695
  %v1113 = vpow.pop %v1112
  %v1114 = vmul.f32 %v1092, 1.442695
  %v1115 = vpow.pop %v1114
  %v1116 = vmul.f32 %v1093, 1.442695
  %v1117 = vpow.pop %v1116
  %v1118 = vmul.f32 %v1094, 1.442695
  %v1119 = vpow.pop %v1118
  %v1120 = vmul.f32 %v1095, 1.442695
  %v1121 = vpow.pop %v1120
  %v1122 = vmul.f32 %v1096, 1.442695
  %v1123 = vpow.pop %v1122
  %v1124 = vmul.f32 %v1097, 1.442695
  %v1125 = vpow.pop %v1124
  %v1126 = vmul.f32 %v1098, 1.442695
  %v1127 = vpow.pop %v1126
  %v1128 = vmul.f32 %v1099, 1.442695
  %v1129 = vpow.pop %v1128
  %v1130 = vmul.f32 %v1100, 1.442695
  %v1131 = vpow.pop %v1130
  %v1132 = vmul.f32 %v1101, 1.442695
  %v1133 = vpow.pop %v1132
  %v1134 = vsel %vm1037, %v1103, 0.0
  %1135 = vadd.xlane.f32.xlu0 %v1134
  %v1136 = vpop.xlane.xlu0 %1135
  %v1137 = vsel %vm1037, %v1105, 0.0
  %1138 = vadd.xlane.f32.xlu0 %v1137
  %v1139 = vpop.xlane.xlu0 %1138
  %v1140 = vsel %vm1037, %v1107, 0.0
  %1141 = vadd.xlane.f32.xlu0 %v1140
  %v1142 = vpop.xlane.xlu0 %1141
  %v1143 = vsel %vm1037, %v1109, 0.0
  %1144 = vadd.xlane.f32.xlu0 %v1143
  %v1145 = vpop.xlane.xlu0 %1144
  %v1146 = vsel %vm1037, %v1111, 0.0
  %1147 = vadd.xlane.f32.xlu0 %v1146
  %v1148 = vpop.xlane.xlu0 %1147
  %v1149 = vsel %vm1037, %v1113, 0.0
  %1150 = vadd.xlane.f32.xlu0 %v1149
  %v1151 = vpop.xlane.xlu0 %1150
  %v1152 = vsel %vm1037, %v1115, 0.0
  %1153 = vadd.xlane.f32.xlu0 %v1152
  %v1154 = vpop.xlane.xlu0 %1153
  %v1155 = vsel %vm1037, %v1117, 0.0
  %1156 = vadd.xlane.f32.xlu0 %v1155
  %v1157 = vpop.xlane.xlu0 %1156
  %v1158 = vsel %vm1037, %v1119, 0.0
  %1159 = vadd.xlane.f32.xlu0 %v1158
  %v1160 = vpop.xlane.xlu0 %1159
  %v1161 = vsel %vm1037, %v1121, 0.0
  %1162 = vadd.xlane.f32.xlu0 %v1161
  %v1163 = vpop.xlane.xlu0 %1162
  %v1164 = vsel %vm1037, %v1123, 0.0
  %1165 = vadd.xlane.f32.xlu0 %v1164
  %v1166 = vpop.xlane.xlu0 %1165
  %v1167 = vsel %vm1037, %v1125, 0.0
  %1168 = vadd.xlane.f32.xlu0 %v1167
  %v1169 = vpop.xlane.xlu0 %1168
  %v1170 = vsel %vm1037, %v1127, 0.0
  %1171 = vadd.xlane.f32.xlu0 %v1170
  %v1172 = vpop.xlane.xlu0 %1171
  %v1173 = vsel %vm1037, %v1129, 0.0
  %1174 = vadd.xlane.f32.xlu0 %v1173
  %v1175 = vpop.xlane.xlu0 %1174
  %v1176 = vsel %vm1037, %v1131, 0.0
  %1177 = vadd.xlane.f32.xlu0 %v1176
  %v1178 = vpop.xlane.xlu0 %1177
  %v1179 = vsel %vm1037, %v1133, 0.0
  %1180 = vadd.xlane.f32.xlu0 %v1179
  %v1181 = vpop.xlane.xlu0 %1180
  %v1182 = vrcp.pop %v1136
  %v1183 = vrcp.pop %v1139
  %v1184 = vrcp.pop %v1142
  %v1185 = vrcp.pop %v1145
  %v1186 = vrcp.pop %v1148
  %v1187 = vrcp.pop %v1151
  %v1188 = vrcp.pop %v1154
  %v1189 = vrcp.pop %v1157
  %v1190 = vrcp.pop %v1160
  %v1191 = vrcp.pop %v1163
  %v1192 = vrcp.pop %v1166
  %v1193 = vrcp.pop %v1169
  %v1194 = vrcp.pop %v1172
  %v1195 = vrcp.pop %v1175
  %v1196 = vrcp.pop %v1178
  %v1197 = vrcp.pop %v1181
  %v1198 = vmul.f32 %v1103, %v1182
  %v1199 = vmul.f32 %v1105, %v1183
  %v1200 = vmul.f32 %v1107, %v1184
  %v1201 = vmul.f32 %v1109, %v1185
  %v1202 = vmul.f32 %v1111, %v1186
  %v1203 = vmul.f32 %v1113, %v1187
  %v1204 = vmul.f32 %v1115, %v1188
  %v1205 = vmul.f32 %v1117, %v1189
  %v1206 = vmul.f32 %v1119, %v1190
  %v1207 = vmul.f32 %v1121, %v1191
  %v1208 = vmul.f32 %v1123, %v1192
  %v1209 = vmul.f32 %v1125, %v1193
  %v1210 = vmul.f32 %v1127, %v1194
  %v1211 = vmul.f32 %v1129, %v1195
  %v1212 = vmul.f32 %v1131, %v1196
  %v1213 = vmul.f32 %v1133, %v1197
  %v1214 = vpack.c.bf16 %v1198, %v1198
  %v1215 = vpack.c.bf16 %v1199, %v1199
  %v1216 = vpack.c.bf16 %v1200, %v1200
  %v1217 = vpack.c.bf16 %v1201, %v1201
  %v1218 = vpack.c.bf16 %v1202, %v1202
  %v1219 = vpack.c.bf16 %v1203, %v1203
  %v1220 = vpack.c.bf16 %v1204, %v1204
  %v1221 = vpack.c.bf16 %v1205, %v1205
  %v1222 = vpack.c.bf16 %v1206, %v1206
  %v1223 = vpack.c.bf16 %v1207, %v1207
  %v1224 = vpack.c.bf16 %v1208, %v1208
  %v1225 = vpack.c.bf16 %v1209, %v1209
  %v1226 = vpack.c.bf16 %v1210, %v1210
  %v1227 = vpack.c.bf16 %v1211, %v1211
  %v1228 = vpack.c.bf16 %v1212, %v1212
  %v1229 = vpack.c.bf16 %v1213, %v1213
  %v1232 = vunpack.c.l.b16 %v1214
  %v1233 = vunpack.c.l.b16 %v1215
  %v1234 = vpack.c.b16 %v1233, %v1232
  %v1237 = vunpack.c.l.b16 %v740
  %v1238 = vunpack.c.l.b16 %v741
  %v1239 = vpack.c.b16 %v1238, %v1237
  %v1242 = vsel %vm1037, %v1234, 0
  %1244 = vmatpush.bf16.msra.mxu0 0
  %1245 = vmatpush.bf16.msra.mxu0 0
  %1246 = vmatpush.bf16.msra.mxu0 0
  %1247 = vmatpush.bf16.msra.mxu0 0
  %1248 = vmatpush.bf16.msra.mxu0 0
  %1249 = vmatpush.bf16.msra.mxu0 0
  %1250 = vmatpush.bf16.msra.mxu0 0
  %1251 = vmatpush.bf16.msra.mxu0 %v1239
  %1252 = vmatmul.bf16.gmra.mxu0 %v1242
  %v1253 = vpop.f32.mrf.mxu0
  %v1254 = vadd.f32 0.0, %v1253
  %v1255 = vpop.f32.mrf.mxu0
  %v1256 = vadd.f32 0.0, %v1255
  %1257 = vdwg.mxu0
  %v1260 = vunpack.c.l.b16 %v1216
  %v1261 = vunpack.c.l.b16 %v1217
  %v1262 = vpack.c.b16 %v1261, %v1260
  %v1265 = vunpack.c.l.b16 %v742
  %v1266 = vunpack.c.l.b16 %v743
  %v1267 = vpack.c.b16 %v1266, %v1265
  %v1270 = vsel %vm1037, %v1262, 0
  %1272 = vmatpush.bf16.msra.mxu0 0
  %1273 = vmatpush.bf16.msra.mxu0 0
  %1274 = vmatpush.bf16.msra.mxu0 0
  %1275 = vmatpush.bf16.msra.mxu0 0
  %1276 = vmatpush.bf16.msra.mxu0 0
  %1277 = vmatpush.bf16.msra.mxu0 0
  %1278 = vmatpush.bf16.msra.mxu0 0
  %1279 = vmatpush.bf16.msra.mxu0 %v1267
  %1280 = vmatmul.bf16.gmra.mxu0 %v1270
  %v1281 = vpop.f32.mrf.mxu0
  %v1282 = vadd.f32 0.0, %v1281
  %v1283 = vpop.f32.mrf.mxu0
  %v1284 = vadd.f32 0.0, %v1283
  %1285 = vdwg.mxu0
  %v1288 = vunpack.c.l.b16 %v1218
  %v1289 = vunpack.c.l.b16 %v1219
  %v1290 = vpack.c.b16 %v1289, %v1288
  %v1293 = vunpack.c.l.b16 %v744
  %v1294 = vunpack.c.l.b16 %v745
  %v1295 = vpack.c.b16 %v1294, %v1293
  %v1298 = vsel %vm1037, %v1290, 0
  %1300 = vmatpush.bf16.msra.mxu0 0
  %1301 = vmatpush.bf16.msra.mxu0 0
  %1302 = vmatpush.bf16.msra.mxu0 0
  %1303 = vmatpush.bf16.msra.mxu0 0
  %1304 = vmatpush.bf16.msra.mxu0 0
  %1305 = vmatpush.bf16.msra.mxu0 0
  %1306 = vmatpush.bf16.msra.mxu0 0
  %1307 = vmatpush.bf16.msra.mxu0 %v1295
  %1308 = vmatmul.bf16.gmra.mxu0 %v1298
  %v1309 = vpop.f32.mrf.mxu0
  %v1310 = vadd.f32 0.0, %v1309
  %v1311 = vpop.f32.mrf.mxu0
  %v1312 = vadd.f32 0.0, %v1311
  %1313 = vdwg.mxu0
  %v1316 = vunpack.c.l.b16 %v1220
  %v1317 = vunpack.c.l.b16 %v1221
  %v1318 = vpack.c.b16 %v1317, %v1316
  %v1321 = vunpack.c.l.b16 %v746
  %v1322 = vunpack.c.l.b16 %v747
  %v1323 = vpack.c.b16 %v1322, %v1321
  %v1326 = vsel %vm1037, %v1318, 0
  %1328 = vmatpush.bf16.msra.mxu0 0
  %1329 = vmatpush.bf16.msra.mxu0 0
  %1330 = vmatpush.bf16.msra.mxu0 0
  %1331 = vmatpush.bf16.msra.mxu0 0
  %1332 = vmatpush.bf16.msra.mxu0 0
  %1333 = vmatpush.bf16.msra.mxu0 0
  %1334 = vmatpush.bf16.msra.mxu0 0
  %1335 = vmatpush.bf16.msra.mxu0 %v1323
  %1336 = vmatmul.bf16.gmra.mxu0 %v1326
  %v1337 = vpop.f32.mrf.mxu0
  %v1338 = vadd.f32 0.0, %v1337
  %v1339 = vpop.f32.mrf.mxu0
  %v1340 = vadd.f32 0.0, %v1339
  %1341 = vdwg.mxu0
  %v1344 = vunpack.c.l.b16 %v1222
  %v1345 = vunpack.c.l.b16 %v1223
  %v1346 = vpack.c.b16 %v1345, %v1344
  %v1349 = vunpack.c.l.b16 %v748
  %v1350 = vunpack.c.l.b16 %v749
  %v1351 = vpack.c.b16 %v1350, %v1349
  %v1354 = vsel %vm1037, %v1346, 0
  %1356 = vmatpush.bf16.msra.mxu0 0
  %1357 = vmatpush.bf16.msra.mxu0 0
  %1358 = vmatpush.bf16.msra.mxu0 0
  %1359 = vmatpush.bf16.msra.mxu0 0
  %1360 = vmatpush.bf16.msra.mxu0 0
  %1361 = vmatpush.bf16.msra.mxu0 0
  %1362 = vmatpush.bf16.msra.mxu0 0
  %1363 = vmatpush.bf16.msra.mxu0 %v1351
  %1364 = vmatmul.bf16.gmra.mxu0 %v1354
  %v1365 = vpop.f32.mrf.mxu0
  %v1366 = vadd.f32 0.0, %v1365
  %v1367 = vpop.f32.mrf.mxu0
  %v1368 = vadd.f32 0.0, %v1367
  %1369 = vdwg.mxu0
  %v1372 = vunpack.c.l.b16 %v1224
  %v1373 = vunpack.c.l.b16 %v1225
  %v1374 = vpack.c.b16 %v1373, %v1372
  %v1377 = vunpack.c.l.b16 %v750
  %v1378 = vunpack.c.l.b16 %v751
  %v1379 = vpack.c.b16 %v1378, %v1377
  %v1382 = vsel %vm1037, %v1374, 0
  %1384 = vmatpush.bf16.msra.mxu0 0
  %1385 = vmatpush.bf16.msra.mxu0 0
  %1386 = vmatpush.bf16.msra.mxu0 0
  %1387 = vmatpush.bf16.msra.mxu0 0
  %1388 = vmatpush.bf16.msra.mxu0 0
  %1389 = vmatpush.bf16.msra.mxu0 0
  %1390 = vmatpush.bf16.msra.mxu0 0
  %1391 = vmatpush.bf16.msra.mxu0 %v1379
  %1392 = vmatmul.bf16.gmra.mxu0 %v1382
  %v1393 = vpop.f32.mrf.mxu0
  %v1394 = vadd.f32 0.0, %v1393
  %v1395 = vpop.f32.mrf.mxu0
  %v1396 = vadd.f32 0.0, %v1395
  %1397 = vdwg.mxu0
  %v1400 = vunpack.c.l.b16 %v1226
  %v1401 = vunpack.c.l.b16 %v1227
  %v1402 = vpack.c.b16 %v1401, %v1400
  %v1405 = vunpack.c.l.b16 %v752
  %v1406 = vunpack.c.l.b16 %v753
  %v1407 = vpack.c.b16 %v1406, %v1405
  %v1410 = vsel %vm1037, %v1402, 0
  %1412 = vmatpush.bf16.msra.mxu0 0
  %1413 = vmatpush.bf16.msra.mxu0 0
  %1414 = vmatpush.bf16.msra.mxu0 0
  %1415 = vmatpush.bf16.msra.mxu0 0
  %1416 = vmatpush.bf16.msra.mxu0 0
  %1417 = vmatpush.bf16.msra.mxu0 0
  %1418 = vmatpush.bf16.msra.mxu0 0
  %1419 = vmatpush.bf16.msra.mxu0 %v1407
  %1420 = vmatmul.bf16.gmra.mxu0 %v1410
  %v1421 = vpop.f32.mrf.mxu0
  %v1422 = vadd.f32 0.0, %v1421
  %v1423 = vpop.f32.mrf.mxu0
  %v1424 = vadd.f32 0.0, %v1423
  %1425 = vdwg.mxu0
  %v1428 = vunpack.c.l.b16 %v1228
  %v1429 = vunpack.c.l.b16 %v1229
  %v1430 = vpack.c.b16 %v1429, %v1428
  %v1433 = vunpack.c.l.b16 %v754
  %v1434 = vunpack.c.l.b16 %v755
  %v1435 = vpack.c.b16 %v1434, %v1433
  %v1438 = vsel %vm1037, %v1430, 0
  %1440 = vmatpush.bf16.msra.mxu0 0
  %1441 = vmatpush.bf16.msra.mxu0 0
  %1442 = vmatpush.bf16.msra.mxu0 0
  %1443 = vmatpush.bf16.msra.mxu0 0
  %1444 = vmatpush.bf16.msra.mxu0 0
  %1445 = vmatpush.bf16.msra.mxu0 0
  %1446 = vmatpush.bf16.msra.mxu0 0
  %1447 = vmatpush.bf16.msra.mxu0 %v1435
  %1448 = vmatmul.bf16.gmra.mxu0 %v1438
  %v1449 = vpop.f32.mrf.mxu0
  %v1450 = vadd.f32 0.0, %v1449
  %v1451 = vpop.f32.mrf.mxu0
  %v1452 = vadd.f32 0.0, %v1451
  %1453 = vdwg.mxu0
  %1454 = vrot.lane.b32.xlu0 %v784, 120
  %v1455 = vpop.permute.xlu0 %1454
  %1456 = vrot.lane.b32.xlu0 %v789, 120
  %v1457 = vpop.permute.xlu0 %1456
  %v1459 = vsel %vm790, %v1455, 0
  %v1462 = vsel %vm790, %v1457, 0
  %1464 = vmatpush.bf16.xpose.msra.mxu0 0
  %1465 = vmatpush.bf16.xpose.msra.mxu0 0
  %1466 = vmatpush.bf16.xpose.msra.mxu0 0
  %1467 = vmatpush.bf16.xpose.msra.mxu0 0
  %1468 = vmatpush.bf16.xpose.msra.mxu0 0
  %1469 = vmatpush.bf16.xpose.msra.mxu0 0
  %1470 = vmatpush.bf16.xpose.msra.mxu0 0
  %1471 = vmatpush.bf16.xpose.msra.mxu0 %v1462
  %1472 = vmatmul.bf16.gmra.mxu0 %v1459
  %v1473 = vpop.f32.mrf.mxu0
  %v1474 = vadd.f32 %v758, %v1473
  %v1475 = vpop.f32.mrf.mxu0
  %v1476 = vadd.f32 %v759, %v1475
  %1477 = vdwg.mxu0
  %1478 = vrot.lane.b32.xlu0 %v815, 120
  %v1479 = vpop.permute.xlu0 %1478
  %1480 = vrot.lane.b32.xlu0 %v820, 120
  %v1481 = vpop.permute.xlu0 %1480
  %v1483 = vsel %vm790, %v1479, 0
  %v1486 = vsel %vm790, %v1481, 0
  %1488 = vmatpush.bf16.xpose.msra.mxu0 0
  %1489 = vmatpush.bf16.xpose.msra.mxu0 0
  %1490 = vmatpush.bf16.xpose.msra.mxu0 0
  %1491 = vmatpush.bf16.xpose.msra.mxu0 0
  %1492 = vmatpush.bf16.xpose.msra.mxu0 0
  %1493 = vmatpush.bf16.xpose.msra.mxu0 0
  %1494 = vmatpush.bf16.xpose.msra.mxu0 0
  %1495 = vmatpush.bf16.xpose.msra.mxu0 %v1486
  %1496 = vmatmul.bf16.gmra.mxu0 %v1483
  %v1497 = vpop.f32.mrf.mxu0
  %v1498 = vadd.f32 %v758, %v1497
  %v1499 = vpop.f32.mrf.mxu0
  %v1500 = vadd.f32 %v759, %v1499
  %1501 = vdwg.mxu0
  %1502 = vrot.lane.b32.xlu0 %v845, 120
  %v1503 = vpop.permute.xlu0 %1502
  %1504 = vrot.lane.b32.xlu0 %v850, 120
  %v1505 = vpop.permute.xlu0 %1504
  %v1507 = vsel %vm790, %v1503, 0
  %v1510 = vsel %vm790, %v1505, 0
  %1512 = vmatpush.bf16.xpose.msra.mxu0 0
  %1513 = vmatpush.bf16.xpose.msra.mxu0 0
  %1514 = vmatpush.bf16.xpose.msra.mxu0 0
  %1515 = vmatpush.bf16.xpose.msra.mxu0 0
  %1516 = vmatpush.bf16.xpose.msra.mxu0 0
  %1517 = vmatpush.bf16.xpose.msra.mxu0 0
  %1518 = vmatpush.bf16.xpose.msra.mxu0 0
  %1519 = vmatpush.bf16.xpose.msra.mxu0 %v1510
  %1520 = vmatmul.bf16.gmra.mxu0 %v1507
  %v1521 = vpop.f32.mrf.mxu0
  %v1522 = vadd.f32 %v758, %v1521
  %v1523 = vpop.f32.mrf.mxu0
  %v1524 = vadd.f32 %v759, %v1523
  %1525 = vdwg.mxu0
  %1526 = vrot.lane.b32.xlu0 %v875, 120
  %v1527 = vpop.permute.xlu0 %1526
  %1528 = vrot.lane.b32.xlu0 %v880, 120
  %v1529 = vpop.permute.xlu0 %1528
  %v1531 = vsel %vm790, %v1527, 0
  %v1534 = vsel %vm790, %v1529, 0
  %1536 = vmatpush.bf16.xpose.msra.mxu0 0
  %1537 = vmatpush.bf16.xpose.msra.mxu0 0
  %1538 = vmatpush.bf16.xpose.msra.mxu0 0
  %1539 = vmatpush.bf16.xpose.msra.mxu0 0
  %1540 = vmatpush.bf16.xpose.msra.mxu0 0
  %1541 = vmatpush.bf16.xpose.msra.mxu0 0
  %1542 = vmatpush.bf16.xpose.msra.mxu0 0
  %1543 = vmatpush.bf16.xpose.msra.mxu0 %v1534
  %1544 = vmatmul.bf16.gmra.mxu0 %v1531
  %v1545 = vpop.f32.mrf.mxu0
  %v1546 = vadd.f32 %v758, %v1545
  %v1547 = vpop.f32.mrf.mxu0
  %v1548 = vadd.f32 %v759, %v1547
  %1549 = vdwg.mxu0
  %1550 = vrot.lane.b32.xlu0 %v905, 120
  %v1551 = vpop.permute.xlu0 %1550
  %1552 = vrot.lane.b32.xlu0 %v910, 120
  %v1553 = vpop.permute.xlu0 %1552
  %v1555 = vsel %vm790, %v1551, 0
  %v1558 = vsel %vm790, %v1553, 0
  %1560 = vmatpush.bf16.xpose.msra.mxu0 0
  %1561 = vmatpush.bf16.xpose.msra.mxu0 0
  %1562 = vmatpush.bf16.xpose.msra.mxu0 0
  %1563 = vmatpush.bf16.xpose.msra.mxu0 0
  %1564 = vmatpush.bf16.xpose.msra.mxu0 0
  %1565 = vmatpush.bf16.xpose.msra.mxu0 0
  %1566 = vmatpush.bf16.xpose.msra.mxu0 0
  %1567 = vmatpush.bf16.xpose.msra.mxu0 %v1558
  %1568 = vmatmul.bf16.gmra.mxu0 %v1555
  %v1569 = vpop.f32.mrf.mxu0
  %v1570 = vadd.f32 %v758, %v1569
  %v1571 = vpop.f32.mrf.mxu0
  %v1572 = vadd.f32 %v759, %v1571
  %1573 = vdwg.mxu0
  %1574 = vrot.lane.b32.xlu0 %v935, 120
  %v1575 = vpop.permute.xlu0 %1574
  %1576 = vrot.lane.b32.xlu0 %v940, 120
  %v1577 = vpop.permute.xlu0 %1576
  %v1579 = vsel %vm790, %v1575, 0
  %v1582 = vsel %vm790, %v1577, 0
  %1584 = vmatpush.bf16.xpose.msra.mxu0 0
  %1585 = vmatpush.bf16.xpose.msra.mxu0 0
  %1586 = vmatpush.bf16.xpose.msra.mxu0 0
  %1587 = vmatpush.bf16.xpose.msra.mxu0 0
  %1588 = vmatpush.bf16.xpose.msra.mxu0 0
  %1589 = vmatpush.bf16.xpose.msra.mxu0 0
  %1590 = vmatpush.bf16.xpose.msra.mxu0 0
  %1591 = vmatpush.bf16.xpose.msra.mxu0 %v1582
  %1592 = vmatmul.bf16.gmra.mxu0 %v1579
  %v1593 = vpop.f32.mrf.mxu0
  %v1594 = vadd.f32 %v758, %v1593
  %v1595 = vpop.f32.mrf.mxu0
  %v1596 = vadd.f32 %v759, %v1595
  %1597 = vdwg.mxu0
  %1598 = vrot.lane.b32.xlu0 %v965, 120
  %v1599 = vpop.permute.xlu0 %1598
  %1600 = vrot.lane.b32.xlu0 %v970, 120
  %v1601 = vpop.permute.xlu0 %1600
  %v1603 = vsel %vm790, %v1599, 0
  %v1606 = vsel %vm790, %v1601, 0
  %1608 = vmatpush.bf16.xpose.msra.mxu0 0
  %1609 = vmatpush.bf16.xpose.msra.mxu0 0
  %1610 = vmatpush.bf16.xpose.msra.mxu0 0
  %1611 = vmatpush.bf16.xpose.msra.mxu0 0
  %1612 = vmatpush.bf16.xpose.msra.mxu0 0
  %1613 = vmatpush.bf16.xpose.msra.mxu0 0
  %1614 = vmatpush.bf16.xpose.msra.mxu0 0
  %1615 = vmatpush.bf16.xpose.msra.mxu0 %v1606
  %1616 = vmatmul.bf16.gmra.mxu0 %v1603
  %v1617 = vpop.f32.mrf.mxu0
  %v1618 = vadd.f32 %v758, %v1617
  %v1619 = vpop.f32.mrf.mxu0
  %v1620 = vadd.f32 %v759, %v1619
  %1621 = vdwg.mxu0
  %1622 = vrot.lane.b32.xlu0 %v995, 120
  %v1623 = vpop.permute.xlu0 %1622
  %1624 = vrot.lane.b32.xlu0 %v1000, 120
  %v1625 = vpop.permute.xlu0 %1624
  %v1627 = vsel %vm790, %v1623, 0
  %v1630 = vsel %vm790, %v1625, 0
  %1632 = vmatpush.bf16.xpose.msra.mxu0 0
  %1633 = vmatpush.bf16.xpose.msra.mxu0 0
  %1634 = vmatpush.bf16.xpose.msra.mxu0 0
  %1635 = vmatpush.bf16.xpose.msra.mxu0 0
  %1636 = vmatpush.bf16.xpose.msra.mxu0 0
  %1637 = vmatpush.bf16.xpose.msra.mxu0 0
  %1638 = vmatpush.bf16.xpose.msra.mxu0 0
  %1639 = vmatpush.bf16.xpose.msra.mxu0 %v1630
  %1640 = vmatmul.bf16.gmra.mxu0 %v1627
  %v1641 = vpop.f32.mrf.mxu0
  %v1642 = vadd.f32 %v758, %v1641
  %v1643 = vpop.f32.mrf.mxu0
  %v1644 = vadd.f32 %v759, %v1643
  %1645 = vdwg.mxu0
  %v1646 = vadd.f32 %v1474, %v764
  %v1647 = vadd.f32 %v1476, %v765
  %v1648 = vadd.f32 %v1498, %v766
  %v1649 = vadd.f32 %v1500, %v767
  %v1650 = vadd.f32 %v1522, %v768
  %v1651 = vadd.f32 %v1524, %v769
  %v1652 = vadd.f32 %v1546, %v770
  %v1653 = vadd.f32 %v1548, %v771
  %v1654 = vadd.f32 %v1570, %v772
  %v1655 = vadd.f32 %v1572, %v773
  %v1656 = vadd.f32 %v1594, %v774
  %v1657 = vadd.f32 %v1596, %v775
  %v1658 = vadd.f32 %v1618, %v776
  %v1659 = vadd.f32 %v1620, %v777
  %v1660 = vadd.f32 %v1642, %v778
  %v1661 = vadd.f32 %v1644, %v779
  %v1662 = vsel %vm1037, %v1646, -inf
  %1663 = vmax.xlane.f32.xlu0 %v1662
  %v1664 = vpop.xlane.xlu0 %1663
  %v1665 = vsel %vm1037, %v1647, -inf
  %1666 = vmax.xlane.f32.xlu0 %v1665
  %v1667 = vpop.xlane.xlu0 %1666
  %v1668 = vsel %vm1037, %v1648, -inf
  %1669 = vmax.xlane.f32.xlu0 %v1668
  %v1670 = vpop.xlane.xlu0 %1669
  %v1671 = vsel %vm1037, %v1649, -inf
  %1672 = vmax.xlane.f32.xlu0 %v1671
  %v1673 = vpop.xlane.xlu0 %1672
  %v1674 = vsel %vm1037, %v1650, -inf
  %1675 = vmax.xlane.f32.xlu0 %v1674
  %v1676 = vpop.xlane.xlu0 %1675
  %v1677 = vsel %vm1037, %v1651, -inf
  %1678 = vmax.xlane.f32.xlu0 %v1677
  %v1679 = vpop.xlane.xlu0 %1678
  %v1680 = vsel %vm1037, %v1652, -inf
  %1681 = vmax.xlane.f32.xlu0 %v1680
  %v1682 = vpop.xlane.xlu0 %1681
  %v1683 = vsel %vm1037, %v1653, -inf
  %1684 = vmax.xlane.f32.xlu0 %v1683
  %v1685 = vpop.xlane.xlu0 %1684
  %v1686 = vsel %vm1037, %v1654, -inf
  %1687 = vmax.xlane.f32.xlu0 %v1686
  %v1688 = vpop.xlane.xlu0 %1687
  %v1689 = vsel %vm1037, %v1655, -inf
  %1690 = vmax.xlane.f32.xlu0 %v1689
  %v1691 = vpop.xlane.xlu0 %1690
  %v1692 = vsel %vm1037, %v1656, -inf
  %1693 = vmax.xlane.f32.xlu0 %v1692
  %v1694 = vpop.xlane.xlu0 %1693
  %v1695 = vsel %vm1037, %v1657, -inf
  %1696 = vmax.xlane.f32.xlu0 %v1695
  %v1697 = vpop.xlane.xlu0 %1696
  %v1698 = vsel %vm1037, %v1658, -inf
  %1699 = vmax.xlane.f32.xlu0 %v1698
  %v1700 = vpop.xlane.xlu0 %1699
  %v1701 = vsel %vm1037, %v1659, -inf
  %1702 = vmax.xlane.f32.xlu0 %v1701
  %v1703 = vpop.xlane.xlu0 %1702
  %v1704 = vsel %vm1037, %v1660, -inf
  %1705 = vmax.xlane.f32.xlu0 %v1704
  %v1706 = vpop.xlane.xlu0 %1705
  %v1707 = vsel %vm1037, %v1661, -inf
  %1708 = vmax.xlane.f32.xlu0 %v1707
  %v1709 = vpop.xlane.xlu0 %1708
  %v1710 = vsub.f32 %v1646, %v1664
  %v1711 = vsub.f32 %v1647, %v1667
  %v1712 = vsub.f32 %v1648, %v1670
  %v1713 = vsub.f32 %v1649, %v1673
  %v1714 = vsub.f32 %v1650, %v1676
  %v1715 = vsub.f32 %v1651, %v1679
  %v1716 = vsub.f32 %v1652, %v1682
  %v1717 = vsub.f32 %v1653, %v1685
  %v1718 = vsub.f32 %v1654, %v1688
  %v1719 = vsub.f32 %v1655, %v1691
  %v1720 = vsub.f32 %v1656, %v1694
  %v1721 = vsub.f32 %v1657, %v1697
  %v1722 = vsub.f32 %v1658, %v1700
  %v1723 = vsub.f32 %v1659, %v1703
  %v1724 = vsub.f32 %v1660, %v1706
  %v1725 = vsub.f32 %v1661, %v1709
  %v1726 = vmul.f32 %v1710, 1.442695
  %v1727 = vpow.pop %v1726
  %v1728 = vmul.f32 %v1711, 1.442695
  %v1729 = vpow.pop %v1728
  %v1730 = vmul.f32 %v1712, 1.442695
  %v1731 = vpow.pop %v1730
  %v1732 = vmul.f32 %v1713, 1.442695
  %v1733 = vpow.pop %v1732
  %v1734 = vmul.f32 %v1714, 1.442695
  %v1735 = vpow.pop %v1734
  %v1736 = vmul.f32 %v1715, 1.442695
  %v1737 = vpow.pop %v1736
  %v1738 = vmul.f32 %v1716, 1.442695
  %v1739 = vpow.pop %v1738
  %v1740 = vmul.f32 %v1717, 1.442695
  %v1741 = vpow.pop %v1740
  %v1742 = vmul.f32 %v1718, 1.442695
  %v1743 = vpow.pop %v1742
  %v1744 = vmul.f32 %v1719, 1.442695
  %v1745 = vpow.pop %v1744
  %v1746 = vmul.f32 %v1720, 1.442695
  %v1747 = vpow.pop %v1746
  %v1748 = vmul.f32 %v1721, 1.442695
  %v1749 = vpow.pop %v1748
  %v1750 = vmul.f32 %v1722, 1.442695
  %v1751 = vpow.pop %v1750
  %v1752 = vmul.f32 %v1723, 1.442695
  %v1753 = vpow.pop %v1752
  %v1754 = vmul.f32 %v1724, 1.442695
  %v1755 = vpow.pop %v1754
  %v1756 = vmul.f32 %v1725, 1.442695
  %v1757 = vpow.pop %v1756
  %v1758 = vsel %vm1037, %v1727, 0.0
  %1759 = vadd.xlane.f32.xlu0 %v1758
  %v1760 = vpop.xlane.xlu0 %1759
  %v1761 = vsel %vm1037, %v1729, 0.0
  %1762 = vadd.xlane.f32.xlu0 %v1761
  %v1763 = vpop.xlane.xlu0 %1762
  %v1764 = vsel %vm1037, %v1731, 0.0
  %1765 = vadd.xlane.f32.xlu0 %v1764
  %v1766 = vpop.xlane.xlu0 %1765
  %v1767 = vsel %vm1037, %v1733, 0.0
  %1768 = vadd.xlane.f32.xlu0 %v1767
  %v1769 = vpop.xlane.xlu0 %1768
  %v1770 = vsel %vm1037, %v1735, 0.0
  %1771 = vadd.xlane.f32.xlu0 %v1770
  %v1772 = vpop.xlane.xlu0 %1771
  %v1773 = vsel %vm1037, %v1737, 0.0
  %1774 = vadd.xlane.f32.xlu0 %v1773
  %v1775 = vpop.xlane.xlu0 %1774
  %v1776 = vsel %vm1037, %v1739, 0.0
  %1777 = vadd.xlane.f32.xlu0 %v1776
  %v1778 = vpop.xlane.xlu0 %1777
  %v1779 = vsel %vm1037, %v1741, 0.0
  %1780 = vadd.xlane.f32.xlu0 %v1779
  %v1781 = vpop.xlane.xlu0 %1780
  %v1782 = vsel %vm1037, %v1743, 0.0
  %1783 = vadd.xlane.f32.xlu0 %v1782
  %v1784 = vpop.xlane.xlu0 %1783
  %v1785 = vsel %vm1037, %v1745, 0.0
  %1786 = vadd.xlane.f32.xlu0 %v1785
  %v1787 = vpop.xlane.xlu0 %1786
  %v1788 = vsel %vm1037, %v1747, 0.0
  %1789 = vadd.xlane.f32.xlu0 %v1788
  %v1790 = vpop.xlane.xlu0 %1789
  %v1791 = vsel %vm1037, %v1749, 0.0
  %1792 = vadd.xlane.f32.xlu0 %v1791
  %v1793 = vpop.xlane.xlu0 %1792
  %v1794 = vsel %vm1037, %v1751, 0.0
  %1795 = vadd.xlane.f32.xlu0 %v1794
  %v1796 = vpop.xlane.xlu0 %1795
  %v1797 = vsel %vm1037, %v1753, 0.0
  %1798 = vadd.xlane.f32.xlu0 %v1797
  %v1799 = vpop.xlane.xlu0 %1798
  %v1800 = vsel %vm1037, %v1755, 0.0
  %1801 = vadd.xlane.f32.xlu0 %v1800
  %v1802 = vpop.xlane.xlu0 %1801
  %v1803 = vsel %vm1037, %v1757, 0.0
  %1804 = vadd.xlane.f32.xlu0 %v1803
  %v1805 = vpop.xlane.xlu0 %1804
  %v1806 = vrcp.pop %v1760
  %v1807 = vrcp.pop %v1763
  %v1808 = vrcp.pop %v1766
  %v1809 = vrcp.pop %v1769
  %v1810 = vrcp.pop %v1772
  %v1811 = vrcp.pop %v1775
  %v1812 = vrcp.pop %v1778
  %v1813 = vrcp.pop %v1781
  %v1814 = vrcp.pop %v1784
  %v1815 = vrcp.pop %v1787
  %v1816 = vrcp.pop %v1790
  %v1817 = vrcp.pop %v1793
  %v1818 = vrcp.pop %v1796
  %v1819 = vrcp.pop %v1799
  %v1820 = vrcp.pop %v1802
  %v1821 = vrcp.pop %v1805
  %v1822 = vmul.f32 %v1727, %v1806
  %v1823 = vmul.f32 %v1729, %v1807
  %v1824 = vmul.f32 %v1731, %v1808
  %v1825 = vmul.f32 %v1733, %v1809
  %v1826 = vmul.f32 %v1735, %v1810
  %v1827 = vmul.f32 %v1737, %v1811
  %v1828 = vmul.f32 %v1739, %v1812
  %v1829 = vmul.f32 %v1741, %v1813
  %v1830 = vmul.f32 %v1743, %v1814
  %v1831 = vmul.f32 %v1745, %v1815
  %v1832 = vmul.f32 %v1747, %v1816
  %v1833 = vmul.f32 %v1749, %v1817
  %v1834 = vmul.f32 %v1751, %v1818
  %v1835 = vmul.f32 %v1753, %v1819
  %v1836 = vmul.f32 %v1755, %v1820
  %v1837 = vmul.f32 %v1757, %v1821
  %v1838 = vpack.c.bf16 %v1822, %v1822
  %v1839 = vpack.c.bf16 %v1823, %v1823
  %v1840 = vpack.c.bf16 %v1824, %v1824
  %v1841 = vpack.c.bf16 %v1825, %v1825
  %v1842 = vpack.c.bf16 %v1826, %v1826
  %v1843 = vpack.c.bf16 %v1827, %v1827
  %v1844 = vpack.c.bf16 %v1828, %v1828
  %v1845 = vpack.c.bf16 %v1829, %v1829
  %v1846 = vpack.c.bf16 %v1830, %v1830
  %v1847 = vpack.c.bf16 %v1831, %v1831
  %v1848 = vpack.c.bf16 %v1832, %v1832
  %v1849 = vpack.c.bf16 %v1833, %v1833
  %v1850 = vpack.c.bf16 %v1834, %v1834
  %v1851 = vpack.c.bf16 %v1835, %v1835
  %v1852 = vpack.c.bf16 %v1836, %v1836
  %v1853 = vpack.c.bf16 %v1837, %v1837
  %v1856 = vunpack.c.l.b16 %v1838
  %v1857 = vunpack.c.l.b16 %v1839
  %v1858 = vpack.c.b16 %v1857, %v1856
  %1859 = vrot.lane.b32.xlu0 %v1239, 120
  %v1860 = vpop.permute.xlu0 %1859
  %v1863 = vsel %vm1037, %v1858, 0
  %1865 = vmatpush.bf16.msra.mxu0 0
  %1866 = vmatpush.bf16.msra.mxu0 0
  %1867 = vmatpush.bf16.msra.mxu0 0
  %1868 = vmatpush.bf16.msra.mxu0 0
  %1869 = vmatpush.bf16.msra.mxu0 0
  %1870 = vmatpush.bf16.msra.mxu0 0
  %1871 = vmatpush.bf16.msra.mxu0 0
  %1872 = vmatpush.bf16.msra.mxu0 %v1860
  %1873 = vmatmul.bf16.gmra.mxu0 %v1863
  %v1874 = vpop.f32.mrf.mxu0
  %v1875 = vadd.f32 0.0, %v1874
  %v1876 = vpop.f32.mrf.mxu0
  %v1877 = vadd.f32 0.0, %v1876
  %1878 = vdwg.mxu0
  %v1881 = vunpack.c.l.b16 %v1840
  %v1882 = vunpack.c.l.b16 %v1841
  %v1883 = vpack.c.b16 %v1882, %v1881
  %1884 = vrot.lane.b32.xlu0 %v1267, 120
  %v1885 = vpop.permute.xlu0 %1884
  %v1888 = vsel %vm1037, %v1883, 0
  %1890 = vmatpush.bf16.msra.mxu0 0
  %1891 = vmatpush.bf16.msra.mxu0 0
  %1892 = vmatpush.bf16.msra.mxu0 0
  %1893 = vmatpush.bf16.msra.mxu0 0
  %1894 = vmatpush.bf16.msra.mxu0 0
  %1895 = vmatpush.bf16.msra.mxu0 0
  %1896 = vmatpush.bf16.msra.mxu0 0
  %1897 = vmatpush.bf16.msra.mxu0 %v1885
  %1898 = vmatmul.bf16.gmra.mxu0 %v1888
  %v1899 = vpop.f32.mrf.mxu0
  %v1900 = vadd.f32 0.0, %v1899
  %v1901 = vpop.f32.mrf.mxu0
  %v1902 = vadd.f32 0.0, %v1901
  %1903 = vdwg.mxu0
  %v1906 = vunpack.c.l.b16 %v1842
  %v1907 = vunpack.c.l.b16 %v1843
  %v1908 = vpack.c.b16 %v1907, %v1906
  %1909 = vrot.lane.b32.xlu0 %v1295, 120
  %v1910 = vpop.permute.xlu0 %1909
  %v1913 = vsel %vm1037, %v1908, 0
  %1915 = vmatpush.bf16.msra.mxu0 0
  %1916 = vmatpush.bf16.msra.mxu0 0
  %1917 = vmatpush.bf16.msra.mxu0 0
  %1918 = vmatpush.bf16.msra.mxu0 0
  %1919 = vmatpush.bf16.msra.mxu0 0
  %1920 = vmatpush.bf16.msra.mxu0 0
  %1921 = vmatpush.bf16.msra.mxu0 0
  %1922 = vmatpush.bf16.msra.mxu0 %v1910
  %1923 = vmatmul.bf16.gmra.mxu0 %v1913
  %v1924 = vpop.f32.mrf.mxu0
  %v1925 = vadd.f32 0.0, %v1924
  %v1926 = vpop.f32.mrf.mxu0
  %v1927 = vadd.f32 0.0, %v1926
  %1928 = vdwg.mxu0
  %v1931 = vunpack.c.l.b16 %v1844
  %v1932 = vunpack.c.l.b16 %v1845
  %v1933 = vpack.c.b16 %v1932, %v1931
  %1934 = vrot.lane.b32.xlu0 %v1323, 120
  %v1935 = vpop.permute.xlu0 %1934
  %v1938 = vsel %vm1037, %v1933, 0
  %1940 = vmatpush.bf16.msra.mxu0 0
  %1941 = vmatpush.bf16.msra.mxu0 0
  %1942 = vmatpush.bf16.msra.mxu0 0
  %1943 = vmatpush.bf16.msra.mxu0 0
  %1944 = vmatpush.bf16.msra.mxu0 0
  %1945 = vmatpush.bf16.msra.mxu0 0
  %1946 = vmatpush.bf16.msra.mxu0 0
  %1947 = vmatpush.bf16.msra.mxu0 %v1935
  %1948 = vmatmul.bf16.gmra.mxu0 %v1938
  %v1949 = vpop.f32.mrf.mxu0
  %v1950 = vadd.f32 0.0, %v1949
  %v1951 = vpop.f32.mrf.mxu0
  %v1952 = vadd.f32 0.0, %v1951
  %1953 = vdwg.mxu0
  %v1956 = vunpack.c.l.b16 %v1846
  %v1957 = vunpack.c.l.b16 %v1847
  %v1958 = vpack.c.b16 %v1957, %v1956
  %1959 = vrot.lane.b32.xlu0 %v1351, 120
  %v1960 = vpop.permute.xlu0 %1959
  %v1963 = vsel %vm1037, %v1958, 0
  %1965 = vmatpush.bf16.msra.mxu0 0
  %1966 = vmatpush.bf16.msra.mxu0 0
  %1967 = vmatpush.bf16.msra.mxu0 0
  %1968 = vmatpush.bf16.msra.mxu0 0
  %1969 = vmatpush.bf16.msra.mxu0 0
  %1970 = vmatpush.bf16.msra.mxu0 0
  %1971 = vmatpush.bf16.msra.mxu0 0
  %1972 = vmatpush.bf16.msra.mxu0 %v1960
  %1973 = vmatmul.bf16.gmra.mxu0 %v1963
  %v1974 = vpop.f32.mrf.mxu0
  %v1975 = vadd.f32 0.0, %v1974
  %v1976 = vpop.f32.mrf.mxu0
  %v1977 = vadd.f32 0.0, %v1976
  %1978 = vdwg.mxu0
  %v1981 = vunpack.c.l.b16 %v1848
  %v1982 = vunpack.c.l.b16 %v1849
  %v1983 = vpack.c.b16 %v1982, %v1981
  %1984 = vrot.lane.b32.xlu0 %v1379, 120
  %v1985 = vpop.permute.xlu0 %1984
  %v1988 = vsel %vm1037, %v1983, 0
  %1990 = vmatpush.bf16.msra.mxu0 0
  %1991 = vmatpush.bf16.msra.mxu0 0
  %1992 = vmatpush.bf16.msra.mxu0 0
  %1993 = vmatpush.bf16.msra.mxu0 0
  %1994 = vmatpush.bf16.msra.mxu0 0
  %1995 = vmatpush.bf16.msra.mxu0 0
  %1996 = vmatpush.bf16.msra.mxu0 0
  %1997 = vmatpush.bf16.msra.mxu0 %v1985
  %1998 = vmatmul.bf16.gmra.mxu0 %v1988
  %v1999 = vpop.f32.mrf.mxu0
  %v2000 = vadd.f32 0.0, %v1999
  %v2001 = vpop.f32.mrf.mxu0
  %v2002 = vadd.f32 0.0, %v2001
  %2003 = vdwg.mxu0
  %v2006 = vunpack.c.l.b16 %v1850
  %v2007 = vunpack.c.l.b16 %v1851
  %v2008 = vpack.c.b16 %v2007, %v2006
  %2009 = vrot.lane.b32.xlu0 %v1407, 120
  %v2010 = vpop.permute.xlu0 %2009
  %v2013 = vsel %vm1037, %v2008, 0
  %2015 = vmatpush.bf16.msra.mxu0 0
  %2016 = vmatpush.bf16.msra.mxu0 0
  %2017 = vmatpush.bf16.msra.mxu0 0
  %2018 = vmatpush.bf16.msra.mxu0 0
  %2019 = vmatpush.bf16.msra.mxu0 0
  %2020 = vmatpush.bf16.msra.mxu0 0
  %2021 = vmatpush.bf16.msra.mxu0 0
  %2022 = vmatpush.bf16.msra.mxu0 %v2010
  %2023 = vmatmul.bf16.gmra.mxu0 %v2013
  %v2024 = vpop.f32.mrf.mxu0
  %v2025 = vadd.f32 0.0, %v2024
  %v2026 = vpop.f32.mrf.mxu0
  %v2027 = vadd.f32 0.0, %v2026
  %2028 = vdwg.mxu0
  %v2031 = vunpack.c.l.b16 %v1852
  %v2032 = vunpack.c.l.b16 %v1853
  %v2033 = vpack.c.b16 %v2032, %v2031
  %2034 = vrot.lane.b32.xlu0 %v1435, 120
  %v2035 = vpop.permute.xlu0 %2034
  %v2038 = vsel %vm1037, %v2033, 0
  %2040 = vmatpush.bf16.msra.mxu0 0
  %2041 = vmatpush.bf16.msra.mxu0 0
  %2042 = vmatpush.bf16.msra.mxu0 0
  %2043 = vmatpush.bf16.msra.mxu0 0
  %2044 = vmatpush.bf16.msra.mxu0 0
  %2045 = vmatpush.bf16.msra.mxu0 0
  %2046 = vmatpush.bf16.msra.mxu0 0
  %2047 = vmatpush.bf16.msra.mxu0 %v2035
  %2048 = vmatmul.bf16.gmra.mxu0 %v2038
  %v2049 = vpop.f32.mrf.mxu0
  %v2050 = vadd.f32 0.0, %v2049
  %v2051 = vpop.f32.mrf.mxu0
  %v2052 = vadd.f32 0.0, %v2051
  %2053 = vdwg.mxu0
  %2054 = vrot.lane.b32.xlu0 %v784, 112
  %v2055 = vpop.permute.xlu0 %2054
  %2056 = vrot.lane.b32.xlu0 %v789, 112
  %v2057 = vpop.permute.xlu0 %2056
  %v2059 = vsel %vm790, %v2055, 0
  %v2062 = vsel %vm790, %v2057, 0
  %2064 = vmatpush.bf16.xpose.msra.mxu0 0
  %2065 = vmatpush.bf16.xpose.msra.mxu0 0
  %2066 = vmatpush.bf16.xpose.msra.mxu0 0
  %2067 = vmatpush.bf16.xpose.msra.mxu0 0
  %2068 = vmatpush.bf16.xpose.msra.mxu0 0
  %2069 = vmatpush.bf16.xpose.msra.mxu0 0
  %2070 = vmatpush.bf16.xpose.msra.mxu0 0
  %2071 = vmatpush.bf16.xpose.msra.mxu0 %v2062
  %2072 = vmatmul.bf16.gmra.mxu0 %v2059
  %v2073 = vpop.f32.mrf.mxu0
  %v2074 = vadd.f32 %v760, %v2073
  %v2075 = vpop.f32.mrf.mxu0
  %v2076 = vadd.f32 %v761, %v2075
  %2077 = vdwg.mxu0
  %2078 = vrot.lane.b32.xlu0 %v815, 112
  %v2079 = vpop.permute.xlu0 %2078
  %2080 = vrot.lane.b32.xlu0 %v820, 112
  %v2081 = vpop.permute.xlu0 %2080
  %v2083 = vsel %vm790, %v2079, 0
  %v2086 = vsel %vm790, %v2081, 0
  %2088 = vmatpush.bf16.xpose.msra.mxu0 0
  %2089 = vmatpush.bf16.xpose.msra.mxu0 0
  %2090 = vmatpush.bf16.xpose.msra.mxu0 0
  %2091 = vmatpush.bf16.xpose.msra.mxu0 0
  %2092 = vmatpush.bf16.xpose.msra.mxu0 0
  %2093 = vmatpush.bf16.xpose.msra.mxu0 0
  %2094 = vmatpush.bf16.xpose.msra.mxu0 0
  %2095 = vmatpush.bf16.xpose.msra.mxu0 %v2086
  %2096 = vmatmul.bf16.gmra.mxu0 %v2083
  %v2097 = vpop.f32.mrf.mxu0
  %v2098 = vadd.f32 %v760, %v2097
  %v2099 = vpop.f32.mrf.mxu0
  %v2100 = vadd.f32 %v761, %v2099
  %2101 = vdwg.mxu0
  %2102 = vrot.lane.b32.xlu0 %v845, 112
  %v2103 = vpop.permute.xlu0 %2102
  %2104 = vrot.lane.b32.xlu0 %v850, 112
  %v2105 = vpop.permute.xlu0 %2104
  %v2107 = vsel %vm790, %v2103, 0
  %v2110 = vsel %vm790, %v2105, 0
  %2112 = vmatpush.bf16.xpose.msra.mxu0 0
  %2113 = vmatpush.bf16.xpose.msra.mxu0 0
  %2114 = vmatpush.bf16.xpose.msra.mxu0 0
  %2115 = vmatpush.bf16.xpose.msra.mxu0 0
  %2116 = vmatpush.bf16.xpose.msra.mxu0 0
  %2117 = vmatpush.bf16.xpose.msra.mxu0 0
  %2118 = vmatpush.bf16.xpose.msra.mxu0 0
  %2119 = vmatpush.bf16.xpose.msra.mxu0 %v2110
  %2120 = vmatmul.bf16.gmra.mxu0 %v2107
  %v2121 = vpop.f32.mrf.mxu0
  %v2122 = vadd.f32 %v760, %v2121
  %v2123 = vpop.f32.mrf.mxu0
  %v2124 = vadd.f32 %v761, %v2123
  %2125 = vdwg.mxu0
  %2126 = vrot.lane.b32.xlu0 %v875, 112
  %v2127 = vpop.permute.xlu0 %2126
  %2128 = vrot.lane.b32.xlu0 %v880, 112
  %v2129 = vpop.permute.xlu0 %2128
  %v2131 = vsel %vm790, %v2127, 0
  %v2134 = vsel %vm790, %v2129, 0
  %2136 = vmatpush.bf16.xpose.msra.mxu0 0
  %2137 = vmatpush.bf16.xpose.msra.mxu0 0
  %2138 = vmatpush.bf16.xpose.msra.mxu0 0
  %2139 = vmatpush.bf16.xpose.msra.mxu0 0
  %2140 = vmatpush.bf16.xpose.msra.mxu0 0
  %2141 = vmatpush.bf16.xpose.msra.mxu0 0
  %2142 = vmatpush.bf16.xpose.msra.mxu0 0
  %2143 = vmatpush.bf16.xpose.msra.mxu0 %v2134
  %2144 = vmatmul.bf16.gmra.mxu0 %v2131
  %v2145 = vpop.f32.mrf.mxu0
  %v2146 = vadd.f32 %v760, %v2145
  %v2147 = vpop.f32.mrf.mxu0
  %v2148 = vadd.f32 %v761, %v2147
  %2149 = vdwg.mxu0
  %2150 = vrot.lane.b32.xlu0 %v905, 112
  %v2151 = vpop.permute.xlu0 %2150
  %2152 = vrot.lane.b32.xlu0 %v910, 112
  %v2153 = vpop.permute.xlu0 %2152
  %v2155 = vsel %vm790, %v2151, 0
  %v2158 = vsel %vm790, %v2153, 0
  %2160 = vmatpush.bf16.xpose.msra.mxu0 0
  %2161 = vmatpush.bf16.xpose.msra.mxu0 0
  %2162 = vmatpush.bf16.xpose.msra.mxu0 0
  %2163 = vmatpush.bf16.xpose.msra.mxu0 0
  %2164 = vmatpush.bf16.xpose.msra.mxu0 0
  %2165 = vmatpush.bf16.xpose.msra.mxu0 0
  %2166 = vmatpush.bf16.xpose.msra.mxu0 0
  %2167 = vmatpush.bf16.xpose.msra.mxu0 %v2158
  %2168 = vmatmul.bf16.gmra.mxu0 %v2155
  %v2169 = vpop.f32.mrf.mxu0
  %v2170 = vadd.f32 %v760, %v2169
  %v2171 = vpop.f32.mrf.mxu0
  %v2172 = vadd.f32 %v761, %v2171
  %2173 = vdwg.mxu0
  %2174 = vrot.lane.b32.xlu0 %v935, 112
  %v2175 = vpop.permute.xlu0 %2174
  %2176 = vrot.lane.b32.xlu0 %v940, 112
  %v2177 = vpop.permute.xlu0 %2176
  %v2179 = vsel %vm790, %v2175, 0
  %v2182 = vsel %vm790, %v2177, 0
  %2184 = vmatpush.bf16.xpose.msra.mxu0 0
  %2185 = vmatpush.bf16.xpose.msra.mxu0 0
  %2186 = vmatpush.bf16.xpose.msra.mxu0 0
  %2187 = vmatpush.bf16.xpose.msra.mxu0 0
  %2188 = vmatpush.bf16.xpose.msra.mxu0 0
  %2189 = vmatpush.bf16.xpose.msra.mxu0 0
  %2190 = vmatpush.bf16.xpose.msra.mxu0 0
  %2191 = vmatpush.bf16.xpose.msra.mxu0 %v2182
  %2192 = vmatmul.bf16.gmra.mxu0 %v2179
  %v2193 = vpop.f32.mrf.mxu0
  %v2194 = vadd.f32 %v760, %v2193
  %v2195 = vpop.f32.mrf.mxu0
  %v2196 = vadd.f32 %v761, %v2195
  %2197 = vdwg.mxu0
  %2198 = vrot.lane.b32.xlu0 %v965, 112
  %v2199 = vpop.permute.xlu0 %2198
  %2200 = vrot.lane.b32.xlu0 %v970, 112
  %v2201 = vpop.permute.xlu0 %2200
  %v2203 = vsel %vm790, %v2199, 0
  %v2206 = vsel %vm790, %v2201, 0
  %2208 = vmatpush.bf16.xpose.msra.mxu0 0
  %2209 = vmatpush.bf16.xpose.msra.mxu0 0
  %2210 = vmatpush.bf16.xpose.msra.mxu0 0
  %2211 = vmatpush.bf16.xpose.msra.mxu0 0
  %2212 = vmatpush.bf16.xpose.msra.mxu0 0
  %2213 = vmatpush.bf16.xpose.msra.mxu0 0
  %2214 = vmatpush.bf16.xpose.msra.mxu0 0
  %2215 = vmatpush.bf16.xpose.msra.mxu0 %v2206
  %2216 = vmatmul.bf16.gmra.mxu0 %v2203
  %v2217 = vpop.f32.mrf.mxu0
  %v2218 = vadd.f32 %v760, %v2217
  %v2219 = vpop.f32.mrf.mxu0
  %v2220 = vadd.f32 %v761, %v2219
  %2221 = vdwg.mxu0
  %2222 = vrot.lane.b32.xlu0 %v995, 112
  %v2223 = vpop.permute.xlu0 %2222
  %2224 = vrot.lane.b32.xlu0 %v1000, 112
  %v2225 = vpop.permute.xlu0 %2224
  %v2227 = vsel %vm790, %v2223, 0
  %v2230 = vsel %vm790, %v2225, 0
  %2232 = vmatpush.bf16.xpose.msra.mxu0 0
  %2233 = vmatpush.bf16.xpose.msra.mxu0 0
  %2234 = vmatpush.bf16.xpose.msra.mxu0 0
  %2235 = vmatpush.bf16.xpose.msra.mxu0 0
  %2236 = vmatpush.bf16.xpose.msra.mxu0 0
  %2237 = vmatpush.bf16.xpose.msra.mxu0 0
  %2238 = vmatpush.bf16.xpose.msra.mxu0 0
  %2239 = vmatpush.bf16.xpose.msra.mxu0 %v2230
  %2240 = vmatmul.bf16.gmra.mxu0 %v2227
  %v2241 = vpop.f32.mrf.mxu0
  %v2242 = vadd.f32 %v760, %v2241
  %v2243 = vpop.f32.mrf.mxu0
  %v2244 = vadd.f32 %v761, %v2243
  %2245 = vdwg.mxu0
  %v2246 = vadd.f32 %v2074, %v764
  %v2247 = vadd.f32 %v2076, %v765
  %v2248 = vadd.f32 %v2098, %v766
  %v2249 = vadd.f32 %v2100, %v767
  %v2250 = vadd.f32 %v2122, %v768
  %v2251 = vadd.f32 %v2124, %v769
  %v2252 = vadd.f32 %v2146, %v770
  %v2253 = vadd.f32 %v2148, %v771
  %v2254 = vadd.f32 %v2170, %v772
  %v2255 = vadd.f32 %v2172, %v773
  %v2256 = vadd.f32 %v2194, %v774
  %v2257 = vadd.f32 %v2196, %v775
  %v2258 = vadd.f32 %v2218, %v776
  %v2259 = vadd.f32 %v2220, %v777
  %v2260 = vadd.f32 %v2242, %v778
  %v2261 = vadd.f32 %v2244, %v779
  %v2262 = vsel %vm1037, %v2246, -inf
  %2263 = vmax.xlane.f32.xlu0 %v2262
  %v2264 = vpop.xlane.xlu0 %2263
  %v2265 = vsel %vm1037, %v2247, -inf
  %2266 = vmax.xlane.f32.xlu0 %v2265
  %v2267 = vpop.xlane.xlu0 %2266
  %v2268 = vsel %vm1037, %v2248, -inf
  %2269 = vmax.xlane.f32.xlu0 %v2268
  %v2270 = vpop.xlane.xlu0 %2269
  %v2271 = vsel %vm1037, %v2249, -inf
  %2272 = vmax.xlane.f32.xlu0 %v2271
  %v2273 = vpop.xlane.xlu0 %2272
  %v2274 = vsel %vm1037, %v2250, -inf
  %2275 = vmax.xlane.f32.xlu0 %v2274
  %v2276 = vpop.xlane.xlu0 %2275
  %v2277 = vsel %vm1037, %v2251, -inf
  %2278 = vmax.xlane.f32.xlu0 %v2277
  %v2279 = vpop.xlane.xlu0 %2278
  %v2280 = vsel %vm1037, %v2252, -inf
  %2281 = vmax.xlane.f32.xlu0 %v2280
  %v2282 = vpop.xlane.xlu0 %2281
  %v2283 = vsel %vm1037, %v2253, -inf
  %2284 = vmax.xlane.f32.xlu0 %v2283
  %v2285 = vpop.xlane.xlu0 %2284
  %v2286 = vsel %vm1037, %v2254, -inf
  %2287 = vmax.xlane.f32.xlu0 %v2286
  %v2288 = vpop.xlane.xlu0 %2287
  %v2289 = vsel %vm1037, %v2255, -inf
  %2290 = vmax.xlane.f32.xlu0 %v2289
  %v2291 = vpop.xlane.xlu0 %2290
  %v2292 = vsel %vm1037, %v2256, -inf
  %2293 = vmax.xlane.f32.xlu0 %v2292
  %v2294 = vpop.xlane.xlu0 %2293
  %v2295 = vsel %vm1037, %v2257, -inf
  %2296 = vmax.xlane.f32.xlu0 %v2295
  %v2297 = vpop.xlane.xlu0 %2296
  %v2298 = vsel %vm1037, %v2258, -inf
  %2299 = vmax.xlane.f32.xlu0 %v2298
  %v2300 = vpop.xlane.xlu0 %2299
  %v2301 = vsel %vm1037, %v2259, -inf
  %2302 = vmax.xlane.f32.xlu0 %v2301
  %v2303 = vpop.xlane.xlu0 %2302
  %v2304 = vsel %vm1037, %v2260, -inf
  %2305 = vmax.xlane.f32.xlu0 %v2304
  %v2306 = vpop.xlane.xlu0 %2305
  %v2307 = vsel %vm1037, %v2261, -inf
  %2308 = vmax.xlane.f32.xlu0 %v2307
  %v2309 = vpop.xlane.xlu0 %2308
  %v2310 = vsub.f32 %v2246, %v2264
  %v2311 = vsub.f32 %v2247, %v2267
  %v2312 = vsub.f32 %v2248, %v2270
  %v2313 = vsub.f32 %v2249, %v2273
  %v2314 = vsub.f32 %v2250, %v2276
  %v2315 = vsub.f32 %v2251, %v2279
  %v2316 = vsub.f32 %v2252, %v2282
  %v2317 = vsub.f32 %v2253, %v2285
  %v2318 = vsub.f32 %v2254, %v2288
  %v2319 = vsub.f32 %v2255, %v2291
  %v2320 = vsub.f32 %v2256, %v2294
  %v2321 = vsub.f32 %v2257, %v2297
  %v2322 = vsub.f32 %v2258, %v2300
  %v2323 = vsub.f32 %v2259, %v2303
  %v2324 = vsub.f32 %v2260, %v2306
  %v2325 = vsub.f32 %v2261, %v2309
  %v2326 = vmul.f32 %v2310, 1.442695
  %v2327 = vpow.pop %v2326
  %v2328 = vmul.f32 %v2311, 1.442695
  %v2329 = vpow.pop %v2328
  %v2330 = vmul.f32 %v2312, 1.442695
  %v2331 = vpow.pop %v2330
  %v2332 = vmul.f32 %v2313, 1.442695
  %v2333 = vpow.pop %v2332
  %v2334 = vmul.f32 %v2314, 1.442695
  %v2335 = vpow.pop %v2334
  %v2336 = vmul.f32 %v2315, 1.442695
  %v2337 = vpow.pop %v2336
  %v2338 = vmul.f32 %v2316, 1.442695
  %v2339 = vpow.pop %v2338
  %v2340 = vmul.f32 %v2317, 1.442695
  %v2341 = vpow.pop %v2340
  %v2342 = vmul.f32 %v2318, 1.442695
  %v2343 = vpow.pop %v2342
  %v2344 = vmul.f32 %v2319, 1.442695
  %v2345 = vpow.pop %v2344
  %v2346 = vmul.f32 %v2320, 1.442695
  %v2347 = vpow.pop %v2346
  %v2348 = vmul.f32 %v2321, 1.442695
  %v2349 = vpow.pop %v2348
  %v2350 = vmul.f32 %v2322, 1.442695
  %v2351 = vpow.pop %v2350
  %v2352 = vmul.f32 %v2323, 1.442695
  %v2353 = vpow.pop %v2352
  %v2354 = vmul.f32 %v2324, 1.442695
  %v2355 = vpow.pop %v2354
  %v2356 = vmul.f32 %v2325, 1.442695
  %v2357 = vpow.pop %v2356
  %v2358 = vsel %vm1037, %v2327, 0.0
  %2359 = vadd.xlane.f32.xlu0 %v2358
  %v2360 = vpop.xlane.xlu0 %2359
  %v2361 = vsel %vm1037, %v2329, 0.0
  %2362 = vadd.xlane.f32.xlu0 %v2361
  %v2363 = vpop.xlane.xlu0 %2362
  %v2364 = vsel %vm1037, %v2331, 0.0
  %2365 = vadd.xlane.f32.xlu0 %v2364
  %v2366 = vpop.xlane.xlu0 %2365
  %v2367 = vsel %vm1037, %v2333, 0.0
  %2368 = vadd.xlane.f32.xlu0 %v2367
  %v2369 = vpop.xlane.xlu0 %2368
  %v2370 = vsel %vm1037, %v2335, 0.0
  %2371 = vadd.xlane.f32.xlu0 %v2370
  %v2372 = vpop.xlane.xlu0 %2371
  %v2373 = vsel %vm1037, %v2337, 0.0
  %2374 = vadd.xlane.f32.xlu0 %v2373
  %v2375 = vpop.xlane.xlu0 %2374
  %v2376 = vsel %vm1037, %v2339, 0.0
  %2377 = vadd.xlane.f32.xlu0 %v2376
  %v2378 = vpop.xlane.xlu0 %2377
  %v2379 = vsel %vm1037, %v2341, 0.0
  %2380 = vadd.xlane.f32.xlu0 %v2379
  %v2381 = vpop.xlane.xlu0 %2380
  %v2382 = vsel %vm1037, %v2343, 0.0
  %2383 = vadd.xlane.f32.xlu0 %v2382
  %v2384 = vpop.xlane.xlu0 %2383
  %v2385 = vsel %vm1037, %v2345, 0.0
  %2386 = vadd.xlane.f32.xlu0 %v2385
  %v2387 = vpop.xlane.xlu0 %2386
  %v2388 = vsel %vm1037, %v2347, 0.0
  %2389 = vadd.xlane.f32.xlu0 %v2388
  %v2390 = vpop.xlane.xlu0 %2389
  %v2391 = vsel %vm1037, %v2349, 0.0
  %2392 = vadd.xlane.f32.xlu0 %v2391
  %v2393 = vpop.xlane.xlu0 %2392
  %v2394 = vsel %vm1037, %v2351, 0.0
  %2395 = vadd.xlane.f32.xlu0 %v2394
  %v2396 = vpop.xlane.xlu0 %2395
  %v2397 = vsel %vm1037, %v2353, 0.0
  %2398 = vadd.xlane.f32.xlu0 %v2397
  %v2399 = vpop.xlane.xlu0 %2398
  %v2400 = vsel %vm1037, %v2355, 0.0
  %2401 = vadd.xlane.f32.xlu0 %v2400
  %v2402 = vpop.xlane.xlu0 %2401
  %v2403 = vsel %vm1037, %v2357, 0.0
  %2404 = vadd.xlane.f32.xlu0 %v2403
  %v2405 = vpop.xlane.xlu0 %2404
  %v2406 = vrcp.pop %v2360
  %v2407 = vrcp.pop %v2363
  %v2408 = vrcp.pop %v2366
  %v2409 = vrcp.pop %v2369
  %v2410 = vrcp.pop %v2372
  %v2411 = vrcp.pop %v2375
  %v2412 = vrcp.pop %v2378
  %v2413 = vrcp.pop %v2381
  %v2414 = vrcp.pop %v2384
  %v2415 = vrcp.pop %v2387
  %v2416 = vrcp.pop %v2390
  %v2417 = vrcp.pop %v2393
  %v2418 = vrcp.pop %v2396
  %v2419 = vrcp.pop %v2399
  %v2420 = vrcp.pop %v2402
  %v2421 = vrcp.pop %v2405
  %v2422 = vmul.f32 %v2327, %v2406
  %v2423 = vmul.f32 %v2329, %v2407
  %v2424 = vmul.f32 %v2331, %v2408
  %v2425 = vmul.f32 %v2333, %v2409
  %v2426 = vmul.f32 %v2335, %v2410
  %v2427 = vmul.f32 %v2337, %v2411
  %v2428 = vmul.f32 %v2339, %v2412
  %v2429 = vmul.f32 %v2341, %v2413
  %v2430 = vmul.f32 %v2343, %v2414
  %v2431 = vmul.f32 %v2345, %v2415
  %v2432 = vmul.f32 %v2347, %v2416
  %v2433 = vmul.f32 %v2349, %v2417
  %v2434 = vmul.f32 %v2351, %v2418
  %v2435 = vmul.f32 %v2353, %v2419
  %v2436 = vmul.f32 %v2355, %v2420
  %v2437 = vmul.f32 %v2357, %v2421
  %v2438 = vpack.c.bf16 %v2422, %v2422
  %v2439 = vpack.c.bf16 %v2423, %v2423
  %v2440 = vpack.c.bf16 %v2424, %v2424
  %v2441 = vpack.c.bf16 %v2425, %v2425
  %v2442 = vpack.c.bf16 %v2426, %v2426
  %v2443 = vpack.c.bf16 %v2427, %v2427
  %v2444 = vpack.c.bf16 %v2428, %v2428
  %v2445 = vpack.c.bf16 %v2429, %v2429
  %v2446 = vpack.c.bf16 %v2430, %v2430
  %v2447 = vpack.c.bf16 %v2431, %v2431
  %v2448 = vpack.c.bf16 %v2432, %v2432
  %v2449 = vpack.c.bf16 %v2433, %v2433
  %v2450 = vpack.c.bf16 %v2434, %v2434
  %v2451 = vpack.c.bf16 %v2435, %v2435
  %v2452 = vpack.c.bf16 %v2436, %v2436
  %v2453 = vpack.c.bf16 %v2437, %v2437
  %v2456 = vunpack.c.l.b16 %v2438
  %v2457 = vunpack.c.l.b16 %v2439
  %v2458 = vpack.c.b16 %v2457, %v2456
  %2459 = vrot.lane.b32.xlu0 %v1239, 112
  %v2460 = vpop.permute.xlu0 %2459
  %v2463 = vsel %vm1037, %v2458, 0
  %2465 = vmatpush.bf16.msra.mxu0 0
  %2466 = vmatpush.bf16.msra.mxu0 0
  %2467 = vmatpush.bf16.msra.mxu0 0
  %2468 = vmatpush.bf16.msra.mxu0 0
  %2469 = vmatpush.bf16.msra.mxu0 0
  %2470 = vmatpush.bf16.msra.mxu0 0
  %2471 = vmatpush.bf16.msra.mxu0 0
  %2472 = vmatpush.bf16.msra.mxu0 %v2460
  %2473 = vmatmul.bf16.gmra.mxu0 %v2463
  %v2474 = vpop.f32.mrf.mxu0
  %v2475 = vadd.f32 0.0, %v2474
  %v2476 = vpop.f32.mrf.mxu0
  %v2477 = vadd.f32 0.0, %v2476
  %2478 = vdwg.mxu0
  %v2481 = vunpack.c.l.b16 %v2440
  %v2482 = vunpack.c.l.b16 %v2441
  %v2483 = vpack.c.b16 %v2482, %v2481
  %2484 = vrot.lane.b32.xlu0 %v1267, 112
  %v2485 = vpop.permute.xlu0 %2484
  %v2488 = vsel %vm1037, %v2483, 0
  %2490 = vmatpush.bf16.msra.mxu0 0
  %2491 = vmatpush.bf16.msra.mxu0 0
  %2492 = vmatpush.bf16.msra.mxu0 0
  %2493 = vmatpush.bf16.msra.mxu0 0
  %2494 = vmatpush.bf16.msra.mxu0 0
  %2495 = vmatpush.bf16.msra.mxu0 0
  %2496 = vmatpush.bf16.msra.mxu0 0
  %2497 = vmatpush.bf16.msra.mxu0 %v2485
  %2498 = vmatmul.bf16.gmra.mxu0 %v2488
  %v2499 = vpop.f32.mrf.mxu0
  %v2500 = vadd.f32 0.0, %v2499
  %v2501 = vpop.f32.mrf.mxu0
  %v2502 = vadd.f32 0.0, %v2501
  %2503 = vdwg.mxu0
  %v2506 = vunpack.c.l.b16 %v2442
  %v2507 = vunpack.c.l.b16 %v2443
  %v2508 = vpack.c.b16 %v2507, %v2506
  %2509 = vrot.lane.b32.xlu0 %v1295, 112
  %v2510 = vpop.permute.xlu0 %2509
  %v2513 = vsel %vm1037, %v2508, 0
  %2515 = vmatpush.bf16.msra.mxu0 0
  %2516 = vmatpush.bf16.msra.mxu0 0
  %2517 = vmatpush.bf16.msra.mxu0 0
  %2518 = vmatpush.bf16.msra.mxu0 0
  %2519 = vmatpush.bf16.msra.mxu0 0
  %2520 = vmatpush.bf16.msra.mxu0 0
  %2521 = vmatpush.bf16.msra.mxu0 0
  %2522 = vmatpush.bf16.msra.mxu0 %v2510
  %2523 = vmatmul.bf16.gmra.mxu0 %v2513
  %v2524 = vpop.f32.mrf.mxu0
  %v2525 = vadd.f32 0.0, %v2524
  %v2526 = vpop.f32.mrf.mxu0
  %v2527 = vadd.f32 0.0, %v2526
  %2528 = vdwg.mxu0
  %v2531 = vunpack.c.l.b16 %v2444
  %v2532 = vunpack.c.l.b16 %v2445
  %v2533 = vpack.c.b16 %v2532, %v2531
  %2534 = vrot.lane.b32.xlu0 %v1323, 112
  %v2535 = vpop.permute.xlu0 %2534
  %v2538 = vsel %vm1037, %v2533, 0
  %2540 = vmatpush.bf16.msra.mxu0 0
  %2541 = vmatpush.bf16.msra.mxu0 0
  %2542 = vmatpush.bf16.msra.mxu0 0
  %2543 = vmatpush.bf16.msra.mxu0 0
  %2544 = vmatpush.bf16.msra.mxu0 0
  %2545 = vmatpush.bf16.msra.mxu0 0
  %2546 = vmatpush.bf16.msra.mxu0 0
  %2547 = vmatpush.bf16.msra.mxu0 %v2535
  %2548 = vmatmul.bf16.gmra.mxu0 %v2538
  %v2549 = vpop.f32.mrf.mxu0
  %v2550 = vadd.f32 0.0, %v2549
  %v2551 = vpop.f32.mrf.mxu0
  %v2552 = vadd.f32 0.0, %v2551
  %2553 = vdwg.mxu0
  %v2556 = vunpack.c.l.b16 %v2446
  %v2557 = vunpack.c.l.b16 %v2447
  %v2558 = vpack.c.b16 %v2557, %v2556
  %2559 = vrot.lane.b32.xlu0 %v1351, 112
  %v2560 = vpop.permute.xlu0 %2559
  %v2563 = vsel %vm1037, %v2558, 0
  %2565 = vmatpush.bf16.msra.mxu0 0
  %2566 = vmatpush.bf16.msra.mxu0 0
  %2567 = vmatpush.bf16.msra.mxu0 0
  %2568 = vmatpush.bf16.msra.mxu0 0
  %2569 = vmatpush.bf16.msra.mxu0 0
  %2570 = vmatpush.bf16.msra.mxu0 0
  %2571 = vmatpush.bf16.msra.mxu0 0
  %2572 = vmatpush.bf16.msra.mxu0 %v2560
  %2573 = vmatmul.bf16.gmra.mxu0 %v2563
  %v2574 = vpop.f32.mrf.mxu0
  %v2575 = vadd.f32 0.0, %v2574
  %v2576 = vpop.f32.mrf.mxu0
  %v2577 = vadd.f32 0.0, %v2576
  %2578 = vdwg.mxu0
  %v2581 = vunpack.c.l.b16 %v2448
  %v2582 = vunpack.c.l.b16 %v2449
  %v2583 = vpack.c.b16 %v2582, %v2581
  %2584 = vrot.lane.b32.xlu0 %v1379, 112
  %v2585 = vpop.permute.xlu0 %2584
  %v2588 = vsel %vm1037, %v2583, 0
  %2590 = vmatpush.bf16.msra.mxu0 0
  %2591 = vmatpush.bf16.msra.mxu0 0
  %2592 = vmatpush.bf16.msra.mxu0 0
  %2593 = vmatpush.bf16.msra.mxu0 0
  %2594 = vmatpush.bf16.msra.mxu0 0
  %2595 = vmatpush.bf16.msra.mxu0 0
  %2596 = vmatpush.bf16.msra.mxu0 0
  %2597 = vmatpush.bf16.msra.mxu0 %v2585
  %2598 = vmatmul.bf16.gmra.mxu0 %v2588
  %v2599 = vpop.f32.mrf.mxu0
  %v2600 = vadd.f32 0.0, %v2599
  %v2601 = vpop.f32.mrf.mxu0
  %v2602 = vadd.f32 0.0, %v2601
  %2603 = vdwg.mxu0
  %v2606 = vunpack.c.l.b16 %v2450
  %v2607 = vunpack.c.l.b16 %v2451
  %v2608 = vpack.c.b16 %v2607, %v2606
  %2609 = vrot.lane.b32.xlu0 %v1407, 112
  %v2610 = vpop.permute.xlu0 %2609
  %v2613 = vsel %vm1037, %v2608, 0
  %2615 = vmatpush.bf16.msra.mxu0 0
  %2616 = vmatpush.bf16.msra.mxu0 0
  %2617 = vmatpush.bf16.msra.mxu0 0
  %2618 = vmatpush.bf16.msra.mxu0 0
  %2619 = vmatpush.bf16.msra.mxu0 0
  %2620 = vmatpush.bf16.msra.mxu0 0
  %2621 = vmatpush.bf16.msra.mxu0 0
  %2622 = vmatpush.bf16.msra.mxu0 %v2610
  %2623 = vmatmul.bf16.gmra.mxu0 %v2613
  %v2624 = vpop.f32.mrf.mxu0
  %v2625 = vadd.f32 0.0, %v2624
  %v2626 = vpop.f32.mrf.mxu0
  %v2627 = vadd.f32 0.0, %v2626
  %2628 = vdwg.mxu0
  %v2631 = vunpack.c.l.b16 %v2452
  %v2632 = vunpack.c.l.b16 %v2453
  %v2633 = vpack.c.b16 %v2632, %v2631
  %2634 = vrot.lane.b32.xlu0 %v1435, 112
  %v2635 = vpop.permute.xlu0 %2634
  %v2638 = vsel %vm1037, %v2633, 0
  %2640 = vmatpush.bf16.msra.mxu0 0
  %2641 = vmatpush.bf16.msra.mxu0 0
  %2642 = vmatpush.bf16.msra.mxu0 0
  %2643 = vmatpush.bf16.msra.mxu0 0
  %2644 = vmatpush.bf16.msra.mxu0 0
  %2645 = vmatpush.bf16.msra.mxu0 0
  %2646 = vmatpush.bf16.msra.mxu0 0
  %2647 = vmatpush.bf16.msra.mxu0 %v2635
  %2648 = vmatmul.bf16.gmra.mxu0 %v2638
  %v2649 = vpop.f32.mrf.mxu0
  %v2650 = vadd.f32 0.0, %v2649
  %v2651 = vpop.f32.mrf.mxu0
  %v2652 = vadd.f32 0.0, %v2651
  %2653 = vdwg.mxu0
  %2654 = vrot.lane.b32.xlu0 %v784, 104
  %v2655 = vpop.permute.xlu0 %2654
  %2656 = vrot.lane.b32.xlu0 %v789, 104
  %v2657 = vpop.permute.xlu0 %2656
  %v2659 = vsel %vm790, %v2655, 0
  %v2662 = vsel %vm790, %v2657, 0
  %2664 = vmatpush.bf16.xpose.msra.mxu0 0
  %2665 = vmatpush.bf16.xpose.msra.mxu0 0
  %2666 = vmatpush.bf16.xpose.msra.mxu0 0
  %2667 = vmatpush.bf16.xpose.msra.mxu0 0
  %2668 = vmatpush.bf16.xpose.msra.mxu0 0
  %2669 = vmatpush.bf16.xpose.msra.mxu0 0
  %2670 = vmatpush.bf16.xpose.msra.mxu0 0
  %2671 = vmatpush.bf16.xpose.msra.mxu0 %v2662
  %2672 = vmatmul.bf16.gmra.mxu0 %v2659
  %v2673 = vpop.f32.mrf.mxu0
  %v2674 = vadd.f32 %v762, %v2673
  %v2675 = vpop.f32.mrf.mxu0
  %v2676 = vadd.f32 %v763, %v2675
  %2677 = vdwg.mxu0
  %2678 = vrot.lane.b32.xlu0 %v815, 104
  %v2679 = vpop.permute.xlu0 %2678
  %2680 = vrot.lane.b32.xlu0 %v820, 104
  %v2681 = vpop.permute.xlu0 %2680
  %v2683 = vsel %vm790, %v2679, 0
  %v2686 = vsel %vm790, %v2681, 0
  %2688 = vmatpush.bf16.xpose.msra.mxu0 0
  %2689 = vmatpush.bf16.xpose.msra.mxu0 0
  %2690 = vmatpush.bf16.xpose.msra.mxu0 0
  %2691 = vmatpush.bf16.xpose.msra.mxu0 0
  %2692 = vmatpush.bf16.xpose.msra.mxu0 0
  %2693 = vmatpush.bf16.xpose.msra.mxu0 0
  %2694 = vmatpush.bf16.xpose.msra.mxu0 0
  %2695 = vmatpush.bf16.xpose.msra.mxu0 %v2686
  %2696 = vmatmul.bf16.gmra.mxu0 %v2683
  %v2697 = vpop.f32.mrf.mxu0
  %v2698 = vadd.f32 %v762, %v2697
  %v2699 = vpop.f32.mrf.mxu0
  %v2700 = vadd.f32 %v763, %v2699
  %2701 = vdwg.mxu0
  %2702 = vrot.lane.b32.xlu0 %v845, 104
  %v2703 = vpop.permute.xlu0 %2702
  %2704 = vrot.lane.b32.xlu0 %v850, 104
  %v2705 = vpop.permute.xlu0 %2704
  %v2707 = vsel %vm790, %v2703, 0
  %v2710 = vsel %vm790, %v2705, 0
  %2712 = vmatpush.bf16.xpose.msra.mxu0 0
  %2713 = vmatpush.bf16.xpose.msra.mxu0 0
  %2714 = vmatpush.bf16.xpose.msra.mxu0 0
  %2715 = vmatpush.bf16.xpose.msra.mxu0 0
  %2716 = vmatpush.bf16.xpose.msra.mxu0 0
  %2717 = vmatpush.bf16.xpose.msra.mxu0 0
  %2718 = vmatpush.bf16.xpose.msra.mxu0 0
  %2719 = vmatpush.bf16.xpose.msra.mxu0 %v2710
  %2720 = vmatmul.bf16.gmra.mxu0 %v2707
  %v2721 = vpop.f32.mrf.mxu0
  %v2722 = vadd.f32 %v762, %v2721
  %v2723 = vpop.f32.mrf.mxu0
  %v2724 = vadd.f32 %v763, %v2723
  %2725 = vdwg.mxu0
  %2726 = vrot.lane.b32.xlu0 %v875, 104
  %v2727 = vpop.permute.xlu0 %2726
  %2728 = vrot.lane.b32.xlu0 %v880, 104
  %v2729 = vpop.permute.xlu0 %2728
  %v2731 = vsel %vm790, %v2727, 0
  %v2734 = vsel %vm790, %v2729, 0
  %2736 = vmatpush.bf16.xpose.msra.mxu0 0
  %2737 = vmatpush.bf16.xpose.msra.mxu0 0
  %2738 = vmatpush.bf16.xpose.msra.mxu0 0
  %2739 = vmatpush.bf16.xpose.msra.mxu0 0
  %2740 = vmatpush.bf16.xpose.msra.mxu0 0
  %2741 = vmatpush.bf16.xpose.msra.mxu0 0
  %2742 = vmatpush.bf16.xpose.msra.mxu0 0
  %2743 = vmatpush.bf16.xpose.msra.mxu0 %v2734
  %2744 = vmatmul.bf16.gmra.mxu0 %v2731
  %v2745 = vpop.f32.mrf.mxu0
  %v2746 = vadd.f32 %v762, %v2745
  %v2747 = vpop.f32.mrf.mxu0
  %v2748 = vadd.f32 %v763, %v2747
  %2749 = vdwg.mxu0
  %2750 = vrot.lane.b32.xlu0 %v905, 104
  %v2751 = vpop.permute.xlu0 %2750
  %2752 = vrot.lane.b32.xlu0 %v910, 104
  %v2753 = vpop.permute.xlu0 %2752
  %v2755 = vsel %vm790, %v2751, 0
  %v2758 = vsel %vm790, %v2753, 0
  %2760 = vmatpush.bf16.xpose.msra.mxu0 0
  %2761 = vmatpush.bf16.xpose.msra.mxu0 0
  %2762 = vmatpush.bf16.xpose.msra.mxu0 0
  %2763 = vmatpush.bf16.xpose.msra.mxu0 0
  %2764 = vmatpush.bf16.xpose.msra.mxu0 0
  %2765 = vmatpush.bf16.xpose.msra.mxu0 0
  %2766 = vmatpush.bf16.xpose.msra.mxu0 0
  %2767 = vmatpush.bf16.xpose.msra.mxu0 %v2758
  %2768 = vmatmul.bf16.gmra.mxu0 %v2755
  %v2769 = vpop.f32.mrf.mxu0
  %v2770 = vadd.f32 %v762, %v2769
  %v2771 = vpop.f32.mrf.mxu0
  %v2772 = vadd.f32 %v763, %v2771
  %2773 = vdwg.mxu0
  %2774 = vrot.lane.b32.xlu0 %v935, 104
  %v2775 = vpop.permute.xlu0 %2774
  %2776 = vrot.lane.b32.xlu0 %v940, 104
  %v2777 = vpop.permute.xlu0 %2776
  %v2779 = vsel %vm790, %v2775, 0
  %v2782 = vsel %vm790, %v2777, 0
  %2784 = vmatpush.bf16.xpose.msra.mxu0 0
  %2785 = vmatpush.bf16.xpose.msra.mxu0 0
  %2786 = vmatpush.bf16.xpose.msra.mxu0 0
  %2787 = vmatpush.bf16.xpose.msra.mxu0 0
  %2788 = vmatpush.bf16.xpose.msra.mxu0 0
  %2789 = vmatpush.bf16.xpose.msra.mxu0 0
  %2790 = vmatpush.bf16.xpose.msra.mxu0 0
  %2791 = vmatpush.bf16.xpose.msra.mxu0 %v2782
  %2792 = vmatmul.bf16.gmra.mxu0 %v2779
  %v2793 = vpop.f32.mrf.mxu0
  %v2794 = vadd.f32 %v762, %v2793
  %v2795 = vpop.f32.mrf.mxu0
  %v2796 = vadd.f32 %v763, %v2795
  %2797 = vdwg.mxu0
  %2798 = vrot.lane.b32.xlu0 %v965, 104
  %v2799 = vpop.permute.xlu0 %2798
  %2800 = vrot.lane.b32.xlu0 %v970, 104
  %v2801 = vpop.permute.xlu0 %2800
  %v2803 = vsel %vm790, %v2799, 0
  %v2806 = vsel %vm790, %v2801, 0
  %2808 = vmatpush.bf16.xpose.msra.mxu0 0
  %2809 = vmatpush.bf16.xpose.msra.mxu0 0
  %2810 = vmatpush.bf16.xpose.msra.mxu0 0
  %2811 = vmatpush.bf16.xpose.msra.mxu0 0
  %2812 = vmatpush.bf16.xpose.msra.mxu0 0
  %2813 = vmatpush.bf16.xpose.msra.mxu0 0
  %2814 = vmatpush.bf16.xpose.msra.mxu0 0
  %2815 = vmatpush.bf16.xpose.msra.mxu0 %v2806
  %2816 = vmatmul.bf16.gmra.mxu0 %v2803
  %v2817 = vpop.f32.mrf.mxu0
  %v2818 = vadd.f32 %v762, %v2817
  %v2819 = vpop.f32.mrf.mxu0
  %v2820 = vadd.f32 %v763, %v2819
  %2821 = vdwg.mxu0
  %2822 = vrot.lane.b32.xlu0 %v995, 104
  %v2823 = vpop.permute.xlu0 %2822
  %2824 = vrot.lane.b32.xlu0 %v1000, 104
  %v2825 = vpop.permute.xlu0 %2824
  %v2827 = vsel %vm790, %v2823, 0
  %v2830 = vsel %vm790, %v2825, 0
  %2832 = vmatpush.bf16.xpose.msra.mxu0 0
  %2833 = vmatpush.bf16.xpose.msra.mxu0 0
  %2834 = vmatpush.bf16.xpose.msra.mxu0 0
  %2835 = vmatpush.bf16.xpose.msra.mxu0 0
  %2836 = vmatpush.bf16.xpose.msra.mxu0 0
  %2837 = vmatpush.bf16.xpose.msra.mxu0 0
  %2838 = vmatpush.bf16.xpose.msra.mxu0 0
  %2839 = vmatpush.bf16.xpose.msra.mxu0 %v2830
  %2840 = vmatmul.bf16.gmra.mxu0 %v2827
  %v2841 = vpop.f32.mrf.mxu0
  %v2842 = vadd.f32 %v762, %v2841
  %v2843 = vpop.f32.mrf.mxu0
  %v2844 = vadd.f32 %v763, %v2843
  %2845 = vdwg.mxu0
  %v2846 = vadd.f32 %v2674, %v764
  %v2847 = vadd.f32 %v2676, %v765
  %v2848 = vadd.f32 %v2698, %v766
  %v2849 = vadd.f32 %v2700, %v767
  %v2850 = vadd.f32 %v2722, %v768
  %v2851 = vadd.f32 %v2724, %v769
  %v2852 = vadd.f32 %v2746, %v770
  %v2853 = vadd.f32 %v2748, %v771
  %v2854 = vadd.f32 %v2770, %v772
  %v2855 = vadd.f32 %v2772, %v773
  %v2856 = vadd.f32 %v2794, %v774
  %v2857 = vadd.f32 %v2796, %v775
  %v2858 = vadd.f32 %v2818, %v776
  %v2859 = vadd.f32 %v2820, %v777
  %v2860 = vadd.f32 %v2842, %v778
  %v2861 = vadd.f32 %v2844, %v779
  %v2862 = vsel %vm1037, %v2846, -inf
  %2863 = vmax.xlane.f32.xlu0 %v2862
  %v2864 = vpop.xlane.xlu0 %2863
  %v2865 = vsel %vm1037, %v2847, -inf
  %2866 = vmax.xlane.f32.xlu0 %v2865
  %v2867 = vpop.xlane.xlu0 %2866
  %v2868 = vsel %vm1037, %v2848, -inf
  %2869 = vmax.xlane.f32.xlu0 %v2868
  %v2870 = vpop.xlane.xlu0 %2869
  %v2871 = vsel %vm1037, %v2849, -inf
  %2872 = vmax.xlane.f32.xlu0 %v2871
  %v2873 = vpop.xlane.xlu0 %2872
  %v2874 = vsel %vm1037, %v2850, -inf
  %2875 = vmax.xlane.f32.xlu0 %v2874
  %v2876 = vpop.xlane.xlu0 %2875
  %v2877 = vsel %vm1037, %v2851, -inf
  %2878 = vmax.xlane.f32.xlu0 %v2877
  %v2879 = vpop.xlane.xlu0 %2878
  %v2880 = vsel %vm1037, %v2852, -inf
  %2881 = vmax.xlane.f32.xlu0 %v2880
  %v2882 = vpop.xlane.xlu0 %2881
  %v2883 = vsel %vm1037, %v2853, -inf
  %2884 = vmax.xlane.f32.xlu0 %v2883
  %v2885 = vpop.xlane.xlu0 %2884
  %v2886 = vsel %vm1037, %v2854, -inf
  %2887 = vmax.xlane.f32.xlu0 %v2886
  %v2888 = vpop.xlane.xlu0 %2887
  %v2889 = vsel %vm1037, %v2855, -inf
  %2890 = vmax.xlane.f32.xlu0 %v2889
  %v2891 = vpop.xlane.xlu0 %2890
  %v2892 = vsel %vm1037, %v2856, -inf
  %2893 = vmax.xlane.f32.xlu0 %v2892
  %v2894 = vpop.xlane.xlu0 %2893
  %v2895 = vsel %vm1037, %v2857, -inf
  %2896 = vmax.xlane.f32.xlu0 %v2895
  %v2897 = vpop.xlane.xlu0 %2896
  %v2898 = vsel %vm1037, %v2858, -inf
  %2899 = vmax.xlane.f32.xlu0 %v2898
  %v2900 = vpop.xlane.xlu0 %2899
  %v2901 = vsel %vm1037, %v2859, -inf
  %2902 = vmax.xlane.f32.xlu0 %v2901
  %v2903 = vpop.xlane.xlu0 %2902
  %v2904 = vsel %vm1037, %v2860, -inf
  %2905 = vmax.xlane.f32.xlu0 %v2904
  %v2906 = vpop.xlane.xlu0 %2905
  %v2907 = vsel %vm1037, %v2861, -inf
  %2908 = vmax.xlane.f32.xlu0 %v2907
  %v2909 = vpop.xlane.xlu0 %2908
  %v2910 = vsub.f32 %v2846, %v2864
  %v2911 = vsub.f32 %v2847, %v2867
  %v2912 = vsub.f32 %v2848, %v2870
  %v2913 = vsub.f32 %v2849, %v2873
  %v2914 = vsub.f32 %v2850, %v2876
  %v2915 = vsub.f32 %v2851, %v2879
  %v2916 = vsub.f32 %v2852, %v2882
  %v2917 = vsub.f32 %v2853, %v2885
  %v2918 = vsub.f32 %v2854, %v2888
  %v2919 = vsub.f32 %v2855, %v2891
  %v2920 = vsub.f32 %v2856, %v2894
  %v2921 = vsub.f32 %v2857, %v2897
  %v2922 = vsub.f32 %v2858, %v2900
  %v2923 = vsub.f32 %v2859, %v2903
  %v2924 = vsub.f32 %v2860, %v2906
  %v2925 = vsub.f32 %v2861, %v2909
  %v2926 = vmul.f32 %v2910, 1.442695
  %v2927 = vpow.pop %v2926
  %v2928 = vmul.f32 %v2911, 1.442695
  %v2929 = vpow.pop %v2928
  %v2930 = vmul.f32 %v2912, 1.442695
  %v2931 = vpow.pop %v2930
  %v2932 = vmul.f32 %v2913, 1.442695
  %v2933 = vpow.pop %v2932
  %v2934 = vmul.f32 %v2914, 1.442695
  %v2935 = vpow.pop %v2934
  %v2936 = vmul.f32 %v2915, 1.442695
  %v2937 = vpow.pop %v2936
  %v2938 = vmul.f32 %v2916, 1.442695
  %v2939 = vpow.pop %v2938
  %v2940 = vmul.f32 %v2917, 1.442695
  %v2941 = vpow.pop %v2940
  %v2942 = vmul.f32 %v2918, 1.442695
  %v2943 = vpow.pop %v2942
  %v2944 = vmul.f32 %v2919, 1.442695
  %v2945 = vpow.pop %v2944
  %v2946 = vmul.f32 %v2920, 1.442695
  %v2947 = vpow.pop %v2946
  %v2948 = vmul.f32 %v2921, 1.442695
  %v2949 = vpow.pop %v2948
  %v2950 = vmul.f32 %v2922, 1.442695
  %v2951 = vpow.pop %v2950
  %v2952 = vmul.f32 %v2923, 1.442695
  %v2953 = vpow.pop %v2952
  %v2954 = vmul.f32 %v2924, 1.442695
  %v2955 = vpow.pop %v2954
  %v2956 = vmul.f32 %v2925, 1.442695
  %v2957 = vpow.pop %v2956
  %v2958 = vsel %vm1037, %v2927, 0.0
  %2959 = vadd.xlane.f32.xlu0 %v2958
  %v2960 = vpop.xlane.xlu0 %2959
  %v2961 = vsel %vm1037, %v2929, 0.0
  %2962 = vadd.xlane.f32.xlu0 %v2961
  %v2963 = vpop.xlane.xlu0 %2962
  %v2964 = vsel %vm1037, %v2931, 0.0
  %2965 = vadd.xlane.f32.xlu0 %v2964
  %v2966 = vpop.xlane.xlu0 %2965
  %v2967 = vsel %vm1037, %v2933, 0.0
  %2968 = vadd.xlane.f32.xlu0 %v2967
  %v2969 = vpop.xlane.xlu0 %2968
  %v2970 = vsel %vm1037, %v2935, 0.0
  %2971 = vadd.xlane.f32.xlu0 %v2970
  %v2972 = vpop.xlane.xlu0 %2971
  %v2973 = vsel %vm1037, %v2937, 0.0
  %2974 = vadd.xlane.f32.xlu0 %v2973
  %v2975 = vpop.xlane.xlu0 %2974
  %v2976 = vsel %vm1037, %v2939, 0.0
  %2977 = vadd.xlane.f32.xlu0 %v2976
  %v2978 = vpop.xlane.xlu0 %2977
  %v2979 = vsel %vm1037, %v2941, 0.0
  %2980 = vadd.xlane.f32.xlu0 %v2979
  %v2981 = vpop.xlane.xlu0 %2980
  %v2982 = vsel %vm1037, %v2943, 0.0
  %2983 = vadd.xlane.f32.xlu0 %v2982
  %v2984 = vpop.xlane.xlu0 %2983
  %v2985 = vsel %vm1037, %v2945, 0.0
  %2986 = vadd.xlane.f32.xlu0 %v2985
  %v2987 = vpop.xlane.xlu0 %2986
  %v2988 = vsel %vm1037, %v2947, 0.0
  %2989 = vadd.xlane.f32.xlu0 %v2988
  %v2990 = vpop.xlane.xlu0 %2989
  %v2991 = vsel %vm1037, %v2949, 0.0
  %2992 = vadd.xlane.f32.xlu0 %v2991
  %v2993 = vpop.xlane.xlu0 %2992
  %v2994 = vsel %vm1037, %v2951, 0.0
  %2995 = vadd.xlane.f32.xlu0 %v2994
  %v2996 = vpop.xlane.xlu0 %2995
  %v2997 = vsel %vm1037, %v2953, 0.0
  %2998 = vadd.xlane.f32.xlu0 %v2997
  %v2999 = vpop.xlane.xlu0 %2998
  %v3000 = vsel %vm1037, %v2955, 0.0
  %3001 = vadd.xlane.f32.xlu0 %v3000
  %v3002 = vpop.xlane.xlu0 %3001
  %v3003 = vsel %vm1037, %v2957, 0.0
  %3004 = vadd.xlane.f32.xlu0 %v3003
  %v3005 = vpop.xlane.xlu0 %3004
  %v3006 = vrcp.pop %v2960
  %v3007 = vrcp.pop %v2963
  %v3008 = vrcp.pop %v2966
  %v3009 = vrcp.pop %v2969
  %v3010 = vrcp.pop %v2972
  %v3011 = vrcp.pop %v2975
  %v3012 = vrcp.pop %v2978
  %v3013 = vrcp.pop %v2981
  %v3014 = vrcp.pop %v2984
  %v3015 = vrcp.pop %v2987
  %v3016 = vrcp.pop %v2990
  %v3017 = vrcp.pop %v2993
  %v3018 = vrcp.pop %v2996
  %v3019 = vrcp.pop %v2999
  %v3020 = vrcp.pop %v3002
  %v3021 = vrcp.pop %v3005
  %v3022 = vmul.f32 %v2927, %v3006
  %v3023 = vmul.f32 %v2929, %v3007
  %v3024 = vmul.f32 %v2931, %v3008
  %v3025 = vmul.f32 %v2933, %v3009
  %v3026 = vmul.f32 %v2935, %v3010
  %v3027 = vmul.f32 %v2937, %v3011
  %v3028 = vmul.f32 %v2939, %v3012
  %v3029 = vmul.f32 %v2941, %v3013
  %v3030 = vmul.f32 %v2943, %v3014
  %v3031 = vmul.f32 %v2945, %v3015
  %v3032 = vmul.f32 %v2947, %v3016
  %v3033 = vmul.f32 %v2949, %v3017
  %v3034 = vmul.f32 %v2951, %v3018
  %v3035 = vmul.f32 %v2953, %v3019
  %v3036 = vmul.f32 %v2955, %v3020
  %v3037 = vmul.f32 %v2957, %v3021
  %v3038 = vpack.c.bf16 %v3022, %v3022
  %v3039 = vpack.c.bf16 %v3023, %v3023
  %v3040 = vpack.c.bf16 %v3024, %v3024
  %v3041 = vpack.c.bf16 %v3025, %v3025
  %v3042 = vpack.c.bf16 %v3026, %v3026
  %v3043 = vpack.c.bf16 %v3027, %v3027
  %v3044 = vpack.c.bf16 %v3028, %v3028
  %v3045 = vpack.c.bf16 %v3029, %v3029
  %v3046 = vpack.c.bf16 %v3030, %v3030
  %v3047 = vpack.c.bf16 %v3031, %v3031
  %v3048 = vpack.c.bf16 %v3032, %v3032
  %v3049 = vpack.c.bf16 %v3033, %v3033
  %v3050 = vpack.c.bf16 %v3034, %v3034
  %v3051 = vpack.c.bf16 %v3035, %v3035
  %v3052 = vpack.c.bf16 %v3036, %v3036
  %v3053 = vpack.c.bf16 %v3037, %v3037
  %v3056 = vunpack.c.l.b16 %v3038
  %v3057 = vunpack.c.l.b16 %v3039
  %v3058 = vpack.c.b16 %v3057, %v3056
  %3059 = vrot.lane.b32.xlu0 %v1239, 104
  %v3060 = vpop.permute.xlu0 %3059
  %v3063 = vsel %vm1037, %v3058, 0
  %3065 = vmatpush.bf16.msra.mxu0 0
  %3066 = vmatpush.bf16.msra.mxu0 0
  %3067 = vmatpush.bf16.msra.mxu0 0
  %3068 = vmatpush.bf16.msra.mxu0 0
  %3069 = vmatpush.bf16.msra.mxu0 0
  %3070 = vmatpush.bf16.msra.mxu0 0
  %3071 = vmatpush.bf16.msra.mxu0 0
  %3072 = vmatpush.bf16.msra.mxu0 %v3060
  %3073 = vmatmul.bf16.gmra.mxu0 %v3063
  %v3074 = vpop.f32.mrf.mxu0
  %v3075 = vadd.f32 0.0, %v3074
  %v3076 = vpop.f32.mrf.mxu0
  %v3077 = vadd.f32 0.0, %v3076
  %3078 = vdwg.mxu0
  %v3081 = vunpack.c.l.b16 %v3040
  %v3082 = vunpack.c.l.b16 %v3041
  %v3083 = vpack.c.b16 %v3082, %v3081
  %3084 = vrot.lane.b32.xlu0 %v1267, 104
  %v3085 = vpop.permute.xlu0 %3084
  %v3088 = vsel %vm1037, %v3083, 0
  %3090 = vmatpush.bf16.msra.mxu0 0
  %3091 = vmatpush.bf16.msra.mxu0 0
  %3092 = vmatpush.bf16.msra.mxu0 0
  %3093 = vmatpush.bf16.msra.mxu0 0
  %3094 = vmatpush.bf16.msra.mxu0 0
  %3095 = vmatpush.bf16.msra.mxu0 0
  %3096 = vmatpush.bf16.msra.mxu0 0
  %3097 = vmatpush.bf16.msra.mxu0 %v3085
  %3098 = vmatmul.bf16.gmra.mxu0 %v3088
  %v3099 = vpop.f32.mrf.mxu0
  %v3100 = vadd.f32 0.0, %v3099
  %v3101 = vpop.f32.mrf.mxu0
  %v3102 = vadd.f32 0.0, %v3101
  %3103 = vdwg.mxu0
  %v3106 = vunpack.c.l.b16 %v3042
  %v3107 = vunpack.c.l.b16 %v3043
  %v3108 = vpack.c.b16 %v3107, %v3106
  %3109 = vrot.lane.b32.xlu0 %v1295, 104
  %v3110 = vpop.permute.xlu0 %3109
  %v3113 = vsel %vm1037, %v3108, 0
  %3115 = vmatpush.bf16.msra.mxu0 0
  %3116 = vmatpush.bf16.msra.mxu0 0
  %3117 = vmatpush.bf16.msra.mxu0 0
  %3118 = vmatpush.bf16.msra.mxu0 0
  %3119 = vmatpush.bf16.msra.mxu0 0
  %3120 = vmatpush.bf16.msra.mxu0 0
  %3121 = vmatpush.bf16.msra.mxu0 0
  %3122 = vmatpush.bf16.msra.mxu0 %v3110
  %3123 = vmatmul.bf16.gmra.mxu0 %v3113
  %v3124 = vpop.f32.mrf.mxu0
  %v3125 = vadd.f32 0.0, %v3124
  %v3126 = vpop.f32.mrf.mxu0
  %v3127 = vadd.f32 0.0, %v3126
  %3128 = vdwg.mxu0
  %v3131 = vunpack.c.l.b16 %v3044
  %v3132 = vunpack.c.l.b16 %v3045
  %v3133 = vpack.c.b16 %v3132, %v3131
  %3134 = vrot.lane.b32.xlu0 %v1323, 104
  %v3135 = vpop.permute.xlu0 %3134
  %v3138 = vsel %vm1037, %v3133, 0
  %3140 = vmatpush.bf16.msra.mxu0 0
  %3141 = vmatpush.bf16.msra.mxu0 0
  %3142 = vmatpush.bf16.msra.mxu0 0
  %3143 = vmatpush.bf16.msra.mxu0 0
  %3144 = vmatpush.bf16.msra.mxu0 0
  %3145 = vmatpush.bf16.msra.mxu0 0
  %3146 = vmatpush.bf16.msra.mxu0 0
  %3147 = vmatpush.bf16.msra.mxu0 %v3135
  %3148 = vmatmul.bf16.gmra.mxu0 %v3138
  %v3149 = vpop.f32.mrf.mxu0
  %v3150 = vadd.f32 0.0, %v3149
  %v3151 = vpop.f32.mrf.mxu0
  %v3152 = vadd.f32 0.0, %v3151
  %3153 = vdwg.mxu0
  %v3156 = vunpack.c.l.b16 %v3046
  %v3157 = vunpack.c.l.b16 %v3047
  %v3158 = vpack.c.b16 %v3157, %v3156
  %3159 = vrot.lane.b32.xlu0 %v1351, 104
  %v3160 = vpop.permute.xlu0 %3159
  %v3163 = vsel %vm1037, %v3158, 0
  %3165 = vmatpush.bf16.msra.mxu0 0
  %3166 = vmatpush.bf16.msra.mxu0 0
  %3167 = vmatpush.bf16.msra.mxu0 0
  %3168 = vmatpush.bf16.msra.mxu0 0
  %3169 = vmatpush.bf16.msra.mxu0 0
  %3170 = vmatpush.bf16.msra.mxu0 0
  %3171 = vmatpush.bf16.msra.mxu0 0
  %3172 = vmatpush.bf16.msra.mxu0 %v3160
  %3173 = vmatmul.bf16.gmra.mxu0 %v3163
  %v3174 = vpop.f32.mrf.mxu0
  %v3175 = vadd.f32 0.0, %v3174
  %v3176 = vpop.f32.mrf.mxu0
  %v3177 = vadd.f32 0.0, %v3176
  %3178 = vdwg.mxu0
  %v3181 = vunpack.c.l.b16 %v3048
  %v3182 = vunpack.c.l.b16 %v3049
  %v3183 = vpack.c.b16 %v3182, %v3181
  %3184 = vrot.lane.b32.xlu0 %v1379, 104
  %v3185 = vpop.permute.xlu0 %3184
  %v3188 = vsel %vm1037, %v3183, 0
  %3190 = vmatpush.bf16.msra.mxu0 0
  %3191 = vmatpush.bf16.msra.mxu0 0
  %3192 = vmatpush.bf16.msra.mxu0 0
  %3193 = vmatpush.bf16.msra.mxu0 0
  %3194 = vmatpush.bf16.msra.mxu0 0
  %3195 = vmatpush.bf16.msra.mxu0 0
  %3196 = vmatpush.bf16.msra.mxu0 0
  %3197 = vmatpush.bf16.msra.mxu0 %v3185
  %3198 = vmatmul.bf16.gmra.mxu0 %v3188
  %v3199 = vpop.f32.mrf.mxu0
  %v3200 = vadd.f32 0.0, %v3199
  %v3201 = vpop.f32.mrf.mxu0
  %v3202 = vadd.f32 0.0, %v3201
  %3203 = vdwg.mxu0
  %v3206 = vunpack.c.l.b16 %v3050
  %v3207 = vunpack.c.l.b16 %v3051
  %v3208 = vpack.c.b16 %v3207, %v3206
  %3209 = vrot.lane.b32.xlu0 %v1407, 104
  %v3210 = vpop.permute.xlu0 %3209
  %v3213 = vsel %vm1037, %v3208, 0
  %3215 = vmatpush.bf16.msra.mxu0 0
  %3216 = vmatpush.bf16.msra.mxu0 0
  %3217 = vmatpush.bf16.msra.mxu0 0
  %3218 = vmatpush.bf16.msra.mxu0 0
  %3219 = vmatpush.bf16.msra.mxu0 0
  %3220 = vmatpush.bf16.msra.mxu0 0
  %3221 = vmatpush.bf16.msra.mxu0 0
  %3222 = vmatpush.bf16.msra.mxu0 %v3210
  %3223 = vmatmul.bf16.gmra.mxu0 %v3213
  %v3224 = vpop.f32.mrf.mxu0
  %v3225 = vadd.f32 0.0, %v3224
  %v3226 = vpop.f32.mrf.mxu0
  %v3227 = vadd.f32 0.0, %v3226
  %3228 = vdwg.mxu0
  %v3231 = vunpack.c.l.b16 %v3052
  %v3232 = vunpack.c.l.b16 %v3053
  %v3233 = vpack.c.b16 %v3232, %v3231
  %3234 = vrot.lane.b32.xlu0 %v1435, 104
  %v3235 = vpop.permute.xlu0 %3234
  %v3238 = vsel %vm1037, %v3233, 0
  %3240 = vmatpush.bf16.msra.mxu0 0
  %3241 = vmatpush.bf16.msra.mxu0 0
  %3242 = vmatpush.bf16.msra.mxu0 0
  %3243 = vmatpush.bf16.msra.mxu0 0
  %3244 = vmatpush.bf16.msra.mxu0 0
  %3245 = vmatpush.bf16.msra.mxu0 0
  %3246 = vmatpush.bf16.msra.mxu0 0
  %3247 = vmatpush.bf16.msra.mxu0 %v3235
  %3248 = vmatmul.bf16.gmra.mxu0 %v3238
  %v3249 = vpop.f32.mrf.mxu0
  %v3250 = vadd.f32 0.0, %v3249
  %v3251 = vpop.f32.mrf.mxu0
  %v3252 = vadd.f32 0.0, %v3251
  %3253 = vdwg.mxu0
  %3270 = vrot.lane.b32.xlu0 %v1875, 8
  %v3271 = vpop.permute.xlu0 %3270
  %3272 = vrot.lane.b32.xlu0 %v1877, 8
  %v3273 = vpop.permute.xlu0 %3272
  %3274 = vrot.lane.b32.xlu0 %v1900, 8
  %v3275 = vpop.permute.xlu0 %3274
  %3276 = vrot.lane.b32.xlu0 %v1902, 8
  %v3277 = vpop.permute.xlu0 %3276
  %3278 = vrot.lane.b32.xlu0 %v1925, 8
  %v3279 = vpop.permute.xlu0 %3278
  %3280 = vrot.lane.b32.xlu0 %v1927, 8
  %v3281 = vpop.permute.xlu0 %3280
  %3282 = vrot.lane.b32.xlu0 %v1950, 8
  %v3283 = vpop.permute.xlu0 %3282
  %3284 = vrot.lane.b32.xlu0 %v1952, 8
  %v3285 = vpop.permute.xlu0 %3284
  %3286 = vrot.lane.b32.xlu0 %v1975, 8
  %v3287 = vpop.permute.xlu0 %3286
  %3288 = vrot.lane.b32.xlu0 %v1977, 8
  %v3289 = vpop.permute.xlu0 %3288
  %3290 = vrot.lane.b32.xlu0 %v2000, 8
  %v3291 = vpop.permute.xlu0 %3290
  %3292 = vrot.lane.b32.xlu0 %v2002, 8
  %v3293 = vpop.permute.xlu0 %3292
  %3294 = vrot.lane.b32.xlu0 %v2025, 8
  %v3295 = vpop.permute.xlu0 %3294
  %3296 = vrot.lane.b32.xlu0 %v2027, 8
  %v3297 = vpop.permute.xlu0 %3296
  %3298 = vrot.lane.b32.xlu0 %v2050, 8
  %v3299 = vpop.permute.xlu0 %3298
  %3300 = vrot.lane.b32.xlu0 %v2052, 8
  %v3301 = vpop.permute.xlu0 %3300
  %3334 = vrot.lane.b32.xlu0 %v2475, 16
  %v3335 = vpop.permute.xlu0 %3334
  %3336 = vrot.lane.b32.xlu0 %v2477, 16
  %v3337 = vpop.permute.xlu0 %3336
  %3338 = vrot.lane.b32.xlu0 %v2500, 16
  %v3339 = vpop.permute.xlu0 %3338
  %3340 = vrot.lane.b32.xlu0 %v2502, 16
  %v3341 = vpop.permute.xlu0 %3340
  %3342 = vrot.lane.b32.xlu0 %v2525, 16
  %v3343 = vpop.permute.xlu0 %3342
  %3344 = vrot.lane.b32.xlu0 %v2527, 16
  %v3345 = vpop.permute.xlu0 %3344
  %3346 = vrot.lane.b32.xlu0 %v2550, 16
  %v3347 = vpop.permute.xlu0 %3346
  %3348 = vrot.lane.b32.xlu0 %v2552, 16
  %v3349 = vpop.permute.xlu0 %3348
  %3350 = vrot.lane.b32.xlu0 %v2575, 16
  %v3351 = vpop.permute.xlu0 %3350
  %3352 = vrot.lane.b32.xlu0 %v2577, 16
  %v3353 = vpop.permute.xlu0 %3352
  %3354 = vrot.lane.b32.xlu0 %v2600, 16
  %v3355 = vpop.permute.xlu0 %3354
  %3356 = vrot.lane.b32.xlu0 %v2602, 16
  %v3357 = vpop.permute.xlu0 %3356
  %3358 = vrot.lane.b32.xlu0 %v2625, 16
  %v3359 = vpop.permute.xlu0 %3358
  %3360 = vrot.lane.b32.xlu0 %v2627, 16
  %v3361 = vpop.permute.xlu0 %3360
  %3362 = vrot.lane.b32.xlu0 %v2650, 16
  %v3363 = vpop.permute.xlu0 %3362
  %3364 = vrot.lane.b32.xlu0 %v2652, 16
  %v3365 = vpop.permute.xlu0 %3364
  %3398 = vrot.lane.b32.xlu0 %v3075, 24
  %v3399 = vpop.permute.xlu0 %3398
  %3400 = vrot.lane.b32.xlu0 %v3077, 24
  %v3401 = vpop.permute.xlu0 %3400
  %3402 = vrot.lane.b32.xlu0 %v3100, 24
  %v3403 = vpop.permute.xlu0 %3402
  %3404 = vrot.lane.b32.xlu0 %v3102, 24
  %v3405 = vpop.permute.xlu0 %3404
  %3406 = vrot.lane.b32.xlu0 %v3125, 24
  %v3407 = vpop.permute.xlu0 %3406
  %3408 = vrot.lane.b32.xlu0 %v3127, 24
  %v3409 = vpop.permute.xlu0 %3408
  %3410 = vrot.lane.b32.xlu0 %v3150, 24
  %v3411 = vpop.permute.xlu0 %3410
  %3412 = vrot.lane.b32.xlu0 %v3152, 24
  %v3413 = vpop.permute.xlu0 %3412
  %3414 = vrot.lane.b32.xlu0 %v3175, 24
  %v3415 = vpop.permute.xlu0 %3414
  %3416 = vrot.lane.b32.xlu0 %v3177, 24
  %v3417 = vpop.permute.xlu0 %3416
  %3418 = vrot.lane.b32.xlu0 %v3200, 24
  %v3419 = vpop.permute.xlu0 %3418
  %3420 = vrot.lane.b32.xlu0 %v3202, 24
  %v3421 = vpop.permute.xlu0 %3420
  %3422 = vrot.lane.b32.xlu0 %v3225, 24
  %v3423 = vpop.permute.xlu0 %3422
  %3424 = vrot.lane.b32.xlu0 %v3227, 24
  %v3425 = vpop.permute.xlu0 %3424
  %3426 = vrot.lane.b32.xlu0 %v3250, 24
  %v3427 = vpop.permute.xlu0 %3426
  %3428 = vrot.lane.b32.xlu0 %v3252, 24
  %v3429 = vpop.permute.xlu0 %3428
  %v3446 = vsel %vm790, %v1254, %v3271
  %v3447 = vsel %vm790, %v1256, %v3273
  %v3448 = vsel %vm790, %v1282, %v3275
  %v3449 = vsel %vm790, %v1284, %v3277
  %v3450 = vsel %vm790, %v1310, %v3279
  %v3451 = vsel %vm790, %v1312, %v3281
  %v3452 = vsel %vm790, %v1338, %v3283
  %v3453 = vsel %vm790, %v1340, %v3285
  %v3454 = vsel %vm790, %v1366, %v3287
  %v3455 = vsel %vm790, %v1368, %v3289
  %v3456 = vsel %vm790, %v1394, %v3291
  %v3457 = vsel %vm790, %v1396, %v3293
  %v3458 = vsel %vm790, %v1422, %v3295
  %v3459 = vsel %vm790, %v1424, %v3297
  %v3460 = vsel %vm790, %v1450, %v3299
  %v3461 = vsel %vm790, %v1452, %v3301
  %v3462 = vsel %vm1037, %v3446, %v3335
  %v3463 = vsel %vm1037, %v3447, %v3337
  %v3464 = vsel %vm1037, %v3448, %v3339
  %v3465 = vsel %vm1037, %v3449, %v3341
  %v3466 = vsel %vm1037, %v3450, %v3343
  %v3467 = vsel %vm1037, %v3451, %v3345
  %v3468 = vsel %vm1037, %v3452, %v3347
  %v3469 = vsel %vm1037, %v3453, %v3349
  %v3470 = vsel %vm1037, %v3454, %v3351
  %v3471 = vsel %vm1037, %v3455, %v3353
  %v3472 = vsel %vm1037, %v3456, %v3355
  %v3473 = vsel %vm1037, %v3457, %v3357
  %v3474 = vsel %vm1037, %v3458, %v3359
  %v3475 = vsel %vm1037, %v3459, %v3361
  %v3476 = vsel %vm1037, %v3460, %v3363
  %v3477 = vsel %vm1037, %v3461, %v3365
  %vm3478 = vcmask 195584
  %v3479 = vsel %vm3478, %v3462, %v3399
  %v3480 = vsel %vm3478, %v3463, %v3401
  %v3481 = vsel %vm3478, %v3464, %v3403
  %v3482 = vsel %vm3478, %v3465, %v3405
  %v3483 = vsel %vm3478, %v3466, %v3407
  %v3484 = vsel %vm3478, %v3467, %v3409
  %v3485 = vsel %vm3478, %v3468, %v3411
  %v3486 = vsel %vm3478, %v3469, %v3413
  %v3487 = vsel %vm3478, %v3470, %v3415
  %v3488 = vsel %vm3478, %v3471, %v3417
  %v3489 = vsel %vm3478, %v3472, %v3419
  %v3490 = vsel %vm3478, %v3473, %v3421
  %v3491 = vsel %vm3478, %v3474, %v3423
  %v3492 = vsel %vm3478, %v3475, %v3425
  %v3493 = vsel %vm3478, %v3476, %v3427
  %v3494 = vsel %vm3478, %v3477, %v3429
  %v3495 = vpack.c.bf16 %v3480, %v3479
  %v3496 = vpack.c.bf16 %v3482, %v3481
  %v3497 = vpack.c.bf16 %v3484, %v3483
  %v3498 = vpack.c.bf16 %v3486, %v3485
  %v3499 = vpack.c.bf16 %v3488, %v3487
  %v3500 = vpack.c.bf16 %v3490, %v3489
  %v3501 = vpack.c.bf16 %v3492, %v3491
  %v3502 = vpack.c.bf16 %v3494, %v3493
  %v3503 = vld [vmem:[%s6] sm:$0xf]
  %v3504 = vld [vmem:[%s6 + $0x4] sm:$0xf]
  %v3505 = vld [vmem:[%s6 + $0x8] sm:$0xf]
  %v3506 = vld [vmem:[%s6 + $0xc] sm:$0xf]
  %v3507 = vld [vmem:[%s7] sm:$0x1]
  %v3509 = vperm.slane %v3507, 0
  %v3515 = vunpack.c.l.b16 %v3503
  %v3516 = vunpack.c.l.b16 %v3504
  %v3517 = vunpack.c.l.b16 %v3505
  %v3518 = vunpack.c.l.b16 %v3506
  %v3519 = vpack.c.b16 %v3516, %v3515
  %v3520 = vpack.c.b16 %v3518, %v3517
  %v3524 = vsel %vm49, %v3495, 0
  %v3527 = vsel %vm49, %v3496, 0
  %v3530 = vsel %vm49, %v3497, 0
  %v3533 = vsel %vm49, %v3498, 0
  %v3536 = vsel %vm49, %v3499, 0
  %v3539 = vsel %vm49, %v3500, 0
  %v3542 = vsel %vm49, %v3501, 0
  %v3545 = vsel %vm49, %v3502, 0
  %3547 = vmatpush.bf16.msra.mxu0 0
  %3548 = vmatpush.bf16.msra.mxu0 0
  %3549 = vmatpush.bf16.msra.mxu0 0
  %3550 = vmatpush.bf16.msra.mxu0 0
  %3551 = vmatpush.bf16.msra.mxu0 0
  %3552 = vmatpush.bf16.msra.mxu0 0
  %3553 = vmatpush.bf16.msra.mxu0 %v3520
  %3554 = vmatpush.bf16.msra.mxu0 %v3519
  %3555 = vmatmul.bf16.gmra.mxu0 %v3524
  %v3556 = vpop.f32.mrf.mxu0
  %v3557 = vadd.f32 %v3509, %v3556
  %v3558 = vpop.f32.mrf.mxu0
  %v3559 = vadd.f32 %v3509, %v3558
  %3560 = vmatmul.bf16.gmra.mxu0 %v3527
  %v3561 = vpop.f32.mrf.mxu0
  %v3562 = vadd.f32 %v3509, %v3561
  %v3563 = vpop.f32.mrf.mxu0
  %v3564 = vadd.f32 %v3509, %v3563
  %3565 = vmatmul.bf16.gmra.mxu0 %v3530
  %v3566 = vpop.f32.mrf.mxu0
  %v3567 = vadd.f32 %v3509, %v3566
  %v3568 = vpop.f32.mrf.mxu0
  %v3569 = vadd.f32 %v3509, %v3568
  %3570 = vmatmul.bf16.gmra.mxu0 %v3533
  %v3571 = vpop.f32.mrf.mxu0
  %v3572 = vadd.f32 %v3509, %v3571
  %v3573 = vpop.f32.mrf.mxu0
  %v3574 = vadd.f32 %v3509, %v3573
  %3575 = vmatmul.bf16.gmra.mxu0 %v3536
  %v3576 = vpop.f32.mrf.mxu0
  %v3577 = vadd.f32 %v3509, %v3576
  %v3578 = vpop.f32.mrf.mxu0
  %v3579 = vadd.f32 %v3509, %v3578
  %3580 = vmatmul.bf16.gmra.mxu0 %v3539
  %v3581 = vpop.f32.mrf.mxu0
  %v3582 = vadd.f32 %v3509, %v3581
  %v3583 = vpop.f32.mrf.mxu0
  %v3584 = vadd.f32 %v3509, %v3583
  %3585 = vmatmul.bf16.gmra.mxu0 %v3542
  %v3586 = vpop.f32.mrf.mxu0
  %v3587 = vadd.f32 %v3509, %v3586
  %v3588 = vpop.f32.mrf.mxu0
  %v3589 = vadd.f32 %v3509, %v3588
  %3590 = vmatmul.bf16.gmra.mxu0 %v3545
  %v3591 = vpop.f32.mrf.mxu0
  %v3592 = vadd.f32 %v3509, %v3591
  %v3593 = vpop.f32.mrf.mxu0
  %v3594 = vadd.f32 %v3509, %v3593
  %3595 = vdwg.mxu0
  %v3596 = vmul.f32 %v3557, 0.5
  %v3597 = vmul.f32 %v3559, 0.5
  %v3598 = vmul.f32 %v3562, 0.5
  %v3599 = vmul.f32 %v3564, 0.5
  %v3600 = vmul.f32 %v3567, 0.5
  %v3601 = vmul.f32 %v3569, 0.5
  %v3602 = vmul.f32 %v3572, 0.5
  %v3603 = vmul.f32 %v3574, 0.5
  %v3604 = vmul.f32 %v3577, 0.5
  %v3605 = vmul.f32 %v3579, 0.5
  %v3606 = vmul.f32 %v3582, 0.5
  %v3607 = vmul.f32 %v3584, 0.5
  %v3608 = vmul.f32 %v3587, 0.5
  %v3609 = vmul.f32 %v3589, 0.5
  %v3610 = vmul.f32 %v3592, 0.5
  %v3611 = vmul.f32 %v3594, 0.5
  %v3612 = vmul.f32 %v3557, 0.70710677
  %v3613 = vmul.f32 %v3559, 0.70710677
  %v3614 = vmul.f32 %v3562, 0.70710677
  %v3615 = vmul.f32 %v3564, 0.70710677
  %v3616 = vmul.f32 %v3567, 0.70710677
  %v3617 = vmul.f32 %v3569, 0.70710677
  %v3618 = vmul.f32 %v3572, 0.70710677
  %v3619 = vmul.f32 %v3574, 0.70710677
  %v3620 = vmul.f32 %v3577, 0.70710677
  %v3621 = vmul.f32 %v3579, 0.70710677
  %v3622 = vmul.f32 %v3582, 0.70710677
  %v3623 = vmul.f32 %v3584, 0.70710677
  %v3624 = vmul.f32 %v3587, 0.70710677
  %v3625 = vmul.f32 %v3589, 0.70710677
  %v3626 = vmul.f32 %v3592, 0.70710677
  %v3627 = vmul.f32 %v3594, 0.70710677
  %v3628 = vmul.f32 %v3612, %v3612
  %v3629 = vmin.f32 16.0, %v3628
  %v3630 = vmul.f32 %v3629, 2.1237322e-06
  %v3631 = vadd.f32 %v3630, 0.00028619796
  %v3632 = vmul.f32 %v3629, %v3631
  %v3633 = vadd.f32 %v3632, 0.0036580483
  %v3634 = vmul.f32 %v3629, %v3633
  %v3635 = vadd.f32 %v3634, 0.05243302
  %v3636 = vmul.f32 %v3629, %v3635
  %v3637 = vadd.f32 %v3636, 0.18741608
  %v3638 = vmul.f32 %v3629, %v3637
  %v3639 = vadd.f32 %v3638, 1.1283791
  %v3640 = vmul.f32 %v3612, %v3639
  %v3641 = vmul.f32 %v3629, 3.8918573e-05
  %v3642 = vadd.f32 %v3641, 0.001143296
  %v3643 = vmul.f32 %v3629, %v3642
  %v3644 = vadd.f32 %v3643, 0.014752088
  %v3645 = vmul.f32 %v3629, %v3644
  %v3646 = vadd.f32 %v3645, 0.112945676
  %v3647 = vmul.f32 %v3629, %v3646
  %v3648 = vadd.f32 %v3647, 0.4994258
  %v3649 = vmul.f32 %v3629, %v3648
  %v3650 = vadd.f32 %v3649, 1.0
  %v3651 = vrcp.pop %v3650
  %v3652 = vmul.f32 %v3650, %v3651
  %v3653 = vsub.f32 1.0, %v3652
  %v3654 = vmul.f32 %v3651, %v3653
  %v3655 = vadd.f32 %v3651, %v3654
  %vm3656 = vweird.f32 %v3650
  %vm3657 = vweird.f32 %v3651
  %vm3658 = vmor %vm3656, %vm3657
  %v3659 = vsel %vm3658, %v3651, %v3655
  %v3660 = vand.u32 2147483647, %v3650
  %vm3661 = vcmp.eq.f32.partialorder %v3660, 8.507059e+37
  %v3662 = vand.u32 %v3650, 2147483648
  %v3663 = vor.u32 1.1754944e-38, %v3662
  %v3664 = vsel %vm3661, %v3663, %v3659
  %v3665 = vmul.f32 %v3640, %v3664
  %v3666 = vmin.f32 %v3665, 1.0
  %v3667 = vmax.f32 %v3666, -1.0
  %v3668 = vmul.f32 %v3613, %v3613
  %v3669 = vmin.f32 16.0, %v3668
  %v3670 = vmul.f32 %v3669, 2.1237322e-06
  %v3671 = vadd.f32 %v3670, 0.00028619796
  %v3672 = vmul.f32 %v3669, %v3671
  %v3673 = vadd.f32 %v3672, 0.0036580483
  %v3674 = vmul.f32 %v3669, %v3673
  %v3675 = vadd.f32 %v3674, 0.05243302
  %v3676 = vmul.f32 %v3669, %v3675
  %v3677 = vadd.f32 %v3676, 0.18741608
  %v3678 = vmul.f32 %v3669, %v3677
  %v3679 = vadd.f32 %v3678, 1.1283791
  %v3680 = vmul.f32 %v3613, %v3679
  %v3681 = vmul.f32 %v3669, 3.8918573e-05
  %v3682 = vadd.f32 %v3681, 0.001143296
  %v3683 = vmul.f32 %v3669, %v3682
  %v3684 = vadd.f32 %v3683, 0.014752088
  %v3685 = vmul.f32 %v3669, %v3684
  %v3686 = vadd.f32 %v3685, 0.112945676
  %v3687 = vmul.f32 %v3669, %v3686
  %v3688 = vadd.f32 %v3687, 0.4994258
  %v3689 = vmul.f32 %v3669, %v3688
  %v3690 = vadd.f32 %v3689, 1.0
  %v3691 = vrcp.pop %v3690
  %v3692 = vmul.f32 %v3690, %v3691
  %v3693 = vsub.f32 1.0, %v3692
  %v3694 = vmul.f32 %v3691, %v3693
  %v3695 = vadd.f32 %v3691, %v3694
  %vm3696 = vweird.f32 %v3690
  %vm3697 = vweird.f32 %v3691
  %vm3698 = vmor %vm3696, %vm3697
  %v3699 = vsel %vm3698, %v3691, %v3695
  %v3700 = vand.u32 2147483647, %v3690
  %vm3701 = vcmp.eq.f32.partialorder %v3700, 8.507059e+37
  %v3702 = vand.u32 %v3690, 2147483648
  %v3703 = vor.u32 1.1754944e-38, %v3702
  %v3704 = vsel %vm3701, %v3703, %v3699
  %v3705 = vmul.f32 %v3680, %v3704
  %v3706 = vmin.f32 %v3705, 1.0
  %v3707 = vmax.f32 %v3706, -1.0
  %v3708 = vmul.f32 %v3614, %v3614
  %v3709 = vmin.f32 16.0, %v3708
  %v3710 = vmul.f32 %v3709, 2.1237322e-06
  %v3711 = vadd.f32 %v3710, 0.00028619796
  %v3712 = vmul.f32 %v3709, %v3711
  %v3713 = vadd.f32 %v3712, 0.0036580483
  %v3714 = vmul.f32 %v3709, %v3713
  %v3715 = vadd.f32 %v3714, 0.05243302
  %v3716 = vmul.f32 %v3709, %v3715
  %v3717 = vadd.f32 %v3716, 0.18741608
  %v3718 = vmul.f32 %v3709, %v3717
  %v3719 = vadd.f32 %v3718, 1.1283791
  %v3720 = vmul.f32 %v3614, %v3719
  %v3721 = vmul.f32 %v3709, 3.8918573e-05
  %v3722 = vadd.f32 %v3721, 0.001143296
  %v3723 = vmul.f32 %v3709, %v3722
  %v3724 = vadd.f32 %v3723, 0.014752088
  %v3725 = vmul.f32 %v3709, %v3724
  %v3726 = vadd.f32 %v3725, 0.112945676
  %v3727 = vmul.f32 %v3709, %v3726
  %v3728 = vadd.f32 %v3727, 0.4994258
  %v3729 = vmul.f32 %v3709, %v3728
  %v3730 = vadd.f32 %v3729, 1.0
  %v3731 = vrcp.pop %v3730
  %v3732 = vmul.f32 %v3730, %v3731
  %v3733 = vsub.f32 1.0, %v3732
  %v3734 = vmul.f32 %v3731, %v3733
  %v3735 = vadd.f32 %v3731, %v3734
  %vm3736 = vweird.f32 %v3730
  %vm3737 = vweird.f32 %v3731
  %vm3738 = vmor %vm3736, %vm3737
  %v3739 = vsel %vm3738, %v3731, %v3735
  %v3740 = vand.u32 2147483647, %v3730
  %vm3741 = vcmp.eq.f32.partialorder %v3740, 8.507059e+37
  %v3742 = vand.u32 %v3730, 2147483648
  %v3743 = vor.u32 1.1754944e-38, %v3742
  %v3744 = vsel %vm3741, %v3743, %v3739
  %v3745 = vmul.f32 %v3720, %v3744
  %v3746 = vmin.f32 %v3745, 1.0
  %v3747 = vmax.f32 %v3746, -1.0
  %v3748 = vmul.f32 %v3615, %v3615
  %v3749 = vmin.f32 16.0, %v3748
  %v3750 = vmul.f32 %v3749, 2.1237322e-06
  %v3751 = vadd.f32 %v3750, 0.00028619796
  %v3752 = vmul.f32 %v3749, %v3751
  %v3753 = vadd.f32 %v3752, 0.0036580483
  %v3754 = vmul.f32 %v3749, %v3753
  %v3755 = vadd.f32 %v3754, 0.05243302
  %v3756 = vmul.f32 %v3749, %v3755
  %v3757 = vadd.f32 %v3756, 0.18741608
  %v3758 = vmul.f32 %v3749, %v3757
  %v3759 = vadd.f32 %v3758, 1.1283791
  %v3760 = vmul.f32 %v3615, %v3759
  %v3761 = vmul.f32 %v3749, 3.8918573e-05
  %v3762 = vadd.f32 %v3761, 0.001143296
  %v3763 = vmul.f32 %v3749, %v3762
  %v3764 = vadd.f32 %v3763, 0.014752088
  %v3765 = vmul.f32 %v3749, %v3764
  %v3766 = vadd.f32 %v3765, 0.112945676
  %v3767 = vmul.f32 %v3749, %v3766
  %v3768 = vadd.f32 %v3767, 0.4994258
  %v3769 = vmul.f32 %v3749, %v3768
  %v3770 = vadd.f32 %v3769, 1.0
  %v3771 = vrcp.pop %v3770
  %v3772 = vmul.f32 %v3770, %v3771
  %v3773 = vsub.f32 1.0, %v3772
  %v3774 = vmul.f32 %v3771, %v3773
  %v3775 = vadd.f32 %v3771, %v3774
  %vm3776 = vweird.f32 %v3770
  %vm3777 = vweird.f32 %v3771
  %vm3778 = vmor %vm3776, %vm3777
  %v3779 = vsel %vm3778, %v3771, %v3775
  %v3780 = vand.u32 2147483647, %v3770
  %vm3781 = vcmp.eq.f32.partialorder %v3780, 8.507059e+37
  %v3782 = vand.u32 %v3770, 2147483648
  %v3783 = vor.u32 1.1754944e-38, %v3782
  %v3784 = vsel %vm3781, %v3783, %v3779
  %v3785 = vmul.f32 %v3760, %v3784
  %v3786 = vmin.f32 %v3785, 1.0
  %v3787 = vmax.f32 %v3786, -1.0
  %v3788 = vmul.f32 %v3616, %v3616
  %v3789 = vmin.f32 16.0, %v3788
  %v3790 = vmul.f32 %v3789, 2.1237322e-06
  %v3791 = vadd.f32 %v3790, 0.00028619796
  %v3792 = vmul.f32 %v3789, %v3791
  %v3793 = vadd.f32 %v3792, 0.0036580483
  %v3794 = vmul.f32 %v3789, %v3793
  %v3795 = vadd.f32 %v3794, 0.05243302
  %v3796 = vmul.f32 %v3789, %v3795
  %v3797 = vadd.f32 %v3796, 0.18741608
  %v3798 = vmul.f32 %v3789, %v3797
  %v3799 = vadd.f32 %v3798, 1.1283791
  %v3800 = vmul.f32 %v3616, %v3799
  %v3801 = vmul.f32 %v3789, 3.8918573e-05
  %v3802 = vadd.f32 %v3801, 0.001143296
  %v3803 = vmul.f32 %v3789, %v3802
  %v3804 = vadd.f32 %v3803, 0.014752088
  %v3805 = vmul.f32 %v3789, %v3804
  %v3806 = vadd.f32 %v3805, 0.112945676
  %v3807 = vmul.f32 %v3789, %v3806
  %v3808 = vadd.f32 %v3807, 0.4994258
  %v3809 = vmul.f32 %v3789, %v3808
  %v3810 = vadd.f32 %v3809, 1.0
  %v3811 = vrcp.pop %v3810
  %v3812 = vmul.f32 %v3810, %v3811
  %v3813 = vsub.f32 1.0, %v3812
  %v3814 = vmul.f32 %v3811, %v3813
  %v3815 = vadd.f32 %v3811, %v3814
  %vm3816 = vweird.f32 %v3810
  %vm3817 = vweird.f32 %v3811
  %vm3818 = vmor %vm3816, %vm3817
  %v3819 = vsel %vm3818, %v3811, %v3815
  %v3820 = vand.u32 2147483647, %v3810
  %vm3821 = vcmp.eq.f32.partialorder %v3820, 8.507059e+37
  %v3822 = vand.u32 %v3810, 2147483648
  %v3823 = vor.u32 1.1754944e-38, %v3822
  %v3824 = vsel %vm3821, %v3823, %v3819
  %v3825 = vmul.f32 %v3800, %v3824
  %v3826 = vmin.f32 %v3825, 1.0
  %v3827 = vmax.f32 %v3826, -1.0
  %v3828 = vmul.f32 %v3617, %v3617
  %v3829 = vmin.f32 16.0, %v3828
  %v3830 = vmul.f32 %v3829, 2.1237322e-06
  %v3831 = vadd.f32 %v3830, 0.00028619796
  %v3832 = vmul.f32 %v3829, %v3831
  %v3833 = vadd.f32 %v3832, 0.0036580483
  %v3834 = vmul.f32 %v3829, %v3833
  %v3835 = vadd.f32 %v3834, 0.05243302
  %v3836 = vmul.f32 %v3829, %v3835
  %v3837 = vadd.f32 %v3836, 0.18741608
  %v3838 = vmul.f32 %v3829, %v3837
  %v3839 = vadd.f32 %v3838, 1.1283791
  %v3840 = vmul.f32 %v3617, %v3839
  %v3841 = vmul.f32 %v3829, 3.8918573e-05
  %v3842 = vadd.f32 %v3841, 0.001143296
  %v3843 = vmul.f32 %v3829, %v3842
  %v3844 = vadd.f32 %v3843, 0.014752088
  %v3845 = vmul.f32 %v3829, %v3844
  %v3846 = vadd.f32 %v3845, 0.112945676
  %v3847 = vmul.f32 %v3829, %v3846
  %v3848 = vadd.f32 %v3847, 0.4994258
  %v3849 = vmul.f32 %v3829, %v3848
  %v3850 = vadd.f32 %v3849, 1.0
  %v3851 = vrcp.pop %v3850
  %v3852 = vmul.f32 %v3850, %v3851
  %v3853 = vsub.f32 1.0, %v3852
  %v3854 = vmul.f32 %v3851, %v3853
  %v3855 = vadd.f32 %v3851, %v3854
  %vm3856 = vweird.f32 %v3850
  %vm3857 = vweird.f32 %v3851
  %vm3858 = vmor %vm3856, %vm3857
  %v3859 = vsel %vm3858, %v3851, %v3855
  %v3860 = vand.u32 2147483647, %v3850
  %vm3861 = vcmp.eq.f32.partialorder %v3860, 8.507059e+37
  %v3862 = vand.u32 %v3850, 2147483648
  %v3863 = vor.u32 1.1754944e-38, %v3862
  %v3864 = vsel %vm3861, %v3863, %v3859
  %v3865 = vmul.f32 %v3840, %v3864
  %v3866 = vmin.f32 %v3865, 1.0
  %v3867 = vmax.f32 %v3866, -1.0
  %v3868 = vmul.f32 %v3618, %v3618
  %v3869 = vmin.f32 16.0, %v3868
  %v3870 = vmul.f32 %v3869, 2.1237322e-06
  %v3871 = vadd.f32 %v3870, 0.00028619796
  %v3872 = vmul.f32 %v3869, %v3871
  %v3873 = vadd.f32 %v3872, 0.0036580483
  %v3874 = vmul.f32 %v3869, %v3873
  %v3875 = vadd.f32 %v3874, 0.05243302
  %v3876 = vmul.f32 %v3869, %v3875
  %v3877 = vadd.f32 %v3876, 0.18741608
  %v3878 = vmul.f32 %v3869, %v3877
  %v3879 = vadd.f32 %v3878, 1.1283791
  %v3880 = vmul.f32 %v3618, %v3879
  %v3881 = vmul.f32 %v3869, 3.8918573e-05
  %v3882 = vadd.f32 %v3881, 0.001143296
  %v3883 = vmul.f32 %v3869, %v3882
  %v3884 = vadd.f32 %v3883, 0.014752088
  %v3885 = vmul.f32 %v3869, %v3884
  %v3886 = vadd.f32 %v3885, 0.112945676
  %v3887 = vmul.f32 %v3869, %v3886
  %v3888 = vadd.f32 %v3887, 0.4994258
  %v3889 = vmul.f32 %v3869, %v3888
  %v3890 = vadd.f32 %v3889, 1.0
  %v3891 = vrcp.pop %v3890
  %v3892 = vmul.f32 %v3890, %v3891
  %v3893 = vsub.f32 1.0, %v3892
  %v3894 = vmul.f32 %v3891, %v3893
  %v3895 = vadd.f32 %v3891, %v3894
  %vm3896 = vweird.f32 %v3890
  %vm3897 = vweird.f32 %v3891
  %vm3898 = vmor %vm3896, %vm3897
  %v3899 = vsel %vm3898, %v3891, %v3895
  %v3900 = vand.u32 2147483647, %v3890
  %vm3901 = vcmp.eq.f32.partialorder %v3900, 8.507059e+37
  %v3902 = vand.u32 %v3890, 2147483648
  %v3903 = vor.u32 1.1754944e-38, %v3902
  %v3904 = vsel %vm3901, %v3903, %v3899
  %v3905 = vmul.f32 %v3880, %v3904
  %v3906 = vmin.f32 %v3905, 1.0
  %v3907 = vmax.f32 %v3906, -1.0
  %v3908 = vmul.f32 %v3619, %v3619
  %v3909 = vmin.f32 16.0, %v3908
  %v3910 = vmul.f32 %v3909, 2.1237322e-06
  %v3911 = vadd.f32 %v3910, 0.00028619796
  %v3912 = vmul.f32 %v3909, %v3911
  %v3913 = vadd.f32 %v3912, 0.0036580483
  %v3914 = vmul.f32 %v3909, %v3913
  %v3915 = vadd.f32 %v3914, 0.05243302
  %v3916 = vmul.f32 %v3909, %v3915
  %v3917 = vadd.f32 %v3916, 0.18741608
  %v3918 = vmul.f32 %v3909, %v3917
  %v3919 = vadd.f32 %v3918, 1.1283791
  %v3920 = vmul.f32 %v3619, %v3919
  %v3921 = vmul.f32 %v3909, 3.8918573e-05
  %v3922 = vadd.f32 %v3921, 0.001143296
  %v3923 = vmul.f32 %v3909, %v3922
  %v3924 = vadd.f32 %v3923, 0.014752088
  %v3925 = vmul.f32 %v3909, %v3924
  %v3926 = vadd.f32 %v3925, 0.112945676
  %v3927 = vmul.f32 %v3909, %v3926
  %v3928 = vadd.f32 %v3927, 0.4994258
  %v3929 = vmul.f32 %v3909, %v3928
  %v3930 = vadd.f32 %v3929, 1.0
  %v3931 = vrcp.pop %v3930
  %v3932 = vmul.f32 %v3930, %v3931
  %v3933 = vsub.f32 1.0, %v3932
  %v3934 = vmul.f32 %v3931, %v3933
  %v3935 = vadd.f32 %v3931, %v3934
  %vm3936 = vweird.f32 %v3930
  %vm3937 = vweird.f32 %v3931
  %vm3938 = vmor %vm3936, %vm3937
  %v3939 = vsel %vm3938, %v3931, %v3935
  %v3940 = vand.u32 2147483647, %v3930
  %vm3941 = vcmp.eq.f32.partialorder %v3940, 8.507059e+37
  %v3942 = vand.u32 %v3930, 2147483648
  %v3943 = vor.u32 1.1754944e-38, %v3942
  %v3944 = vsel %vm3941, %v3943, %v3939
  %v3945 = vmul.f32 %v3920, %v3944
  %v3946 = vmin.f32 %v3945, 1.0
  %v3947 = vmax.f32 %v3946, -1.0
  %v3948 = vmul.f32 %v3620, %v3620
  %v3949 = vmin.f32 16.0, %v3948
  %v3950 = vmul.f32 %v3949, 2.1237322e-06
  %v3951 = vadd.f32 %v3950, 0.00028619796
  %v3952 = vmul.f32 %v3949, %v3951
  %v3953 = vadd.f32 %v3952, 0.0036580483
  %v3954 = vmul.f32 %v3949, %v3953
  %v3955 = vadd.f32 %v3954, 0.05243302
  %v3956 = vmul.f32 %v3949, %v3955
  %v3957 = vadd.f32 %v3956, 0.18741608
  %v3958 = vmul.f32 %v3949, %v3957
  %v3959 = vadd.f32 %v3958, 1.1283791
  %v3960 = vmul.f32 %v3620, %v3959
  %v3961 = vmul.f32 %v3949, 3.8918573e-05
  %v3962 = vadd.f32 %v3961, 0.001143296
  %v3963 = vmul.f32 %v3949, %v3962
  %v3964 = vadd.f32 %v3963, 0.014752088
  %v3965 = vmul.f32 %v3949, %v3964
  %v3966 = vadd.f32 %v3965, 0.112945676
  %v3967 = vmul.f32 %v3949, %v3966
  %v3968 = vadd.f32 %v3967, 0.4994258
  %v3969 = vmul.f32 %v3949, %v3968
  %v3970 = vadd.f32 %v3969, 1.0
  %v3971 = vrcp.pop %v3970
  %v3972 = vmul.f32 %v3970, %v3971
  %v3973 = vsub.f32 1.0, %v3972
  %v3974 = vmul.f32 %v3971, %v3973
  %v3975 = vadd.f32 %v3971, %v3974
  %vm3976 = vweird.f32 %v3970
  %vm3977 = vweird.f32 %v3971
  %vm3978 = vmor %vm3976, %vm3977
  %v3979 = vsel %vm3978, %v3971, %v3975
  %v3980 = vand.u32 2147483647, %v3970
  %vm3981 = vcmp.eq.f32.partialorder %v3980, 8.507059e+37
  %v3982 = vand.u32 %v3970, 2147483648
  %v3983 = vor.u32 1.1754944e-38, %v3982
  %v3984 = vsel %vm3981, %v3983, %v3979
  %v3985 = vmul.f32 %v3960, %v3984
  %v3986 = vmin.f32 %v3985, 1.0
  %v3987 = vmax.f32 %v3986, -1.0
  %v3988 = vmul.f32 %v3621, %v3621
  %v3989 = vmin.f32 16.0, %v3988
  %v3990 = vmul.f32 %v3989, 2.1237322e-06
  %v3991 = vadd.f32 %v3990, 0.00028619796
  %v3992 = vmul.f32 %v3989, %v3991
  %v3993 = vadd.f32 %v3992, 0.0036580483
  %v3994 = vmul.f32 %v3989, %v3993
  %v3995 = vadd.f32 %v3994, 0.05243302
  %v3996 = vmul.f32 %v3989, %v3995
  %v3997 = vadd.f32 %v3996, 0.18741608
  %v3998 = vmul.f32 %v3989, %v3997
  %v3999 = vadd.f32 %v3998, 1.1283791
  %v4000 = vmul.f32 %v3621, %v3999
  %v4001 = vmul.f32 %v3989, 3.8918573e-05
  %v4002 = vadd.f32 %v4001, 0.001143296
  %v4003 = vmul.f32 %v3989, %v4002
  %v4004 = vadd.f32 %v4003, 0.014752088
  %v4005 = vmul.f32 %v3989, %v4004
  %v4006 = vadd.f32 %v4005, 0.112945676
  %v4007 = vmul.f32 %v3989, %v4006
  %v4008 = vadd.f32 %v4007, 0.4994258
  %v4009 = vmul.f32 %v3989, %v4008
  %v4010 = vadd.f32 %v4009, 1.0
  %v4011 = vrcp.pop %v4010
  %v4012 = vmul.f32 %v4010, %v4011
  %v4013 = vsub.f32 1.0, %v4012
  %v4014 = vmul.f32 %v4011, %v4013
  %v4015 = vadd.f32 %v4011, %v4014
  %vm4016 = vweird.f32 %v4010
  %vm4017 = vweird.f32 %v4011
  %vm4018 = vmor %vm4016, %vm4017
  %v4019 = vsel %vm4018, %v4011, %v4015
  %v4020 = vand.u32 2147483647, %v4010
  %vm4021 = vcmp.eq.f32.partialorder %v4020, 8.507059e+37
  %v4022 = vand.u32 %v4010, 2147483648
  %v4023 = vor.u32 1.1754944e-38, %v4022
  %v4024 = vsel %vm4021, %v4023, %v4019
  %v4025 = vmul.f32 %v4000, %v4024
  %v4026 = vmin.f32 %v4025, 1.0
  %v4027 = vmax.f32 %v4026, -1.0
  %v4028 = vmul.f32 %v3622, %v3622
  %v4029 = vmin.f32 16.0, %v4028
  %v4030 = vmul.f32 %v4029, 2.1237322e-06
  %v4031 = vadd.f32 %v4030, 0.00028619796
  %v4032 = vmul.f32 %v4029, %v4031
  %v4033 = vadd.f32 %v4032, 0.0036580483
  %v4034 = vmul.f32 %v4029, %v4033
  %v4035 = vadd.f32 %v4034, 0.05243302
  %v4036 = vmul.f32 %v4029, %v4035
  %v4037 = vadd.f32 %v4036, 0.18741608
  %v4038 = vmul.f32 %v4029, %v4037
  %v4039 = vadd.f32 %v4038, 1.1283791
  %v4040 = vmul.f32 %v3622, %v4039
  %v4041 = vmul.f32 %v4029, 3.8918573e-05
  %v4042 = vadd.f32 %v4041, 0.001143296
  %v4043 = vmul.f32 %v4029, %v4042
  %v4044 = vadd.f32 %v4043, 0.014752088
  %v4045 = vmul.f32 %v4029, %v4044
  %v4046 = vadd.f32 %v4045, 0.112945676
  %v4047 = vmul.f32 %v4029, %v4046
  %v4048 = vadd.f32 %v4047, 0.4994258
  %v4049 = vmul.f32 %v4029, %v4048
  %v4050 = vadd.f32 %v4049, 1.0
  %v4051 = vrcp.pop %v4050
  %v4052 = vmul.f32 %v4050, %v4051
  %v4053 = vsub.f32 1.0, %v4052
  %v4054 = vmul.f32 %v4051, %v4053
  %v4055 = vadd.f32 %v4051, %v4054
  %vm4056 = vweird.f32 %v4050
  %vm4057 = vweird.f32 %v4051
  %vm4058 = vmor %vm4056, %vm4057
  %v4059 = vsel %vm4058, %v4051, %v4055
  %v4060 = vand.u32 2147483647, %v4050
  %vm4061 = vcmp.eq.f32.partialorder %v4060, 8.507059e+37
  %v4062 = vand.u32 %v4050, 2147483648
  %v4063 = vor.u32 1.1754944e-38, %v4062
  %v4064 = vsel %vm4061, %v4063, %v4059
  %v4065 = vmul.f32 %v4040, %v4064
  %v4066 = vmin.f32 %v4065, 1.0
  %v4067 = vmax.f32 %v4066, -1.0
  %v4068 = vmul.f32 %v3623, %v3623
  %v4069 = vmin.f32 16.0, %v4068
  %v4070 = vmul.f32 %v4069, 2.1237322e-06
  %v4071 = vadd.f32 %v4070, 0.00028619796
  %v4072 = vmul.f32 %v4069, %v4071
  %v4073 = vadd.f32 %v4072, 0.0036580483
  %v4074 = vmul.f32 %v4069, %v4073
  %v4075 = vadd.f32 %v4074, 0.05243302
  %v4076 = vmul.f32 %v4069, %v4075
  %v4077 = vadd.f32 %v4076, 0.18741608
  %v4078 = vmul.f32 %v4069, %v4077
  %v4079 = vadd.f32 %v4078, 1.1283791
  %v4080 = vmul.f32 %v3623, %v4079
  %v4081 = vmul.f32 %v4069, 3.8918573e-05
  %v4082 = vadd.f32 %v4081, 0.001143296
  %v4083 = vmul.f32 %v4069, %v4082
  %v4084 = vadd.f32 %v4083, 0.014752088
  %v4085 = vmul.f32 %v4069, %v4084
  %v4086 = vadd.f32 %v4085, 0.112945676
  %v4087 = vmul.f32 %v4069, %v4086
  %v4088 = vadd.f32 %v4087, 0.4994258
  %v4089 = vmul.f32 %v4069, %v4088
  %v4090 = vadd.f32 %v4089, 1.0
  %v4091 = vrcp.pop %v4090
  %v4092 = vmul.f32 %v4090, %v4091
  %v4093 = vsub.f32 1.0, %v4092
  %v4094 = vmul.f32 %v4091, %v4093
  %v4095 = vadd.f32 %v4091, %v4094
  %vm4096 = vweird.f32 %v4090
  %vm4097 = vweird.f32 %v4091
  %vm4098 = vmor %vm4096, %vm4097
  %v4099 = vsel %vm4098, %v4091, %v4095
  %v4100 = vand.u32 2147483647, %v4090
  %vm4101 = vcmp.eq.f32.partialorder %v4100, 8.507059e+37
  %v4102 = vand.u32 %v4090, 2147483648
  %v4103 = vor.u32 1.1754944e-38, %v4102
  %v4104 = vsel %vm4101, %v4103, %v4099
  %v4105 = vmul.f32 %v4080, %v4104
  %v4106 = vmin.f32 %v4105, 1.0
  %v4107 = vmax.f32 %v4106, -1.0
  %v4108 = vmul.f32 %v3624, %v3624
  %v4109 = vmin.f32 16.0, %v4108
  %v4110 = vmul.f32 %v4109, 2.1237322e-06
  %v4111 = vadd.f32 %v4110, 0.00028619796
  %v4112 = vmul.f32 %v4109, %v4111
  %v4113 = vadd.f32 %v4112, 0.0036580483
  %v4114 = vmul.f32 %v4109, %v4113
  %v4115 = vadd.f32 %v4114, 0.05243302
  %v4116 = vmul.f32 %v4109, %v4115
  %v4117 = vadd.f32 %v4116, 0.18741608
  %v4118 = vmul.f32 %v4109, %v4117
  %v4119 = vadd.f32 %v4118, 1.1283791
  %v4120 = vmul.f32 %v3624, %v4119
  %v4121 = vmul.f32 %v4109, 3.8918573e-05
  %v4122 = vadd.f32 %v4121, 0.001143296
  %v4123 = vmul.f32 %v4109, %v4122
  %v4124 = vadd.f32 %v4123, 0.014752088
  %v4125 = vmul.f32 %v4109, %v4124
  %v4126 = vadd.f32 %v4125, 0.112945676
  %v4127 = vmul.f32 %v4109, %v4126
  %v4128 = vadd.f32 %v4127, 0.4994258
  %v4129 = vmul.f32 %v4109, %v4128
  %v4130 = vadd.f32 %v4129, 1.0
  %v4131 = vrcp.pop %v4130
  %v4132 = vmul.f32 %v4130, %v4131
  %v4133 = vsub.f32 1.0, %v4132
  %v4134 = vmul.f32 %v4131, %v4133
  %v4135 = vadd.f32 %v4131, %v4134
  %vm4136 = vweird.f32 %v4130
  %vm4137 = vweird.f32 %v4131
  %vm4138 = vmor %vm4136, %vm4137
  %v4139 = vsel %vm4138, %v4131, %v4135
  %v4140 = vand.u32 2147483647, %v4130
  %vm4141 = vcmp.eq.f32.partialorder %v4140, 8.507059e+37
  %v4142 = vand.u32 %v4130, 2147483648
  %v4143 = vor.u32 1.1754944e-38, %v4142
  %v4144 = vsel %vm4141, %v4143, %v4139
  %v4145 = vmul.f32 %v4120, %v4144
  %v4146 = vmin.f32 %v4145, 1.0
  %v4147 = vmax.f32 %v4146, -1.0
  %v4148 = vmul.f32 %v3625, %v3625
  %v4149 = vmin.f32 16.0, %v4148
  %v4150 = vmul.f32 %v4149, 2.1237322e-06
  %v4151 = vadd.f32 %v4150, 0.00028619796
  %v4152 = vmul.f32 %v4149, %v4151
  %v4153 = vadd.f32 %v4152, 0.0036580483
  %v4154 = vmul.f32 %v4149, %v4153
  %v4155 = vadd.f32 %v4154, 0.05243302
  %v4156 = vmul.f32 %v4149, %v4155
  %v4157 = vadd.f32 %v4156, 0.18741608
  %v4158 = vmul.f32 %v4149, %v4157
  %v4159 = vadd.f32 %v4158, 1.1283791
  %v4160 = vmul.f32 %v3625, %v4159
  %v4161 = vmul.f32 %v4149, 3.8918573e-05
  %v4162 = vadd.f32 %v4161, 0.001143296
  %v4163 = vmul.f32 %v4149, %v4162
  %v4164 = vadd.f32 %v4163, 0.014752088
  %v4165 = vmul.f32 %v4149, %v4164
  %v4166 = vadd.f32 %v4165, 0.112945676
  %v4167 = vmul.f32 %v4149, %v4166
  %v4168 = vadd.f32 %v4167, 0.4994258
  %v4169 = vmul.f32 %v4149, %v4168
  %v4170 = vadd.f32 %v4169, 1.0
  %v4171 = vrcp.pop %v4170
  %v4172 = vmul.f32 %v4170, %v4171
  %v4173 = vsub.f32 1.0, %v4172
  %v4174 = vmul.f32 %v4171, %v4173
  %v4175 = vadd.f32 %v4171, %v4174
  %vm4176 = vweird.f32 %v4170
  %vm4177 = vweird.f32 %v4171
  %vm4178 = vmor %vm4176, %vm4177
  %v4179 = vsel %vm4178, %v4171, %v4175
  %v4180 = vand.u32 2147483647, %v4170
  %vm4181 = vcmp.eq.f32.partialorder %v4180, 8.507059e+37
  %v4182 = vand.u32 %v4170, 2147483648
  %v4183 = vor.u32 1.1754944e-38, %v4182
  %v4184 = vsel %vm4181, %v4183, %v4179
  %v4185 = vmul.f32 %v4160, %v4184
  %v4186 = vmin.f32 %v4185, 1.0
  %v4187 = vmax.f32 %v4186, -1.0
  %v4188 = vmul.f32 %v3626, %v3626
  %v4189 = vmin.f32 16.0, %v4188
  %v4190 = vmul.f32 %v4189, 2.1237322e-06
  %v4191 = vadd.f32 %v4190, 0.00028619796
  %v4192 = vmul.f32 %v4189, %v4191
  %v4193 = vadd.f32 %v4192, 0.0036580483
  %v4194 = vmul.f32 %v4189, %v4193
  %v4195 = vadd.f32 %v4194, 0.05243302
  %v4196 = vmul.f32 %v4189, %v4195
  %v4197 = vadd.f32 %v4196, 0.18741608
  %v4198 = vmul.f32 %v4189, %v4197
  %v4199 = vadd.f32 %v4198, 1.1283791
  %v4200 = vmul.f32 %v3626, %v4199
  %v4201 = vmul.f32 %v4189, 3.8918573e-05
  %v4202 = vadd.f32 %v4201, 0.001143296
  %v4203 = vmul.f32 %v4189, %v4202
  %v4204 = vadd.f32 %v4203, 0.014752088
  %v4205 = vmul.f32 %v4189, %v4204
  %v4206 = vadd.f32 %v4205, 0.112945676
  %v4207 = vmul.f32 %v4189, %v4206
  %v4208 = vadd.f32 %v4207, 0.4994258
  %v4209 = vmul.f32 %v4189, %v4208
  %v4210 = vadd.f32 %v4209, 1.0
  %v4211 = vrcp.pop %v4210
  %v4212 = vmul.f32 %v4210, %v4211
  %v4213 = vsub.f32 1.0, %v4212
  %v4214 = vmul.f32 %v4211, %v4213
  %v4215 = vadd.f32 %v4211, %v4214
  %vm4216 = vweird.f32 %v4210
  %vm4217 = vweird.f32 %v4211
  %vm4218 = vmor %vm4216, %vm4217
  %v4219 = vsel %vm4218, %v4211, %v4215
  %v4220 = vand.u32 2147483647, %v4210
  %vm4221 = vcmp.eq.f32.partialorder %v4220, 8.507059e+37
  %v4222 = vand.u32 %v4210, 2147483648
  %v4223 = vor.u32 1.1754944e-38, %v4222
  %v4224 = vsel %vm4221, %v4223, %v4219
  %v4225 = vmul.f32 %v4200, %v4224
  %v4226 = vmin.f32 %v4225, 1.0
  %v4227 = vmax.f32 %v4226, -1.0
  %v4228 = vmul.f32 %v3627, %v3627
  %v4229 = vmin.f32 16.0, %v4228
  %v4230 = vmul.f32 %v4229, 2.1237322e-06
  %v4231 = vadd.f32 %v4230, 0.00028619796
  %v4232 = vmul.f32 %v4229, %v4231
  %v4233 = vadd.f32 %v4232, 0.0036580483
  %v4234 = vmul.f32 %v4229, %v4233
  %v4235 = vadd.f32 %v4234, 0.05243302
  %v4236 = vmul.f32 %v4229, %v4235
  %v4237 = vadd.f32 %v4236, 0.18741608
  %v4238 = vmul.f32 %v4229, %v4237
  %v4239 = vadd.f32 %v4238, 1.1283791
  %v4240 = vmul.f32 %v3627, %v4239
  %v4241 = vmul.f32 %v4229, 3.8918573e-05
  %v4242 = vadd.f32 %v4241, 0.001143296
  %v4243 = vmul.f32 %v4229, %v4242
  %v4244 = vadd.f32 %v4243, 0.014752088
  %v4245 = vmul.f32 %v4229, %v4244
  %v4246 = vadd.f32 %v4245, 0.112945676
  %v4247 = vmul.f32 %v4229, %v4246
  %v4248 = vadd.f32 %v4247, 0.4994258
  %v4249 = vmul.f32 %v4229, %v4248
  %v4250 = vadd.f32 %v4249, 1.0
  %v4251 = vrcp.pop %v4250
  %v4252 = vmul.f32 %v4250, %v4251
  %v4253 = vsub.f32 1.0, %v4252
  %v4254 = vmul.f32 %v4251, %v4253
  %v4255 = vadd.f32 %v4251, %v4254
  %vm4256 = vweird.f32 %v4250
  %vm4257 = vweird.f32 %v4251
  %vm4258 = vmor %vm4256, %vm4257
  %v4259 = vsel %vm4258, %v4251, %v4255
  %v4260 = vand.u32 2147483647, %v4250
  %vm4261 = vcmp.eq.f32.partialorder %v4260, 8.507059e+37
  %v4262 = vand.u32 %v4250, 2147483648
  %v4263 = vor.u32 1.1754944e-38, %v4262
  %v4264 = vsel %vm4261, %v4263, %v4259
  %v4265 = vmul.f32 %v4240, %v4264
  %v4266 = vmin.f32 %v4265, 1.0
  %v4267 = vmax.f32 %v4266, -1.0
  %v4268 = vadd.f32 %v3667, 1.0
  %v4269 = vadd.f32 %v3707, 1.0
  %v4270 = vadd.f32 %v3747, 1.0
  %v4271 = vadd.f32 %v3787, 1.0
  %v4272 = vadd.f32 %v3827, 1.0
  %v4273 = vadd.f32 %v3867, 1.0
  %v4274 = vadd.f32 %v3907, 1.0
  %v4275 = vadd.f32 %v3947, 1.0
  %v4276 = vadd.f32 %v3987, 1.0
  %v4277 = vadd.f32 %v4027, 1.0
  %v4278 = vadd.f32 %v4067, 1.0
  %v4279 = vadd.f32 %v4107, 1.0
  %v4280 = vadd.f32 %v4147, 1.0
  %v4281 = vadd.f32 %v4187, 1.0
  %v4282 = vadd.f32 %v4227, 1.0
  %v4283 = vadd.f32 %v4267, 1.0
  %v4284 = vmul.f32 %v3596, %v4268
  %v4285 = vmul.f32 %v3597, %v4269
  %v4286 = vmul.f32 %v3598, %v4270
  %v4287 = vmul.f32 %v3599, %v4271
  %v4288 = vmul.f32 %v3600, %v4272
  %v4289 = vmul.f32 %v3601, %v4273
  %v4290 = vmul.f32 %v3602, %v4274
  %v4291 = vmul.f32 %v3603, %v4275
  %v4292 = vmul.f32 %v3604, %v4276
  %v4293 = vmul.f32 %v3605, %v4277
  %v4294 = vmul.f32 %v3606, %v4278
  %v4295 = vmul.f32 %v3607, %v4279
  %v4296 = vmul.f32 %v3608, %v4280
  %v4297 = vmul.f32 %v3609, %v4281
  %v4298 = vmul.f32 %v3610, %v4282
  %v4299 = vmul.f32 %v3611, %v4283
  %v4300 = vadd.f32 %v33, %v4284
  %v4301 = vadd.f32 %v34, %v4285
  %v4302 = vadd.f32 %v35, %v4286
  %v4303 = vadd.f32 %v36, %v4287
  %v4304 = vadd.f32 %v37, %v4288
  %v4305 = vadd.f32 %v38, %v4289
  %v4306 = vadd.f32 %v39, %v4290
  %v4307 = vadd.f32 %v40, %v4291
  %v4308 = vadd.f32 %v41, %v4292
  %v4309 = vadd.f32 %v42, %v4293
  %v4310 = vadd.f32 %v43, %v4294
  %v4311 = vadd.f32 %v44, %v4295
  %v4312 = vadd.f32 %v45, %v4296
  %v4313 = vadd.f32 %v46, %v4297
  %v4314 = vadd.f32 %v47, %v4298
  %v4315 = vadd.f32 %v48, %v4299
  %4316 = vst.msk [vmem:[%s9] sm:$0xff] %vm49, %v4300
  %4317 = vst.msk [vmem:[%s9 + $0x8] sm:$0xff] %vm49, %v4301
  %4318 = vst.msk [vmem:[%s9 + $0x10] sm:$0xff] %vm49, %v4302
  %4319 = vst.msk [vmem:[%s9 + $0x18] sm:$0xff] %vm49, %v4303
  %4320 = vst.msk [vmem:[%s9 + $0x20] sm:$0xff] %vm49, %v4304
  %4321 = vst.msk [vmem:[%s9 + $0x28] sm:$0xff] %vm49, %v4305
  %4322 = vst.msk [vmem:[%s9 + $0x30] sm:$0xff] %vm49, %v4306
  %4323 = vst.msk [vmem:[%s9 + $0x38] sm:$0xff] %vm49, %v4307
  %4324 = vst.msk [vmem:[%s9 + $0x40] sm:$0xff] %vm49, %v4308
  %4325 = vst.msk [vmem:[%s9 + $0x48] sm:$0xff] %vm49, %v4309
  %4326 = vst.msk [vmem:[%s9 + $0x50] sm:$0xff] %vm49, %v4310
  %4327 = vst.msk [vmem:[%s9 + $0x58] sm:$0xff] %vm49, %v4311
  %4328 = vst.msk [vmem:[%s9 + $0x60] sm:$0xff] %vm49, %v4312
  %4329 = vst.msk [vmem:[%s9 + $0x68] sm:$0xff] %vm49, %v4313
  %4330 = vst.msk [vmem:[%s9 + $0x70] sm:$0xff] %vm49, %v4314
  %4331 = vst.msk [vmem:[%s9 + $0x78] sm:$0xff] %vm49, %v4315
  // Predicated region
  $region38: #{_basic_layer_impl.3} parent=0 // pred_check
    _
  $region39: #{_basic_layer_impl.3} parent=0 // pred_check_branch
    %4333 = sbr.rel (0) target = $region41
  $region40: #{_basic_layer_impl.3} parent=0 // pred_region
    _
  $region41: #{_basic_layer_impl.3} parent=0 // pred_fallthru
    _
  // Predicated region
  $region42: #{_basic_layer_impl.3} parent=0 // pred_check
    _
  $region43: #{_basic_layer_impl.3} parent=0 // pred_check_branch
    %4335 = sbr.rel (0) target = $region45
  $region44: #{_basic_layer_impl.3} parent=0 // pred_region
    _
  $region45: #{_basic_layer_impl.3} parent=0 // pred_fallthru
    _

// kernel: _basic_layer_impl.2
$region0: #{_basic_layer_impl.2}
  #allocation0 [shape = 'u32[]', space=smem, size = 0x4, offset = 0x4, fixed_abs, tag = 'smem constant byte address 0x4 - core index']
  #allocation1 [shape = 'u32[72,128]{1,0:T(1,128)}', space=vmem, size = 0x9000, scoped, tag = 'internal scratch']
  %s0 = inlined_call_operand.vmem [shape: f32[8,16,32], index: 0, kind: input, shape index: {}]
  %s1 = inlined_call_operand.vmem [shape: f32[1,32], index: 1, kind: input, shape index: {}]
  %s2 = inlined_call_operand.vmem [shape: f32[1,32], index: 2, kind: input, shape index: {}]
  %s3 = inlined_call_operand.vmem [shape: bf16[3,32,32], index: 3, kind: input, shape index: {}]
  %s4 = inlined_call_operand.vmem [shape: f32[3,1,32], index: 4, kind: input, shape index: {}]
  %s5 = inlined_call_operand.vmem [shape: bf16[32,32], index: 5, kind: input, shape index: {}]
  %s6 = inlined_call_operand.vmem [shape: f32[1,32], index: 6, kind: input, shape index: {}]
  %s7 = inlined_call_operand.vmem [shape: f32[4,16,16], index: 7, kind: input, shape index: {}]
  %s8 = inlined_call_operand.vmem [shape: f32[8,16,32], index: 8, kind: output, shape index: {}]
  %s9 = sld [smem:[#allocation0]]
  $region42: #{_basic_layer_impl.2} parent=0
    _
  %s11 = ssub.s32 1, %s9
  %s12 = scalar_select 0, %s11, %s9
  // Predicated region
  $region2: #{_basic_layer_impl.2} parent=0 // pred_check
    _
  $region3: #{_basic_layer_impl.2} parent=0 // pred_check_branch
    %14 = sbr.rel (0) target = $region5
  $region4: #{_basic_layer_impl.2} parent=0 // pred_region
    _
  $region5: #{_basic_layer_impl.2} parent=0 // pred_fallthru
    _
  // Predicated region
  $region6: #{_basic_layer_impl.2} parent=0 // pred_check
    _
  $region7: #{_basic_layer_impl.2} parent=0 // pred_check_branch
    %16 = sbr.rel (0) target = $region9
  $region8: #{_basic_layer_impl.2} parent=0 // pred_region
    _
  $region9: #{_basic_layer_impl.2} parent=0 // pred_fallthru
    _
  // Predicated region
  $region10: #{_basic_layer_impl.2} parent=0 // pred_check
    _
  $region11: #{_basic_layer_impl.2} parent=0 // pred_check_branch
    %18 = sbr.rel (0) target = $region13
  $region12: #{_basic_layer_impl.2} parent=0 // pred_region
    _
  $region13: #{_basic_layer_impl.2} parent=0 // pred_fallthru
    _
  // Predicated region
  $region14: #{_basic_layer_impl.2} parent=0 // pred_check
    _
  $region15: #{_basic_layer_impl.2} parent=0 // pred_check_branch
    %20 = sbr.rel (0) target = $region17
  $region16: #{_basic_layer_impl.2} parent=0 // pred_region
    _
  $region17: #{_basic_layer_impl.2} parent=0 // pred_fallthru
    _
  // Predicated region
  $region18: #{_basic_layer_impl.2} parent=0 // pred_check
    _
  $region19: #{_basic_layer_impl.2} parent=0 // pred_check_branch
    %22 = sbr.rel (0) target = $region21
  $region20: #{_basic_layer_impl.2} parent=0 // pred_region
    _
  $region21: #{_basic_layer_impl.2} parent=0 // pred_fallthru
    _
  // Predicated region
  $region22: #{_basic_layer_impl.2} parent=0 // pred_check
    _
  $region23: #{_basic_layer_impl.2} parent=0 // pred_check_branch
    %24 = sbr.rel (0) target = $region25
  $region24: #{_basic_layer_impl.2} parent=0 // pred_region
    _
  $region25: #{_basic_layer_impl.2} parent=0 // pred_fallthru
    _
  // Predicated region
  $region26: #{_basic_layer_impl.2} parent=0 // pred_check
    _
  $region27: #{_basic_layer_impl.2} parent=0 // pred_check_branch
    %26 = sbr.rel (0) target = $region29
  $region28: #{_basic_layer_impl.2} parent=0 // pred_region
    _
  $region29: #{_basic_layer_impl.2} parent=0 // pred_fallthru
    _
  // Predicated region
  $region30: #{_basic_layer_impl.2} parent=0 // pred_check
    _
  $region31: #{_basic_layer_impl.2} parent=0 // pred_check_branch
    %28 = sbr.rel (0) target = $region33
  $region32: #{_basic_layer_impl.2} parent=0 // pred_region
    _
  $region33: #{_basic_layer_impl.2} parent=0 // pred_fallthru
    _
  %v30 = vld [vmem:[%s0] sm:$0xff]
  %v31 = vld [vmem:[%s0 + $0x8] sm:$0xff]
  %v32 = vld [vmem:[%s0 + $0x10] sm:$0xff]
  %v33 = vld [vmem:[%s0 + $0x18] sm:$0xff]
  %v34 = vld [vmem:[%s0 + $0x20] sm:$0xff]
  %v35 = vld [vmem:[%s0 + $0x28] sm:$0xff]
  %v36 = vld [vmem:[%s0 + $0x30] sm:$0xff]
  %v37 = vld [vmem:[%s0 + $0x38] sm:$0xff]
  %v38 = vld [vmem:[%s0 + $0x40] sm:$0xff]
  %v39 = vld [vmem:[%s0 + $0x48] sm:$0xff]
  %v40 = vld [vmem:[%s0 + $0x50] sm:$0xff]
  %v41 = vld [vmem:[%s0 + $0x58] sm:$0xff]
  %v42 = vld [vmem:[%s0 + $0x60] sm:$0xff]
  %v43 = vld [vmem:[%s0 + $0x68] sm:$0xff]
  %v44 = vld [vmem:[%s0 + $0x70] sm:$0xff]
  %v45 = vld [vmem:[%s0 + $0x78] sm:$0xff]
  %vm46 = vcmask 261120
  %v47 = vsel %vm46, %v30, 0.0
  %48 = vadd.xlane.f32.xlu0 %v47
  %v49 = vpop.xlane.xlu0 %48
  %v50 = vsel %vm46, %v31, 0.0
  %51 = vadd.xlane.f32.xlu0 %v50
  %v52 = vpop.xlane.xlu0 %51
  %v53 = vsel %vm46, %v32, 0.0
  %54 = vadd.xlane.f32.xlu0 %v53
  %v55 = vpop.xlane.xlu0 %54
  %v56 = vsel %vm46, %v33, 0.0
  %57 = vadd.xlane.f32.xlu0 %v56
  %v58 = vpop.xlane.xlu0 %57
  %v59 = vsel %vm46, %v34, 0.0
  %60 = vadd.xlane.f32.xlu0 %v59
  %v61 = vpop.xlane.xlu0 %60
  %v62 = vsel %vm46, %v35, 0.0
  %63 = vadd.xlane.f32.xlu0 %v62
  %v64 = vpop.xlane.xlu0 %63
  %v65 = vsel %vm46, %v36, 0.0
  %66 = vadd.xlane.f32.xlu0 %v65
  %v67 = vpop.xlane.xlu0 %66
  %v68 = vsel %vm46, %v37, 0.0
  %69 = vadd.xlane.f32.xlu0 %v68
  %v70 = vpop.xlane.xlu0 %69
  %v71 = vsel %vm46, %v38, 0.0
  %72 = vadd.xlane.f32.xlu0 %v71
  %v73 = vpop.xlane.xlu0 %72
  %v74 = vsel %vm46, %v39, 0.0
  %75 = vadd.xlane.f32.xlu0 %v74
  %v76 = vpop.xlane.xlu0 %75
  %v77 = vsel %vm46, %v40, 0.0
  %78 = vadd.xlane.f32.xlu0 %v77
  %v79 = vpop.xlane.xlu0 %78
  %v80 = vsel %vm46, %v41, 0.0
  %81 = vadd.xlane.f32.xlu0 %v80
  %v82 = vpop.xlane.xlu0 %81
  %v83 = vsel %vm46, %v42, 0.0
  %84 = vadd.xlane.f32.xlu0 %v83
  %v85 = vpop.xlane.xlu0 %84
  %v86 = vsel %vm46, %v43, 0.0
  %87 = vadd.xlane.f32.xlu0 %v86
  %v88 = vpop.xlane.xlu0 %87
  %v89 = vsel %vm46, %v44, 0.0
  %90 = vadd.xlane.f32.xlu0 %v89
  %v91 = vpop.xlane.xlu0 %90
  %v92 = vsel %vm46, %v45, 0.0
  %93 = vadd.xlane.f32.xlu0 %v92
  %v94 = vpop.xlane.xlu0 %93
  %v95 = vrcp.pop 32.0
  %v96 = vmul.f32 32.0, %v95
  %v97 = vsub.f32 1.0, %v96
  %v98 = vmul.f32 %v95, %v97
  %v99 = vadd.f32 %v95, %v98
  %vm100 = vweird.f32 %v95
  %v101 = vsel %vm100, %v95, %v99
  %v102 = vmul.f32 %v49, %v101
  %v103 = vmul.f32 %v52, %v101
  %v104 = vmul.f32 %v55, %v101
  %v105 = vmul.f32 %v58, %v101
  %v106 = vmul.f32 %v61, %v101
  %v107 = vmul.f32 %v64, %v101
  %v108 = vmul.f32 %v67, %v101
  %v109 = vmul.f32 %v70, %v101
  %v110 = vmul.f32 %v73, %v101
  %v111 = vmul.f32 %v76, %v101
  %v112 = vmul.f32 %v79, %v101
  %v113 = vmul.f32 %v82, %v101
  %v114 = vmul.f32 %v85, %v101
  %v115 = vmul.f32 %v88, %v101
  %v116 = vmul.f32 %v91, %v101
  %v117 = vmul.f32 %v94, %v101
  %v118 = vsub.f32 %v30, %v102
  %v119 = vsub.f32 %v31, %v103
  %v120 = vsub.f32 %v32, %v104
  %v121 = vsub.f32 %v33, %v105
  %v122 = vsub.f32 %v34, %v106
  %v123 = vsub.f32 %v35, %v107
  %v124 = vsub.f32 %v36, %v108
  %v125 = vsub.f32 %v37, %v109
  %v126 = vsub.f32 %v38, %v110
  %v127 = vsub.f32 %v39, %v111
  %v128 = vsub.f32 %v40, %v112
  %v129 = vsub.f32 %v41, %v113
  %v130 = vsub.f32 %v42, %v114
  %v131 = vsub.f32 %v43, %v115
  %v132 = vsub.f32 %v44, %v116
  %v133 = vsub.f32 %v45, %v117
  %v134 = vmul.f32 %v118, %v118
  %v135 = vmul.f32 %v119, %v119
  %v136 = vmul.f32 %v120, %v120
  %v137 = vmul.f32 %v121, %v121
  %v138 = vmul.f32 %v122, %v122
  %v139 = vmul.f32 %v123, %v123
  %v140 = vmul.f32 %v124, %v124
  %v141 = vmul.f32 %v125, %v125
  %v142 = vmul.f32 %v126, %v126
  %v143 = vmul.f32 %v127, %v127
  %v144 = vmul.f32 %v128, %v128
  %v145 = vmul.f32 %v129, %v129
  %v146 = vmul.f32 %v130, %v130
  %v147 = vmul.f32 %v131, %v131
  %v148 = vmul.f32 %v132, %v132
  %v149 = vmul.f32 %v133, %v133
  %v150 = vsel %vm46, %v134, 0.0
  %151 = vadd.xlane.f32.xlu0 %v150
  %v152 = vpop.xlane.xlu0 %151
  %v153 = vsel %vm46, %v135, 0.0
  %154 = vadd.xlane.f32.xlu0 %v153
  %v155 = vpop.xlane.xlu0 %154
  %v156 = vsel %vm46, %v136, 0.0
  %157 = vadd.xlane.f32.xlu0 %v156
  %v158 = vpop.xlane.xlu0 %157
  %v159 = vsel %vm46, %v137, 0.0
  %160 = vadd.xlane.f32.xlu0 %v159
  %v161 = vpop.xlane.xlu0 %160
  %v162 = vsel %vm46, %v138, 0.0
  %163 = vadd.xlane.f32.xlu0 %v162
  %v164 = vpop.xlane.xlu0 %163
  %v165 = vsel %vm46, %v139, 0.0
  %166 = vadd.xlane.f32.xlu0 %v165
  %v167 = vpop.xlane.xlu0 %166
  %v168 = vsel %vm46, %v140, 0.0
  %169 = vadd.xlane.f32.xlu0 %v168
  %v170 = vpop.xlane.xlu0 %169
  %v171 = vsel %vm46, %v141, 0.0
  %172 = vadd.xlane.f32.xlu0 %v171
  %v173 = vpop.xlane.xlu0 %172
  %v174 = vsel %vm46, %v142, 0.0
  %175 = vadd.xlane.f32.xlu0 %v174
  %v176 = vpop.xlane.xlu0 %175
  %v177 = vsel %vm46, %v143, 0.0
  %178 = vadd.xlane.f32.xlu0 %v177
  %v179 = vpop.xlane.xlu0 %178
  %v180 = vsel %vm46, %v144, 0.0
  %181 = vadd.xlane.f32.xlu0 %v180
  %v182 = vpop.xlane.xlu0 %181
  %v183 = vsel %vm46, %v145, 0.0
  %184 = vadd.xlane.f32.xlu0 %v183
  %v185 = vpop.xlane.xlu0 %184
  %v186 = vsel %vm46, %v146, 0.0
  %187 = vadd.xlane.f32.xlu0 %v186
  %v188 = vpop.xlane.xlu0 %187
  %v189 = vsel %vm46, %v147, 0.0
  %190 = vadd.xlane.f32.xlu0 %v189
  %v191 = vpop.xlane.xlu0 %190
  %v192 = vsel %vm46, %v148, 0.0
  %193 = vadd.xlane.f32.xlu0 %v192
  %v194 = vpop.xlane.xlu0 %193
  %v195 = vsel %vm46, %v149, 0.0
  %196 = vadd.xlane.f32.xlu0 %v195
  %v197 = vpop.xlane.xlu0 %196
  %v198 = vmul.f32 %v152, %v101
  %v199 = vmul.f32 %v155, %v101
  %v200 = vmul.f32 %v158, %v101
  %v201 = vmul.f32 %v161, %v101
  %v202 = vmul.f32 %v164, %v101
  %v203 = vmul.f32 %v167, %v101
  %v204 = vmul.f32 %v170, %v101
  %v205 = vmul.f32 %v173, %v101
  %v206 = vmul.f32 %v176, %v101
  %v207 = vmul.f32 %v179, %v101
  %v208 = vmul.f32 %v182, %v101
  %v209 = vmul.f32 %v185, %v101
  %v210 = vmul.f32 %v188, %v101
  %v211 = vmul.f32 %v191, %v101
  %v212 = vmul.f32 %v194, %v101
  %v213 = vmul.f32 %v197, %v101
  %v214 = vadd.f32 %v198, 1e-05
  %v215 = vadd.f32 %v199, 1e-05
  %v216 = vadd.f32 %v200, 1e-05
  %v217 = vadd.f32 %v201, 1e-05
  %v218 = vadd.f32 %v202, 1e-05
  %v219 = vadd.f32 %v203, 1e-05
  %v220 = vadd.f32 %v204, 1e-05
  %v221 = vadd.f32 %v205, 1e-05
  %v222 = vadd.f32 %v206, 1e-05
  %v223 = vadd.f32 %v207, 1e-05
  %v224 = vadd.f32 %v208, 1e-05
  %v225 = vadd.f32 %v209, 1e-05
  %v226 = vadd.f32 %v210, 1e-05
  %v227 = vadd.f32 %v211, 1e-05
  %v228 = vadd.f32 %v212, 1e-05
  %v229 = vadd.f32 %v213, 1e-05
  %v230 = vrsqrt.pop %v214
  %v231 = vmul.f32 %v230, %v214
  %v232 = vmul.f32 %v231, %v230
  %v233 = vmul.f32 0.5, %v232
  %v234 = vsub.f32 1.5, %v233
  %v235 = vmul.f32 %v230, %v234
  %vm236 = vweird.f32 %v214
  %vm237 = vweird.f32 %v230
  %vm238 = vmor %vm236, %vm237
  %v239 = vsel %vm238, %v230, %v235
  %v240 = vrsqrt.pop %v215
  %v241 = vmul.f32 %v240, %v215
  %v242 = vmul.f32 %v241, %v240
  %v243 = vmul.f32 0.5, %v242
  %v244 = vsub.f32 1.5, %v243
  %v245 = vmul.f32 %v240, %v244
  %vm246 = vweird.f32 %v215
  %vm247 = vweird.f32 %v240
  %vm248 = vmor %vm246, %vm247
  %v249 = vsel %vm248, %v240, %v245
  %v250 = vrsqrt.pop %v216
  %v251 = vmul.f32 %v250, %v216
  %v252 = vmul.f32 %v251, %v250
  %v253 = vmul.f32 0.5, %v252
  %v254 = vsub.f32 1.5, %v253
  %v255 = vmul.f32 %v250, %v254
  %vm256 = vweird.f32 %v216
  %vm257 = vweird.f32 %v250
  %vm258 = vmor %vm256, %vm257
  %v259 = vsel %vm258, %v250, %v255
  %v260 = vrsqrt.pop %v217
  %v261 = vmul.f32 %v260, %v217
  %v262 = vmul.f32 %v261, %v260
  %v263 = vmul.f32 0.5, %v262
  %v264 = vsub.f32 1.5, %v263
  %v265 = vmul.f32 %v260, %v264
  %vm266 = vweird.f32 %v217
  %vm267 = vweird.f32 %v260
  %vm268 = vmor %vm266, %vm267
  %v269 = vsel %vm268, %v260, %v265
  %v270 = vrsqrt.pop %v218
  %v271 = vmul.f32 %v270, %v218
  %v272 = vmul.f32 %v271, %v270
  %v273 = vmul.f32 0.5, %v272
  %v274 = vsub.f32 1.5, %v273
  %v275 = vmul.f32 %v270, %v274
  %vm276 = vweird.f32 %v218
  %vm277 = vweird.f32 %v270
  %vm278 = vmor %vm276, %vm277
  %v279 = vsel %vm278, %v270, %v275
  %v280 = vrsqrt.pop %v219
  %v281 = vmul.f32 %v280, %v219
  %v282 = vmul.f32 %v281, %v280
  %v283 = vmul.f32 0.5, %v282
  %v284 = vsub.f32 1.5, %v283
  %v285 = vmul.f32 %v280, %v284
  %vm286 = vweird.f32 %v219
  %vm287 = vweird.f32 %v280
  %vm288 = vmor %vm286, %vm287
  %v289 = vsel %vm288, %v280, %v285
  %v290 = vrsqrt.pop %v220
  %v291 = vmul.f32 %v290, %v220
  %v292 = vmul.f32 %v291, %v290
  %v293 = vmul.f32 0.5, %v292
  %v294 = vsub.f32 1.5, %v293
  %v295 = vmul.f32 %v290, %v294
  %vm296 = vweird.f32 %v220
  %vm297 = vweird.f32 %v290
  %vm298 = vmor %vm296, %vm297
  %v299 = vsel %vm298, %v290, %v295
  %v300 = vrsqrt.pop %v221
  %v301 = vmul.f32 %v300, %v221
  %v302 = vmul.f32 %v301, %v300
  %v303 = vmul.f32 0.5, %v302
  %v304 = vsub.f32 1.5, %v303
  %v305 = vmul.f32 %v300, %v304
  %vm306 = vweird.f32 %v221
  %vm307 = vweird.f32 %v300
  %vm308 = vmor %vm306, %vm307
  %v309 = vsel %vm308, %v300, %v305
  %v310 = vrsqrt.pop %v222
  %v311 = vmul.f32 %v310, %v222
  %v312 = vmul.f32 %v311, %v310
  %v313 = vmul.f32 0.5, %v312
  %v314 = vsub.f32 1.5, %v313
  %v315 = vmul.f32 %v310, %v314
  %vm316 = vweird.f32 %v222
  %vm317 = vweird.f32 %v310
  %vm318 = vmor %vm316, %vm317
  %v319 = vsel %vm318, %v310, %v315
  %v320 = vrsqrt.pop %v223
  %v321 = vmul.f32 %v320, %v223
  %v322 = vmul.f32 %v321, %v320
  %v323 = vmul.f32 0.5, %v322
  %v324 = vsub.f32 1.5, %v323
  %v325 = vmul.f32 %v320, %v324
  %vm326 = vweird.f32 %v223
  %vm327 = vweird.f32 %v320
  %vm328 = vmor %vm326, %vm327
  %v329 = vsel %vm328, %v320, %v325
  %v330 = vrsqrt.pop %v224
  %v331 = vmul.f32 %v330, %v224
  %v332 = vmul.f32 %v331, %v330
  %v333 = vmul.f32 0.5, %v332
  %v334 = vsub.f32 1.5, %v333
  %v335 = vmul.f32 %v330, %v334
  %vm336 = vweird.f32 %v224
  %vm337 = vweird.f32 %v330
  %vm338 = vmor %vm336, %vm337
  %v339 = vsel %vm338, %v330, %v335
  %v340 = vrsqrt.pop %v225
  %v341 = vmul.f32 %v340, %v225
  %v342 = vmul.f32 %v341, %v340
  %v343 = vmul.f32 0.5, %v342
  %v344 = vsub.f32 1.5, %v343
  %v345 = vmul.f32 %v340, %v344
  %vm346 = vweird.f32 %v225
  %vm347 = vweird.f32 %v340
  %vm348 = vmor %vm346, %vm347
  %v349 = vsel %vm348, %v340, %v345
  %v350 = vrsqrt.pop %v226
  %v351 = vmul.f32 %v350, %v226
  %v352 = vmul.f32 %v351, %v350
  %v353 = vmul.f32 0.5, %v352
  %v354 = vsub.f32 1.5, %v353
  %v355 = vmul.f32 %v350, %v354
  %vm356 = vweird.f32 %v226
  %vm357 = vweird.f32 %v350
  %vm358 = vmor %vm356, %vm357
  %v359 = vsel %vm358, %v350, %v355
  %v360 = vrsqrt.pop %v227
  %v361 = vmul.f32 %v360, %v227
  %v362 = vmul.f32 %v361, %v360
  %v363 = vmul.f32 0.5, %v362
  %v364 = vsub.f32 1.5, %v363
  %v365 = vmul.f32 %v360, %v364
  %vm366 = vweird.f32 %v227
  %vm367 = vweird.f32 %v360
  %vm368 = vmor %vm366, %vm367
  %v369 = vsel %vm368, %v360, %v365
  %v370 = vrsqrt.pop %v228
  %v371 = vmul.f32 %v370, %v228
  %v372 = vmul.f32 %v371, %v370
  %v373 = vmul.f32 0.5, %v372
  %v374 = vsub.f32 1.5, %v373
  %v375 = vmul.f32 %v370, %v374
  %vm376 = vweird.f32 %v228
  %vm377 = vweird.f32 %v370
  %vm378 = vmor %vm376, %vm377
  %v379 = vsel %vm378, %v370, %v375
  %v380 = vrsqrt.pop %v229
  %v381 = vmul.f32 %v380, %v229
  %v382 = vmul.f32 %v381, %v380
  %v383 = vmul.f32 0.5, %v382
  %v384 = vsub.f32 1.5, %v383
  %v385 = vmul.f32 %v380, %v384
  %vm386 = vweird.f32 %v229
  %vm387 = vweird.f32 %v380
  %vm388 = vmor %vm386, %vm387
  %v389 = vsel %vm388, %v380, %v385
  %v390 = vmul.f32 %v118, %v239
  %v391 = vmul.f32 %v119, %v249
  %v392 = vmul.f32 %v120, %v259
  %v393 = vmul.f32 %v121, %v269
  %v394 = vmul.f32 %v122, %v279
  %v395 = vmul.f32 %v123, %v289
  %v396 = vmul.f32 %v124, %v299
  %v397 = vmul.f32 %v125, %v309
  %v398 = vmul.f32 %v126, %v319
  %v399 = vmul.f32 %v127, %v329
  %v400 = vmul.f32 %v128, %v339
  %v401 = vmul.f32 %v129, %v349
  %v402 = vmul.f32 %v130, %v359
  %v403 = vmul.f32 %v131, %v369
  %v404 = vmul.f32 %v132, %v379
  %v405 = vmul.f32 %v133, %v389
  %v406 = vld [vmem:[%s1] sm:$0x1]
  %v408 = vperm.slane %v406, 0
  %v410 = vmul.f32 %v390, %v408
  %v411 = vmul.f32 %v391, %v408
  %v412 = vmul.f32 %v392, %v408
  %v413 = vmul.f32 %v393, %v408
  %v414 = vmul.f32 %v394, %v408
  %v415 = vmul.f32 %v395, %v408
  %v416 = vmul.f32 %v396, %v408
  %v417 = vmul.f32 %v397, %v408
  %v418 = vmul.f32 %v398, %v408
  %v419 = vmul.f32 %v399, %v408
  %v420 = vmul.f32 %v400, %v408
  %v421 = vmul.f32 %v401, %v408
  %v422 = vmul.f32 %v402, %v408
  %v423 = vmul.f32 %v403, %v408
  %v424 = vmul.f32 %v404, %v408
  %v425 = vmul.f32 %v405, %v408
  %v426 = vld [vmem:[%s2] sm:$0x1]
  %v428 = vperm.slane %v426, 0
  %v430 = vadd.f32 %v410, %v428
  %v431 = vadd.f32 %v411, %v428
  %v432 = vadd.f32 %v412, %v428
  %v433 = vadd.f32 %v413, %v428
  %v434 = vadd.f32 %v414, %v428
  %v435 = vadd.f32 %v415, %v428
  %v436 = vadd.f32 %v416, %v428
  %v437 = vadd.f32 %v417, %v428
  %v438 = vadd.f32 %v418, %v428
  %v439 = vadd.f32 %v419, %v428
  %v440 = vadd.f32 %v420, %v428
  %v441 = vadd.f32 %v421, %v428
  %v442 = vadd.f32 %v422, %v428
  %v443 = vadd.f32 %v423, %v428
  %v444 = vadd.f32 %v424, %v428
  %v445 = vadd.f32 %v425, %v428
  %v446 = vpack.c.bf16 %v431, %v430
  %v447 = vpack.c.bf16 %v433, %v432
  %v448 = vpack.c.bf16 %v435, %v434
  %v449 = vpack.c.bf16 %v437, %v436
  %v450 = vpack.c.bf16 %v439, %v438
  %v451 = vpack.c.bf16 %v441, %v440
  %v452 = vpack.c.bf16 %v443, %v442
  %v453 = vpack.c.bf16 %v445, %v444
  %v454 = vld [vmem:[%s3] sm:$0xf]
  %v455 = vld [vmem:[%s3 + $0x4] sm:$0xf]
  %v456 = vld [vmem:[%s3 + $0x8] sm:$0xf]
  %v457 = vld [vmem:[%s3 + $0xc] sm:$0xf]
  %v458 = vld [vmem:[%s4] sm:$0x1]
  %v460 = vperm.slane %v458, 0
  %v466 = vunpack.c.l.b16 %v454
  %v467 = vunpack.c.l.b16 %v455
  %v468 = vunpack.c.l.b16 %v456
  %v469 = vunpack.c.l.b16 %v457
  %v470 = vpack.c.b16 %v467, %v466
  %v471 = vpack.c.b16 %v469, %v468
  %v475 = vsel %vm46, %v446, 0
  %v478 = vsel %vm46, %v447, 0
  %v481 = vsel %vm46, %v448, 0
  %v484 = vsel %vm46, %v449, 0
  %v487 = vsel %vm46, %v450, 0
  %v490 = vsel %vm46, %v451, 0
  %v493 = vsel %vm46, %v452, 0
  %v496 = vsel %vm46, %v453, 0
  %498 = vmatpush.bf16.msra.mxu0 0
  %499 = vmatpush.bf16.msra.mxu0 0
  %500 = vmatpush.bf16.msra.mxu0 0
  %501 = vmatpush.bf16.msra.mxu0 0
  %502 = vmatpush.bf16.msra.mxu0 0
  %503 = vmatpush.bf16.msra.mxu0 0
  %504 = vmatpush.bf16.msra.mxu0 %v471
  %505 = vmatpush.bf16.msra.mxu0 %v470
  %506 = vmatmul.bf16.gmra.mxu0 %v475
  %v507 = vpop.f32.mrf.mxu0
  %v508 = vadd.f32 %v460, %v507
  %v509 = vpop.f32.mrf.mxu0
  %v510 = vadd.f32 %v460, %v509
  %511 = vmatmul.bf16.gmra.mxu0 %v478
  %v512 = vpop.f32.mrf.mxu0
  %v513 = vadd.f32 %v460, %v512
  %v514 = vpop.f32.mrf.mxu0
  %v515 = vadd.f32 %v460, %v514
  %516 = vmatmul.bf16.gmra.mxu0 %v481
  %v517 = vpop.f32.mrf.mxu0
  %v518 = vadd.f32 %v460, %v517
  %v519 = vpop.f32.mrf.mxu0
  %v520 = vadd.f32 %v460, %v519
  %521 = vmatmul.bf16.gmra.mxu0 %v484
  %v522 = vpop.f32.mrf.mxu0
  %v523 = vadd.f32 %v460, %v522
  %v524 = vpop.f32.mrf.mxu0
  %v525 = vadd.f32 %v460, %v524
  %526 = vmatmul.bf16.gmra.mxu0 %v487
  %v527 = vpop.f32.mrf.mxu0
  %v528 = vadd.f32 %v460, %v527
  %v529 = vpop.f32.mrf.mxu0
  %v530 = vadd.f32 %v460, %v529
  %531 = vmatmul.bf16.gmra.mxu0 %v490
  %v532 = vpop.f32.mrf.mxu0
  %v533 = vadd.f32 %v460, %v532
  %v534 = vpop.f32.mrf.mxu0
  %v535 = vadd.f32 %v460, %v534
  %536 = vmatmul.bf16.gmra.mxu0 %v493
  %v537 = vpop.f32.mrf.mxu0
  %v538 = vadd.f32 %v460, %v537
  %v539 = vpop.f32.mrf.mxu0
  %v540 = vadd.f32 %v460, %v539
  %541 = vmatmul.bf16.gmra.mxu0 %v496
  %v542 = vpop.f32.mrf.mxu0
  %v543 = vadd.f32 %v460, %v542
  %v544 = vpop.f32.mrf.mxu0
  %v545 = vadd.f32 %v460, %v544
  %546 = vdwg.mxu0
  %v547 = vmul.f32 %v508, 0.35355338
  %v548 = vmul.f32 %v510, 0.35355338
  %v549 = vmul.f32 %v513, 0.35355338
  %v550 = vmul.f32 %v515, 0.35355338
  %v551 = vmul.f32 %v518, 0.35355338
  %v552 = vmul.f32 %v520, 0.35355338
  %v553 = vmul.f32 %v523, 0.35355338
  %v554 = vmul.f32 %v525, 0.35355338
  %v555 = vmul.f32 %v528, 0.35355338
  %v556 = vmul.f32 %v530, 0.35355338
  %v557 = vmul.f32 %v533, 0.35355338
  %v558 = vmul.f32 %v535, 0.35355338
  %v559 = vmul.f32 %v538, 0.35355338
  %v560 = vmul.f32 %v540, 0.35355338
  %v561 = vmul.f32 %v543, 0.35355338
  %v562 = vmul.f32 %v545, 0.35355338
  %s563 = scalar_lea.vmem %s3, 16
  %v564 = vld [vmem:[%s563] sm:$0xf]
  %v565 = vld [vmem:[%s563 + $0x4] sm:$0xf]
  %v566 = vld [vmem:[%s563 + $0x8] sm:$0xf]
  %v567 = vld [vmem:[%s563 + $0xc] sm:$0xf]
  %s568 = scalar_lea.vmem %s4, 1
  %v569 = vld [vmem:[%s568] sm:$0x1]
  %v571 = vperm.slane %v569, 0
  %v577 = vunpack.c.l.b16 %v564
  %v578 = vunpack.c.l.b16 %v565
  %v579 = vunpack.c.l.b16 %v566
  %v580 = vunpack.c.l.b16 %v567
  %v581 = vpack.c.b16 %v578, %v577
  %v582 = vpack.c.b16 %v580, %v579
  %585 = vmatpush.bf16.msra.mxu0 0
  %586 = vmatpush.bf16.msra.mxu0 0
  %587 = vmatpush.bf16.msra.mxu0 0
  %588 = vmatpush.bf16.msra.mxu0 0
  %589 = vmatpush.bf16.msra.mxu0 0
  %590 = vmatpush.bf16.msra.mxu0 0
  %591 = vmatpush.bf16.msra.mxu0 %v582
  %592 = vmatpush.bf16.msra.mxu0 %v581
  %593 = vmatmul.bf16.gmra.mxu0 %v475
  %v594 = vpop.f32.mrf.mxu0
  %v595 = vadd.f32 %v571, %v594
  %v596 = vpop.f32.mrf.mxu0
  %v597 = vadd.f32 %v571, %v596
  %598 = vmatmul.bf16.gmra.mxu0 %v478
  %v599 = vpop.f32.mrf.mxu0
  %v600 = vadd.f32 %v571, %v599
  %v601 = vpop.f32.mrf.mxu0
  %v602 = vadd.f32 %v571, %v601
  %603 = vmatmul.bf16.gmra.mxu0 %v481
  %v604 = vpop.f32.mrf.mxu0
  %v605 = vadd.f32 %v571, %v604
  %v606 = vpop.f32.mrf.mxu0
  %v607 = vadd.f32 %v571, %v606
  %608 = vmatmul.bf16.gmra.mxu0 %v484
  %v609 = vpop.f32.mrf.mxu0
  %v610 = vadd.f32 %v571, %v609
  %v611 = vpop.f32.mrf.mxu0
  %v612 = vadd.f32 %v571, %v611
  %613 = vmatmul.bf16.gmra.mxu0 %v487
  %v614 = vpop.f32.mrf.mxu0
  %v615 = vadd.f32 %v571, %v614
  %v616 = vpop.f32.mrf.mxu0
  %v617 = vadd.f32 %v571, %v616
  %618 = vmatmul.bf16.gmra.mxu0 %v490
  %v619 = vpop.f32.mrf.mxu0
  %v620 = vadd.f32 %v571, %v619
  %v621 = vpop.f32.mrf.mxu0
  %v622 = vadd.f32 %v571, %v621
  %623 = vmatmul.bf16.gmra.mxu0 %v493
  %v624 = vpop.f32.mrf.mxu0
  %v625 = vadd.f32 %v571, %v624
  %v626 = vpop.f32.mrf.mxu0
  %v627 = vadd.f32 %v571, %v626
  %628 = vmatmul.bf16.gmra.mxu0 %v496
  %v629 = vpop.f32.mrf.mxu0
  %v630 = vadd.f32 %v571, %v629
  %v631 = vpop.f32.mrf.mxu0
  %v632 = vadd.f32 %v571, %v631
  %633 = vdwg.mxu0
  %s634 = scalar_lea.vmem %s3, 32
  %v635 = vld [vmem:[%s634] sm:$0xf]
  %v636 = vld [vmem:[%s634 + $0x4] sm:$0xf]
  %v637 = vld [vmem:[%s634 + $0x8] sm:$0xf]
  %v638 = vld [vmem:[%s634 + $0xc] sm:$0xf]
  %s639 = scalar_lea.vmem %s4, 2
  %v640 = vld [vmem:[%s639] sm:$0x1]
  %v642 = vperm.slane %v640, 0
  %v648 = vunpack.c.l.b16 %v635
  %v649 = vunpack.c.l.b16 %v636
  %v650 = vunpack.c.l.b16 %v637
  %v651 = vunpack.c.l.b16 %v638
  %v652 = vpack.c.b16 %v649, %v648
  %v653 = vpack.c.b16 %v651, %v650
  %656 = vmatpush.bf16.msra.mxu0 0
  %657 = vmatpush.bf16.msra.mxu0 0
  %658 = vmatpush.bf16.msra.mxu0 0
  %659 = vmatpush.bf16.msra.mxu0 0
  %660 = vmatpush.bf16.msra.mxu0 0
  %661 = vmatpush.bf16.msra.mxu0 0
  %662 = vmatpush.bf16.msra.mxu0 %v653
  %663 = vmatpush.bf16.msra.mxu0 %v652
  %664 = vmatmul.bf16.gmra.mxu0 %v475
  %v665 = vpop.f32.mrf.mxu0
  %v666 = vadd.f32 %v642, %v665
  %v667 = vpop.f32.mrf.mxu0
  %v668 = vadd.f32 %v642, %v667
  %669 = vmatmul.bf16.gmra.mxu0 %v478
  %v670 = vpop.f32.mrf.mxu0
  %v671 = vadd.f32 %v642, %v670
  %v672 = vpop.f32.mrf.mxu0
  %v673 = vadd.f32 %v642, %v672
  %674 = vmatmul.bf16.gmra.mxu0 %v481
  %v675 = vpop.f32.mrf.mxu0
  %v676 = vadd.f32 %v642, %v675
  %v677 = vpop.f32.mrf.mxu0
  %v678 = vadd.f32 %v642, %v677
  %679 = vmatmul.bf16.gmra.mxu0 %v484
  %v680 = vpop.f32.mrf.mxu0
  %v681 = vadd.f32 %v642, %v680
  %v682 = vpop.f32.mrf.mxu0
  %v683 = vadd.f32 %v642, %v682
  %684 = vmatmul.bf16.gmra.mxu0 %v487
  %v685 = vpop.f32.mrf.mxu0
  %v686 = vadd.f32 %v642, %v685
  %v687 = vpop.f32.mrf.mxu0
  %v688 = vadd.f32 %v642, %v687
  %689 = vmatmul.bf16.gmra.mxu0 %v490
  %v690 = vpop.f32.mrf.mxu0
  %v691 = vadd.f32 %v642, %v690
  %v692 = vpop.f32.mrf.mxu0
  %v693 = vadd.f32 %v642, %v692
  %694 = vmatmul.bf16.gmra.mxu0 %v493
  %v695 = vpop.f32.mrf.mxu0
  %v696 = vadd.f32 %v642, %v695
  %v697 = vpop.f32.mrf.mxu0
  %v698 = vadd.f32 %v642, %v697
  %699 = vmatmul.bf16.gmra.mxu0 %v496
  %v700 = vpop.f32.mrf.mxu0
  %v701 = vadd.f32 %v642, %v700
  %v702 = vpop.f32.mrf.mxu0
  %v703 = vadd.f32 %v642, %v702
  %704 = vdwg.mxu0
  %v705 = vpack.c.bf16 %v547, %v547
  %v706 = vpack.c.bf16 %v548, %v548
  %v707 = vpack.c.bf16 %v549, %v549
  %v708 = vpack.c.bf16 %v550, %v550
  %v709 = vpack.c.bf16 %v551, %v551
  %v710 = vpack.c.bf16 %v552, %v552
  %v711 = vpack.c.bf16 %v553, %v553
  %v712 = vpack.c.bf16 %v554, %v554
  %v713 = vpack.c.bf16 %v555, %v555
  %v714 = vpack.c.bf16 %v556, %v556
  %v715 = vpack.c.bf16 %v557, %v557
  %v716 = vpack.c.bf16 %v558, %v558
  %v717 = vpack.c.bf16 %v559, %v559
  %v718 = vpack.c.bf16 %v560, %v560
  %v719 = vpack.c.bf16 %v561, %v561
  %v720 = vpack.c.bf16 %v562, %v562
  %v721 = vpack.c.bf16 %v595, %v595
  %v722 = vpack.c.bf16 %v597, %v597
  %v723 = vpack.c.bf16 %v600, %v600
  %v724 = vpack.c.bf16 %v602, %v602
  %v725 = vpack.c.bf16 %v605, %v605
  %v726 = vpack.c.bf16 %v607, %v607
  %v727 = vpack.c.bf16 %v610, %v610
  %v728 = vpack.c.bf16 %v612, %v612
  %v729 = vpack.c.bf16 %v615, %v615
  %v730 = vpack.c.bf16 %v617, %v617
  %v731 = vpack.c.bf16 %v620, %v620
  %v732 = vpack.c.bf16 %v622, %v622
  %v733 = vpack.c.bf16 %v625, %v625
  %v734 = vpack.c.bf16 %v627, %v627
  %v735 = vpack.c.bf16 %v630, %v630
  %v736 = vpack.c.bf16 %v632, %v632
  %v737 = vpack.c.bf16 %v666, %v666
  %v738 = vpack.c.bf16 %v668, %v668
  %v739 = vpack.c.bf16 %v671, %v671
  %v740 = vpack.c.bf16 %v673, %v673
  %v741 = vpack.c.bf16 %v676, %v676
  %v742 = vpack.c.bf16 %v678, %v678
  %v743 = vpack.c.bf16 %v681, %v681
  %v744 = vpack.c.bf16 %v683, %v683
  %v745 = vpack.c.bf16 %v686, %v686
  %v746 = vpack.c.bf16 %v688, %v688
  %v747 = vpack.c.bf16 %v691, %v691
  %v748 = vpack.c.bf16 %v693, %v693
  %v749 = vpack.c.bf16 %v696, %v696
  %v750 = vpack.c.bf16 %v698, %v698
  %v751 = vpack.c.bf16 %v701, %v701
  %v752 = vpack.c.bf16 %v703, %v703
  %v753 = vld [vmem:[%s7] sm:$0xff]
  %v754 = vld [vmem:[%s7 + $0x8] sm:$0xff]
  %v755 = vld [vmem:[%s7 + $0x10] sm:$0xff]
  %v756 = vld [vmem:[%s7 + $0x18] sm:$0xff]
  %v757 = vld [vmem:[%s7 + $0x20] sm:$0xff]
  %v758 = vld [vmem:[%s7 + $0x28] sm:$0xff]
  %v759 = vld [vmem:[%s7 + $0x30] sm:$0xff]
  %v760 = vld [vmem:[%s7 + $0x38] sm:$0xff]
  %v763 = vunpack.c.l.b16 %v705
  %v764 = vunpack.c.l.b16 %v706
  %v765 = vpack.c.b16 %v764, %v763
  %v768 = vunpack.c.l.b16 %v721
  %v769 = vunpack.c.l.b16 %v722
  %v770 = vpack.c.b16 %v769, %v768
  %vm771 = vcmask 64512
  %v773 = vsel %vm771, %v765, 0
  %v776 = vsel %vm771, %v770, 0
  %778 = vmatpush.bf16.xpose.msra.mxu0 0
  %779 = vmatpush.bf16.xpose.msra.mxu0 0
  %780 = vmatpush.bf16.xpose.msra.mxu0 0
  %781 = vmatpush.bf16.xpose.msra.mxu0 0
  %782 = vmatpush.bf16.xpose.msra.mxu0 0
  %783 = vmatpush.bf16.xpose.msra.mxu0 0
  %784 = vmatpush.bf16.xpose.msra.mxu0 0
  %785 = vmatpush.bf16.xpose.msra.mxu0 %v776
  %786 = vmatmul.bf16.gmra.mxu0 %v773
  %v787 = vpop.f32.mrf.mxu0
  %v788 = vadd.f32 %v753, %v787
  %v789 = vpop.f32.mrf.mxu0
  %v790 = vadd.f32 %v754, %v789
  %791 = vdwg.mxu0
  %v794 = vunpack.c.l.b16 %v707
  %v795 = vunpack.c.l.b16 %v708
  %v796 = vpack.c.b16 %v795, %v794
  %v799 = vunpack.c.l.b16 %v723
  %v800 = vunpack.c.l.b16 %v724
  %v801 = vpack.c.b16 %v800, %v799
  %v803 = vsel %vm771, %v796, 0
  %v806 = vsel %vm771, %v801, 0
  %808 = vmatpush.bf16.xpose.msra.mxu0 0
  %809 = vmatpush.bf16.xpose.msra.mxu0 0
  %810 = vmatpush.bf16.xpose.msra.mxu0 0
  %811 = vmatpush.bf16.xpose.msra.mxu0 0
  %812 = vmatpush.bf16.xpose.msra.mxu0 0
  %813 = vmatpush.bf16.xpose.msra.mxu0 0
  %814 = vmatpush.bf16.xpose.msra.mxu0 0
  %815 = vmatpush.bf16.xpose.msra.mxu0 %v806
  %816 = vmatmul.bf16.gmra.mxu0 %v803
  %v817 = vpop.f32.mrf.mxu0
  %v818 = vadd.f32 %v753, %v817
  %v819 = vpop.f32.mrf.mxu0
  %v820 = vadd.f32 %v754, %v819
  %821 = vdwg.mxu0
  %v824 = vunpack.c.l.b16 %v709
  %v825 = vunpack.c.l.b16 %v710
  %v826 = vpack.c.b16 %v825, %v824
  %v829 = vunpack.c.l.b16 %v725
  %v830 = vunpack.c.l.b16 %v726
  %v831 = vpack.c.b16 %v830, %v829
  %v833 = vsel %vm771, %v826, 0
  %v836 = vsel %vm771, %v831, 0
  %838 = vmatpush.bf16.xpose.msra.mxu0 0
  %839 = vmatpush.bf16.xpose.msra.mxu0 0
  %840 = vmatpush.bf16.xpose.msra.mxu0 0
  %841 = vmatpush.bf16.xpose.msra.mxu0 0
  %842 = vmatpush.bf16.xpose.msra.mxu0 0
  %843 = vmatpush.bf16.xpose.msra.mxu0 0
  %844 = vmatpush.bf16.xpose.msra.mxu0 0
  %845 = vmatpush.bf16.xpose.msra.mxu0 %v836
  %846 = vmatmul.bf16.gmra.mxu0 %v833
  %v847 = vpop.f32.mrf.mxu0
  %v848 = vadd.f32 %v753, %v847
  %v849 = vpop.f32.mrf.mxu0
  %v850 = vadd.f32 %v754, %v849
  %851 = vdwg.mxu0
  %v854 = vunpack.c.l.b16 %v711
  %v855 = vunpack.c.l.b16 %v712
  %v856 = vpack.c.b16 %v855, %v854
  %v859 = vunpack.c.l.b16 %v727
  %v860 = vunpack.c.l.b16 %v728
  %v861 = vpack.c.b16 %v860, %v859
  %v863 = vsel %vm771, %v856, 0
  %v866 = vsel %vm771, %v861, 0
  %868 = vmatpush.bf16.xpose.msra.mxu0 0
  %869 = vmatpush.bf16.xpose.msra.mxu0 0
  %870 = vmatpush.bf16.xpose.msra.mxu0 0
  %871 = vmatpush.bf16.xpose.msra.mxu0 0
  %872 = vmatpush.bf16.xpose.msra.mxu0 0
  %873 = vmatpush.bf16.xpose.msra.mxu0 0
  %874 = vmatpush.bf16.xpose.msra.mxu0 0
  %875 = vmatpush.bf16.xpose.msra.mxu0 %v866
  %876 = vmatmul.bf16.gmra.mxu0 %v863
  %v877 = vpop.f32.mrf.mxu0
  %v878 = vadd.f32 %v753, %v877
  %v879 = vpop.f32.mrf.mxu0
  %v880 = vadd.f32 %v754, %v879
  %881 = vdwg.mxu0
  %v884 = vunpack.c.l.b16 %v713
  %v885 = vunpack.c.l.b16 %v714
  %v886 = vpack.c.b16 %v885, %v884
  %v889 = vunpack.c.l.b16 %v729
  %v890 = vunpack.c.l.b16 %v730
  %v891 = vpack.c.b16 %v890, %v889
  %v893 = vsel %vm771, %v886, 0
  %v896 = vsel %vm771, %v891, 0
  %898 = vmatpush.bf16.xpose.msra.mxu0 0
  %899 = vmatpush.bf16.xpose.msra.mxu0 0
  %900 = vmatpush.bf16.xpose.msra.mxu0 0
  %901 = vmatpush.bf16.xpose.msra.mxu0 0
  %902 = vmatpush.bf16.xpose.msra.mxu0 0
  %903 = vmatpush.bf16.xpose.msra.mxu0 0
  %904 = vmatpush.bf16.xpose.msra.mxu0 0
  %905 = vmatpush.bf16.xpose.msra.mxu0 %v896
  %906 = vmatmul.bf16.gmra.mxu0 %v893
  %v907 = vpop.f32.mrf.mxu0
  %v908 = vadd.f32 %v753, %v907
  %v909 = vpop.f32.mrf.mxu0
  %v910 = vadd.f32 %v754, %v909
  %911 = vdwg.mxu0
  %v914 = vunpack.c.l.b16 %v715
  %v915 = vunpack.c.l.b16 %v716
  %v916 = vpack.c.b16 %v915, %v914
  %v919 = vunpack.c.l.b16 %v731
  %v920 = vunpack.c.l.b16 %v732
  %v921 = vpack.c.b16 %v920, %v919
  %v923 = vsel %vm771, %v916, 0
  %v926 = vsel %vm771, %v921, 0
  %928 = vmatpush.bf16.xpose.msra.mxu0 0
  %929 = vmatpush.bf16.xpose.msra.mxu0 0
  %930 = vmatpush.bf16.xpose.msra.mxu0 0
  %931 = vmatpush.bf16.xpose.msra.mxu0 0
  %932 = vmatpush.bf16.xpose.msra.mxu0 0
  %933 = vmatpush.bf16.xpose.msra.mxu0 0
  %934 = vmatpush.bf16.xpose.msra.mxu0 0
  %935 = vmatpush.bf16.xpose.msra.mxu0 %v926
  %936 = vmatmul.bf16.gmra.mxu0 %v923
  %v937 = vpop.f32.mrf.mxu0
  %v938 = vadd.f32 %v753, %v937
  %v939 = vpop.f32.mrf.mxu0
  %v940 = vadd.f32 %v754, %v939
  %941 = vdwg.mxu0
  %v944 = vunpack.c.l.b16 %v717
  %v945 = vunpack.c.l.b16 %v718
  %v946 = vpack.c.b16 %v945, %v944
  %v949 = vunpack.c.l.b16 %v733
  %v950 = vunpack.c.l.b16 %v734
  %v951 = vpack.c.b16 %v950, %v949
  %v953 = vsel %vm771, %v946, 0
  %v956 = vsel %vm771, %v951, 0
  %958 = vmatpush.bf16.xpose.msra.mxu0 0
  %959 = vmatpush.bf16.xpose.msra.mxu0 0
  %960 = vmatpush.bf16.xpose.msra.mxu0 0
  %961 = vmatpush.bf16.xpose.msra.mxu0 0
  %962 = vmatpush.bf16.xpose.msra.mxu0 0
  %963 = vmatpush.bf16.xpose.msra.mxu0 0
  %964 = vmatpush.bf16.xpose.msra.mxu0 0
  %965 = vmatpush.bf16.xpose.msra.mxu0 %v956
  %966 = vmatmul.bf16.gmra.mxu0 %v953
  %v967 = vpop.f32.mrf.mxu0
  %v968 = vadd.f32 %v753, %v967
  %v969 = vpop.f32.mrf.mxu0
  %v970 = vadd.f32 %v754, %v969
  %971 = vdwg.mxu0
  %v974 = vunpack.c.l.b16 %v719
  %v975 = vunpack.c.l.b16 %v720
  %v976 = vpack.c.b16 %v975, %v974
  %v979 = vunpack.c.l.b16 %v735
  %v980 = vunpack.c.l.b16 %v736
  %v981 = vpack.c.b16 %v980, %v979
  %v983 = vsel %vm771, %v976, 0
  %v986 = vsel %vm771, %v981, 0
  %988 = vmatpush.bf16.xpose.msra.mxu0 0
  %989 = vmatpush.bf16.xpose.msra.mxu0 0
  %990 = vmatpush.bf16.xpose.msra.mxu0 0
  %991 = vmatpush.bf16.xpose.msra.mxu0 0
  %992 = vmatpush.bf16.xpose.msra.mxu0 0
  %993 = vmatpush.bf16.xpose.msra.mxu0 0
  %994 = vmatpush.bf16.xpose.msra.mxu0 0
  %995 = vmatpush.bf16.xpose.msra.mxu0 %v986
  %996 = vmatmul.bf16.gmra.mxu0 %v983
  %v997 = vpop.f32.mrf.mxu0
  %v998 = vadd.f32 %v753, %v997
  %v999 = vpop.f32.mrf.mxu0
  %v1000 = vadd.f32 %v754, %v999
  %1001 = vdwg.mxu0
  %vm1002 = vcmask 130048
  %v1003 = vsel %vm1002, %v788, -inf
  %1004 = vmax.xlane.f32.xlu0 %v1003
  %v1005 = vpop.xlane.xlu0 %1004
  %v1006 = vsel %vm1002, %v790, -inf
  %1007 = vmax.xlane.f32.xlu0 %v1006
  %v1008 = vpop.xlane.xlu0 %1007
  %v1009 = vsel %vm1002, %v818, -inf
  %1010 = vmax.xlane.f32.xlu0 %v1009
  %v1011 = vpop.xlane.xlu0 %1010
  %v1012 = vsel %vm1002, %v820, -inf
  %1013 = vmax.xlane.f32.xlu0 %v1012
  %v1014 = vpop.xlane.xlu0 %1013
  %v1015 = vsel %vm1002, %v848, -inf
  %1016 = vmax.xlane.f32.xlu0 %v1015
  %v1017 = vpop.xlane.xlu0 %1016
  %v1018 = vsel %vm1002, %v850, -inf
  %1019 = vmax.xlane.f32.xlu0 %v1018
  %v1020 = vpop.xlane.xlu0 %1019
  %v1021 = vsel %vm1002, %v878, -inf
  %1022 = vmax.xlane.f32.xlu0 %v1021
  %v1023 = vpop.xlane.xlu0 %1022
  %v1024 = vsel %vm1002, %v880, -inf
  %1025 = vmax.xlane.f32.xlu0 %v1024
  %v1026 = vpop.xlane.xlu0 %1025
  %v1027 = vsel %vm1002, %v908, -inf
  %1028 = vmax.xlane.f32.xlu0 %v1027
  %v1029 = vpop.xlane.xlu0 %1028
  %v1030 = vsel %vm1002, %v910, -inf
  %1031 = vmax.xlane.f32.xlu0 %v1030
  %v1032 = vpop.xlane.xlu0 %1031
  %v1033 = vsel %vm1002, %v938, -inf
  %1034 = vmax.xlane.f32.xlu0 %v1033
  %v1035 = vpop.xlane.xlu0 %1034
  %v1036 = vsel %vm1002, %v940, -inf
  %1037 = vmax.xlane.f32.xlu0 %v1036
  %v1038 = vpop.xlane.xlu0 %1037
  %v1039 = vsel %vm1002, %v968, -inf
  %1040 = vmax.xlane.f32.xlu0 %v1039
  %v1041 = vpop.xlane.xlu0 %1040
  %v1042 = vsel %vm1002, %v970, -inf
  %1043 = vmax.xlane.f32.xlu0 %v1042
  %v1044 = vpop.xlane.xlu0 %1043
  %v1045 = vsel %vm1002, %v998, -inf
  %1046 = vmax.xlane.f32.xlu0 %v1045
  %v1047 = vpop.xlane.xlu0 %1046
  %v1048 = vsel %vm1002, %v1000, -inf
  %1049 = vmax.xlane.f32.xlu0 %v1048
  %v1050 = vpop.xlane.xlu0 %1049
  %v1051 = vsub.f32 %v788, %v1005
  %v1052 = vsub.f32 %v790, %v1008
  %v1053 = vsub.f32 %v818, %v1011
  %v1054 = vsub.f32 %v820, %v1014
  %v1055 = vsub.f32 %v848, %v1017
  %v1056 = vsub.f32 %v850, %v1020
  %v1057 = vsub.f32 %v878, %v1023
  %v1058 = vsub.f32 %v880, %v1026
  %v1059 = vsub.f32 %v908, %v1029
  %v1060 = vsub.f32 %v910, %v1032
  %v1061 = vsub.f32 %v938, %v1035
  %v1062 = vsub.f32 %v940, %v1038
  %v1063 = vsub.f32 %v968, %v1041
  %v1064 = vsub.f32 %v970, %v1044
  %v1065 = vsub.f32 %v998, %v1047
  %v1066 = vsub.f32 %v1000, %v1050
  %v1067 = vmul.f32 %v1051, 1.442695
  %v1068 = vpow.pop %v1067
  %v1069 = vmul.f32 %v1052, 1.442695
  %v1070 = vpow.pop %v1069
  %v1071 = vmul.f32 %v1053, 1.442695
  %v1072 = vpow.pop %v1071
  %v1073 = vmul.f32 %v1054, 1.442695
  %v1074 = vpow.pop %v1073
  %v1075 = vmul.f32 %v1055, 1.442695
  %v1076 = vpow.pop %v1075
  %v1077 = vmul.f32 %v1056, 1.442695
  %v1078 = vpow.pop %v1077
  %v1079 = vmul.f32 %v1057, 1.442695
  %v1080 = vpow.pop %v1079
  %v1081 = vmul.f32 %v1058, 1.442695
  %v1082 = vpow.pop %v1081
  %v1083 = vmul.f32 %v1059, 1.442695
  %v1084 = vpow.pop %v1083
  %v1085 = vmul.f32 %v1060, 1.442695
  %v1086 = vpow.pop %v1085
  %v1087 = vmul.f32 %v1061, 1.442695
  %v1088 = vpow.pop %v1087
  %v1089 = vmul.f32 %v1062, 1.442695
  %v1090 = vpow.pop %v1089
  %v1091 = vmul.f32 %v1063, 1.442695
  %v1092 = vpow.pop %v1091
  %v1093 = vmul.f32 %v1064, 1.442695
  %v1094 = vpow.pop %v1093
  %v1095 = vmul.f32 %v1065, 1.442695
  %v1096 = vpow.pop %v1095
  %v1097 = vmul.f32 %v1066, 1.442695
  %v1098 = vpow.pop %v1097
  %v1099 = vsel %vm1002, %v1068, 0.0
  %1100 = vadd.xlane.f32.xlu0 %v1099
  %v1101 = vpop.xlane.xlu0 %1100
  %v1102 = vsel %vm1002, %v1070, 0.0
  %1103 = vadd.xlane.f32.xlu0 %v1102
  %v1104 = vpop.xlane.xlu0 %1103
  %v1105 = vsel %vm1002, %v1072, 0.0
  %1106 = vadd.xlane.f32.xlu0 %v1105
  %v1107 = vpop.xlane.xlu0 %1106
  %v1108 = vsel %vm1002, %v1074, 0.0
  %1109 = vadd.xlane.f32.xlu0 %v1108
  %v1110 = vpop.xlane.xlu0 %1109
  %v1111 = vsel %vm1002, %v1076, 0.0
  %1112 = vadd.xlane.f32.xlu0 %v1111
  %v1113 = vpop.xlane.xlu0 %1112
  %v1114 = vsel %vm1002, %v1078, 0.0
  %1115 = vadd.xlane.f32.xlu0 %v1114
  %v1116 = vpop.xlane.xlu0 %1115
  %v1117 = vsel %vm1002, %v1080, 0.0
  %1118 = vadd.xlane.f32.xlu0 %v1117
  %v1119 = vpop.xlane.xlu0 %1118
  %v1120 = vsel %vm1002, %v1082, 0.0
  %1121 = vadd.xlane.f32.xlu0 %v1120
  %v1122 = vpop.xlane.xlu0 %1121
  %v1123 = vsel %vm1002, %v1084, 0.0
  %1124 = vadd.xlane.f32.xlu0 %v1123
  %v1125 = vpop.xlane.xlu0 %1124
  %v1126 = vsel %vm1002, %v1086, 0.0
  %1127 = vadd.xlane.f32.xlu0 %v1126
  %v1128 = vpop.xlane.xlu0 %1127
  %v1129 = vsel %vm1002, %v1088, 0.0
  %1130 = vadd.xlane.f32.xlu0 %v1129
  %v1131 = vpop.xlane.xlu0 %1130
  %v1132 = vsel %vm1002, %v1090, 0.0
  %1133 = vadd.xlane.f32.xlu0 %v1132
  %v1134 = vpop.xlane.xlu0 %1133
  %v1135 = vsel %vm1002, %v1092, 0.0
  %1136 = vadd.xlane.f32.xlu0 %v1135
  %v1137 = vpop.xlane.xlu0 %1136
  %v1138 = vsel %vm1002, %v1094, 0.0
  %1139 = vadd.xlane.f32.xlu0 %v1138
  %v1140 = vpop.xlane.xlu0 %1139
  %v1141 = vsel %vm1002, %v1096, 0.0
  %1142 = vadd.xlane.f32.xlu0 %v1141
  %v1143 = vpop.xlane.xlu0 %1142
  %v1144 = vsel %vm1002, %v1098, 0.0
  %1145 = vadd.xlane.f32.xlu0 %v1144
  %v1146 = vpop.xlane.xlu0 %1145
  %v1147 = vrcp.pop %v1101
  %v1148 = vrcp.pop %v1104
  %v1149 = vrcp.pop %v1107
  %v1150 = vrcp.pop %v1110
  %v1151 = vrcp.pop %v1113
  %v1152 = vrcp.pop %v1116
  %v1153 = vrcp.pop %v1119
  %v1154 = vrcp.pop %v1122
  %v1155 = vrcp.pop %v1125
  %v1156 = vrcp.pop %v1128
  %v1157 = vrcp.pop %v1131
  %v1158 = vrcp.pop %v1134
  %v1159 = vrcp.pop %v1137
  %v1160 = vrcp.pop %v1140
  %v1161 = vrcp.pop %v1143
  %v1162 = vrcp.pop %v1146
  %v1163 = vmul.f32 %v1068, %v1147
  %v1164 = vmul.f32 %v1070, %v1148
  %v1165 = vmul.f32 %v1072, %v1149
  %v1166 = vmul.f32 %v1074, %v1150
  %v1167 = vmul.f32 %v1076, %v1151
  %v1168 = vmul.f32 %v1078, %v1152
  %v1169 = vmul.f32 %v1080, %v1153
  %v1170 = vmul.f32 %v1082, %v1154
  %v1171 = vmul.f32 %v1084, %v1155
  %v1172 = vmul.f32 %v1086, %v1156
  %v1173 = vmul.f32 %v1088, %v1157
  %v1174 = vmul.f32 %v1090, %v1158
  %v1175 = vmul.f32 %v1092, %v1159
  %v1176 = vmul.f32 %v1094, %v1160
  %v1177 = vmul.f32 %v1096, %v1161
  %v1178 = vmul.f32 %v1098, %v1162
  %v1179 = vpack.c.bf16 %v1163, %v1163
  %v1180 = vpack.c.bf16 %v1164, %v1164
  %v1181 = vpack.c.bf16 %v1165, %v1165
  %v1182 = vpack.c.bf16 %v1166, %v1166
  %v1183 = vpack.c.bf16 %v1167, %v1167
  %v1184 = vpack.c.bf16 %v1168, %v1168
  %v1185 = vpack.c.bf16 %v1169, %v1169
  %v1186 = vpack.c.bf16 %v1170, %v1170
  %v1187 = vpack.c.bf16 %v1171, %v1171
  %v1188 = vpack.c.bf16 %v1172, %v1172
  %v1189 = vpack.c.bf16 %v1173, %v1173
  %v1190 = vpack.c.bf16 %v1174, %v1174
  %v1191 = vpack.c.bf16 %v1175, %v1175
  %v1192 = vpack.c.bf16 %v1176, %v1176
  %v1193 = vpack.c.bf16 %v1177, %v1177
  %v1194 = vpack.c.bf16 %v1178, %v1178
  %v1197 = vunpack.c.l.b16 %v1179
  %v1198 = vunpack.c.l.b16 %v1180
  %v1199 = vpack.c.b16 %v1198, %v1197
  %v1202 = vunpack.c.l.b16 %v737
  %v1203 = vunpack.c.l.b16 %v738
  %v1204 = vpack.c.b16 %v1203, %v1202
  %v1207 = vsel %vm1002, %v1199, 0
  %1209 = vmatpush.bf16.msra.mxu0 0
  %1210 = vmatpush.bf16.msra.mxu0 0
  %1211 = vmatpush.bf16.msra.mxu0 0
  %1212 = vmatpush.bf16.msra.mxu0 0
  %1213 = vmatpush.bf16.msra.mxu0 0
  %1214 = vmatpush.bf16.msra.mxu0 0
  %1215 = vmatpush.bf16.msra.mxu0 0
  %1216 = vmatpush.bf16.msra.mxu0 %v1204
  %1217 = vmatmul.bf16.gmra.mxu0 %v1207
  %v1218 = vpop.f32.mrf.mxu0
  %v1219 = vadd.f32 0.0, %v1218
  %v1220 = vpop.f32.mrf.mxu0
  %v1221 = vadd.f32 0.0, %v1220
  %1222 = vdwg.mxu0
  %v1225 = vunpack.c.l.b16 %v1181
  %v1226 = vunpack.c.l.b16 %v1182
  %v1227 = vpack.c.b16 %v1226, %v1225
  %v1230 = vunpack.c.l.b16 %v739
  %v1231 = vunpack.c.l.b16 %v740
  %v1232 = vpack.c.b16 %v1231, %v1230
  %v1235 = vsel %vm1002, %v1227, 0
  %1237 = vmatpush.bf16.msra.mxu0 0
  %1238 = vmatpush.bf16.msra.mxu0 0
  %1239 = vmatpush.bf16.msra.mxu0 0
  %1240 = vmatpush.bf16.msra.mxu0 0
  %1241 = vmatpush.bf16.msra.mxu0 0
  %1242 = vmatpush.bf16.msra.mxu0 0
  %1243 = vmatpush.bf16.msra.mxu0 0
  %1244 = vmatpush.bf16.msra.mxu0 %v1232
  %1245 = vmatmul.bf16.gmra.mxu0 %v1235
  %v1246 = vpop.f32.mrf.mxu0
  %v1247 = vadd.f32 0.0, %v1246
  %v1248 = vpop.f32.mrf.mxu0
  %v1249 = vadd.f32 0.0, %v1248
  %1250 = vdwg.mxu0
  %v1253 = vunpack.c.l.b16 %v1183
  %v1254 = vunpack.c.l.b16 %v1184
  %v1255 = vpack.c.b16 %v1254, %v1253
  %v1258 = vunpack.c.l.b16 %v741
  %v1259 = vunpack.c.l.b16 %v742
  %v1260 = vpack.c.b16 %v1259, %v1258
  %v1263 = vsel %vm1002, %v1255, 0
  %1265 = vmatpush.bf16.msra.mxu0 0
  %1266 = vmatpush.bf16.msra.mxu0 0
  %1267 = vmatpush.bf16.msra.mxu0 0
  %1268 = vmatpush.bf16.msra.mxu0 0
  %1269 = vmatpush.bf16.msra.mxu0 0
  %1270 = vmatpush.bf16.msra.mxu0 0
  %1271 = vmatpush.bf16.msra.mxu0 0
  %1272 = vmatpush.bf16.msra.mxu0 %v1260
  %1273 = vmatmul.bf16.gmra.mxu0 %v1263
  %v1274 = vpop.f32.mrf.mxu0
  %v1275 = vadd.f32 0.0, %v1274
  %v1276 = vpop.f32.mrf.mxu0
  %v1277 = vadd.f32 0.0, %v1276
  %1278 = vdwg.mxu0
  %v1281 = vunpack.c.l.b16 %v1185
  %v1282 = vunpack.c.l.b16 %v1186
  %v1283 = vpack.c.b16 %v1282, %v1281
  %v1286 = vunpack.c.l.b16 %v743
  %v1287 = vunpack.c.l.b16 %v744
  %v1288 = vpack.c.b16 %v1287, %v1286
  %v1291 = vsel %vm1002, %v1283, 0
  %1293 = vmatpush.bf16.msra.mxu0 0
  %1294 = vmatpush.bf16.msra.mxu0 0
  %1295 = vmatpush.bf16.msra.mxu0 0
  %1296 = vmatpush.bf16.msra.mxu0 0
  %1297 = vmatpush.bf16.msra.mxu0 0
  %1298 = vmatpush.bf16.msra.mxu0 0
  %1299 = vmatpush.bf16.msra.mxu0 0
  %1300 = vmatpush.bf16.msra.mxu0 %v1288
  %1301 = vmatmul.bf16.gmra.mxu0 %v1291
  %v1302 = vpop.f32.mrf.mxu0
  %v1303 = vadd.f32 0.0, %v1302
  %v1304 = vpop.f32.mrf.mxu0
  %v1305 = vadd.f32 0.0, %v1304
  %1306 = vdwg.mxu0
  %v1309 = vunpack.c.l.b16 %v1187
  %v1310 = vunpack.c.l.b16 %v1188
  %v1311 = vpack.c.b16 %v1310, %v1309
  %v1314 = vunpack.c.l.b16 %v745
  %v1315 = vunpack.c.l.b16 %v746
  %v1316 = vpack.c.b16 %v1315, %v1314
  %v1319 = vsel %vm1002, %v1311, 0
  %1321 = vmatpush.bf16.msra.mxu0 0
  %1322 = vmatpush.bf16.msra.mxu0 0
  %1323 = vmatpush.bf16.msra.mxu0 0
  %1324 = vmatpush.bf16.msra.mxu0 0
  %1325 = vmatpush.bf16.msra.mxu0 0
  %1326 = vmatpush.bf16.msra.mxu0 0
  %1327 = vmatpush.bf16.msra.mxu0 0
  %1328 = vmatpush.bf16.msra.mxu0 %v1316
  %1329 = vmatmul.bf16.gmra.mxu0 %v1319
  %v1330 = vpop.f32.mrf.mxu0
  %v1331 = vadd.f32 0.0, %v1330
  %v1332 = vpop.f32.mrf.mxu0
  %v1333 = vadd.f32 0.0, %v1332
  %1334 = vdwg.mxu0
  %v1337 = vunpack.c.l.b16 %v1189
  %v1338 = vunpack.c.l.b16 %v1190
  %v1339 = vpack.c.b16 %v1338, %v1337
  %v1342 = vunpack.c.l.b16 %v747
  %v1343 = vunpack.c.l.b16 %v748
  %v1344 = vpack.c.b16 %v1343, %v1342
  %v1347 = vsel %vm1002, %v1339, 0
  %1349 = vmatpush.bf16.msra.mxu0 0
  %1350 = vmatpush.bf16.msra.mxu0 0
  %1351 = vmatpush.bf16.msra.mxu0 0
  %1352 = vmatpush.bf16.msra.mxu0 0
  %1353 = vmatpush.bf16.msra.mxu0 0
  %1354 = vmatpush.bf16.msra.mxu0 0
  %1355 = vmatpush.bf16.msra.mxu0 0
  %1356 = vmatpush.bf16.msra.mxu0 %v1344
  %1357 = vmatmul.bf16.gmra.mxu0 %v1347
  %v1358 = vpop.f32.mrf.mxu0
  %v1359 = vadd.f32 0.0, %v1358
  %v1360 = vpop.f32.mrf.mxu0
  %v1361 = vadd.f32 0.0, %v1360
  %1362 = vdwg.mxu0
  %v1365 = vunpack.c.l.b16 %v1191
  %v1366 = vunpack.c.l.b16 %v1192
  %v1367 = vpack.c.b16 %v1366, %v1365
  %v1370 = vunpack.c.l.b16 %v749
  %v1371 = vunpack.c.l.b16 %v750
  %v1372 = vpack.c.b16 %v1371, %v1370
  %v1375 = vsel %vm1002, %v1367, 0
  %1377 = vmatpush.bf16.msra.mxu0 0
  %1378 = vmatpush.bf16.msra.mxu0 0
  %1379 = vmatpush.bf16.msra.mxu0 0
  %1380 = vmatpush.bf16.msra.mxu0 0
  %1381 = vmatpush.bf16.msra.mxu0 0
  %1382 = vmatpush.bf16.msra.mxu0 0
  %1383 = vmatpush.bf16.msra.mxu0 0
  %1384 = vmatpush.bf16.msra.mxu0 %v1372
  %1385 = vmatmul.bf16.gmra.mxu0 %v1375
  %v1386 = vpop.f32.mrf.mxu0
  %v1387 = vadd.f32 0.0, %v1386
  %v1388 = vpop.f32.mrf.mxu0
  %v1389 = vadd.f32 0.0, %v1388
  %1390 = vdwg.mxu0
  %v1393 = vunpack.c.l.b16 %v1193
  %v1394 = vunpack.c.l.b16 %v1194
  %v1395 = vpack.c.b16 %v1394, %v1393
  %v1398 = vunpack.c.l.b16 %v751
  %v1399 = vunpack.c.l.b16 %v752
  %v1400 = vpack.c.b16 %v1399, %v1398
  %v1403 = vsel %vm1002, %v1395, 0
  %1405 = vmatpush.bf16.msra.mxu0 0
  %1406 = vmatpush.bf16.msra.mxu0 0
  %1407 = vmatpush.bf16.msra.mxu0 0
  %1408 = vmatpush.bf16.msra.mxu0 0
  %1409 = vmatpush.bf16.msra.mxu0 0
  %1410 = vmatpush.bf16.msra.mxu0 0
  %1411 = vmatpush.bf16.msra.mxu0 0
  %1412 = vmatpush.bf16.msra.mxu0 %v1400
  %1413 = vmatmul.bf16.gmra.mxu0 %v1403
  %v1414 = vpop.f32.mrf.mxu0
  %v1415 = vadd.f32 0.0, %v1414
  %v1416 = vpop.f32.mrf.mxu0
  %v1417 = vadd.f32 0.0, %v1416
  %1418 = vdwg.mxu0
  %1419 = vrot.lane.b32.xlu0 %v765, 120
  %v1420 = vpop.permute.xlu0 %1419
  %1421 = vrot.lane.b32.xlu0 %v770, 120
  %v1422 = vpop.permute.xlu0 %1421
  %v1424 = vsel %vm771, %v1420, 0
  %v1427 = vsel %vm771, %v1422, 0
  %1429 = vmatpush.bf16.xpose.msra.mxu0 0
  %1430 = vmatpush.bf16.xpose.msra.mxu0 0
  %1431 = vmatpush.bf16.xpose.msra.mxu0 0
  %1432 = vmatpush.bf16.xpose.msra.mxu0 0
  %1433 = vmatpush.bf16.xpose.msra.mxu0 0
  %1434 = vmatpush.bf16.xpose.msra.mxu0 0
  %1435 = vmatpush.bf16.xpose.msra.mxu0 0
  %1436 = vmatpush.bf16.xpose.msra.mxu0 %v1427
  %1437 = vmatmul.bf16.gmra.mxu0 %v1424
  %v1438 = vpop.f32.mrf.mxu0
  %v1439 = vadd.f32 %v755, %v1438
  %v1440 = vpop.f32.mrf.mxu0
  %v1441 = vadd.f32 %v756, %v1440
  %1442 = vdwg.mxu0
  %1443 = vrot.lane.b32.xlu0 %v796, 120
  %v1444 = vpop.permute.xlu0 %1443
  %1445 = vrot.lane.b32.xlu0 %v801, 120
  %v1446 = vpop.permute.xlu0 %1445
  %v1448 = vsel %vm771, %v1444, 0
  %v1451 = vsel %vm771, %v1446, 0
  %1453 = vmatpush.bf16.xpose.msra.mxu0 0
  %1454 = vmatpush.bf16.xpose.msra.mxu0 0
  %1455 = vmatpush.bf16.xpose.msra.mxu0 0
  %1456 = vmatpush.bf16.xpose.msra.mxu0 0
  %1457 = vmatpush.bf16.xpose.msra.mxu0 0
  %1458 = vmatpush.bf16.xpose.msra.mxu0 0
  %1459 = vmatpush.bf16.xpose.msra.mxu0 0
  %1460 = vmatpush.bf16.xpose.msra.mxu0 %v1451
  %1461 = vmatmul.bf16.gmra.mxu0 %v1448
  %v1462 = vpop.f32.mrf.mxu0
  %v1463 = vadd.f32 %v755, %v1462
  %v1464 = vpop.f32.mrf.mxu0
  %v1465 = vadd.f32 %v756, %v1464
  %1466 = vdwg.mxu0
  %1467 = vrot.lane.b32.xlu0 %v826, 120
  %v1468 = vpop.permute.xlu0 %1467
  %1469 = vrot.lane.b32.xlu0 %v831, 120
  %v1470 = vpop.permute.xlu0 %1469
  %v1472 = vsel %vm771, %v1468, 0
  %v1475 = vsel %vm771, %v1470, 0
  %1477 = vmatpush.bf16.xpose.msra.mxu0 0
  %1478 = vmatpush.bf16.xpose.msra.mxu0 0
  %1479 = vmatpush.bf16.xpose.msra.mxu0 0
  %1480 = vmatpush.bf16.xpose.msra.mxu0 0
  %1481 = vmatpush.bf16.xpose.msra.mxu0 0
  %1482 = vmatpush.bf16.xpose.msra.mxu0 0
  %1483 = vmatpush.bf16.xpose.msra.mxu0 0
  %1484 = vmatpush.bf16.xpose.msra.mxu0 %v1475
  %1485 = vmatmul.bf16.gmra.mxu0 %v1472
  %v1486 = vpop.f32.mrf.mxu0
  %v1487 = vadd.f32 %v755, %v1486
  %v1488 = vpop.f32.mrf.mxu0
  %v1489 = vadd.f32 %v756, %v1488
  %1490 = vdwg.mxu0
  %1491 = vrot.lane.b32.xlu0 %v856, 120
  %v1492 = vpop.permute.xlu0 %1491
  %1493 = vrot.lane.b32.xlu0 %v861, 120
  %v1494 = vpop.permute.xlu0 %1493
  %v1496 = vsel %vm771, %v1492, 0
  %v1499 = vsel %vm771, %v1494, 0
  %1501 = vmatpush.bf16.xpose.msra.mxu0 0
  %1502 = vmatpush.bf16.xpose.msra.mxu0 0
  %1503 = vmatpush.bf16.xpose.msra.mxu0 0
  %1504 = vmatpush.bf16.xpose.msra.mxu0 0
  %1505 = vmatpush.bf16.xpose.msra.mxu0 0
  %1506 = vmatpush.bf16.xpose.msra.mxu0 0
  %1507 = vmatpush.bf16.xpose.msra.mxu0 0
  %1508 = vmatpush.bf16.xpose.msra.mxu0 %v1499
  %1509 = vmatmul.bf16.gmra.mxu0 %v1496
  %v1510 = vpop.f32.mrf.mxu0
  %v1511 = vadd.f32 %v755, %v1510
  %v1512 = vpop.f32.mrf.mxu0
  %v1513 = vadd.f32 %v756, %v1512
  %1514 = vdwg.mxu0
  %1515 = vrot.lane.b32.xlu0 %v886, 120
  %v1516 = vpop.permute.xlu0 %1515
  %1517 = vrot.lane.b32.xlu0 %v891, 120
  %v1518 = vpop.permute.xlu0 %1517
  %v1520 = vsel %vm771, %v1516, 0
  %v1523 = vsel %vm771, %v1518, 0
  %1525 = vmatpush.bf16.xpose.msra.mxu0 0
  %1526 = vmatpush.bf16.xpose.msra.mxu0 0
  %1527 = vmatpush.bf16.xpose.msra.mxu0 0
  %1528 = vmatpush.bf16.xpose.msra.mxu0 0
  %1529 = vmatpush.bf16.xpose.msra.mxu0 0
  %1530 = vmatpush.bf16.xpose.msra.mxu0 0
  %1531 = vmatpush.bf16.xpose.msra.mxu0 0
  %1532 = vmatpush.bf16.xpose.msra.mxu0 %v1523
  %1533 = vmatmul.bf16.gmra.mxu0 %v1520
  %v1534 = vpop.f32.mrf.mxu0
  %v1535 = vadd.f32 %v755, %v1534
  %v1536 = vpop.f32.mrf.mxu0
  %v1537 = vadd.f32 %v756, %v1536
  %1538 = vdwg.mxu0
  %1539 = vrot.lane.b32.xlu0 %v916, 120
  %v1540 = vpop.permute.xlu0 %1539
  %1541 = vrot.lane.b32.xlu0 %v921, 120
  %v1542 = vpop.permute.xlu0 %1541
  %v1544 = vsel %vm771, %v1540, 0
  %v1547 = vsel %vm771, %v1542, 0
  %1549 = vmatpush.bf16.xpose.msra.mxu0 0
  %1550 = vmatpush.bf16.xpose.msra.mxu0 0
  %1551 = vmatpush.bf16.xpose.msra.mxu0 0
  %1552 = vmatpush.bf16.xpose.msra.mxu0 0
  %1553 = vmatpush.bf16.xpose.msra.mxu0 0
  %1554 = vmatpush.bf16.xpose.msra.mxu0 0
  %1555 = vmatpush.bf16.xpose.msra.mxu0 0
  %1556 = vmatpush.bf16.xpose.msra.mxu0 %v1547
  %1557 = vmatmul.bf16.gmra.mxu0 %v1544
  %v1558 = vpop.f32.mrf.mxu0
  %v1559 = vadd.f32 %v755, %v1558
  %v1560 = vpop.f32.mrf.mxu0
  %v1561 = vadd.f32 %v756, %v1560
  %1562 = vdwg.mxu0
  %1563 = vrot.lane.b32.xlu0 %v946, 120
  %v1564 = vpop.permute.xlu0 %1563
  %1565 = vrot.lane.b32.xlu0 %v951, 120
  %v1566 = vpop.permute.xlu0 %1565
  %v1568 = vsel %vm771, %v1564, 0
  %v1571 = vsel %vm771, %v1566, 0
  %1573 = vmatpush.bf16.xpose.msra.mxu0 0
  %1574 = vmatpush.bf16.xpose.msra.mxu0 0
  %1575 = vmatpush.bf16.xpose.msra.mxu0 0
  %1576 = vmatpush.bf16.xpose.msra.mxu0 0
  %1577 = vmatpush.bf16.xpose.msra.mxu0 0
  %1578 = vmatpush.bf16.xpose.msra.mxu0 0
  %1579 = vmatpush.bf16.xpose.msra.mxu0 0
  %1580 = vmatpush.bf16.xpose.msra.mxu0 %v1571
  %1581 = vmatmul.bf16.gmra.mxu0 %v1568
  %v1582 = vpop.f32.mrf.mxu0
  %v1583 = vadd.f32 %v755, %v1582
  %v1584 = vpop.f32.mrf.mxu0
  %v1585 = vadd.f32 %v756, %v1584
  %1586 = vdwg.mxu0
  %1587 = vrot.lane.b32.xlu0 %v976, 120
  %v1588 = vpop.permute.xlu0 %1587
  %1589 = vrot.lane.b32.xlu0 %v981, 120
  %v1590 = vpop.permute.xlu0 %1589
  %v1592 = vsel %vm771, %v1588, 0
  %v1595 = vsel %vm771, %v1590, 0
  %1597 = vmatpush.bf16.xpose.msra.mxu0 0
  %1598 = vmatpush.bf16.xpose.msra.mxu0 0
  %1599 = vmatpush.bf16.xpose.msra.mxu0 0
  %1600 = vmatpush.bf16.xpose.msra.mxu0 0
  %1601 = vmatpush.bf16.xpose.msra.mxu0 0
  %1602 = vmatpush.bf16.xpose.msra.mxu0 0
  %1603 = vmatpush.bf16.xpose.msra.mxu0 0
  %1604 = vmatpush.bf16.xpose.msra.mxu0 %v1595
  %1605 = vmatmul.bf16.gmra.mxu0 %v1592
  %v1606 = vpop.f32.mrf.mxu0
  %v1607 = vadd.f32 %v755, %v1606
  %v1608 = vpop.f32.mrf.mxu0
  %v1609 = vadd.f32 %v756, %v1608
  %1610 = vdwg.mxu0
  %v1611 = vsel %vm1002, %v1439, -inf
  %1612 = vmax.xlane.f32.xlu0 %v1611
  %v1613 = vpop.xlane.xlu0 %1612
  %v1614 = vsel %vm1002, %v1441, -inf
  %1615 = vmax.xlane.f32.xlu0 %v1614
  %v1616 = vpop.xlane.xlu0 %1615
  %v1617 = vsel %vm1002, %v1463, -inf
  %1618 = vmax.xlane.f32.xlu0 %v1617
  %v1619 = vpop.xlane.xlu0 %1618
  %v1620 = vsel %vm1002, %v1465, -inf
  %1621 = vmax.xlane.f32.xlu0 %v1620
  %v1622 = vpop.xlane.xlu0 %1621
  %v1623 = vsel %vm1002, %v1487, -inf
  %1624 = vmax.xlane.f32.xlu0 %v1623
  %v1625 = vpop.xlane.xlu0 %1624
  %v1626 = vsel %vm1002, %v1489, -inf
  %1627 = vmax.xlane.f32.xlu0 %v1626
  %v1628 = vpop.xlane.xlu0 %1627
  %v1629 = vsel %vm1002, %v1511, -inf
  %1630 = vmax.xlane.f32.xlu0 %v1629
  %v1631 = vpop.xlane.xlu0 %1630
  %v1632 = vsel %vm1002, %v1513, -inf
  %1633 = vmax.xlane.f32.xlu0 %v1632
  %v1634 = vpop.xlane.xlu0 %1633
  %v1635 = vsel %vm1002, %v1535, -inf
  %1636 = vmax.xlane.f32.xlu0 %v1635
  %v1637 = vpop.xlane.xlu0 %1636
  %v1638 = vsel %vm1002, %v1537, -inf
  %1639 = vmax.xlane.f32.xlu0 %v1638
  %v1640 = vpop.xlane.xlu0 %1639
  %v1641 = vsel %vm1002, %v1559, -inf
  %1642 = vmax.xlane.f32.xlu0 %v1641
  %v1643 = vpop.xlane.xlu0 %1642
  %v1644 = vsel %vm1002, %v1561, -inf
  %1645 = vmax.xlane.f32.xlu0 %v1644
  %v1646 = vpop.xlane.xlu0 %1645
  %v1647 = vsel %vm1002, %v1583, -inf
  %1648 = vmax.xlane.f32.xlu0 %v1647
  %v1649 = vpop.xlane.xlu0 %1648
  %v1650 = vsel %vm1002, %v1585, -inf
  %1651 = vmax.xlane.f32.xlu0 %v1650
  %v1652 = vpop.xlane.xlu0 %1651
  %v1653 = vsel %vm1002, %v1607, -inf
  %1654 = vmax.xlane.f32.xlu0 %v1653
  %v1655 = vpop.xlane.xlu0 %1654
  %v1656 = vsel %vm1002, %v1609, -inf
  %1657 = vmax.xlane.f32.xlu0 %v1656
  %v1658 = vpop.xlane.xlu0 %1657
  %v1659 = vsub.f32 %v1439, %v1613
  %v1660 = vsub.f32 %v1441, %v1616
  %v1661 = vsub.f32 %v1463, %v1619
  %v1662 = vsub.f32 %v1465, %v1622
  %v1663 = vsub.f32 %v1487, %v1625
  %v1664 = vsub.f32 %v1489, %v1628
  %v1665 = vsub.f32 %v1511, %v1631
  %v1666 = vsub.f32 %v1513, %v1634
  %v1667 = vsub.f32 %v1535, %v1637
  %v1668 = vsub.f32 %v1537, %v1640
  %v1669 = vsub.f32 %v1559, %v1643
  %v1670 = vsub.f32 %v1561, %v1646
  %v1671 = vsub.f32 %v1583, %v1649
  %v1672 = vsub.f32 %v1585, %v1652
  %v1673 = vsub.f32 %v1607, %v1655
  %v1674 = vsub.f32 %v1609, %v1658
  %v1675 = vmul.f32 %v1659, 1.442695
  %v1676 = vpow.pop %v1675
  %v1677 = vmul.f32 %v1660, 1.442695
  %v1678 = vpow.pop %v1677
  %v1679 = vmul.f32 %v1661, 1.442695
  %v1680 = vpow.pop %v1679
  %v1681 = vmul.f32 %v1662, 1.442695
  %v1682 = vpow.pop %v1681
  %v1683 = vmul.f32 %v1663, 1.442695
  %v1684 = vpow.pop %v1683
  %v1685 = vmul.f32 %v1664, 1.442695
  %v1686 = vpow.pop %v1685
  %v1687 = vmul.f32 %v1665, 1.442695
  %v1688 = vpow.pop %v1687
  %v1689 = vmul.f32 %v1666, 1.442695
  %v1690 = vpow.pop %v1689
  %v1691 = vmul.f32 %v1667, 1.442695
  %v1692 = vpow.pop %v1691
  %v1693 = vmul.f32 %v1668, 1.442695
  %v1694 = vpow.pop %v1693
  %v1695 = vmul.f32 %v1669, 1.442695
  %v1696 = vpow.pop %v1695
  %v1697 = vmul.f32 %v1670, 1.442695
  %v1698 = vpow.pop %v1697
  %v1699 = vmul.f32 %v1671, 1.442695
  %v1700 = vpow.pop %v1699
  %v1701 = vmul.f32 %v1672, 1.442695
  %v1702 = vpow.pop %v1701
  %v1703 = vmul.f32 %v1673, 1.442695
  %v1704 = vpow.pop %v1703
  %v1705 = vmul.f32 %v1674, 1.442695
  %v1706 = vpow.pop %v1705
  %v1707 = vsel %vm1002, %v1676, 0.0
  %1708 = vadd.xlane.f32.xlu0 %v1707
  %v1709 = vpop.xlane.xlu0 %1708
  %v1710 = vsel %vm1002, %v1678, 0.0
  %1711 = vadd.xlane.f32.xlu0 %v1710
  %v1712 = vpop.xlane.xlu0 %1711
  %v1713 = vsel %vm1002, %v1680, 0.0
  %1714 = vadd.xlane.f32.xlu0 %v1713
  %v1715 = vpop.xlane.xlu0 %1714
  %v1716 = vsel %vm1002, %v1682, 0.0
  %1717 = vadd.xlane.f32.xlu0 %v1716
  %v1718 = vpop.xlane.xlu0 %1717
  %v1719 = vsel %vm1002, %v1684, 0.0
  %1720 = vadd.xlane.f32.xlu0 %v1719
  %v1721 = vpop.xlane.xlu0 %1720
  %v1722 = vsel %vm1002, %v1686, 0.0
  %1723 = vadd.xlane.f32.xlu0 %v1722
  %v1724 = vpop.xlane.xlu0 %1723
  %v1725 = vsel %vm1002, %v1688, 0.0
  %1726 = vadd.xlane.f32.xlu0 %v1725
  %v1727 = vpop.xlane.xlu0 %1726
  %v1728 = vsel %vm1002, %v1690, 0.0
  %1729 = vadd.xlane.f32.xlu0 %v1728
  %v1730 = vpop.xlane.xlu0 %1729
  %v1731 = vsel %vm1002, %v1692, 0.0
  %1732 = vadd.xlane.f32.xlu0 %v1731
  %v1733 = vpop.xlane.xlu0 %1732
  %v1734 = vsel %vm1002, %v1694, 0.0
  %1735 = vadd.xlane.f32.xlu0 %v1734
  %v1736 = vpop.xlane.xlu0 %1735
  %v1737 = vsel %vm1002, %v1696, 0.0
  %1738 = vadd.xlane.f32.xlu0 %v1737
  %v1739 = vpop.xlane.xlu0 %1738
  %v1740 = vsel %vm1002, %v1698, 0.0
  %1741 = vadd.xlane.f32.xlu0 %v1740
  %v1742 = vpop.xlane.xlu0 %1741
  %v1743 = vsel %vm1002, %v1700, 0.0
  %1744 = vadd.xlane.f32.xlu0 %v1743
  %v1745 = vpop.xlane.xlu0 %1744
  %v1746 = vsel %vm1002, %v1702, 0.0
  %1747 = vadd.xlane.f32.xlu0 %v1746
  %v1748 = vpop.xlane.xlu0 %1747
  %v1749 = vsel %vm1002, %v1704, 0.0
  %1750 = vadd.xlane.f32.xlu0 %v1749
  %v1751 = vpop.xlane.xlu0 %1750
  %v1752 = vsel %vm1002, %v1706, 0.0
  %1753 = vadd.xlane.f32.xlu0 %v1752
  %v1754 = vpop.xlane.xlu0 %1753
  %v1755 = vrcp.pop %v1709
  %v1756 = vrcp.pop %v1712
  %v1757 = vrcp.pop %v1715
  %v1758 = vrcp.pop %v1718
  %v1759 = vrcp.pop %v1721
  %v1760 = vrcp.pop %v1724
  %v1761 = vrcp.pop %v1727
  %v1762 = vrcp.pop %v1730
  %v1763 = vrcp.pop %v1733
  %v1764 = vrcp.pop %v1736
  %v1765 = vrcp.pop %v1739
  %v1766 = vrcp.pop %v1742
  %v1767 = vrcp.pop %v1745
  %v1768 = vrcp.pop %v1748
  %v1769 = vrcp.pop %v1751
  %v1770 = vrcp.pop %v1754
  %v1771 = vmul.f32 %v1676, %v1755
  %v1772 = vmul.f32 %v1678, %v1756
  %v1773 = vmul.f32 %v1680, %v1757
  %v1774 = vmul.f32 %v1682, %v1758
  %v1775 = vmul.f32 %v1684, %v1759
  %v1776 = vmul.f32 %v1686, %v1760
  %v1777 = vmul.f32 %v1688, %v1761
  %v1778 = vmul.f32 %v1690, %v1762
  %v1779 = vmul.f32 %v1692, %v1763
  %v1780 = vmul.f32 %v1694, %v1764
  %v1781 = vmul.f32 %v1696, %v1765
  %v1782 = vmul.f32 %v1698, %v1766
  %v1783 = vmul.f32 %v1700, %v1767
  %v1784 = vmul.f32 %v1702, %v1768
  %v1785 = vmul.f32 %v1704, %v1769
  %v1786 = vmul.f32 %v1706, %v1770
  %v1787 = vpack.c.bf16 %v1771, %v1771
  %v1788 = vpack.c.bf16 %v1772, %v1772
  %v1789 = vpack.c.bf16 %v1773, %v1773
  %v1790 = vpack.c.bf16 %v1774, %v1774
  %v1791 = vpack.c.bf16 %v1775, %v1775
  %v1792 = vpack.c.bf16 %v1776, %v1776
  %v1793 = vpack.c.bf16 %v1777, %v1777
  %v1794 = vpack.c.bf16 %v1778, %v1778
  %v1795 = vpack.c.bf16 %v1779, %v1779
  %v1796 = vpack.c.bf16 %v1780, %v1780
  %v1797 = vpack.c.bf16 %v1781, %v1781
  %v1798 = vpack.c.bf16 %v1782, %v1782
  %v1799 = vpack.c.bf16 %v1783, %v1783
  %v1800 = vpack.c.bf16 %v1784, %v1784
  %v1801 = vpack.c.bf16 %v1785, %v1785
  %v1802 = vpack.c.bf16 %v1786, %v1786
  %v1805 = vunpack.c.l.b16 %v1787
  %v1806 = vunpack.c.l.b16 %v1788
  %v1807 = vpack.c.b16 %v1806, %v1805
  %1808 = vrot.lane.b32.xlu0 %v1204, 120
  %v1809 = vpop.permute.xlu0 %1808
  %v1812 = vsel %vm1002, %v1807, 0
  %1814 = vmatpush.bf16.msra.mxu0 0
  %1815 = vmatpush.bf16.msra.mxu0 0
  %1816 = vmatpush.bf16.msra.mxu0 0
  %1817 = vmatpush.bf16.msra.mxu0 0
  %1818 = vmatpush.bf16.msra.mxu0 0
  %1819 = vmatpush.bf16.msra.mxu0 0
  %1820 = vmatpush.bf16.msra.mxu0 0
  %1821 = vmatpush.bf16.msra.mxu0 %v1809
  %1822 = vmatmul.bf16.gmra.mxu0 %v1812
  %v1823 = vpop.f32.mrf.mxu0
  %v1824 = vadd.f32 0.0, %v1823
  %v1825 = vpop.f32.mrf.mxu0
  %v1826 = vadd.f32 0.0, %v1825
  %1827 = vdwg.mxu0
  %v1830 = vunpack.c.l.b16 %v1789
  %v1831 = vunpack.c.l.b16 %v1790
  %v1832 = vpack.c.b16 %v1831, %v1830
  %1833 = vrot.lane.b32.xlu0 %v1232, 120
  %v1834 = vpop.permute.xlu0 %1833
  %v1837 = vsel %vm1002, %v1832, 0
  %1839 = vmatpush.bf16.msra.mxu0 0
  %1840 = vmatpush.bf16.msra.mxu0 0
  %1841 = vmatpush.bf16.msra.mxu0 0
  %1842 = vmatpush.bf16.msra.mxu0 0
  %1843 = vmatpush.bf16.msra.mxu0 0
  %1844 = vmatpush.bf16.msra.mxu0 0
  %1845 = vmatpush.bf16.msra.mxu0 0
  %1846 = vmatpush.bf16.msra.mxu0 %v1834
  %1847 = vmatmul.bf16.gmra.mxu0 %v1837
  %v1848 = vpop.f32.mrf.mxu0
  %v1849 = vadd.f32 0.0, %v1848
  %v1850 = vpop.f32.mrf.mxu0
  %v1851 = vadd.f32 0.0, %v1850
  %1852 = vdwg.mxu0
  %v1855 = vunpack.c.l.b16 %v1791
  %v1856 = vunpack.c.l.b16 %v1792
  %v1857 = vpack.c.b16 %v1856, %v1855
  %1858 = vrot.lane.b32.xlu0 %v1260, 120
  %v1859 = vpop.permute.xlu0 %1858
  %v1862 = vsel %vm1002, %v1857, 0
  %1864 = vmatpush.bf16.msra.mxu0 0
  %1865 = vmatpush.bf16.msra.mxu0 0
  %1866 = vmatpush.bf16.msra.mxu0 0
  %1867 = vmatpush.bf16.msra.mxu0 0
  %1868 = vmatpush.bf16.msra.mxu0 0
  %1869 = vmatpush.bf16.msra.mxu0 0
  %1870 = vmatpush.bf16.msra.mxu0 0
  %1871 = vmatpush.bf16.msra.mxu0 %v1859
  %1872 = vmatmul.bf16.gmra.mxu0 %v1862
  %v1873 = vpop.f32.mrf.mxu0
  %v1874 = vadd.f32 0.0, %v1873
  %v1875 = vpop.f32.mrf.mxu0
  %v1876 = vadd.f32 0.0, %v1875
  %1877 = vdwg.mxu0
  %v1880 = vunpack.c.l.b16 %v1793
  %v1881 = vunpack.c.l.b16 %v1794
  %v1882 = vpack.c.b16 %v1881, %v1880
  %1883 = vrot.lane.b32.xlu0 %v1288, 120
  %v1884 = vpop.permute.xlu0 %1883
  %v1887 = vsel %vm1002, %v1882, 0
  %1889 = vmatpush.bf16.msra.mxu0 0
  %1890 = vmatpush.bf16.msra.mxu0 0
  %1891 = vmatpush.bf16.msra.mxu0 0
  %1892 = vmatpush.bf16.msra.mxu0 0
  %1893 = vmatpush.bf16.msra.mxu0 0
  %1894 = vmatpush.bf16.msra.mxu0 0
  %1895 = vmatpush.bf16.msra.mxu0 0
  %1896 = vmatpush.bf16.msra.mxu0 %v1884
  %1897 = vmatmul.bf16.gmra.mxu0 %v1887
  %v1898 = vpop.f32.mrf.mxu0
  %v1899 = vadd.f32 0.0, %v1898
  %v1900 = vpop.f32.mrf.mxu0
  %v1901 = vadd.f32 0.0, %v1900
  %1902 = vdwg.mxu0
  %v1905 = vunpack.c.l.b16 %v1795
  %v1906 = vunpack.c.l.b16 %v1796
  %v1907 = vpack.c.b16 %v1906, %v1905
  %1908 = vrot.lane.b32.xlu0 %v1316, 120
  %v1909 = vpop.permute.xlu0 %1908
  %v1912 = vsel %vm1002, %v1907, 0
  %1914 = vmatpush.bf16.msra.mxu0 0
  %1915 = vmatpush.bf16.msra.mxu0 0
  %1916 = vmatpush.bf16.msra.mxu0 0
  %1917 = vmatpush.bf16.msra.mxu0 0
  %1918 = vmatpush.bf16.msra.mxu0 0
  %1919 = vmatpush.bf16.msra.mxu0 0
  %1920 = vmatpush.bf16.msra.mxu0 0
  %1921 = vmatpush.bf16.msra.mxu0 %v1909
  %1922 = vmatmul.bf16.gmra.mxu0 %v1912
  %v1923 = vpop.f32.mrf.mxu0
  %v1924 = vadd.f32 0.0, %v1923
  %v1925 = vpop.f32.mrf.mxu0
  %v1926 = vadd.f32 0.0, %v1925
  %1927 = vdwg.mxu0
  %v1930 = vunpack.c.l.b16 %v1797
  %v1931 = vunpack.c.l.b16 %v1798
  %v1932 = vpack.c.b16 %v1931, %v1930
  %1933 = vrot.lane.b32.xlu0 %v1344, 120
  %v1934 = vpop.permute.xlu0 %1933
  %v1937 = vsel %vm1002, %v1932, 0
  %1939 = vmatpush.bf16.msra.mxu0 0
  %1940 = vmatpush.bf16.msra.mxu0 0
  %1941 = vmatpush.bf16.msra.mxu0 0
  %1942 = vmatpush.bf16.msra.mxu0 0
  %1943 = vmatpush.bf16.msra.mxu0 0
  %1944 = vmatpush.bf16.msra.mxu0 0
  %1945 = vmatpush.bf16.msra.mxu0 0
  %1946 = vmatpush.bf16.msra.mxu0 %v1934
  %1947 = vmatmul.bf16.gmra.mxu0 %v1937
  %v1948 = vpop.f32.mrf.mxu0
  %v1949 = vadd.f32 0.0, %v1948
  %v1950 = vpop.f32.mrf.mxu0
  %v1951 = vadd.f32 0.0, %v1950
  %1952 = vdwg.mxu0
  %v1955 = vunpack.c.l.b16 %v1799
  %v1956 = vunpack.c.l.b16 %v1800
  %v1957 = vpack.c.b16 %v1956, %v1955
  %1958 = vrot.lane.b32.xlu0 %v1372, 120
  %v1959 = vpop.permute.xlu0 %1958
  %v1962 = vsel %vm1002, %v1957, 0
  %1964 = vmatpush.bf16.msra.mxu0 0
  %1965 = vmatpush.bf16.msra.mxu0 0
  %1966 = vmatpush.bf16.msra.mxu0 0
  %1967 = vmatpush.bf16.msra.mxu0 0
  %1968 = vmatpush.bf16.msra.mxu0 0
  %1969 = vmatpush.bf16.msra.mxu0 0
  %1970 = vmatpush.bf16.msra.mxu0 0
  %1971 = vmatpush.bf16.msra.mxu0 %v1959
  %1972 = vmatmul.bf16.gmra.mxu0 %v1962
  %v1973 = vpop.f32.mrf.mxu0
  %v1974 = vadd.f32 0.0, %v1973
  %v1975 = vpop.f32.mrf.mxu0
  %v1976 = vadd.f32 0.0, %v1975
  %1977 = vdwg.mxu0
  %v1980 = vunpack.c.l.b16 %v1801
  %v1981 = vunpack.c.l.b16 %v1802
  %v1982 = vpack.c.b16 %v1981, %v1980
  %1983 = vrot.lane.b32.xlu0 %v1400, 120
  %v1984 = vpop.permute.xlu0 %1983
  %v1987 = vsel %vm1002, %v1982, 0
  %1989 = vmatpush.bf16.msra.mxu0 0
  %1990 = vmatpush.bf16.msra.mxu0 0
  %1991 = vmatpush.bf16.msra.mxu0 0
  %1992 = vmatpush.bf16.msra.mxu0 0
  %1993 = vmatpush.bf16.msra.mxu0 0
  %1994 = vmatpush.bf16.msra.mxu0 0
  %1995 = vmatpush.bf16.msra.mxu0 0
  %1996 = vmatpush.bf16.msra.mxu0 %v1984
  %1997 = vmatmul.bf16.gmra.mxu0 %v1987
  %v1998 = vpop.f32.mrf.mxu0
  %v1999 = vadd.f32 0.0, %v1998
  %v2000 = vpop.f32.mrf.mxu0
  %v2001 = vadd.f32 0.0, %v2000
  %2002 = vdwg.mxu0
  %2003 = vrot.lane.b32.xlu0 %v765, 112
  %v2004 = vpop.permute.xlu0 %2003
  %2005 = vrot.lane.b32.xlu0 %v770, 112
  %v2006 = vpop.permute.xlu0 %2005
  %v2008 = vsel %vm771, %v2004, 0
  %v2011 = vsel %vm771, %v2006, 0
  %2013 = vmatpush.bf16.xpose.msra.mxu0 0
  %2014 = vmatpush.bf16.xpose.msra.mxu0 0
  %2015 = vmatpush.bf16.xpose.msra.mxu0 0
  %2016 = vmatpush.bf16.xpose.msra.mxu0 0
  %2017 = vmatpush.bf16.xpose.msra.mxu0 0
  %2018 = vmatpush.bf16.xpose.msra.mxu0 0
  %2019 = vmatpush.bf16.xpose.msra.mxu0 0
  %2020 = vmatpush.bf16.xpose.msra.mxu0 %v2011
  %2021 = vmatmul.bf16.gmra.mxu0 %v2008
  %v2022 = vpop.f32.mrf.mxu0
  %v2023 = vadd.f32 %v757, %v2022
  %v2024 = vpop.f32.mrf.mxu0
  %v2025 = vadd.f32 %v758, %v2024
  %2026 = vdwg.mxu0
  %2027 = vrot.lane.b32.xlu0 %v796, 112
  %v2028 = vpop.permute.xlu0 %2027
  %2029 = vrot.lane.b32.xlu0 %v801, 112
  %v2030 = vpop.permute.xlu0 %2029
  %v2032 = vsel %vm771, %v2028, 0
  %v2035 = vsel %vm771, %v2030, 0
  %2037 = vmatpush.bf16.xpose.msra.mxu0 0
  %2038 = vmatpush.bf16.xpose.msra.mxu0 0
  %2039 = vmatpush.bf16.xpose.msra.mxu0 0
  %2040 = vmatpush.bf16.xpose.msra.mxu0 0
  %2041 = vmatpush.bf16.xpose.msra.mxu0 0
  %2042 = vmatpush.bf16.xpose.msra.mxu0 0
  %2043 = vmatpush.bf16.xpose.msra.mxu0 0
  %2044 = vmatpush.bf16.xpose.msra.mxu0 %v2035
  %2045 = vmatmul.bf16.gmra.mxu0 %v2032
  %v2046 = vpop.f32.mrf.mxu0
  %v2047 = vadd.f32 %v757, %v2046
  %v2048 = vpop.f32.mrf.mxu0
  %v2049 = vadd.f32 %v758, %v2048
  %2050 = vdwg.mxu0
  %2051 = vrot.lane.b32.xlu0 %v826, 112
  %v2052 = vpop.permute.xlu0 %2051
  %2053 = vrot.lane.b32.xlu0 %v831, 112
  %v2054 = vpop.permute.xlu0 %2053
  %v2056 = vsel %vm771, %v2052, 0
  %v2059 = vsel %vm771, %v2054, 0
  %2061 = vmatpush.bf16.xpose.msra.mxu0 0
  %2062 = vmatpush.bf16.xpose.msra.mxu0 0
  %2063 = vmatpush.bf16.xpose.msra.mxu0 0
  %2064 = vmatpush.bf16.xpose.msra.mxu0 0
  %2065 = vmatpush.bf16.xpose.msra.mxu0 0
  %2066 = vmatpush.bf16.xpose.msra.mxu0 0
  %2067 = vmatpush.bf16.xpose.msra.mxu0 0
  %2068 = vmatpush.bf16.xpose.msra.mxu0 %v2059
  %2069 = vmatmul.bf16.gmra.mxu0 %v2056
  %v2070 = vpop.f32.mrf.mxu0
  %v2071 = vadd.f32 %v757, %v2070
  %v2072 = vpop.f32.mrf.mxu0
  %v2073 = vadd.f32 %v758, %v2072
  %2074 = vdwg.mxu0
  %2075 = vrot.lane.b32.xlu0 %v856, 112
  %v2076 = vpop.permute.xlu0 %2075
  %2077 = vrot.lane.b32.xlu0 %v861, 112
  %v2078 = vpop.permute.xlu0 %2077
  %v2080 = vsel %vm771, %v2076, 0
  %v2083 = vsel %vm771, %v2078, 0
  %2085 = vmatpush.bf16.xpose.msra.mxu0 0
  %2086 = vmatpush.bf16.xpose.msra.mxu0 0
  %2087 = vmatpush.bf16.xpose.msra.mxu0 0
  %2088 = vmatpush.bf16.xpose.msra.mxu0 0
  %2089 = vmatpush.bf16.xpose.msra.mxu0 0
  %2090 = vmatpush.bf16.xpose.msra.mxu0 0
  %2091 = vmatpush.bf16.xpose.msra.mxu0 0
  %2092 = vmatpush.bf16.xpose.msra.mxu0 %v2083
  %2093 = vmatmul.bf16.gmra.mxu0 %v2080
  %v2094 = vpop.f32.mrf.mxu0
  %v2095 = vadd.f32 %v757, %v2094
  %v2096 = vpop.f32.mrf.mxu0
  %v2097 = vadd.f32 %v758, %v2096
  %2098 = vdwg.mxu0
  %2099 = vrot.lane.b32.xlu0 %v886, 112
  %v2100 = vpop.permute.xlu0 %2099
  %2101 = vrot.lane.b32.xlu0 %v891, 112
  %v2102 = vpop.permute.xlu0 %2101
  %v2104 = vsel %vm771, %v2100, 0
  %v2107 = vsel %vm771, %v2102, 0
  %2109 = vmatpush.bf16.xpose.msra.mxu0 0
  %2110 = vmatpush.bf16.xpose.msra.mxu0 0
  %2111 = vmatpush.bf16.xpose.msra.mxu0 0
  %2112 = vmatpush.bf16.xpose.msra.mxu0 0
  %2113 = vmatpush.bf16.xpose.msra.mxu0 0
  %2114 = vmatpush.bf16.xpose.msra.mxu0 0
  %2115 = vmatpush.bf16.xpose.msra.mxu0 0
  %2116 = vmatpush.bf16.xpose.msra.mxu0 %v2107
  %2117 = vmatmul.bf16.gmra.mxu0 %v2104
  %v2118 = vpop.f32.mrf.mxu0
  %v2119 = vadd.f32 %v757, %v2118
  %v2120 = vpop.f32.mrf.mxu0
  %v2121 = vadd.f32 %v758, %v2120
  %2122 = vdwg.mxu0
  %2123 = vrot.lane.b32.xlu0 %v916, 112
  %v2124 = vpop.permute.xlu0 %2123
  %2125 = vrot.lane.b32.xlu0 %v921, 112
  %v2126 = vpop.permute.xlu0 %2125
  %v2128 = vsel %vm771, %v2124, 0
  %v2131 = vsel %vm771, %v2126, 0
  %2133 = vmatpush.bf16.xpose.msra.mxu0 0
  %2134 = vmatpush.bf16.xpose.msra.mxu0 0
  %2135 = vmatpush.bf16.xpose.msra.mxu0 0
  %2136 = vmatpush.bf16.xpose.msra.mxu0 0
  %2137 = vmatpush.bf16.xpose.msra.mxu0 0
  %2138 = vmatpush.bf16.xpose.msra.mxu0 0
  %2139 = vmatpush.bf16.xpose.msra.mxu0 0
  %2140 = vmatpush.bf16.xpose.msra.mxu0 %v2131
  %2141 = vmatmul.bf16.gmra.mxu0 %v2128
  %v2142 = vpop.f32.mrf.mxu0
  %v2143 = vadd.f32 %v757, %v2142
  %v2144 = vpop.f32.mrf.mxu0
  %v2145 = vadd.f32 %v758, %v2144
  %2146 = vdwg.mxu0
  %2147 = vrot.lane.b32.xlu0 %v946, 112
  %v2148 = vpop.permute.xlu0 %2147
  %2149 = vrot.lane.b32.xlu0 %v951, 112
  %v2150 = vpop.permute.xlu0 %2149
  %v2152 = vsel %vm771, %v2148, 0
  %v2155 = vsel %vm771, %v2150, 0
  %2157 = vmatpush.bf16.xpose.msra.mxu0 0
  %2158 = vmatpush.bf16.xpose.msra.mxu0 0
  %2159 = vmatpush.bf16.xpose.msra.mxu0 0
  %2160 = vmatpush.bf16.xpose.msra.mxu0 0
  %2161 = vmatpush.bf16.xpose.msra.mxu0 0
  %2162 = vmatpush.bf16.xpose.msra.mxu0 0
  %2163 = vmatpush.bf16.xpose.msra.mxu0 0
  %2164 = vmatpush.bf16.xpose.msra.mxu0 %v2155
  %2165 = vmatmul.bf16.gmra.mxu0 %v2152
  %v2166 = vpop.f32.mrf.mxu0
  %v2167 = vadd.f32 %v757, %v2166
  %v2168 = vpop.f32.mrf.mxu0
  %v2169 = vadd.f32 %v758, %v2168
  %2170 = vdwg.mxu0
  %2171 = vrot.lane.b32.xlu0 %v976, 112
  %v2172 = vpop.permute.xlu0 %2171
  %2173 = vrot.lane.b32.xlu0 %v981, 112
  %v2174 = vpop.permute.xlu0 %2173
  %v2176 = vsel %vm771, %v2172, 0
  %v2179 = vsel %vm771, %v2174, 0
  %2181 = vmatpush.bf16.xpose.msra.mxu0 0
  %2182 = vmatpush.bf16.xpose.msra.mxu0 0
  %2183 = vmatpush.bf16.xpose.msra.mxu0 0
  %2184 = vmatpush.bf16.xpose.msra.mxu0 0
  %2185 = vmatpush.bf16.xpose.msra.mxu0 0
  %2186 = vmatpush.bf16.xpose.msra.mxu0 0
  %2187 = vmatpush.bf16.xpose.msra.mxu0 0
  %2188 = vmatpush.bf16.xpose.msra.mxu0 %v2179
  %2189 = vmatmul.bf16.gmra.mxu0 %v2176
  %v2190 = vpop.f32.mrf.mxu0
  %v2191 = vadd.f32 %v757, %v2190
  %v2192 = vpop.f32.mrf.mxu0
  %v2193 = vadd.f32 %v758, %v2192
  %2194 = vdwg.mxu0
  %v2195 = vsel %vm1002, %v2023, -inf
  %2196 = vmax.xlane.f32.xlu0 %v2195
  %v2197 = vpop.xlane.xlu0 %2196
  %v2198 = vsel %vm1002, %v2025, -inf
  %2199 = vmax.xlane.f32.xlu0 %v2198
  %v2200 = vpop.xlane.xlu0 %2199
  %v2201 = vsel %vm1002, %v2047, -inf
  %2202 = vmax.xlane.f32.xlu0 %v2201
  %v2203 = vpop.xlane.xlu0 %2202
  %v2204 = vsel %vm1002, %v2049, -inf
  %2205 = vmax.xlane.f32.xlu0 %v2204
  %v2206 = vpop.xlane.xlu0 %2205
  %v2207 = vsel %vm1002, %v2071, -inf
  %2208 = vmax.xlane.f32.xlu0 %v2207
  %v2209 = vpop.xlane.xlu0 %2208
  %v2210 = vsel %vm1002, %v2073, -inf
  %2211 = vmax.xlane.f32.xlu0 %v2210
  %v2212 = vpop.xlane.xlu0 %2211
  %v2213 = vsel %vm1002, %v2095, -inf
  %2214 = vmax.xlane.f32.xlu0 %v2213
  %v2215 = vpop.xlane.xlu0 %2214
  %v2216 = vsel %vm1002, %v2097, -inf
  %2217 = vmax.xlane.f32.xlu0 %v2216
  %v2218 = vpop.xlane.xlu0 %2217
  %v2219 = vsel %vm1002, %v2119, -inf
  %2220 = vmax.xlane.f32.xlu0 %v2219
  %v2221 = vpop.xlane.xlu0 %2220
  %v2222 = vsel %vm1002, %v2121, -inf
  %2223 = vmax.xlane.f32.xlu0 %v2222
  %v2224 = vpop.xlane.xlu0 %2223
  %v2225 = vsel %vm1002, %v2143, -inf
  %2226 = vmax.xlane.f32.xlu0 %v2225
  %v2227 = vpop.xlane.xlu0 %2226
  %v2228 = vsel %vm1002, %v2145, -inf
  %2229 = vmax.xlane.f32.xlu0 %v2228
  %v2230 = vpop.xlane.xlu0 %2229
  %v2231 = vsel %vm1002, %v2167, -inf
  %2232 = vmax.xlane.f32.xlu0 %v2231
  %v2233 = vpop.xlane.xlu0 %2232
  %v2234 = vsel %vm1002, %v2169, -inf
  %2235 = vmax.xlane.f32.xlu0 %v2234
  %v2236 = vpop.xlane.xlu0 %2235
  %v2237 = vsel %vm1002, %v2191, -inf
  %2238 = vmax.xlane.f32.xlu0 %v2237
  %v2239 = vpop.xlane.xlu0 %2238
  %v2240 = vsel %vm1002, %v2193, -inf
  %2241 = vmax.xlane.f32.xlu0 %v2240
  %v2242 = vpop.xlane.xlu0 %2241
  %v2243 = vsub.f32 %v2023, %v2197
  %v2244 = vsub.f32 %v2025, %v2200
  %v2245 = vsub.f32 %v2047, %v2203
  %v2246 = vsub.f32 %v2049, %v2206
  %v2247 = vsub.f32 %v2071, %v2209
  %v2248 = vsub.f32 %v2073, %v2212
  %v2249 = vsub.f32 %v2095, %v2215
  %v2250 = vsub.f32 %v2097, %v2218
  %v2251 = vsub.f32 %v2119, %v2221
  %v2252 = vsub.f32 %v2121, %v2224
  %v2253 = vsub.f32 %v2143, %v2227
  %v2254 = vsub.f32 %v2145, %v2230
  %v2255 = vsub.f32 %v2167, %v2233
  %v2256 = vsub.f32 %v2169, %v2236
  %v2257 = vsub.f32 %v2191, %v2239
  %v2258 = vsub.f32 %v2193, %v2242
  %v2259 = vmul.f32 %v2243, 1.442695
  %v2260 = vpow.pop %v2259
  %v2261 = vmul.f32 %v2244, 1.442695
  %v2262 = vpow.pop %v2261
  %v2263 = vmul.f32 %v2245, 1.442695
  %v2264 = vpow.pop %v2263
  %v2265 = vmul.f32 %v2246, 1.442695
  %v2266 = vpow.pop %v2265
  %v2267 = vmul.f32 %v2247, 1.442695
  %v2268 = vpow.pop %v2267
  %v2269 = vmul.f32 %v2248, 1.442695
  %v2270 = vpow.pop %v2269
  %v2271 = vmul.f32 %v2249, 1.442695
  %v2272 = vpow.pop %v2271
  %v2273 = vmul.f32 %v2250, 1.442695
  %v2274 = vpow.pop %v2273
  %v2275 = vmul.f32 %v2251, 1.442695
  %v2276 = vpow.pop %v2275
  %v2277 = vmul.f32 %v2252, 1.442695
  %v2278 = vpow.pop %v2277
  %v2279 = vmul.f32 %v2253, 1.442695
  %v2280 = vpow.pop %v2279
  %v2281 = vmul.f32 %v2254, 1.442695
  %v2282 = vpow.pop %v2281
  %v2283 = vmul.f32 %v2255, 1.442695
  %v2284 = vpow.pop %v2283
  %v2285 = vmul.f32 %v2256, 1.442695
  %v2286 = vpow.pop %v2285
  %v2287 = vmul.f32 %v2257, 1.442695
  %v2288 = vpow.pop %v2287
  %v2289 = vmul.f32 %v2258, 1.442695
  %v2290 = vpow.pop %v2289
  %v2291 = vsel %vm1002, %v2260, 0.0
  %2292 = vadd.xlane.f32.xlu0 %v2291
  %v2293 = vpop.xlane.xlu0 %2292
  %v2294 = vsel %vm1002, %v2262, 0.0
  %2295 = vadd.xlane.f32.xlu0 %v2294
  %v2296 = vpop.xlane.xlu0 %2295
  %v2297 = vsel %vm1002, %v2264, 0.0
  %2298 = vadd.xlane.f32.xlu0 %v2297
  %v2299 = vpop.xlane.xlu0 %2298
  %v2300 = vsel %vm1002, %v2266, 0.0
  %2301 = vadd.xlane.f32.xlu0 %v2300
  %v2302 = vpop.xlane.xlu0 %2301
  %v2303 = vsel %vm1002, %v2268, 0.0
  %2304 = vadd.xlane.f32.xlu0 %v2303
  %v2305 = vpop.xlane.xlu0 %2304
  %v2306 = vsel %vm1002, %v2270, 0.0
  %2307 = vadd.xlane.f32.xlu0 %v2306
  %v2308 = vpop.xlane.xlu0 %2307
  %v2309 = vsel %vm1002, %v2272, 0.0
  %2310 = vadd.xlane.f32.xlu0 %v2309
  %v2311 = vpop.xlane.xlu0 %2310
  %v2312 = vsel %vm1002, %v2274, 0.0
  %2313 = vadd.xlane.f32.xlu0 %v2312
  %v2314 = vpop.xlane.xlu0 %2313
  %v2315 = vsel %vm1002, %v2276, 0.0
  %2316 = vadd.xlane.f32.xlu0 %v2315
  %v2317 = vpop.xlane.xlu0 %2316
  %v2318 = vsel %vm1002, %v2278, 0.0
  %2319 = vadd.xlane.f32.xlu0 %v2318
  %v2320 = vpop.xlane.xlu0 %2319
  %v2321 = vsel %vm1002, %v2280, 0.0
  %2322 = vadd.xlane.f32.xlu0 %v2321
  %v2323 = vpop.xlane.xlu0 %2322
  %v2324 = vsel %vm1002, %v2282, 0.0
  %2325 = vadd.xlane.f32.xlu0 %v2324
  %v2326 = vpop.xlane.xlu0 %2325
  %v2327 = vsel %vm1002, %v2284, 0.0
  %2328 = vadd.xlane.f32.xlu0 %v2327
  %v2329 = vpop.xlane.xlu0 %2328
  %v2330 = vsel %vm1002, %v2286, 0.0
  %2331 = vadd.xlane.f32.xlu0 %v2330
  %v2332 = vpop.xlane.xlu0 %2331
  %v2333 = vsel %vm1002, %v2288, 0.0
  %2334 = vadd.xlane.f32.xlu0 %v2333
  %v2335 = vpop.xlane.xlu0 %2334
  %v2336 = vsel %vm1002, %v2290, 0.0
  %2337 = vadd.xlane.f32.xlu0 %v2336
  %v2338 = vpop.xlane.xlu0 %2337
  %v2339 = vrcp.pop %v2293
  %v2340 = vrcp.pop %v2296
  %v2341 = vrcp.pop %v2299
  %v2342 = vrcp.pop %v2302
  %v2343 = vrcp.pop %v2305
  %v2344 = vrcp.pop %v2308
  %v2345 = vrcp.pop %v2311
  %v2346 = vrcp.pop %v2314
  %v2347 = vrcp.pop %v2317
  %v2348 = vrcp.pop %v2320
  %v2349 = vrcp.pop %v2323
  %v2350 = vrcp.pop %v2326
  %v2351 = vrcp.pop %v2329
  %v2352 = vrcp.pop %v2332
  %v2353 = vrcp.pop %v2335
  %v2354 = vrcp.pop %v2338
  %v2355 = vmul.f32 %v2260, %v2339
  %v2356 = vmul.f32 %v2262, %v2340
  %v2357 = vmul.f32 %v2264, %v2341
  %v2358 = vmul.f32 %v2266, %v2342
  %v2359 = vmul.f32 %v2268, %v2343
  %v2360 = vmul.f32 %v2270, %v2344
  %v2361 = vmul.f32 %v2272, %v2345
  %v2362 = vmul.f32 %v2274, %v2346
  %v2363 = vmul.f32 %v2276, %v2347
  %v2364 = vmul.f32 %v2278, %v2348
  %v2365 = vmul.f32 %v2280, %v2349
  %v2366 = vmul.f32 %v2282, %v2350
  %v2367 = vmul.f32 %v2284, %v2351
  %v2368 = vmul.f32 %v2286, %v2352
  %v2369 = vmul.f32 %v2288, %v2353
  %v2370 = vmul.f32 %v2290, %v2354
  %v2371 = vpack.c.bf16 %v2355, %v2355
  %v2372 = vpack.c.bf16 %v2356, %v2356
  %v2373 = vpack.c.bf16 %v2357, %v2357
  %v2374 = vpack.c.bf16 %v2358, %v2358
  %v2375 = vpack.c.bf16 %v2359, %v2359
  %v2376 = vpack.c.bf16 %v2360, %v2360
  %v2377 = vpack.c.bf16 %v2361, %v2361
  %v2378 = vpack.c.bf16 %v2362, %v2362
  %v2379 = vpack.c.bf16 %v2363, %v2363
  %v2380 = vpack.c.bf16 %v2364, %v2364
  %v2381 = vpack.c.bf16 %v2365, %v2365
  %v2382 = vpack.c.bf16 %v2366, %v2366
  %v2383 = vpack.c.bf16 %v2367, %v2367
  %v2384 = vpack.c.bf16 %v2368, %v2368
  %v2385 = vpack.c.bf16 %v2369, %v2369
  %v2386 = vpack.c.bf16 %v2370, %v2370
  %v2389 = vunpack.c.l.b16 %v2371
  %v2390 = vunpack.c.l.b16 %v2372
  %v2391 = vpack.c.b16 %v2390, %v2389
  %2392 = vrot.lane.b32.xlu0 %v1204, 112
  %v2393 = vpop.permute.xlu0 %2392
  %v2396 = vsel %vm1002, %v2391, 0
  %2398 = vmatpush.bf16.msra.mxu0 0
  %2399 = vmatpush.bf16.msra.mxu0 0
  %2400 = vmatpush.bf16.msra.mxu0 0
  %2401 = vmatpush.bf16.msra.mxu0 0
  %2402 = vmatpush.bf16.msra.mxu0 0
  %2403 = vmatpush.bf16.msra.mxu0 0
  %2404 = vmatpush.bf16.msra.mxu0 0
  %2405 = vmatpush.bf16.msra.mxu0 %v2393
  %2406 = vmatmul.bf16.gmra.mxu0 %v2396
  %v2407 = vpop.f32.mrf.mxu0
  %v2408 = vadd.f32 0.0, %v2407
  %v2409 = vpop.f32.mrf.mxu0
  %v2410 = vadd.f32 0.0, %v2409
  %2411 = vdwg.mxu0
  %v2414 = vunpack.c.l.b16 %v2373
  %v2415 = vunpack.c.l.b16 %v2374
  %v2416 = vpack.c.b16 %v2415, %v2414
  %2417 = vrot.lane.b32.xlu0 %v1232, 112
  %v2418 = vpop.permute.xlu0 %2417
  %v2421 = vsel %vm1002, %v2416, 0
  %2423 = vmatpush.bf16.msra.mxu0 0
  %2424 = vmatpush.bf16.msra.mxu0 0
  %2425 = vmatpush.bf16.msra.mxu0 0
  %2426 = vmatpush.bf16.msra.mxu0 0
  %2427 = vmatpush.bf16.msra.mxu0 0
  %2428 = vmatpush.bf16.msra.mxu0 0
  %2429 = vmatpush.bf16.msra.mxu0 0
  %2430 = vmatpush.bf16.msra.mxu0 %v2418
  %2431 = vmatmul.bf16.gmra.mxu0 %v2421
  %v2432 = vpop.f32.mrf.mxu0
  %v2433 = vadd.f32 0.0, %v2432
  %v2434 = vpop.f32.mrf.mxu0
  %v2435 = vadd.f32 0.0, %v2434
  %2436 = vdwg.mxu0
  %v2439 = vunpack.c.l.b16 %v2375
  %v2440 = vunpack.c.l.b16 %v2376
  %v2441 = vpack.c.b16 %v2440, %v2439
  %2442 = vrot.lane.b32.xlu0 %v1260, 112
  %v2443 = vpop.permute.xlu0 %2442
  %v2446 = vsel %vm1002, %v2441, 0
  %2448 = vmatpush.bf16.msra.mxu0 0
  %2449 = vmatpush.bf16.msra.mxu0 0
  %2450 = vmatpush.bf16.msra.mxu0 0
  %2451 = vmatpush.bf16.msra.mxu0 0
  %2452 = vmatpush.bf16.msra.mxu0 0
  %2453 = vmatpush.bf16.msra.mxu0 0
  %2454 = vmatpush.bf16.msra.mxu0 0
  %2455 = vmatpush.bf16.msra.mxu0 %v2443
  %2456 = vmatmul.bf16.gmra.mxu0 %v2446
  %v2457 = vpop.f32.mrf.mxu0
  %v2458 = vadd.f32 0.0, %v2457
  %v2459 = vpop.f32.mrf.mxu0
  %v2460 = vadd.f32 0.0, %v2459
  %2461 = vdwg.mxu0
  %v2464 = vunpack.c.l.b16 %v2377
  %v2465 = vunpack.c.l.b16 %v2378
  %v2466 = vpack.c.b16 %v2465, %v2464
  %2467 = vrot.lane.b32.xlu0 %v1288, 112
  %v2468 = vpop.permute.xlu0 %2467
  %v2471 = vsel %vm1002, %v2466, 0
  %2473 = vmatpush.bf16.msra.mxu0 0
  %2474 = vmatpush.bf16.msra.mxu0 0
  %2475 = vmatpush.bf16.msra.mxu0 0
  %2476 = vmatpush.bf16.msra.mxu0 0
  %2477 = vmatpush.bf16.msra.mxu0 0
  %2478 = vmatpush.bf16.msra.mxu0 0
  %2479 = vmatpush.bf16.msra.mxu0 0
  %2480 = vmatpush.bf16.msra.mxu0 %v2468
  %2481 = vmatmul.bf16.gmra.mxu0 %v2471
  %v2482 = vpop.f32.mrf.mxu0
  %v2483 = vadd.f32 0.0, %v2482
  %v2484 = vpop.f32.mrf.mxu0
  %v2485 = vadd.f32 0.0, %v2484
  %2486 = vdwg.mxu0
  %v2489 = vunpack.c.l.b16 %v2379
  %v2490 = vunpack.c.l.b16 %v2380
  %v2491 = vpack.c.b16 %v2490, %v2489
  %2492 = vrot.lane.b32.xlu0 %v1316, 112
  %v2493 = vpop.permute.xlu0 %2492
  %v2496 = vsel %vm1002, %v2491, 0
  %2498 = vmatpush.bf16.msra.mxu0 0
  %2499 = vmatpush.bf16.msra.mxu0 0
  %2500 = vmatpush.bf16.msra.mxu0 0
  %2501 = vmatpush.bf16.msra.mxu0 0
  %2502 = vmatpush.bf16.msra.mxu0 0
  %2503 = vmatpush.bf16.msra.mxu0 0
  %2504 = vmatpush.bf16.msra.mxu0 0
  %2505 = vmatpush.bf16.msra.mxu0 %v2493
  %2506 = vmatmul.bf16.gmra.mxu0 %v2496
  %v2507 = vpop.f32.mrf.mxu0
  %v2508 = vadd.f32 0.0, %v2507
  %v2509 = vpop.f32.mrf.mxu0
  %v2510 = vadd.f32 0.0, %v2509
  %2511 = vdwg.mxu0
  %v2514 = vunpack.c.l.b16 %v2381
  %v2515 = vunpack.c.l.b16 %v2382
  %v2516 = vpack.c.b16 %v2515, %v2514
  %2517 = vrot.lane.b32.xlu0 %v1344, 112
  %v2518 = vpop.permute.xlu0 %2517
  %v2521 = vsel %vm1002, %v2516, 0
  %2523 = vmatpush.bf16.msra.mxu0 0
  %2524 = vmatpush.bf16.msra.mxu0 0
  %2525 = vmatpush.bf16.msra.mxu0 0
  %2526 = vmatpush.bf16.msra.mxu0 0
  %2527 = vmatpush.bf16.msra.mxu0 0
  %2528 = vmatpush.bf16.msra.mxu0 0
  %2529 = vmatpush.bf16.msra.mxu0 0
  %2530 = vmatpush.bf16.msra.mxu0 %v2518
  %2531 = vmatmul.bf16.gmra.mxu0 %v2521
  %v2532 = vpop.f32.mrf.mxu0
  %v2533 = vadd.f32 0.0, %v2532
  %v2534 = vpop.f32.mrf.mxu0
  %v2535 = vadd.f32 0.0, %v2534
  %2536 = vdwg.mxu0
  %v2539 = vunpack.c.l.b16 %v2383
  %v2540 = vunpack.c.l.b16 %v2384
  %v2541 = vpack.c.b16 %v2540, %v2539
  %2542 = vrot.lane.b32.xlu0 %v1372, 112
  %v2543 = vpop.permute.xlu0 %2542
  %v2546 = vsel %vm1002, %v2541, 0
  %2548 = vmatpush.bf16.msra.mxu0 0
  %2549 = vmatpush.bf16.msra.mxu0 0
  %2550 = vmatpush.bf16.msra.mxu0 0
  %2551 = vmatpush.bf16.msra.mxu0 0
  %2552 = vmatpush.bf16.msra.mxu0 0
  %2553 = vmatpush.bf16.msra.mxu0 0
  %2554 = vmatpush.bf16.msra.mxu0 0
  %2555 = vmatpush.bf16.msra.mxu0 %v2543
  %2556 = vmatmul.bf16.gmra.mxu0 %v2546
  %v2557 = vpop.f32.mrf.mxu0
  %v2558 = vadd.f32 0.0, %v2557
  %v2559 = vpop.f32.mrf.mxu0
  %v2560 = vadd.f32 0.0, %v2559
  %2561 = vdwg.mxu0
  %v2564 = vunpack.c.l.b16 %v2385
  %v2565 = vunpack.c.l.b16 %v2386
  %v2566 = vpack.c.b16 %v2565, %v2564
  %2567 = vrot.lane.b32.xlu0 %v1400, 112
  %v2568 = vpop.permute.xlu0 %2567
  %v2571 = vsel %vm1002, %v2566, 0
  %2573 = vmatpush.bf16.msra.mxu0 0
  %2574 = vmatpush.bf16.msra.mxu0 0
  %2575 = vmatpush.bf16.msra.mxu0 0
  %2576 = vmatpush.bf16.msra.mxu0 0
  %2577 = vmatpush.bf16.msra.mxu0 0
  %2578 = vmatpush.bf16.msra.mxu0 0
  %2579 = vmatpush.bf16.msra.mxu0 0
  %2580 = vmatpush.bf16.msra.mxu0 %v2568
  %2581 = vmatmul.bf16.gmra.mxu0 %v2571
  %v2582 = vpop.f32.mrf.mxu0
  %v2583 = vadd.f32 0.0, %v2582
  %v2584 = vpop.f32.mrf.mxu0
  %v2585 = vadd.f32 0.0, %v2584
  %2586 = vdwg.mxu0
  %2587 = vrot.lane.b32.xlu0 %v765, 104
  %v2588 = vpop.permute.xlu0 %2587
  %2589 = vrot.lane.b32.xlu0 %v770, 104
  %v2590 = vpop.permute.xlu0 %2589
  %v2592 = vsel %vm771, %v2588, 0
  %v2595 = vsel %vm771, %v2590, 0
  %2597 = vmatpush.bf16.xpose.msra.mxu0 0
  %2598 = vmatpush.bf16.xpose.msra.mxu0 0
  %2599 = vmatpush.bf16.xpose.msra.mxu0 0
  %2600 = vmatpush.bf16.xpose.msra.mxu0 0
  %2601 = vmatpush.bf16.xpose.msra.mxu0 0
  %2602 = vmatpush.bf16.xpose.msra.mxu0 0
  %2603 = vmatpush.bf16.xpose.msra.mxu0 0
  %2604 = vmatpush.bf16.xpose.msra.mxu0 %v2595
  %2605 = vmatmul.bf16.gmra.mxu0 %v2592
  %v2606 = vpop.f32.mrf.mxu0
  %v2607 = vadd.f32 %v759, %v2606
  %v2608 = vpop.f32.mrf.mxu0
  %v2609 = vadd.f32 %v760, %v2608
  %2610 = vdwg.mxu0
  %2611 = vrot.lane.b32.xlu0 %v796, 104
  %v2612 = vpop.permute.xlu0 %2611
  %2613 = vrot.lane.b32.xlu0 %v801, 104
  %v2614 = vpop.permute.xlu0 %2613
  %v2616 = vsel %vm771, %v2612, 0
  %v2619 = vsel %vm771, %v2614, 0
  %2621 = vmatpush.bf16.xpose.msra.mxu0 0
  %2622 = vmatpush.bf16.xpose.msra.mxu0 0
  %2623 = vmatpush.bf16.xpose.msra.mxu0 0
  %2624 = vmatpush.bf16.xpose.msra.mxu0 0
  %2625 = vmatpush.bf16.xpose.msra.mxu0 0
  %2626 = vmatpush.bf16.xpose.msra.mxu0 0
  %2627 = vmatpush.bf16.xpose.msra.mxu0 0
  %2628 = vmatpush.bf16.xpose.msra.mxu0 %v2619
  %2629 = vmatmul.bf16.gmra.mxu0 %v2616
  %v2630 = vpop.f32.mrf.mxu0
  %v2631 = vadd.f32 %v759, %v2630
  %v2632 = vpop.f32.mrf.mxu0
  %v2633 = vadd.f32 %v760, %v2632
  %2634 = vdwg.mxu0
  %2635 = vrot.lane.b32.xlu0 %v826, 104
  %v2636 = vpop.permute.xlu0 %2635
  %2637 = vrot.lane.b32.xlu0 %v831, 104
  %v2638 = vpop.permute.xlu0 %2637
  %v2640 = vsel %vm771, %v2636, 0
  %v2643 = vsel %vm771, %v2638, 0
  %2645 = vmatpush.bf16.xpose.msra.mxu0 0
  %2646 = vmatpush.bf16.xpose.msra.mxu0 0
  %2647 = vmatpush.bf16.xpose.msra.mxu0 0
  %2648 = vmatpush.bf16.xpose.msra.mxu0 0
  %2649 = vmatpush.bf16.xpose.msra.mxu0 0
  %2650 = vmatpush.bf16.xpose.msra.mxu0 0
  %2651 = vmatpush.bf16.xpose.msra.mxu0 0
  %2652 = vmatpush.bf16.xpose.msra.mxu0 %v2643
  %2653 = vmatmul.bf16.gmra.mxu0 %v2640
  %v2654 = vpop.f32.mrf.mxu0
  %v2655 = vadd.f32 %v759, %v2654
  %v2656 = vpop.f32.mrf.mxu0
  %v2657 = vadd.f32 %v760, %v2656
  %2658 = vdwg.mxu0
  %2659 = vrot.lane.b32.xlu0 %v856, 104
  %v2660 = vpop.permute.xlu0 %2659
  %2661 = vrot.lane.b32.xlu0 %v861, 104
  %v2662 = vpop.permute.xlu0 %2661
  %v2664 = vsel %vm771, %v2660, 0
  %v2667 = vsel %vm771, %v2662, 0
  %2669 = vmatpush.bf16.xpose.msra.mxu0 0
  %2670 = vmatpush.bf16.xpose.msra.mxu0 0
  %2671 = vmatpush.bf16.xpose.msra.mxu0 0
  %2672 = vmatpush.bf16.xpose.msra.mxu0 0
  %2673 = vmatpush.bf16.xpose.msra.mxu0 0
  %2674 = vmatpush.bf16.xpose.msra.mxu0 0
  %2675 = vmatpush.bf16.xpose.msra.mxu0 0
  %2676 = vmatpush.bf16.xpose.msra.mxu0 %v2667
  %2677 = vmatmul.bf16.gmra.mxu0 %v2664
  %v2678 = vpop.f32.mrf.mxu0
  %v2679 = vadd.f32 %v759, %v2678
  %v2680 = vpop.f32.mrf.mxu0
  %v2681 = vadd.f32 %v760, %v2680
  %2682 = vdwg.mxu0
  %2683 = vrot.lane.b32.xlu0 %v886, 104
  %v2684 = vpop.permute.xlu0 %2683
  %2685 = vrot.lane.b32.xlu0 %v891, 104
  %v2686 = vpop.permute.xlu0 %2685
  %v2688 = vsel %vm771, %v2684, 0
  %v2691 = vsel %vm771, %v2686, 0
  %2693 = vmatpush.bf16.xpose.msra.mxu0 0
  %2694 = vmatpush.bf16.xpose.msra.mxu0 0
  %2695 = vmatpush.bf16.xpose.msra.mxu0 0
  %2696 = vmatpush.bf16.xpose.msra.mxu0 0
  %2697 = vmatpush.bf16.xpose.msra.mxu0 0
  %2698 = vmatpush.bf16.xpose.msra.mxu0 0
  %2699 = vmatpush.bf16.xpose.msra.mxu0 0
  %2700 = vmatpush.bf16.xpose.msra.mxu0 %v2691
  %2701 = vmatmul.bf16.gmra.mxu0 %v2688
  %v2702 = vpop.f32.mrf.mxu0
  %v2703 = vadd.f32 %v759, %v2702
  %v2704 = vpop.f32.mrf.mxu0
  %v2705 = vadd.f32 %v760, %v2704
  %2706 = vdwg.mxu0
  %2707 = vrot.lane.b32.xlu0 %v916, 104
  %v2708 = vpop.permute.xlu0 %2707
  %2709 = vrot.lane.b32.xlu0 %v921, 104
  %v2710 = vpop.permute.xlu0 %2709
  %v2712 = vsel %vm771, %v2708, 0
  %v2715 = vsel %vm771, %v2710, 0
  %2717 = vmatpush.bf16.xpose.msra.mxu0 0
  %2718 = vmatpush.bf16.xpose.msra.mxu0 0
  %2719 = vmatpush.bf16.xpose.msra.mxu0 0
  %2720 = vmatpush.bf16.xpose.msra.mxu0 0
  %2721 = vmatpush.bf16.xpose.msra.mxu0 0
  %2722 = vmatpush.bf16.xpose.msra.mxu0 0
  %2723 = vmatpush.bf16.xpose.msra.mxu0 0
  %2724 = vmatpush.bf16.xpose.msra.mxu0 %v2715
  %2725 = vmatmul.bf16.gmra.mxu0 %v2712
  %v2726 = vpop.f32.mrf.mxu0
  %v2727 = vadd.f32 %v759, %v2726
  %v2728 = vpop.f32.mrf.mxu0
  %v2729 = vadd.f32 %v760, %v2728
  %2730 = vdwg.mxu0
  %2731 = vrot.lane.b32.xlu0 %v946, 104
  %v2732 = vpop.permute.xlu0 %2731
  %2733 = vrot.lane.b32.xlu0 %v951, 104
  %v2734 = vpop.permute.xlu0 %2733
  %v2736 = vsel %vm771, %v2732, 0
  %v2739 = vsel %vm771, %v2734, 0
  %2741 = vmatpush.bf16.xpose.msra.mxu0 0
  %2742 = vmatpush.bf16.xpose.msra.mxu0 0
  %2743 = vmatpush.bf16.xpose.msra.mxu0 0
  %2744 = vmatpush.bf16.xpose.msra.mxu0 0
  %2745 = vmatpush.bf16.xpose.msra.mxu0 0
  %2746 = vmatpush.bf16.xpose.msra.mxu0 0
  %2747 = vmatpush.bf16.xpose.msra.mxu0 0
  %2748 = vmatpush.bf16.xpose.msra.mxu0 %v2739
  %2749 = vmatmul.bf16.gmra.mxu0 %v2736
  %v2750 = vpop.f32.mrf.mxu0
  %v2751 = vadd.f32 %v759, %v2750
  %v2752 = vpop.f32.mrf.mxu0
  %v2753 = vadd.f32 %v760, %v2752
  %2754 = vdwg.mxu0
  %2755 = vrot.lane.b32.xlu0 %v976, 104
  %v2756 = vpop.permute.xlu0 %2755
  %2757 = vrot.lane.b32.xlu0 %v981, 104
  %v2758 = vpop.permute.xlu0 %2757
  %v2760 = vsel %vm771, %v2756, 0
  %v2763 = vsel %vm771, %v2758, 0
  %2765 = vmatpush.bf16.xpose.msra.mxu0 0
  %2766 = vmatpush.bf16.xpose.msra.mxu0 0
  %2767 = vmatpush.bf16.xpose.msra.mxu0 0
  %2768 = vmatpush.bf16.xpose.msra.mxu0 0
  %2769 = vmatpush.bf16.xpose.msra.mxu0 0
  %2770 = vmatpush.bf16.xpose.msra.mxu0 0
  %2771 = vmatpush.bf16.xpose.msra.mxu0 0
  %2772 = vmatpush.bf16.xpose.msra.mxu0 %v2763
  %2773 = vmatmul.bf16.gmra.mxu0 %v2760
  %v2774 = vpop.f32.mrf.mxu0
  %v2775 = vadd.f32 %v759, %v2774
  %v2776 = vpop.f32.mrf.mxu0
  %v2777 = vadd.f32 %v760, %v2776
  %2778 = vdwg.mxu0
  %v2779 = vsel %vm1002, %v2607, -inf
  %2780 = vmax.xlane.f32.xlu0 %v2779
  %v2781 = vpop.xlane.xlu0 %2780
  %v2782 = vsel %vm1002, %v2609, -inf
  %2783 = vmax.xlane.f32.xlu0 %v2782
  %v2784 = vpop.xlane.xlu0 %2783
  %v2785 = vsel %vm1002, %v2631, -inf
  %2786 = vmax.xlane.f32.xlu0 %v2785
  %v2787 = vpop.xlane.xlu0 %2786
  %v2788 = vsel %vm1002, %v2633, -inf
  %2789 = vmax.xlane.f32.xlu0 %v2788
  %v2790 = vpop.xlane.xlu0 %2789
  %v2791 = vsel %vm1002, %v2655, -inf
  %2792 = vmax.xlane.f32.xlu0 %v2791
  %v2793 = vpop.xlane.xlu0 %2792
  %v2794 = vsel %vm1002, %v2657, -inf
  %2795 = vmax.xlane.f32.xlu0 %v2794
  %v2796 = vpop.xlane.xlu0 %2795
  %v2797 = vsel %vm1002, %v2679, -inf
  %2798 = vmax.xlane.f32.xlu0 %v2797
  %v2799 = vpop.xlane.xlu0 %2798
  %v2800 = vsel %vm1002, %v2681, -inf
  %2801 = vmax.xlane.f32.xlu0 %v2800
  %v2802 = vpop.xlane.xlu0 %2801
  %v2803 = vsel %vm1002, %v2703, -inf
  %2804 = vmax.xlane.f32.xlu0 %v2803
  %v2805 = vpop.xlane.xlu0 %2804
  %v2806 = vsel %vm1002, %v2705, -inf
  %2807 = vmax.xlane.f32.xlu0 %v2806
  %v2808 = vpop.xlane.xlu0 %2807
  %v2809 = vsel %vm1002, %v2727, -inf
  %2810 = vmax.xlane.f32.xlu0 %v2809
  %v2811 = vpop.xlane.xlu0 %2810
  %v2812 = vsel %vm1002, %v2729, -inf
  %2813 = vmax.xlane.f32.xlu0 %v2812
  %v2814 = vpop.xlane.xlu0 %2813
  %v2815 = vsel %vm1002, %v2751, -inf
  %2816 = vmax.xlane.f32.xlu0 %v2815
  %v2817 = vpop.xlane.xlu0 %2816
  %v2818 = vsel %vm1002, %v2753, -inf
  %2819 = vmax.xlane.f32.xlu0 %v2818
  %v2820 = vpop.xlane.xlu0 %2819
  %v2821 = vsel %vm1002, %v2775, -inf
  %2822 = vmax.xlane.f32.xlu0 %v2821
  %v2823 = vpop.xlane.xlu0 %2822
  %v2824 = vsel %vm1002, %v2777, -inf
  %2825 = vmax.xlane.f32.xlu0 %v2824
  %v2826 = vpop.xlane.xlu0 %2825
  %v2827 = vsub.f32 %v2607, %v2781
  %v2828 = vsub.f32 %v2609, %v2784
  %v2829 = vsub.f32 %v2631, %v2787
  %v2830 = vsub.f32 %v2633, %v2790
  %v2831 = vsub.f32 %v2655, %v2793
  %v2832 = vsub.f32 %v2657, %v2796
  %v2833 = vsub.f32 %v2679, %v2799
  %v2834 = vsub.f32 %v2681, %v2802
  %v2835 = vsub.f32 %v2703, %v2805
  %v2836 = vsub.f32 %v2705, %v2808
  %v2837 = vsub.f32 %v2727, %v2811
  %v2838 = vsub.f32 %v2729, %v2814
  %v2839 = vsub.f32 %v2751, %v2817
  %v2840 = vsub.f32 %v2753, %v2820
  %v2841 = vsub.f32 %v2775, %v2823
  %v2842 = vsub.f32 %v2777, %v2826
  %v2843 = vmul.f32 %v2827, 1.442695
  %v2844 = vpow.pop %v2843
  %v2845 = vmul.f32 %v2828, 1.442695
  %v2846 = vpow.pop %v2845
  %v2847 = vmul.f32 %v2829, 1.442695
  %v2848 = vpow.pop %v2847
  %v2849 = vmul.f32 %v2830, 1.442695
  %v2850 = vpow.pop %v2849
  %v2851 = vmul.f32 %v2831, 1.442695
  %v2852 = vpow.pop %v2851
  %v2853 = vmul.f32 %v2832, 1.442695
  %v2854 = vpow.pop %v2853
  %v2855 = vmul.f32 %v2833, 1.442695
  %v2856 = vpow.pop %v2855
  %v2857 = vmul.f32 %v2834, 1.442695
  %v2858 = vpow.pop %v2857
  %v2859 = vmul.f32 %v2835, 1.442695
  %v2860 = vpow.pop %v2859
  %v2861 = vmul.f32 %v2836, 1.442695
  %v2862 = vpow.pop %v2861
  %v2863 = vmul.f32 %v2837, 1.442695
  %v2864 = vpow.pop %v2863
  %v2865 = vmul.f32 %v2838, 1.442695
  %v2866 = vpow.pop %v2865
  %v2867 = vmul.f32 %v2839, 1.442695
  %v2868 = vpow.pop %v2867
  %v2869 = vmul.f32 %v2840, 1.442695
  %v2870 = vpow.pop %v2869
  %v2871 = vmul.f32 %v2841, 1.442695
  %v2872 = vpow.pop %v2871
  %v2873 = vmul.f32 %v2842, 1.442695
  %v2874 = vpow.pop %v2873
  %v2875 = vsel %vm1002, %v2844, 0.0
  %2876 = vadd.xlane.f32.xlu0 %v2875
  %v2877 = vpop.xlane.xlu0 %2876
  %v2878 = vsel %vm1002, %v2846, 0.0
  %2879 = vadd.xlane.f32.xlu0 %v2878
  %v2880 = vpop.xlane.xlu0 %2879
  %v2881 = vsel %vm1002, %v2848, 0.0
  %2882 = vadd.xlane.f32.xlu0 %v2881
  %v2883 = vpop.xlane.xlu0 %2882
  %v2884 = vsel %vm1002, %v2850, 0.0
  %2885 = vadd.xlane.f32.xlu0 %v2884
  %v2886 = vpop.xlane.xlu0 %2885
  %v2887 = vsel %vm1002, %v2852, 0.0
  %2888 = vadd.xlane.f32.xlu0 %v2887
  %v2889 = vpop.xlane.xlu0 %2888
  %v2890 = vsel %vm1002, %v2854, 0.0
  %2891 = vadd.xlane.f32.xlu0 %v2890
  %v2892 = vpop.xlane.xlu0 %2891
  %v2893 = vsel %vm1002, %v2856, 0.0
  %2894 = vadd.xlane.f32.xlu0 %v2893
  %v2895 = vpop.xlane.xlu0 %2894
  %v2896 = vsel %vm1002, %v2858, 0.0
  %2897 = vadd.xlane.f32.xlu0 %v2896
  %v2898 = vpop.xlane.xlu0 %2897
  %v2899 = vsel %vm1002, %v2860, 0.0
  %2900 = vadd.xlane.f32.xlu0 %v2899
  %v2901 = vpop.xlane.xlu0 %2900
  %v2902 = vsel %vm1002, %v2862, 0.0
  %2903 = vadd.xlane.f32.xlu0 %v2902
  %v2904 = vpop.xlane.xlu0 %2903
  %v2905 = vsel %vm1002, %v2864, 0.0
  %2906 = vadd.xlane.f32.xlu0 %v2905
  %v2907 = vpop.xlane.xlu0 %2906
  %v2908 = vsel %vm1002, %v2866, 0.0
  %2909 = vadd.xlane.f32.xlu0 %v2908
  %v2910 = vpop.xlane.xlu0 %2909
  %v2911 = vsel %vm1002, %v2868, 0.0
  %2912 = vadd.xlane.f32.xlu0 %v2911
  %v2913 = vpop.xlane.xlu0 %2912
  %v2914 = vsel %vm1002, %v2870, 0.0
  %2915 = vadd.xlane.f32.xlu0 %v2914
  %v2916 = vpop.xlane.xlu0 %2915
  %v2917 = vsel %vm1002, %v2872, 0.0
  %2918 = vadd.xlane.f32.xlu0 %v2917
  %v2919 = vpop.xlane.xlu0 %2918
  %v2920 = vsel %vm1002, %v2874, 0.0
  %2921 = vadd.xlane.f32.xlu0 %v2920
  %v2922 = vpop.xlane.xlu0 %2921
  %v2923 = vrcp.pop %v2877
  %v2924 = vrcp.pop %v2880
  %v2925 = vrcp.pop %v2883
  %v2926 = vrcp.pop %v2886
  %v2927 = vrcp.pop %v2889
  %v2928 = vrcp.pop %v2892
  %v2929 = vrcp.pop %v2895
  %v2930 = vrcp.pop %v2898
  %v2931 = vrcp.pop %v2901
  %v2932 = vrcp.pop %v2904
  %v2933 = vrcp.pop %v2907
  %v2934 = vrcp.pop %v2910
  %v2935 = vrcp.pop %v2913
  %v2936 = vrcp.pop %v2916
  %v2937 = vrcp.pop %v2919
  %v2938 = vrcp.pop %v2922
  %v2939 = vmul.f32 %v2844, %v2923
  %v2940 = vmul.f32 %v2846, %v2924
  %v2941 = vmul.f32 %v2848, %v2925
  %v2942 = vmul.f32 %v2850, %v2926
  %v2943 = vmul.f32 %v2852, %v2927
  %v2944 = vmul.f32 %v2854, %v2928
  %v2945 = vmul.f32 %v2856, %v2929
  %v2946 = vmul.f32 %v2858, %v2930
  %v2947 = vmul.f32 %v2860, %v2931
  %v2948 = vmul.f32 %v2862, %v2932
  %v2949 = vmul.f32 %v2864, %v2933
  %v2950 = vmul.f32 %v2866, %v2934
  %v2951 = vmul.f32 %v2868, %v2935
  %v2952 = vmul.f32 %v2870, %v2936
  %v2953 = vmul.f32 %v2872, %v2937
  %v2954 = vmul.f32 %v2874, %v2938
  %v2955 = vpack.c.bf16 %v2939, %v2939
  %v2956 = vpack.c.bf16 %v2940, %v2940
  %v2957 = vpack.c.bf16 %v2941, %v2941
  %v2958 = vpack.c.bf16 %v2942, %v2942
  %v2959 = vpack.c.bf16 %v2943, %v2943
  %v2960 = vpack.c.bf16 %v2944, %v2944
  %v2961 = vpack.c.bf16 %v2945, %v2945
  %v2962 = vpack.c.bf16 %v2946, %v2946
  %v2963 = vpack.c.bf16 %v2947, %v2947
  %v2964 = vpack.c.bf16 %v2948, %v2948
  %v2965 = vpack.c.bf16 %v2949, %v2949
  %v2966 = vpack.c.bf16 %v2950, %v2950
  %v2967 = vpack.c.bf16 %v2951, %v2951
  %v2968 = vpack.c.bf16 %v2952, %v2952
  %v2969 = vpack.c.bf16 %v2953, %v2953
  %v2970 = vpack.c.bf16 %v2954, %v2954
  %v2973 = vunpack.c.l.b16 %v2955
  %v2974 = vunpack.c.l.b16 %v2956
  %v2975 = vpack.c.b16 %v2974, %v2973
  %2976 = vrot.lane.b32.xlu0 %v1204, 104
  %v2977 = vpop.permute.xlu0 %2976
  %v2980 = vsel %vm1002, %v2975, 0
  %2982 = vmatpush.bf16.msra.mxu0 0
  %2983 = vmatpush.bf16.msra.mxu0 0
  %2984 = vmatpush.bf16.msra.mxu0 0
  %2985 = vmatpush.bf16.msra.mxu0 0
  %2986 = vmatpush.bf16.msra.mxu0 0
  %2987 = vmatpush.bf16.msra.mxu0 0
  %2988 = vmatpush.bf16.msra.mxu0 0
  %2989 = vmatpush.bf16.msra.mxu0 %v2977
  %2990 = vmatmul.bf16.gmra.mxu0 %v2980
  %v2991 = vpop.f32.mrf.mxu0
  %v2992 = vadd.f32 0.0, %v2991
  %v2993 = vpop.f32.mrf.mxu0
  %v2994 = vadd.f32 0.0, %v2993
  %2995 = vdwg.mxu0
  %v2998 = vunpack.c.l.b16 %v2957
  %v2999 = vunpack.c.l.b16 %v2958
  %v3000 = vpack.c.b16 %v2999, %v2998
  %3001 = vrot.lane.b32.xlu0 %v1232, 104
  %v3002 = vpop.permute.xlu0 %3001
  %v3005 = vsel %vm1002, %v3000, 0
  %3007 = vmatpush.bf16.msra.mxu0 0
  %3008 = vmatpush.bf16.msra.mxu0 0
  %3009 = vmatpush.bf16.msra.mxu0 0
  %3010 = vmatpush.bf16.msra.mxu0 0
  %3011 = vmatpush.bf16.msra.mxu0 0
  %3012 = vmatpush.bf16.msra.mxu0 0
  %3013 = vmatpush.bf16.msra.mxu0 0
  %3014 = vmatpush.bf16.msra.mxu0 %v3002
  %3015 = vmatmul.bf16.gmra.mxu0 %v3005
  %v3016 = vpop.f32.mrf.mxu0
  %v3017 = vadd.f32 0.0, %v3016
  %v3018 = vpop.f32.mrf.mxu0
  %v3019 = vadd.f32 0.0, %v3018
  %3020 = vdwg.mxu0
  %v3023 = vunpack.c.l.b16 %v2959
  %v3024 = vunpack.c.l.b16 %v2960
  %v3025 = vpack.c.b16 %v3024, %v3023
  %3026 = vrot.lane.b32.xlu0 %v1260, 104
  %v3027 = vpop.permute.xlu0 %3026
  %v3030 = vsel %vm1002, %v3025, 0
  %3032 = vmatpush.bf16.msra.mxu0 0
  %3033 = vmatpush.bf16.msra.mxu0 0
  %3034 = vmatpush.bf16.msra.mxu0 0
  %3035 = vmatpush.bf16.msra.mxu0 0
  %3036 = vmatpush.bf16.msra.mxu0 0
  %3037 = vmatpush.bf16.msra.mxu0 0
  %3038 = vmatpush.bf16.msra.mxu0 0
  %3039 = vmatpush.bf16.msra.mxu0 %v3027
  %3040 = vmatmul.bf16.gmra.mxu0 %v3030
  %v3041 = vpop.f32.mrf.mxu0
  %v3042 = vadd.f32 0.0, %v3041
  %v3043 = vpop.f32.mrf.mxu0
  %v3044 = vadd.f32 0.0, %v3043
  %3045 = vdwg.mxu0
  %v3048 = vunpack.c.l.b16 %v2961
  %v3049 = vunpack.c.l.b16 %v2962
  %v3050 = vpack.c.b16 %v3049, %v3048
  %3051 = vrot.lane.b32.xlu0 %v1288, 104
  %v3052 = vpop.permute.xlu0 %3051
  %v3055 = vsel %vm1002, %v3050, 0
  %3057 = vmatpush.bf16.msra.mxu0 0
  %3058 = vmatpush.bf16.msra.mxu0 0
  %3059 = vmatpush.bf16.msra.mxu0 0
  %3060 = vmatpush.bf16.msra.mxu0 0
  %3061 = vmatpush.bf16.msra.mxu0 0
  %3062 = vmatpush.bf16.msra.mxu0 0
  %3063 = vmatpush.bf16.msra.mxu0 0
  %3064 = vmatpush.bf16.msra.mxu0 %v3052
  %3065 = vmatmul.bf16.gmra.mxu0 %v3055
  %v3066 = vpop.f32.mrf.mxu0
  %v3067 = vadd.f32 0.0, %v3066
  %v3068 = vpop.f32.mrf.mxu0
  %v3069 = vadd.f32 0.0, %v3068
  %3070 = vdwg.mxu0
  %v3073 = vunpack.c.l.b16 %v2963
  %v3074 = vunpack.c.l.b16 %v2964
  %v3075 = vpack.c.b16 %v3074, %v3073
  %3076 = vrot.lane.b32.xlu0 %v1316, 104
  %v3077 = vpop.permute.xlu0 %3076
  %v3080 = vsel %vm1002, %v3075, 0
  %3082 = vmatpush.bf16.msra.mxu0 0
  %3083 = vmatpush.bf16.msra.mxu0 0
  %3084 = vmatpush.bf16.msra.mxu0 0
  %3085 = vmatpush.bf16.msra.mxu0 0
  %3086 = vmatpush.bf16.msra.mxu0 0
  %3087 = vmatpush.bf16.msra.mxu0 0
  %3088 = vmatpush.bf16.msra.mxu0 0
  %3089 = vmatpush.bf16.msra.mxu0 %v3077
  %3090 = vmatmul.bf16.gmra.mxu0 %v3080
  %v3091 = vpop.f32.mrf.mxu0
  %v3092 = vadd.f32 0.0, %v3091
  %v3093 = vpop.f32.mrf.mxu0
  %v3094 = vadd.f32 0.0, %v3093
  %3095 = vdwg.mxu0
  %v3098 = vunpack.c.l.b16 %v2965
  %v3099 = vunpack.c.l.b16 %v2966
  %v3100 = vpack.c.b16 %v3099, %v3098
  %3101 = vrot.lane.b32.xlu0 %v1344, 104
  %v3102 = vpop.permute.xlu0 %3101
  %v3105 = vsel %vm1002, %v3100, 0
  %3107 = vmatpush.bf16.msra.mxu0 0
  %3108 = vmatpush.bf16.msra.mxu0 0
  %3109 = vmatpush.bf16.msra.mxu0 0
  %3110 = vmatpush.bf16.msra.mxu0 0
  %3111 = vmatpush.bf16.msra.mxu0 0
  %3112 = vmatpush.bf16.msra.mxu0 0
  %3113 = vmatpush.bf16.msra.mxu0 0
  %3114 = vmatpush.bf16.msra.mxu0 %v3102
  %3115 = vmatmul.bf16.gmra.mxu0 %v3105
  %v3116 = vpop.f32.mrf.mxu0
  %v3117 = vadd.f32 0.0, %v3116
  %v3118 = vpop.f32.mrf.mxu0
  %v3119 = vadd.f32 0.0, %v3118
  %3120 = vdwg.mxu0
  %v3123 = vunpack.c.l.b16 %v2967
  %v3124 = vunpack.c.l.b16 %v2968
  %v3125 = vpack.c.b16 %v3124, %v3123
  %3126 = vrot.lane.b32.xlu0 %v1372, 104
  %v3127 = vpop.permute.xlu0 %3126
  %v3130 = vsel %vm1002, %v3125, 0
  %3132 = vmatpush.bf16.msra.mxu0 0
  %3133 = vmatpush.bf16.msra.mxu0 0
  %3134 = vmatpush.bf16.msra.mxu0 0
  %3135 = vmatpush.bf16.msra.mxu0 0
  %3136 = vmatpush.bf16.msra.mxu0 0
  %3137 = vmatpush.bf16.msra.mxu0 0
  %3138 = vmatpush.bf16.msra.mxu0 0
  %3139 = vmatpush.bf16.msra.mxu0 %v3127
  %3140 = vmatmul.bf16.gmra.mxu0 %v3130
  %v3141 = vpop.f32.mrf.mxu0
  %v3142 = vadd.f32 0.0, %v3141
  %v3143 = vpop.f32.mrf.mxu0
  %v3144 = vadd.f32 0.0, %v3143
  %3145 = vdwg.mxu0
  %v3148 = vunpack.c.l.b16 %v2969
  %v3149 = vunpack.c.l.b16 %v2970
  %v3150 = vpack.c.b16 %v3149, %v3148
  %3151 = vrot.lane.b32.xlu0 %v1400, 104
  %v3152 = vpop.permute.xlu0 %3151
  %v3155 = vsel %vm1002, %v3150, 0
  %3157 = vmatpush.bf16.msra.mxu0 0
  %3158 = vmatpush.bf16.msra.mxu0 0
  %3159 = vmatpush.bf16.msra.mxu0 0
  %3160 = vmatpush.bf16.msra.mxu0 0
  %3161 = vmatpush.bf16.msra.mxu0 0
  %3162 = vmatpush.bf16.msra.mxu0 0
  %3163 = vmatpush.bf16.msra.mxu0 0
  %3164 = vmatpush.bf16.msra.mxu0 %v3152
  %3165 = vmatmul.bf16.gmra.mxu0 %v3155
  %v3166 = vpop.f32.mrf.mxu0
  %v3167 = vadd.f32 0.0, %v3166
  %v3168 = vpop.f32.mrf.mxu0
  %v3169 = vadd.f32 0.0, %v3168
  %3170 = vdwg.mxu0
  %3187 = vrot.lane.b32.xlu0 %v1824, 8
  %v3188 = vpop.permute.xlu0 %3187
  %3189 = vrot.lane.b32.xlu0 %v1826, 8
  %v3190 = vpop.permute.xlu0 %3189
  %3191 = vrot.lane.b32.xlu0 %v1849, 8
  %v3192 = vpop.permute.xlu0 %3191
  %3193 = vrot.lane.b32.xlu0 %v1851, 8
  %v3194 = vpop.permute.xlu0 %3193
  %3195 = vrot.lane.b32.xlu0 %v1874, 8
  %v3196 = vpop.permute.xlu0 %3195
  %3197 = vrot.lane.b32.xlu0 %v1876, 8
  %v3198 = vpop.permute.xlu0 %3197
  %3199 = vrot.lane.b32.xlu0 %v1899, 8
  %v3200 = vpop.permute.xlu0 %3199
  %3201 = vrot.lane.b32.xlu0 %v1901, 8
  %v3202 = vpop.permute.xlu0 %3201
  %3203 = vrot.lane.b32.xlu0 %v1924, 8
  %v3204 = vpop.permute.xlu0 %3203
  %3205 = vrot.lane.b32.xlu0 %v1926, 8
  %v3206 = vpop.permute.xlu0 %3205
  %3207 = vrot.lane.b32.xlu0 %v1949, 8
  %v3208 = vpop.permute.xlu0 %3207
  %3209 = vrot.lane.b32.xlu0 %v1951, 8
  %v3210 = vpop.permute.xlu0 %3209
  %3211 = vrot.lane.b32.xlu0 %v1974, 8
  %v3212 = vpop.permute.xlu0 %3211
  %3213 = vrot.lane.b32.xlu0 %v1976, 8
  %v3214 = vpop.permute.xlu0 %3213
  %3215 = vrot.lane.b32.xlu0 %v1999, 8
  %v3216 = vpop.permute.xlu0 %3215
  %3217 = vrot.lane.b32.xlu0 %v2001, 8
  %v3218 = vpop.permute.xlu0 %3217
  %3251 = vrot.lane.b32.xlu0 %v2408, 16
  %v3252 = vpop.permute.xlu0 %3251
  %3253 = vrot.lane.b32.xlu0 %v2410, 16
  %v3254 = vpop.permute.xlu0 %3253
  %3255 = vrot.lane.b32.xlu0 %v2433, 16
  %v3256 = vpop.permute.xlu0 %3255
  %3257 = vrot.lane.b32.xlu0 %v2435, 16
  %v3258 = vpop.permute.xlu0 %3257
  %3259 = vrot.lane.b32.xlu0 %v2458, 16
  %v3260 = vpop.permute.xlu0 %3259
  %3261 = vrot.lane.b32.xlu0 %v2460, 16
  %v3262 = vpop.permute.xlu0 %3261
  %3263 = vrot.lane.b32.xlu0 %v2483, 16
  %v3264 = vpop.permute.xlu0 %3263
  %3265 = vrot.lane.b32.xlu0 %v2485, 16
  %v3266 = vpop.permute.xlu0 %3265
  %3267 = vrot.lane.b32.xlu0 %v2508, 16
  %v3268 = vpop.permute.xlu0 %3267
  %3269 = vrot.lane.b32.xlu0 %v2510, 16
  %v3270 = vpop.permute.xlu0 %3269
  %3271 = vrot.lane.b32.xlu0 %v2533, 16
  %v3272 = vpop.permute.xlu0 %3271
  %3273 = vrot.lane.b32.xlu0 %v2535, 16
  %v3274 = vpop.permute.xlu0 %3273
  %3275 = vrot.lane.b32.xlu0 %v2558, 16
  %v3276 = vpop.permute.xlu0 %3275
  %3277 = vrot.lane.b32.xlu0 %v2560, 16
  %v3278 = vpop.permute.xlu0 %3277
  %3279 = vrot.lane.b32.xlu0 %v2583, 16
  %v3280 = vpop.permute.xlu0 %3279
  %3281 = vrot.lane.b32.xlu0 %v2585, 16
  %v3282 = vpop.permute.xlu0 %3281
  %3315 = vrot.lane.b32.xlu0 %v2992, 24
  %v3316 = vpop.permute.xlu0 %3315
  %3317 = vrot.lane.b32.xlu0 %v2994, 24
  %v3318 = vpop.permute.xlu0 %3317
  %3319 = vrot.lane.b32.xlu0 %v3017, 24
  %v3320 = vpop.permute.xlu0 %3319
  %3321 = vrot.lane.b32.xlu0 %v3019, 24
  %v3322 = vpop.permute.xlu0 %3321
  %3323 = vrot.lane.b32.xlu0 %v3042, 24
  %v3324 = vpop.permute.xlu0 %3323
  %3325 = vrot.lane.b32.xlu0 %v3044, 24
  %v3326 = vpop.permute.xlu0 %3325
  %3327 = vrot.lane.b32.xlu0 %v3067, 24
  %v3328 = vpop.permute.xlu0 %3327
  %3329 = vrot.lane.b32.xlu0 %v3069, 24
  %v3330 = vpop.permute.xlu0 %3329
  %3331 = vrot.lane.b32.xlu0 %v3092, 24
  %v3332 = vpop.permute.xlu0 %3331
  %3333 = vrot.lane.b32.xlu0 %v3094, 24
  %v3334 = vpop.permute.xlu0 %3333
  %3335 = vrot.lane.b32.xlu0 %v3117, 24
  %v3336 = vpop.permute.xlu0 %3335
  %3337 = vrot.lane.b32.xlu0 %v3119, 24
  %v3338 = vpop.permute.xlu0 %3337
  %3339 = vrot.lane.b32.xlu0 %v3142, 24
  %v3340 = vpop.permute.xlu0 %3339
  %3341 = vrot.lane.b32.xlu0 %v3144, 24
  %v3342 = vpop.permute.xlu0 %3341
  %3343 = vrot.lane.b32.xlu0 %v3167, 24
  %v3344 = vpop.permute.xlu0 %3343
  %3345 = vrot.lane.b32.xlu0 %v3169, 24
  %v3346 = vpop.permute.xlu0 %3345
  %v3363 = vsel %vm771, %v1219, %v3188
  %v3364 = vsel %vm771, %v1221, %v3190
  %v3365 = vsel %vm771, %v1247, %v3192
  %v3366 = vsel %vm771, %v1249, %v3194
  %v3367 = vsel %vm771, %v1275, %v3196
  %v3368 = vsel %vm771, %v1277, %v3198
  %v3369 = vsel %vm771, %v1303, %v3200
  %v3370 = vsel %vm771, %v1305, %v3202
  %v3371 = vsel %vm771, %v1331, %v3204
  %v3372 = vsel %vm771, %v1333, %v3206
  %v3373 = vsel %vm771, %v1359, %v3208
  %v3374 = vsel %vm771, %v1361, %v3210
  %v3375 = vsel %vm771, %v1387, %v3212
  %v3376 = vsel %vm771, %v1389, %v3214
  %v3377 = vsel %vm771, %v1415, %v3216
  %v3378 = vsel %vm771, %v1417, %v3218
  %v3379 = vsel %vm1002, %v3363, %v3252
  %v3380 = vsel %vm1002, %v3364, %v3254
  %v3381 = vsel %vm1002, %v3365, %v3256
  %v3382 = vsel %vm1002, %v3366, %v3258
  %v3383 = vsel %vm1002, %v3367, %v3260
  %v3384 = vsel %vm1002, %v3368, %v3262
  %v3385 = vsel %vm1002, %v3369, %v3264
  %v3386 = vsel %vm1002, %v3370, %v3266
  %v3387 = vsel %vm1002, %v3371, %v3268
  %v3388 = vsel %vm1002, %v3372, %v3270
  %v3389 = vsel %vm1002, %v3373, %v3272
  %v3390 = vsel %vm1002, %v3374, %v3274
  %v3391 = vsel %vm1002, %v3375, %v3276
  %v3392 = vsel %vm1002, %v3376, %v3278
  %v3393 = vsel %vm1002, %v3377, %v3280
  %v3394 = vsel %vm1002, %v3378, %v3282
  %vm3395 = vcmask 195584
  %v3396 = vsel %vm3395, %v3379, %v3316
  %v3397 = vsel %vm3395, %v3380, %v3318
  %v3398 = vsel %vm3395, %v3381, %v3320
  %v3399 = vsel %vm3395, %v3382, %v3322
  %v3400 = vsel %vm3395, %v3383, %v3324
  %v3401 = vsel %vm3395, %v3384, %v3326
  %v3402 = vsel %vm3395, %v3385, %v3328
  %v3403 = vsel %vm3395, %v3386, %v3330
  %v3404 = vsel %vm3395, %v3387, %v3332
  %v3405 = vsel %vm3395, %v3388, %v3334
  %v3406 = vsel %vm3395, %v3389, %v3336
  %v3407 = vsel %vm3395, %v3390, %v3338
  %v3408 = vsel %vm3395, %v3391, %v3340
  %v3409 = vsel %vm3395, %v3392, %v3342
  %v3410 = vsel %vm3395, %v3393, %v3344
  %v3411 = vsel %vm3395, %v3394, %v3346
  %v3412 = vpack.c.bf16 %v3397, %v3396
  %v3413 = vpack.c.bf16 %v3399, %v3398
  %v3414 = vpack.c.bf16 %v3401, %v3400
  %v3415 = vpack.c.bf16 %v3403, %v3402
  %v3416 = vpack.c.bf16 %v3405, %v3404
  %v3417 = vpack.c.bf16 %v3407, %v3406
  %v3418 = vpack.c.bf16 %v3409, %v3408
  %v3419 = vpack.c.bf16 %v3411, %v3410
  %v3420 = vld [vmem:[%s5] sm:$0xf]
  %v3421 = vld [vmem:[%s5 + $0x4] sm:$0xf]
  %v3422 = vld [vmem:[%s5 + $0x8] sm:$0xf]
  %v3423 = vld [vmem:[%s5 + $0xc] sm:$0xf]
  %v3424 = vld [vmem:[%s6] sm:$0x1]
  %v3426 = vperm.slane %v3424, 0
  %v3432 = vunpack.c.l.b16 %v3420
  %v3433 = vunpack.c.l.b16 %v3421
  %v3434 = vunpack.c.l.b16 %v3422
  %v3435 = vunpack.c.l.b16 %v3423
  %v3436 = vpack.c.b16 %v3433, %v3432
  %v3437 = vpack.c.b16 %v3435, %v3434
  %v3441 = vsel %vm46, %v3412, 0
  %v3444 = vsel %vm46, %v3413, 0
  %v3447 = vsel %vm46, %v3414, 0
  %v3450 = vsel %vm46, %v3415, 0
  %v3453 = vsel %vm46, %v3416, 0
  %v3456 = vsel %vm46, %v3417, 0
  %v3459 = vsel %vm46, %v3418, 0
  %v3462 = vsel %vm46, %v3419, 0
  %3464 = vmatpush.bf16.msra.mxu0 0
  %3465 = vmatpush.bf16.msra.mxu0 0
  %3466 = vmatpush.bf16.msra.mxu0 0
  %3467 = vmatpush.bf16.msra.mxu0 0
  %3468 = vmatpush.bf16.msra.mxu0 0
  %3469 = vmatpush.bf16.msra.mxu0 0
  %3470 = vmatpush.bf16.msra.mxu0 %v3437
  %3471 = vmatpush.bf16.msra.mxu0 %v3436
  %3472 = vmatmul.bf16.gmra.mxu0 %v3441
  %v3473 = vpop.f32.mrf.mxu0
  %v3474 = vadd.f32 %v3426, %v3473
  %v3475 = vpop.f32.mrf.mxu0
  %v3476 = vadd.f32 %v3426, %v3475
  %3477 = vmatmul.bf16.gmra.mxu0 %v3444
  %v3478 = vpop.f32.mrf.mxu0
  %v3479 = vadd.f32 %v3426, %v3478
  %v3480 = vpop.f32.mrf.mxu0
  %v3481 = vadd.f32 %v3426, %v3480
  %3482 = vmatmul.bf16.gmra.mxu0 %v3447
  %v3483 = vpop.f32.mrf.mxu0
  %v3484 = vadd.f32 %v3426, %v3483
  %v3485 = vpop.f32.mrf.mxu0
  %v3486 = vadd.f32 %v3426, %v3485
  %3487 = vmatmul.bf16.gmra.mxu0 %v3450
  %v3488 = vpop.f32.mrf.mxu0
  %v3489 = vadd.f32 %v3426, %v3488
  %v3490 = vpop.f32.mrf.mxu0
  %v3491 = vadd.f32 %v3426, %v3490
  %3492 = vmatmul.bf16.gmra.mxu0 %v3453
  %v3493 = vpop.f32.mrf.mxu0
  %v3494 = vadd.f32 %v3426, %v3493
  %v3495 = vpop.f32.mrf.mxu0
  %v3496 = vadd.f32 %v3426, %v3495
  %3497 = vmatmul.bf16.gmra.mxu0 %v3456
  %v3498 = vpop.f32.mrf.mxu0
  %v3499 = vadd.f32 %v3426, %v3498
  %v3500 = vpop.f32.mrf.mxu0
  %v3501 = vadd.f32 %v3426, %v3500
  %3502 = vmatmul.bf16.gmra.mxu0 %v3459
  %v3503 = vpop.f32.mrf.mxu0
  %v3504 = vadd.f32 %v3426, %v3503
  %v3505 = vpop.f32.mrf.mxu0
  %v3506 = vadd.f32 %v3426, %v3505
  %3507 = vmatmul.bf16.gmra.mxu0 %v3462
  %v3508 = vpop.f32.mrf.mxu0
  %v3509 = vadd.f32 %v3426, %v3508
  %v3510 = vpop.f32.mrf.mxu0
  %v3511 = vadd.f32 %v3426, %v3510
  %3512 = vdwg.mxu0
  %v3513 = vmul.f32 %v3474, 0.5
  %v3514 = vmul.f32 %v3476, 0.5
  %v3515 = vmul.f32 %v3479, 0.5
  %v3516 = vmul.f32 %v3481, 0.5
  %v3517 = vmul.f32 %v3484, 0.5
  %v3518 = vmul.f32 %v3486, 0.5
  %v3519 = vmul.f32 %v3489, 0.5
  %v3520 = vmul.f32 %v3491, 0.5
  %v3521 = vmul.f32 %v3494, 0.5
  %v3522 = vmul.f32 %v3496, 0.5
  %v3523 = vmul.f32 %v3499, 0.5
  %v3524 = vmul.f32 %v3501, 0.5
  %v3525 = vmul.f32 %v3504, 0.5
  %v3526 = vmul.f32 %v3506, 0.5
  %v3527 = vmul.f32 %v3509, 0.5
  %v3528 = vmul.f32 %v3511, 0.5
  %v3529 = vmul.f32 %v3474, 0.70710677
  %v3530 = vmul.f32 %v3476, 0.70710677
  %v3531 = vmul.f32 %v3479, 0.70710677
  %v3532 = vmul.f32 %v3481, 0.70710677
  %v3533 = vmul.f32 %v3484, 0.70710677
  %v3534 = vmul.f32 %v3486, 0.70710677
  %v3535 = vmul.f32 %v3489, 0.70710677
  %v3536 = vmul.f32 %v3491, 0.70710677
  %v3537 = vmul.f32 %v3494, 0.70710677
  %v3538 = vmul.f32 %v3496, 0.70710677
  %v3539 = vmul.f32 %v3499, 0.70710677
  %v3540 = vmul.f32 %v3501, 0.70710677
  %v3541 = vmul.f32 %v3504, 0.70710677
  %v3542 = vmul.f32 %v3506, 0.70710677
  %v3543 = vmul.f32 %v3509, 0.70710677
  %v3544 = vmul.f32 %v3511, 0.70710677
  %v3545 = vmul.f32 %v3529, %v3529
  %v3546 = vmin.f32 16.0, %v3545
  %v3547 = vmul.f32 %v3546, 2.1237322e-06
  %v3548 = vadd.f32 %v3547, 0.00028619796
  %v3549 = vmul.f32 %v3546, %v3548
  %v3550 = vadd.f32 %v3549, 0.0036580483
  %v3551 = vmul.f32 %v3546, %v3550
  %v3552 = vadd.f32 %v3551, 0.05243302
  %v3553 = vmul.f32 %v3546, %v3552
  %v3554 = vadd.f32 %v3553, 0.18741608
  %v3555 = vmul.f32 %v3546, %v3554
  %v3556 = vadd.f32 %v3555, 1.1283791
  %v3557 = vmul.f32 %v3529, %v3556
  %v3558 = vmul.f32 %v3546, 3.8918573e-05
  %v3559 = vadd.f32 %v3558, 0.001143296
  %v3560 = vmul.f32 %v3546, %v3559
  %v3561 = vadd.f32 %v3560, 0.014752088
  %v3562 = vmul.f32 %v3546, %v3561
  %v3563 = vadd.f32 %v3562, 0.112945676
  %v3564 = vmul.f32 %v3546, %v3563
  %v3565 = vadd.f32 %v3564, 0.4994258
  %v3566 = vmul.f32 %v3546, %v3565
  %v3567 = vadd.f32 %v3566, 1.0
  %v3568 = vrcp.pop %v3567
  %v3569 = vmul.f32 %v3567, %v3568
  %v3570 = vsub.f32 1.0, %v3569
  %v3571 = vmul.f32 %v3568, %v3570
  %v3572 = vadd.f32 %v3568, %v3571
  %vm3573 = vweird.f32 %v3567
  %vm3574 = vweird.f32 %v3568
  %vm3575 = vmor %vm3573, %vm3574
  %v3576 = vsel %vm3575, %v3568, %v3572
  %v3577 = vand.u32 2147483647, %v3567
  %vm3578 = vcmp.eq.f32.partialorder %v3577, 8.507059e+37
  %v3579 = vand.u32 %v3567, 2147483648
  %v3580 = vor.u32 1.1754944e-38, %v3579
  %v3581 = vsel %vm3578, %v3580, %v3576
  %v3582 = vmul.f32 %v3557, %v3581
  %v3583 = vmin.f32 %v3582, 1.0
  %v3584 = vmax.f32 %v3583, -1.0
  %v3585 = vmul.f32 %v3530, %v3530
  %v3586 = vmin.f32 16.0, %v3585
  %v3587 = vmul.f32 %v3586, 2.1237322e-06
  %v3588 = vadd.f32 %v3587, 0.00028619796
  %v3589 = vmul.f32 %v3586, %v3588
  %v3590 = vadd.f32 %v3589, 0.0036580483
  %v3591 = vmul.f32 %v3586, %v3590
  %v3592 = vadd.f32 %v3591, 0.05243302
  %v3593 = vmul.f32 %v3586, %v3592
  %v3594 = vadd.f32 %v3593, 0.18741608
  %v3595 = vmul.f32 %v3586, %v3594
  %v3596 = vadd.f32 %v3595, 1.1283791
  %v3597 = vmul.f32 %v3530, %v3596
  %v3598 = vmul.f32 %v3586, 3.8918573e-05
  %v3599 = vadd.f32 %v3598, 0.001143296
  %v3600 = vmul.f32 %v3586, %v3599
  %v3601 = vadd.f32 %v3600, 0.014752088
  %v3602 = vmul.f32 %v3586, %v3601
  %v3603 = vadd.f32 %v3602, 0.112945676
  %v3604 = vmul.f32 %v3586, %v3603
  %v3605 = vadd.f32 %v3604, 0.4994258
  %v3606 = vmul.f32 %v3586, %v3605
  %v3607 = vadd.f32 %v3606, 1.0
  %v3608 = vrcp.pop %v3607
  %v3609 = vmul.f32 %v3607, %v3608
  %v3610 = vsub.f32 1.0, %v3609
  %v3611 = vmul.f32 %v3608, %v3610
  %v3612 = vadd.f32 %v3608, %v3611
  %vm3613 = vweird.f32 %v3607
  %vm3614 = vweird.f32 %v3608
  %vm3615 = vmor %vm3613, %vm3614
  %v3616 = vsel %vm3615, %v3608, %v3612
  %v3617 = vand.u32 2147483647, %v3607
  %vm3618 = vcmp.eq.f32.partialorder %v3617, 8.507059e+37
  %v3619 = vand.u32 %v3607, 2147483648
  %v3620 = vor.u32 1.1754944e-38, %v3619
  %v3621 = vsel %vm3618, %v3620, %v3616
  %v3622 = vmul.f32 %v3597, %v3621
  %v3623 = vmin.f32 %v3622, 1.0
  %v3624 = vmax.f32 %v3623, -1.0
  %v3625 = vmul.f32 %v3531, %v3531
  %v3626 = vmin.f32 16.0, %v3625
  %v3627 = vmul.f32 %v3626, 2.1237322e-06
  %v3628 = vadd.f32 %v3627, 0.00028619796
  %v3629 = vmul.f32 %v3626, %v3628
  %v3630 = vadd.f32 %v3629, 0.0036580483
  %v3631 = vmul.f32 %v3626, %v3630
  %v3632 = vadd.f32 %v3631, 0.05243302
  %v3633 = vmul.f32 %v3626, %v3632
  %v3634 = vadd.f32 %v3633, 0.18741608
  %v3635 = vmul.f32 %v3626, %v3634
  %v3636 = vadd.f32 %v3635, 1.1283791
  %v3637 = vmul.f32 %v3531, %v3636
  %v3638 = vmul.f32 %v3626, 3.8918573e-05
  %v3639 = vadd.f32 %v3638, 0.001143296
  %v3640 = vmul.f32 %v3626, %v3639
  %v3641 = vadd.f32 %v3640, 0.014752088
  %v3642 = vmul.f32 %v3626, %v3641
  %v3643 = vadd.f32 %v3642, 0.112945676
  %v3644 = vmul.f32 %v3626, %v3643
  %v3645 = vadd.f32 %v3644, 0.4994258
  %v3646 = vmul.f32 %v3626, %v3645
  %v3647 = vadd.f32 %v3646, 1.0
  %v3648 = vrcp.pop %v3647
  %v3649 = vmul.f32 %v3647, %v3648
  %v3650 = vsub.f32 1.0, %v3649
  %v3651 = vmul.f32 %v3648, %v3650
  %v3652 = vadd.f32 %v3648, %v3651
  %vm3653 = vweird.f32 %v3647
  %vm3654 = vweird.f32 %v3648
  %vm3655 = vmor %vm3653, %vm3654
  %v3656 = vsel %vm3655, %v3648, %v3652
  %v3657 = vand.u32 2147483647, %v3647
  %vm3658 = vcmp.eq.f32.partialorder %v3657, 8.507059e+37
  %v3659 = vand.u32 %v3647, 2147483648
  %v3660 = vor.u32 1.1754944e-38, %v3659
  %v3661 = vsel %vm3658, %v3660, %v3656
  %v3662 = vmul.f32 %v3637, %v3661
  %v3663 = vmin.f32 %v3662, 1.0
  %v3664 = vmax.f32 %v3663, -1.0
  %v3665 = vmul.f32 %v3532, %v3532
  %v3666 = vmin.f32 16.0, %v3665
  %v3667 = vmul.f32 %v3666, 2.1237322e-06
  %v3668 = vadd.f32 %v3667, 0.00028619796
  %v3669 = vmul.f32 %v3666, %v3668
  %v3670 = vadd.f32 %v3669, 0.0036580483
  %v3671 = vmul.f32 %v3666, %v3670
  %v3672 = vadd.f32 %v3671, 0.05243302
  %v3673 = vmul.f32 %v3666, %v3672
  %v3674 = vadd.f32 %v3673, 0.18741608
  %v3675 = vmul.f32 %v3666, %v3674
  %v3676 = vadd.f32 %v3675, 1.1283791
  %v3677 = vmul.f32 %v3532, %v3676
  %v3678 = vmul.f32 %v3666, 3.8918573e-05
  %v3679 = vadd.f32 %v3678, 0.001143296
  %v3680 = vmul.f32 %v3666, %v3679
  %v3681 = vadd.f32 %v3680, 0.014752088
  %v3682 = vmul.f32 %v3666, %v3681
  %v3683 = vadd.f32 %v3682, 0.112945676
  %v3684 = vmul.f32 %v3666, %v3683
  %v3685 = vadd.f32 %v3684, 0.4994258
  %v3686 = vmul.f32 %v3666, %v3685
  %v3687 = vadd.f32 %v3686, 1.0
  %v3688 = vrcp.pop %v3687
  %v3689 = vmul.f32 %v3687, %v3688
  %v3690 = vsub.f32 1.0, %v3689
  %v3691 = vmul.f32 %v3688, %v3690
  %v3692 = vadd.f32 %v3688, %v3691
  %vm3693 = vweird.f32 %v3687
  %vm3694 = vweird.f32 %v3688
  %vm3695 = vmor %vm3693, %vm3694
  %v3696 = vsel %vm3695, %v3688, %v3692
  %v3697 = vand.u32 2147483647, %v3687
  %vm3698 = vcmp.eq.f32.partialorder %v3697, 8.507059e+37
  %v3699 = vand.u32 %v3687, 2147483648
  %v3700 = vor.u32 1.1754944e-38, %v3699
  %v3701 = vsel %vm3698, %v3700, %v3696
  %v3702 = vmul.f32 %v3677, %v3701
  %v3703 = vmin.f32 %v3702, 1.0
  %v3704 = vmax.f32 %v3703, -1.0
  %v3705 = vmul.f32 %v3533, %v3533
  %v3706 = vmin.f32 16.0, %v3705
  %v3707 = vmul.f32 %v3706, 2.1237322e-06
  %v3708 = vadd.f32 %v3707, 0.00028619796
  %v3709 = vmul.f32 %v3706, %v3708
  %v3710 = vadd.f32 %v3709, 0.0036580483
  %v3711 = vmul.f32 %v3706, %v3710
  %v3712 = vadd.f32 %v3711, 0.05243302
  %v3713 = vmul.f32 %v3706, %v3712
  %v3714 = vadd.f32 %v3713, 0.18741608
  %v3715 = vmul.f32 %v3706, %v3714
  %v3716 = vadd.f32 %v3715, 1.1283791
  %v3717 = vmul.f32 %v3533, %v3716
  %v3718 = vmul.f32 %v3706, 3.8918573e-05
  %v3719 = vadd.f32 %v3718, 0.001143296
  %v3720 = vmul.f32 %v3706, %v3719
  %v3721 = vadd.f32 %v3720, 0.014752088
  %v3722 = vmul.f32 %v3706, %v3721
  %v3723 = vadd.f32 %v3722, 0.112945676
  %v3724 = vmul.f32 %v3706, %v3723
  %v3725 = vadd.f32 %v3724, 0.4994258
  %v3726 = vmul.f32 %v3706, %v3725
  %v3727 = vadd.f32 %v3726, 1.0
  %v3728 = vrcp.pop %v3727
  %v3729 = vmul.f32 %v3727, %v3728
  %v3730 = vsub.f32 1.0, %v3729
  %v3731 = vmul.f32 %v3728, %v3730
  %v3732 = vadd.f32 %v3728, %v3731
  %vm3733 = vweird.f32 %v3727
  %vm3734 = vweird.f32 %v3728
  %vm3735 = vmor %vm3733, %vm3734
  %v3736 = vsel %vm3735, %v3728, %v3732
  %v3737 = vand.u32 2147483647, %v3727
  %vm3738 = vcmp.eq.f32.partialorder %v3737, 8.507059e+37
  %v3739 = vand.u32 %v3727, 2147483648
  %v3740 = vor.u32 1.1754944e-38, %v3739
  %v3741 = vsel %vm3738, %v3740, %v3736
  %v3742 = vmul.f32 %v3717, %v3741
  %v3743 = vmin.f32 %v3742, 1.0
  %v3744 = vmax.f32 %v3743, -1.0
  %v3745 = vmul.f32 %v3534, %v3534
  %v3746 = vmin.f32 16.0, %v3745
  %v3747 = vmul.f32 %v3746, 2.1237322e-06
  %v3748 = vadd.f32 %v3747, 0.00028619796
  %v3749 = vmul.f32 %v3746, %v3748
  %v3750 = vadd.f32 %v3749, 0.0036580483
  %v3751 = vmul.f32 %v3746, %v3750
  %v3752 = vadd.f32 %v3751, 0.05243302
  %v3753 = vmul.f32 %v3746, %v3752
  %v3754 = vadd.f32 %v3753, 0.18741608
  %v3755 = vmul.f32 %v3746, %v3754
  %v3756 = vadd.f32 %v3755, 1.1283791
  %v3757 = vmul.f32 %v3534, %v3756
  %v3758 = vmul.f32 %v3746, 3.8918573e-05
  %v3759 = vadd.f32 %v3758, 0.001143296
  %v3760 = vmul.f32 %v3746, %v3759
  %v3761 = vadd.f32 %v3760, 0.014752088
  %v3762 = vmul.f32 %v3746, %v3761
  %v3763 = vadd.f32 %v3762, 0.112945676
  %v3764 = vmul.f32 %v3746, %v3763
  %v3765 = vadd.f32 %v3764, 0.4994258
  %v3766 = vmul.f32 %v3746, %v3765
  %v3767 = vadd.f32 %v3766, 1.0
  %v3768 = vrcp.pop %v3767
  %v3769 = vmul.f32 %v3767, %v3768
  %v3770 = vsub.f32 1.0, %v3769
  %v3771 = vmul.f32 %v3768, %v3770
  %v3772 = vadd.f32 %v3768, %v3771
  %vm3773 = vweird.f32 %v3767
  %vm3774 = vweird.f32 %v3768
  %vm3775 = vmor %vm3773, %vm3774
  %v3776 = vsel %vm3775, %v3768, %v3772
  %v3777 = vand.u32 2147483647, %v3767
  %vm3778 = vcmp.eq.f32.partialorder %v3777, 8.507059e+37
  %v3779 = vand.u32 %v3767, 2147483648
  %v3780 = vor.u32 1.1754944e-38, %v3779
  %v3781 = vsel %vm3778, %v3780, %v3776
  %v3782 = vmul.f32 %v3757, %v3781
  %v3783 = vmin.f32 %v3782, 1.0
  %v3784 = vmax.f32 %v3783, -1.0
  %v3785 = vmul.f32 %v3535, %v3535
  %v3786 = vmin.f32 16.0, %v3785
  %v3787 = vmul.f32 %v3786, 2.1237322e-06
  %v3788 = vadd.f32 %v3787, 0.00028619796
  %v3789 = vmul.f32 %v3786, %v3788
  %v3790 = vadd.f32 %v3789, 0.0036580483
  %v3791 = vmul.f32 %v3786, %v3790
  %v3792 = vadd.f32 %v3791, 0.05243302
  %v3793 = vmul.f32 %v3786, %v3792
  %v3794 = vadd.f32 %v3793, 0.18741608
  %v3795 = vmul.f32 %v3786, %v3794
  %v3796 = vadd.f32 %v3795, 1.1283791
  %v3797 = vmul.f32 %v3535, %v3796
  %v3798 = vmul.f32 %v3786, 3.8918573e-05
  %v3799 = vadd.f32 %v3798, 0.001143296
  %v3800 = vmul.f32 %v3786, %v3799
  %v3801 = vadd.f32 %v3800, 0.014752088
  %v3802 = vmul.f32 %v3786, %v3801
  %v3803 = vadd.f32 %v3802, 0.112945676
  %v3804 = vmul.f32 %v3786, %v3803
  %v3805 = vadd.f32 %v3804, 0.4994258
  %v3806 = vmul.f32 %v3786, %v3805
  %v3807 = vadd.f32 %v3806, 1.0
  %v3808 = vrcp.pop %v3807
  %v3809 = vmul.f32 %v3807, %v3808
  %v3810 = vsub.f32 1.0, %v3809
  %v3811 = vmul.f32 %v3808, %v3810
  %v3812 = vadd.f32 %v3808, %v3811
  %vm3813 = vweird.f32 %v3807
  %vm3814 = vweird.f32 %v3808
  %vm3815 = vmor %vm3813, %vm3814
  %v3816 = vsel %vm3815, %v3808, %v3812
  %v3817 = vand.u32 2147483647, %v3807
  %vm3818 = vcmp.eq.f32.partialorder %v3817, 8.507059e+37
  %v3819 = vand.u32 %v3807, 2147483648
  %v3820 = vor.u32 1.1754944e-38, %v3819
  %v3821 = vsel %vm3818, %v3820, %v3816
  %v3822 = vmul.f32 %v3797, %v3821
  %v3823 = vmin.f32 %v3822, 1.0
  %v3824 = vmax.f32 %v3823, -1.0
  %v3825 = vmul.f32 %v3536, %v3536
  %v3826 = vmin.f32 16.0, %v3825
  %v3827 = vmul.f32 %v3826, 2.1237322e-06
  %v3828 = vadd.f32 %v3827, 0.00028619796
  %v3829 = vmul.f32 %v3826, %v3828
  %v3830 = vadd.f32 %v3829, 0.0036580483
  %v3831 = vmul.f32 %v3826, %v3830
  %v3832 = vadd.f32 %v3831, 0.05243302
  %v3833 = vmul.f32 %v3826, %v3832
  %v3834 = vadd.f32 %v3833, 0.18741608
  %v3835 = vmul.f32 %v3826, %v3834
  %v3836 = vadd.f32 %v3835, 1.1283791
  %v3837 = vmul.f32 %v3536, %v3836
  %v3838 = vmul.f32 %v3826, 3.8918573e-05
  %v3839 = vadd.f32 %v3838, 0.001143296
  %v3840 = vmul.f32 %v3826, %v3839
  %v3841 = vadd.f32 %v3840, 0.014752088
  %v3842 = vmul.f32 %v3826, %v3841
  %v3843 = vadd.f32 %v3842, 0.112945676
  %v3844 = vmul.f32 %v3826, %v3843
  %v3845 = vadd.f32 %v3844, 0.4994258
  %v3846 = vmul.f32 %v3826, %v3845
  %v3847 = vadd.f32 %v3846, 1.0
  %v3848 = vrcp.pop %v3847
  %v3849 = vmul.f32 %v3847, %v3848
  %v3850 = vsub.f32 1.0, %v3849
  %v3851 = vmul.f32 %v3848, %v3850
  %v3852 = vadd.f32 %v3848, %v3851
  %vm3853 = vweird.f32 %v3847
  %vm3854 = vweird.f32 %v3848
  %vm3855 = vmor %vm3853, %vm3854
  %v3856 = vsel %vm3855, %v3848, %v3852
  %v3857 = vand.u32 2147483647, %v3847
  %vm3858 = vcmp.eq.f32.partialorder %v3857, 8.507059e+37
  %v3859 = vand.u32 %v3847, 2147483648
  %v3860 = vor.u32 1.1754944e-38, %v3859
  %v3861 = vsel %vm3858, %v3860, %v3856
  %v3862 = vmul.f32 %v3837, %v3861
  %v3863 = vmin.f32 %v3862, 1.0
  %v3864 = vmax.f32 %v3863, -1.0
  %v3865 = vmul.f32 %v3537, %v3537
  %v3866 = vmin.f32 16.0, %v3865
  %v3867 = vmul.f32 %v3866, 2.1237322e-06
  %v3868 = vadd.f32 %v3867, 0.00028619796
  %v3869 = vmul.f32 %v3866, %v3868
  %v3870 = vadd.f32 %v3869, 0.0036580483
  %v3871 = vmul.f32 %v3866, %v3870
  %v3872 = vadd.f32 %v3871, 0.05243302
  %v3873 = vmul.f32 %v3866, %v3872
  %v3874 = vadd.f32 %v3873, 0.18741608
  %v3875 = vmul.f32 %v3866, %v3874
  %v3876 = vadd.f32 %v3875, 1.1283791
  %v3877 = vmul.f32 %v3537, %v3876
  %v3878 = vmul.f32 %v3866, 3.8918573e-05
  %v3879 = vadd.f32 %v3878, 0.001143296
  %v3880 = vmul.f32 %v3866, %v3879
  %v3881 = vadd.f32 %v3880, 0.014752088
  %v3882 = vmul.f32 %v3866, %v3881
  %v3883 = vadd.f32 %v3882, 0.112945676
  %v3884 = vmul.f32 %v3866, %v3883
  %v3885 = vadd.f32 %v3884, 0.4994258
  %v3886 = vmul.f32 %v3866, %v3885
  %v3887 = vadd.f32 %v3886, 1.0
  %v3888 = vrcp.pop %v3887
  %v3889 = vmul.f32 %v3887, %v3888
  %v3890 = vsub.f32 1.0, %v3889
  %v3891 = vmul.f32 %v3888, %v3890
  %v3892 = vadd.f32 %v3888, %v3891
  %vm3893 = vweird.f32 %v3887
  %vm3894 = vweird.f32 %v3888
  %vm3895 = vmor %vm3893, %vm3894
  %v3896 = vsel %vm3895, %v3888, %v3892
  %v3897 = vand.u32 2147483647, %v3887
  %vm3898 = vcmp.eq.f32.partialorder %v3897, 8.507059e+37
  %v3899 = vand.u32 %v3887, 2147483648
  %v3900 = vor.u32 1.1754944e-38, %v3899
  %v3901 = vsel %vm3898, %v3900, %v3896
  %v3902 = vmul.f32 %v3877, %v3901
  %v3903 = vmin.f32 %v3902, 1.0
  %v3904 = vmax.f32 %v3903, -1.0
  %v3905 = vmul.f32 %v3538, %v3538
  %v3906 = vmin.f32 16.0, %v3905
  %v3907 = vmul.f32 %v3906, 2.1237322e-06
  %v3908 = vadd.f32 %v3907, 0.00028619796
  %v3909 = vmul.f32 %v3906, %v3908
  %v3910 = vadd.f32 %v3909, 0.0036580483
  %v3911 = vmul.f32 %v3906, %v3910
  %v3912 = vadd.f32 %v3911, 0.05243302
  %v3913 = vmul.f32 %v3906, %v3912
  %v3914 = vadd.f32 %v3913, 0.18741608
  %v3915 = vmul.f32 %v3906, %v3914
  %v3916 = vadd.f32 %v3915, 1.1283791
  %v3917 = vmul.f32 %v3538, %v3916
  %v3918 = vmul.f32 %v3906, 3.8918573e-05
  %v3919 = vadd.f32 %v3918, 0.001143296
  %v3920 = vmul.f32 %v3906, %v3919
  %v3921 = vadd.f32 %v3920, 0.014752088
  %v3922 = vmul.f32 %v3906, %v3921
  %v3923 = vadd.f32 %v3922, 0.112945676
  %v3924 = vmul.f32 %v3906, %v3923
  %v3925 = vadd.f32 %v3924, 0.4994258
  %v3926 = vmul.f32 %v3906, %v3925
  %v3927 = vadd.f32 %v3926, 1.0
  %v3928 = vrcp.pop %v3927
  %v3929 = vmul.f32 %v3927, %v3928
  %v3930 = vsub.f32 1.0, %v3929
  %v3931 = vmul.f32 %v3928, %v3930
  %v3932 = vadd.f32 %v3928, %v3931
  %vm3933 = vweird.f32 %v3927
  %vm3934 = vweird.f32 %v3928
  %vm3935 = vmor %vm3933, %vm3934
  %v3936 = vsel %vm3935, %v3928, %v3932
  %v3937 = vand.u32 2147483647, %v3927
  %vm3938 = vcmp.eq.f32.partialorder %v3937, 8.507059e+37
  %v3939 = vand.u32 %v3927, 2147483648
  %v3940 = vor.u32 1.1754944e-38, %v3939
  %v3941 = vsel %vm3938, %v3940, %v3936
  %v3942 = vmul.f32 %v3917, %v3941
  %v3943 = vmin.f32 %v3942, 1.0
  %v3944 = vmax.f32 %v3943, -1.0
  %v3945 = vmul.f32 %v3539, %v3539
  %v3946 = vmin.f32 16.0, %v3945
  %v3947 = vmul.f32 %v3946, 2.1237322e-06
  %v3948 = vadd.f32 %v3947, 0.00028619796
  %v3949 = vmul.f32 %v3946, %v3948
  %v3950 = vadd.f32 %v3949, 0.0036580483
  %v3951 = vmul.f32 %v3946, %v3950
  %v3952 = vadd.f32 %v3951, 0.05243302
  %v3953 = vmul.f32 %v3946, %v3952
  %v3954 = vadd.f32 %v3953, 0.18741608
  %v3955 = vmul.f32 %v3946, %v3954
  %v3956 = vadd.f32 %v3955, 1.1283791
  %v3957 = vmul.f32 %v3539, %v3956
  %v3958 = vmul.f32 %v3946, 3.8918573e-05
  %v3959 = vadd.f32 %v3958, 0.001143296
  %v3960 = vmul.f32 %v3946, %v3959
  %v3961 = vadd.f32 %v3960, 0.014752088
  %v3962 = vmul.f32 %v3946, %v3961
  %v3963 = vadd.f32 %v3962, 0.112945676
  %v3964 = vmul.f32 %v3946, %v3963
  %v3965 = vadd.f32 %v3964, 0.4994258
  %v3966 = vmul.f32 %v3946, %v3965
  %v3967 = vadd.f32 %v3966, 1.0
  %v3968 = vrcp.pop %v3967
  %v3969 = vmul.f32 %v3967, %v3968
  %v3970 = vsub.f32 1.0, %v3969
  %v3971 = vmul.f32 %v3968, %v3970
  %v3972 = vadd.f32 %v3968, %v3971
  %vm3973 = vweird.f32 %v3967
  %vm3974 = vweird.f32 %v3968
  %vm3975 = vmor %vm3973, %vm3974
  %v3976 = vsel %vm3975, %v3968, %v3972
  %v3977 = vand.u32 2147483647, %v3967
  %vm3978 = vcmp.eq.f32.partialorder %v3977, 8.507059e+37
  %v3979 = vand.u32 %v3967, 2147483648
  %v3980 = vor.u32 1.1754944e-38, %v3979
  %v3981 = vsel %vm3978, %v3980, %v3976
  %v3982 = vmul.f32 %v3957, %v3981
  %v3983 = vmin.f32 %v3982, 1.0
  %v3984 = vmax.f32 %v3983, -1.0
  %v3985 = vmul.f32 %v3540, %v3540
  %v3986 = vmin.f32 16.0, %v3985
  %v3987 = vmul.f32 %v3986, 2.1237322e-06
  %v3988 = vadd.f32 %v3987, 0.00028619796
  %v3989 = vmul.f32 %v3986, %v3988
  %v3990 = vadd.f32 %v3989, 0.0036580483
  %v3991 = vmul.f32 %v3986, %v3990
  %v3992 = vadd.f32 %v3991, 0.05243302
  %v3993 = vmul.f32 %v3986, %v3992
  %v3994 = vadd.f32 %v3993, 0.18741608
  %v3995 = vmul.f32 %v3986, %v3994
  %v3996 = vadd.f32 %v3995, 1.1283791
  %v3997 = vmul.f32 %v3540, %v3996
  %v3998 = vmul.f32 %v3986, 3.8918573e-05
  %v3999 = vadd.f32 %v3998, 0.001143296
  %v4000 = vmul.f32 %v3986, %v3999
  %v4001 = vadd.f32 %v4000, 0.014752088
  %v4002 = vmul.f32 %v3986, %v4001
  %v4003 = vadd.f32 %v4002, 0.112945676
  %v4004 = vmul.f32 %v3986, %v4003
  %v4005 = vadd.f32 %v4004, 0.4994258
  %v4006 = vmul.f32 %v3986, %v4005
  %v4007 = vadd.f32 %v4006, 1.0
  %v4008 = vrcp.pop %v4007
  %v4009 = vmul.f32 %v4007, %v4008
  %v4010 = vsub.f32 1.0, %v4009
  %v4011 = vmul.f32 %v4008, %v4010
  %v4012 = vadd.f32 %v4008, %v4011
  %vm4013 = vweird.f32 %v4007
  %vm4014 = vweird.f32 %v4008
  %vm4015 = vmor %vm4013, %vm4014
  %v4016 = vsel %vm4015, %v4008, %v4012
  %v4017 = vand.u32 2147483647, %v4007
  %vm4018 = vcmp.eq.f32.partialorder %v4017, 8.507059e+37
  %v4019 = vand.u32 %v4007, 2147483648
  %v4020 = vor.u32 1.1754944e-38, %v4019
  %v4021 = vsel %vm4018, %v4020, %v4016
  %v4022 = vmul.f32 %v3997, %v4021
  %v4023 = vmin.f32 %v4022, 1.0
  %v4024 = vmax.f32 %v4023, -1.0
  %v4025 = vmul.f32 %v3541, %v3541
  %v4026 = vmin.f32 16.0, %v4025
  %v4027 = vmul.f32 %v4026, 2.1237322e-06
  %v4028 = vadd.f32 %v4027, 0.00028619796
  %v4029 = vmul.f32 %v4026, %v4028
  %v4030 = vadd.f32 %v4029, 0.0036580483
  %v4031 = vmul.f32 %v4026, %v4030
  %v4032 = vadd.f32 %v4031, 0.05243302
  %v4033 = vmul.f32 %v4026, %v4032
  %v4034 = vadd.f32 %v4033, 0.18741608
  %v4035 = vmul.f32 %v4026, %v4034
  %v4036 = vadd.f32 %v4035, 1.1283791
  %v4037 = vmul.f32 %v3541, %v4036
  %v4038 = vmul.f32 %v4026, 3.8918573e-05
  %v4039 = vadd.f32 %v4038, 0.001143296
  %v4040 = vmul.f32 %v4026, %v4039
  %v4041 = vadd.f32 %v4040, 0.014752088
  %v4042 = vmul.f32 %v4026, %v4041
  %v4043 = vadd.f32 %v4042, 0.112945676
  %v4044 = vmul.f32 %v4026, %v4043
  %v4045 = vadd.f32 %v4044, 0.4994258
  %v4046 = vmul.f32 %v4026, %v4045
  %v4047 = vadd.f32 %v4046, 1.0
  %v4048 = vrcp.pop %v4047
  %v4049 = vmul.f32 %v4047, %v4048
  %v4050 = vsub.f32 1.0, %v4049
  %v4051 = vmul.f32 %v4048, %v4050
  %v4052 = vadd.f32 %v4048, %v4051
  %vm4053 = vweird.f32 %v4047
  %vm4054 = vweird.f32 %v4048
  %vm4055 = vmor %vm4053, %vm4054
  %v4056 = vsel %vm4055, %v4048, %v4052
  %v4057 = vand.u32 2147483647, %v4047
  %vm4058 = vcmp.eq.f32.partialorder %v4057, 8.507059e+37
  %v4059 = vand.u32 %v4047, 2147483648
  %v4060 = vor.u32 1.1754944e-38, %v4059
  %v4061 = vsel %vm4058, %v4060, %v4056
  %v4062 = vmul.f32 %v4037, %v4061
  %v4063 = vmin.f32 %v4062, 1.0
  %v4064 = vmax.f32 %v4063, -1.0
  %v4065 = vmul.f32 %v3542, %v3542
  %v4066 = vmin.f32 16.0, %v4065
  %v4067 = vmul.f32 %v4066, 2.1237322e-06
  %v4068 = vadd.f32 %v4067, 0.00028619796
  %v4069 = vmul.f32 %v4066, %v4068
  %v4070 = vadd.f32 %v4069, 0.0036580483
  %v4071 = vmul.f32 %v4066, %v4070
  %v4072 = vadd.f32 %v4071, 0.05243302
  %v4073 = vmul.f32 %v4066, %v4072
  %v4074 = vadd.f32 %v4073, 0.18741608
  %v4075 = vmul.f32 %v4066, %v4074
  %v4076 = vadd.f32 %v4075, 1.1283791
  %v4077 = vmul.f32 %v3542, %v4076
  %v4078 = vmul.f32 %v4066, 3.8918573e-05
  %v4079 = vadd.f32 %v4078, 0.001143296
  %v4080 = vmul.f32 %v4066, %v4079
  %v4081 = vadd.f32 %v4080, 0.014752088
  %v4082 = vmul.f32 %v4066, %v4081
  %v4083 = vadd.f32 %v4082, 0.112945676
  %v4084 = vmul.f32 %v4066, %v4083
  %v4085 = vadd.f32 %v4084, 0.4994258
  %v4086 = vmul.f32 %v4066, %v4085
  %v4087 = vadd.f32 %v4086, 1.0
  %v4088 = vrcp.pop %v4087
  %v4089 = vmul.f32 %v4087, %v4088
  %v4090 = vsub.f32 1.0, %v4089
  %v4091 = vmul.f32 %v4088, %v4090
  %v4092 = vadd.f32 %v4088, %v4091
  %vm4093 = vweird.f32 %v4087
  %vm4094 = vweird.f32 %v4088
  %vm4095 = vmor %vm4093, %vm4094
  %v4096 = vsel %vm4095, %v4088, %v4092
  %v4097 = vand.u32 2147483647, %v4087
  %vm4098 = vcmp.eq.f32.partialorder %v4097, 8.507059e+37
  %v4099 = vand.u32 %v4087, 2147483648
  %v4100 = vor.u32 1.1754944e-38, %v4099
  %v4101 = vsel %vm4098, %v4100, %v4096
  %v4102 = vmul.f32 %v4077, %v4101
  %v4103 = vmin.f32 %v4102, 1.0
  %v4104 = vmax.f32 %v4103, -1.0
  %v4105 = vmul.f32 %v3543, %v3543
  %v4106 = vmin.f32 16.0, %v4105
  %v4107 = vmul.f32 %v4106, 2.1237322e-06
  %v4108 = vadd.f32 %v4107, 0.00028619796
  %v4109 = vmul.f32 %v4106, %v4108
  %v4110 = vadd.f32 %v4109, 0.0036580483
  %v4111 = vmul.f32 %v4106, %v4110
  %v4112 = vadd.f32 %v4111, 0.05243302
  %v4113 = vmul.f32 %v4106, %v4112
  %v4114 = vadd.f32 %v4113, 0.18741608
  %v4115 = vmul.f32 %v4106, %v4114
  %v4116 = vadd.f32 %v4115, 1.1283791
  %v4117 = vmul.f32 %v3543, %v4116
  %v4118 = vmul.f32 %v4106, 3.8918573e-05
  %v4119 = vadd.f32 %v4118, 0.001143296
  %v4120 = vmul.f32 %v4106, %v4119
  %v4121 = vadd.f32 %v4120, 0.014752088
  %v4122 = vmul.f32 %v4106, %v4121
  %v4123 = vadd.f32 %v4122, 0.112945676
  %v4124 = vmul.f32 %v4106, %v4123
  %v4125 = vadd.f32 %v4124, 0.4994258
  %v4126 = vmul.f32 %v4106, %v4125
  %v4127 = vadd.f32 %v4126, 1.0
  %v4128 = vrcp.pop %v4127
  %v4129 = vmul.f32 %v4127, %v4128
  %v4130 = vsub.f32 1.0, %v4129
  %v4131 = vmul.f32 %v4128, %v4130
  %v4132 = vadd.f32 %v4128, %v4131
  %vm4133 = vweird.f32 %v4127
  %vm4134 = vweird.f32 %v4128
  %vm4135 = vmor %vm4133, %vm4134
  %v4136 = vsel %vm4135, %v4128, %v4132
  %v4137 = vand.u32 2147483647, %v4127
  %vm4138 = vcmp.eq.f32.partialorder %v4137, 8.507059e+37
  %v4139 = vand.u32 %v4127, 2147483648
  %v4140 = vor.u32 1.1754944e-38, %v4139
  %v4141 = vsel %vm4138, %v4140, %v4136
  %v4142 = vmul.f32 %v4117, %v4141
  %v4143 = vmin.f32 %v4142, 1.0
  %v4144 = vmax.f32 %v4143, -1.0
  %v4145 = vmul.f32 %v3544, %v3544
  %v4146 = vmin.f32 16.0, %v4145
  %v4147 = vmul.f32 %v4146, 2.1237322e-06
  %v4148 = vadd.f32 %v4147, 0.00028619796
  %v4149 = vmul.f32 %v4146, %v4148
  %v4150 = vadd.f32 %v4149, 0.0036580483
  %v4151 = vmul.f32 %v4146, %v4150
  %v4152 = vadd.f32 %v4151, 0.05243302
  %v4153 = vmul.f32 %v4146, %v4152
  %v4154 = vadd.f32 %v4153, 0.18741608
  %v4155 = vmul.f32 %v4146, %v4154
  %v4156 = vadd.f32 %v4155, 1.1283791
  %v4157 = vmul.f32 %v3544, %v4156
  %v4158 = vmul.f32 %v4146, 3.8918573e-05
  %v4159 = vadd.f32 %v4158, 0.001143296
  %v4160 = vmul.f32 %v4146, %v4159
  %v4161 = vadd.f32 %v4160, 0.014752088
  %v4162 = vmul.f32 %v4146, %v4161
  %v4163 = vadd.f32 %v4162, 0.112945676
  %v4164 = vmul.f32 %v4146, %v4163
  %v4165 = vadd.f32 %v4164, 0.4994258
  %v4166 = vmul.f32 %v4146, %v4165
  %v4167 = vadd.f32 %v4166, 1.0
  %v4168 = vrcp.pop %v4167
  %v4169 = vmul.f32 %v4167, %v4168
  %v4170 = vsub.f32 1.0, %v4169
  %v4171 = vmul.f32 %v4168, %v4170
  %v4172 = vadd.f32 %v4168, %v4171
  %vm4173 = vweird.f32 %v4167
  %vm4174 = vweird.f32 %v4168
  %vm4175 = vmor %vm4173, %vm4174
  %v4176 = vsel %vm4175, %v4168, %v4172
  %v4177 = vand.u32 2147483647, %v4167
  %vm4178 = vcmp.eq.f32.partialorder %v4177, 8.507059e+37
  %v4179 = vand.u32 %v4167, 2147483648
  %v4180 = vor.u32 1.1754944e-38, %v4179
  %v4181 = vsel %vm4178, %v4180, %v4176
  %v4182 = vmul.f32 %v4157, %v4181
  %v4183 = vmin.f32 %v4182, 1.0
  %v4184 = vmax.f32 %v4183, -1.0
  %v4185 = vadd.f32 %v3584, 1.0
  %v4186 = vadd.f32 %v3624, 1.0
  %v4187 = vadd.f32 %v3664, 1.0
  %v4188 = vadd.f32 %v3704, 1.0
  %v4189 = vadd.f32 %v3744, 1.0
  %v4190 = vadd.f32 %v3784, 1.0
  %v4191 = vadd.f32 %v3824, 1.0
  %v4192 = vadd.f32 %v3864, 1.0
  %v4193 = vadd.f32 %v3904, 1.0
  %v4194 = vadd.f32 %v3944, 1.0
  %v4195 = vadd.f32 %v3984, 1.0
  %v4196 = vadd.f32 %v4024, 1.0
  %v4197 = vadd.f32 %v4064, 1.0
  %v4198 = vadd.f32 %v4104, 1.0
  %v4199 = vadd.f32 %v4144, 1.0
  %v4200 = vadd.f32 %v4184, 1.0
  %v4201 = vmul.f32 %v3513, %v4185
  %v4202 = vmul.f32 %v3514, %v4186
  %v4203 = vmul.f32 %v3515, %v4187
  %v4204 = vmul.f32 %v3516, %v4188
  %v4205 = vmul.f32 %v3517, %v4189
  %v4206 = vmul.f32 %v3518, %v4190
  %v4207 = vmul.f32 %v3519, %v4191
  %v4208 = vmul.f32 %v3520, %v4192
  %v4209 = vmul.f32 %v3521, %v4193
  %v4210 = vmul.f32 %v3522, %v4194
  %v4211 = vmul.f32 %v3523, %v4195
  %v4212 = vmul.f32 %v3524, %v4196
  %v4213 = vmul.f32 %v3525, %v4197
  %v4214 = vmul.f32 %v3526, %v4198
  %v4215 = vmul.f32 %v3527, %v4199
  %v4216 = vmul.f32 %v3528, %v4200
  %v4217 = vadd.f32 %v30, %v4201
  %v4218 = vadd.f32 %v31, %v4202
  %v4219 = vadd.f32 %v32, %v4203
  %v4220 = vadd.f32 %v33, %v4204
  %v4221 = vadd.f32 %v34, %v4205
  %v4222 = vadd.f32 %v35, %v4206
  %v4223 = vadd.f32 %v36, %v4207
  %v4224 = vadd.f32 %v37, %v4208
  %v4225 = vadd.f32 %v38, %v4209
  %v4226 = vadd.f32 %v39, %v4210
  %v4227 = vadd.f32 %v40, %v4211
  %v4228 = vadd.f32 %v41, %v4212
  %v4229 = vadd.f32 %v42, %v4213
  %v4230 = vadd.f32 %v43, %v4214
  %v4231 = vadd.f32 %v44, %v4215
  %v4232 = vadd.f32 %v45, %v4216
  %4233 = vst.msk [vmem:[%s8] sm:$0xff] %vm46, %v4217
  %4234 = vst.msk [vmem:[%s8 + $0x8] sm:$0xff] %vm46, %v4218
  %4235 = vst.msk [vmem:[%s8 + $0x10] sm:$0xff] %vm46, %v4219
  %4236 = vst.msk [vmem:[%s8 + $0x18] sm:$0xff] %vm46, %v4220
  %4237 = vst.msk [vmem:[%s8 + $0x20] sm:$0xff] %vm46, %v4221
  %4238 = vst.msk [vmem:[%s8 + $0x28] sm:$0xff] %vm46, %v4222
  %4239 = vst.msk [vmem:[%s8 + $0x30] sm:$0xff] %vm46, %v4223
  %4240 = vst.msk [vmem:[%s8 + $0x38] sm:$0xff] %vm46, %v4224
  %4241 = vst.msk [vmem:[%s8 + $0x40] sm:$0xff] %vm46, %v4225
  %4242 = vst.msk [vmem:[%s8 + $0x48] sm:$0xff] %vm46, %v4226
  %4243 = vst.msk [vmem:[%s8 + $0x50] sm:$0xff] %vm46, %v4227
  %4244 = vst.msk [vmem:[%s8 + $0x58] sm:$0xff] %vm46, %v4228
  %4245 = vst.msk [vmem:[%s8 + $0x60] sm:$0xff] %vm46, %v4229
  %4246 = vst.msk [vmem:[%s8 + $0x68] sm:$0xff] %vm46, %v4230
  %4247 = vst.msk [vmem:[%s8 + $0x70] sm:$0xff] %vm46, %v4231
  %4248 = vst.msk [vmem:[%s8 + $0x78] sm:$0xff] %vm46, %v4232
  // Predicated region
  $region34: #{_basic_layer_impl.2} parent=0 // pred_check
    _
  $region35: #{_basic_layer_impl.2} parent=0 // pred_check_branch
    %4250 = sbr.rel (0) target = $region37
  $region36: #{_basic_layer_impl.2} parent=0 // pred_region
    _
  $region37: #{_basic_layer_impl.2} parent=0 // pred_fallthru
    _
  // Predicated region
  $region38: #{_basic_layer_impl.2} parent=0 // pred_check
    _
  $region39: #{_basic_layer_impl.2} parent=0 // pred_check_branch
    %4252 = sbr.rel (0) target = $region41
  $region40: #{_basic_layer_impl.2} parent=0 // pred_region
    _
  $region41: #{_basic_layer_impl.2} parent=0 // pred_fallthru
    _

</llo_original>
